<compile_context>
chip_gen: v7x
topology: tpu7x:2x2x1
jax: 0.10.0
libtpu: 0.0.40
codegen_flags: <defaults>
</compile_context>

<pallas_src>
import functools
import math

import jax
import jax.numpy as jnp
from jax import lax
from jax.experimental import pallas as pl
from jax.experimental.pallas import tpu as pltpu


def _round_up(x, m):
    return ((x + m - 1) // m) * m


# ----------------------------------------------------------------------------
# Fully fused forward kernel
# ----------------------------------------------------------------------------

def _saint_kernel(xe_ref, xd_ref, em_ref, ev_ref, dm_ref, dv_ref, o_ref, *,
                  B, S, D, heads_en, heads_de, num_en, num_de):
    N = B * S
    f32 = jnp.float32
    rows_ev = _round_up(S + 10, 8)
    rows_dv = _round_up(S + 16, 8)

    # Causal (triu, k=1) additive mask, built ONCE and shared by every MHA
    # (encoder self, decoder self, decoder cross) in the whole forward.
    r_i = lax.broadcasted_iota(jnp.int32, (S, S), 0)
    c_i = lax.broadcasted_iota(jnp.int32, (S, S), 1)
    mask_add = jnp.where(c_i > r_i, f32(-1e30), f32(0.0))

    def layernorm(x, g, b):
        mu = jnp.mean(x, axis=-1, keepdims=True)
        xc = x - mu
        var = jnp.mean(xc * xc, axis=-1, keepdims=True)
        return xc * lax.rsqrt(var + 1e-5) * g + b

    def add_pos(x, pos):
        # x: (N, D), pos: (S, D) shared across the batch.
        return x + jnp.broadcast_to(pos[None], (B, S, D)).reshape(N, D)

    def attn_core(q, k, v, heads):
        # q, k, v: (N, D); heads laid out contiguously along the lane dim.
        hd = D // heads
        scale = f32(1.0 / math.sqrt(hd))
        ctx = []
        for h in range(heads):          # static unroll; scores are per-head
            lo = h * hd
            qs = q[:, lo:lo + hd].reshape(B, S, hd)
            ks = k[:, lo:lo + hd].reshape(B, S, hd)
            vs = v[:, lo:lo + hd].reshape(B, S, hd)
            s = lax.dot_general(qs, ks, (((2,), (2,)), ((0,), (0,))),
                                preferred_element_type=f32)
            s = s * scale + mask_add[None]
            m = jnp.max(s, axis=-1, keepdims=True)
            e = jnp.exp(s - m)
            p = e * pl.reciprocal(jnp.sum(e, axis=-1, keepdims=True),
                                  approx=True)
            ctx.append(lax.dot_general(p, vs, (((2,), (1,)), ((0,), (0,))),
                                       preferred_element_type=f32))
        return jnp.concatenate(ctx, axis=-1).reshape(N, D)

    def ffn(x, w1, b1, w2, b2):
        h = jnp.maximum(jnp.dot(x, w1, preferred_element_type=f32) + b1, 0.0)
        return jnp.dot(h, w2, preferred_element_type=f32) + b2

    # --------------------------- encoder stack ---------------------------
    x = xe_ref[...]
    for i in range(num_en):
        mb = i * 4 * D
        vb = i * rows_ev
        pos = ev_ref[vb:vb + S, :]
        g1 = ev_ref[vb + S + 0:vb + S + 1, :]
        c1 = ev_ref[vb + S + 1:vb + S + 2, :]
        g2 = ev_ref[vb + S + 2:vb + S + 3, :]
        c2 = ev_ref[vb + S + 3:vb + S + 4, :]
        bq = ev_ref[vb + S + 4:vb + S + 5, :]
        bk = ev_ref[vb + S + 5:vb + S + 6, :]
        bv = ev_ref[vb + S + 6:vb + S + 7, :]
        bo = ev_ref[vb + S + 7:vb + S + 8, :]
        fb1 = ev_ref[vb + S + 8:vb + S + 9, :]
        fb2 = ev_ref[vb + S + 9:vb + S + 10, :]
        wqkv = em_ref[mb:mb + D, :]
        wo = em_ref[mb + D:mb + 2 * D, 0:D]
        fw1 = em_ref[mb + 2 * D:mb + 3 * D, 0:D]
        fw2 = em_ref[mb + 3 * D:mb + 4 * D, 0:D]

        x = add_pos(x, pos)
        n1 = layernorm(x, g1, c1)
        qkv = jnp.dot(n1, wqkv, preferred_element_type=f32)        # (N, 3D)
        q = qkv[:, 0:D] + bq
        k = qkv[:, D:2 * D] + bk
        v = qkv[:, 2 * D:3 * D] + bv
        attn = jnp.dot(attn_core(q, k, v, heads_en), wo,
                       preferred_element_type=f32) + bo
        m1 = n1 + attn
        n2 = layernorm(m1, g2, c2)
        x = n2 + ffn(n2, fw1, fb1, fw2, fb2)
    en_out = x

    # --------------------------- decoder stack ---------------------------
    y = xd_ref[...]
    for i in range(num_de):
        mb = i * 7 * D
        vb = i * rows_dv
        pos = dv_ref[vb:vb + S, :]
        g1 = dv_ref[vb + S + 0:vb + S + 1, :]
        c1 = dv_ref[vb + S + 1:vb + S + 2, :]
        g2 = dv_ref[vb + S + 2:vb + S + 3, :]
        c2 = dv_ref[vb + S + 3:vb + S + 4, :]
        g3 = dv_ref[vb + S + 4:vb + S + 5, :]
        c3 = dv_ref[vb + S + 5:vb + S + 6, :]
        bq1 = dv_ref[vb + S + 6:vb + S + 7, :]
        bk1 = dv_ref[vb + S + 7:vb + S + 8, :]
        bv1 = dv_ref[vb + S + 8:vb + S + 9, :]
        bo1 = dv_ref[vb + S + 9:vb + S + 10, :]
        bq2 = dv_ref[vb + S + 10:vb + S + 11, :]
        bk2 = dv_ref[vb + S + 11:vb + S + 12, :]
        bv2 = dv_ref[vb + S + 12:vb + S + 13, :]
        bo2 = dv_ref[vb + S + 13:vb + S + 14, :]
        fb1 = dv_ref[vb + S + 14:vb + S + 15, :]
        fb2 = dv_ref[vb + S + 15:vb + S + 16, :]

        wqkv1 = dm_ref[mb:mb + D, :]
        wo1 = dm_ref[mb + D:mb + 2 * D, 0:D]
        wq2 = dm_ref[mb + 2 * D:mb + 3 * D, 0:D]
        wkv2 = dm_ref[mb + 3 * D:mb + 4 * D, 0:2 * D]
        wo2 = dm_ref[mb + 4 * D:mb + 5 * D, 0:D]
        fw1 = dm_ref[mb + 5 * D:mb + 6 * D, 0:D]
        fw2 = dm_ref[mb + 6 * D:mb + 7 * D, 0:D]

        y = add_pos(y, pos)
        # Causal self-attention
        n1 = layernorm(y, g1, c1)
        qkv = jnp.dot(n1, wqkv1, preferred_element_type=f32)       # (N, 3D)
        q = qkv[:, 0:D] + bq1
        k = qkv[:, D:2 * D] + bk1
        v = qkv[:, 2 * D:3 * D] + bv1
        attn1 = jnp.dot(attn_core(q, k, v, heads_de), wo1,
                        preferred_element_type=f32) + bo1
        m1 = n1 + attn1
        # Causal cross-attention against (per-layer LayerNorm of) en_out
        en_n = layernorm(en_out, g2, c2)
        q2 = jnp.dot(m1, wq2, preferred_element_type=f32) + bq2
        kv = jnp.dot(en_n, wkv2, preferred_element_type=f32)       # (N, 2D)
        k2 = kv[:, 0:D] + bk2
        v2 = kv[:, D:2 * D] + bv2
        attn2 = jnp.dot(attn_core(q2, k2, v2, heads_de), wo2,
                        preferred_element_type=f32) + bo2
        m2 = m1 + attn2
        # FFN
        n3 = layernorm(m2, g3, c3)
        y = n3 + ffn(n3, fw1, fb1, fw2, fb2)

    # Final Linear(D -> 1) fused as a VPU multiply + lane reduce.
    ob_row = num_de * rows_dv
    out_w = dv_ref[ob_row:ob_row + 1, :]            # (1, D)
    out_b = dv_ref[ob_row + 1:ob_row + 2, 0:1]      # (1, 1)
    o_ref[...] = jnp.sum(y * out_w, axis=-1, keepdims=True) + out_b


# ----------------------------------------------------------------------------
# pallas_call wrapper (no grid: whole forward, whole batch, all in VMEM)
# ----------------------------------------------------------------------------

def _vmem_spec():
    return pl.BlockSpec(memory_space=pltpu.MemorySpace.VMEM)


def saint_forward(params, in_ex, in_cat, in_in, *, num_en, num_de,
                  heads_en, heads_de):
    B, S = in_ex.shape
    D = params['embd_ex'].shape[1]
    # Embedding gathers stay in plain JAX (XLA gather); activations enter the
    # kernel already flattened to 2D (B*S, D).
    x_enc = (params['embd_ex'][in_ex] + params['embd_cat'][in_cat]).reshape(B * S, D)
    x_dec = params['embd_in'][in_in].reshape(B * S, D)

    kern = functools.partial(_saint_kernel, B=B, S=S, D=D,
                             heads_en=heads_en, heads_de=heads_de,
                             num_en=num_en, num_de=num_de)
    args = (x_enc, x_dec, params['enc_mats'], params['enc_vecs'],
            params['dec_mats'], params['dec_vecs'])
    out = pl.pallas_call(
        kern,
        out_shape=jax.ShapeDtypeStruct((B * S, 1), jnp.float32),
        in_specs=[_vmem_spec() for _ in args],
        out_specs=_vmem_spec(),
    )(*args)
    return out.reshape(B, S, 1)


# ----------------------------------------------------------------------------
# One-time parameter packing (hoisted transposes + contiguous slabs)
# ----------------------------------------------------------------------------

def prepare_params(raw, seq_len):
    D = int(raw['encoder'][0]['ln1_g'].shape[0])
    S = seq_len
    W = 3 * D
    rows_ev = _round_up(S + 10, 8)
    rows_dv = _round_up(S + 16, 8)

    def pad_cols(a, width=W):
        a = jnp.asarray(a, jnp.float32)
        if a.shape[1] == width:
            return a
        return jnp.pad(a, ((0, 0), (0, width - a.shape[1])))

    def pad_rows(a, rows):
        if a.shape[0] == rows:
            return a
        return jnp.pad(a, ((0, rows - a.shape[0]), (0, 0)))

    def enc_mats(p):
        a, f = p['attn'], p['ffn']
        return jnp.concatenate([
            a['in_proj_w'].T,                    # Wqkv (D, 3D), x @ W layout
            pad_cols(a['out_proj_w'].T),         # Wo   (D, D)
            pad_cols(f['w1'].T),                 # W1   (D, D)
            pad_cols(f['w2'].T),                 # W2   (D, D)
        ], axis=0)

    def enc_vecs(p):
        a, f = p['attn'], p['ffn']
        b = a['in_proj_b']
        v = jnp.concatenate([
            p['embd_pos'],                                    # (S, D)
            p['ln1_g'][None], p['ln1_b'][None],
            p['ln2_g'][None], p['ln2_b'][None],
            b[0:D][None], b[D:2 * D][None], b[2 * D:3 * D][None],
            a['out_proj_b'][None],
            f['b1'][None], f['b2'][None],
        ], axis=0)
        return pad_rows(v, rows_ev)

    def dec_mats(p):
        a1, a2, f = p['attn1'], p['attn2'], p['ffn']
        return jnp.concatenate([
            a1['in_proj_w'].T,                        # Wqkv1 (D, 3D)
            pad_cols(a1['out_proj_w'].T),             # Wo1   (D, D)
            pad_cols(a2['in_proj_w'][0:D].T),         # Wq2   (D, D)
            pad_cols(a2['in_proj_w'][D:3 * D].T),     # Wkv2  (D, 2D)
            pad_cols(a2['out_proj_w'].T),             # Wo2   (D, D)
            pad_cols(f['w1'].T),                      # W1    (D, D)
            pad_cols(f['w2'].T),                      # W2    (D, D)
        ], axis=0)

    def dec_vecs(p):
        a1, a2, f = p['attn1'], p['attn2'], p['ffn']
        b1, b2 = a1['in_proj_b'], a2['in_proj_b']
        v = jnp.concatenate([
            p['embd_pos'],                                    # (S, D)
            p['ln1_g'][None], p['ln1_b'][None],
            p['ln2_g'][None], p['ln2_b'][None],
            p['ln3_g'][None], p['ln3_b'][None],
            b1[0:D][None], b1[D:2 * D][None], b1[2 * D:3 * D][None],
            a1['out_proj_b'][None],
            b2[0:D][None], b2[D:2 * D][None], b2[2 * D:3 * D][None],
            a2['out_proj_b'][None],
            f['b1'][None], f['b2'][None],
        ], axis=0)
        return pad_rows(v, rows_dv)

    enc_mats_all = jnp.concatenate([enc_mats(p) for p in raw['encoder']], axis=0)
    enc_vecs_all = jnp.concatenate([enc_vecs(p) for p in raw['encoder']], axis=0)
    dec_mats_all = jnp.concatenate([dec_mats(p) for p in raw['decoder']], axis=0)

    out_w = jnp.asarray(raw['out_w'], jnp.float32).reshape(1, D)
    out_b = jnp.zeros((1, D), jnp.float32).at[0, 0].set(
        jnp.asarray(raw['out_b'], jnp.float32).reshape(-1)[0])
    dec_vecs_all = jnp.concatenate(
        [dec_vecs(p) for p in raw['decoder']] + [out_w, out_b], axis=0)
    dec_vecs_all = pad_rows(dec_vecs_all, _round_up(dec_vecs_all.shape[0], 8))

    return {
        'embd_ex': raw['encoder'][0]['embd_ex'],
        'embd_cat': raw['encoder'][0]['embd_cat'],
        'embd_in': raw['decoder'][0]['embd_in'],
        'enc_mats': enc_mats_all,
        'enc_vecs': enc_vecs_all,
        'dec_mats': dec_mats_all,
        'dec_vecs': dec_vecs_all,
    }


# ----------------------------------------------------------------------------
# Deterministic parameter init (synthetic; mirrors PyTorch shapes)
# ----------------------------------------------------------------------------

def _init_attn(key, D):
    k = jax.random.split(key, 4)
    return {
        'in_proj_w': 0.05 * jax.random.normal(k[0], (3 * D, D), jnp.float32),
        'in_proj_b': 0.01 * jax.random.normal(k[1], (3 * D,), jnp.float32),
        'out_proj_w': 0.05 * jax.random.normal(k[2], (D, D), jnp.float32),
        'out_proj_b': 0.01 * jax.random.normal(k[3], (D,), jnp.float32),
    }


def _init_ffn(key, D):
    k = jax.random.split(key, 4)
    return {
        'w1': 0.05 * jax.random.normal(k[0], (D, D), jnp.float32),
        'b1': 0.01 * jax.random.normal(k[1], (D,), jnp.float32),
        'w2': 0.05 * jax.random.normal(k[2], (D, D), jnp.float32),
        'b2': 0.01 * jax.random.normal(k[3], (D,), jnp.float32),
    }


def init_saint_params(key, D, seq_len, total_ex, total_cat, total_in,
                      num_en, num_de):
    keys = jax.random.split(key, 16)
    enc = {
        'embd_ex': 0.1 * jax.random.normal(keys[0], (total_ex, D), jnp.float32),
        'embd_cat': 0.1 * jax.random.normal(keys[1], (total_cat, D), jnp.float32),
        'embd_pos': 0.1 * jax.random.normal(keys[2], (seq_len, D), jnp.float32),
        'attn': _init_attn(keys[3], D),
        'ffn': _init_ffn(keys[4], D),
        'ln1_g': jnp.ones((D,), jnp.float32), 'ln1_b': jnp.zeros((D,), jnp.float32),
        'ln2_g': jnp.ones((D,), jnp.float32), 'ln2_b': jnp.zeros((D,), jnp.float32),
    }
    dec = {
        'embd_in': 0.1 * jax.random.normal(keys[5], (total_in, D), jnp.float32),
        'embd_pos': 0.1 * jax.random.normal(keys[6], (seq_len, D), jnp.float32),
        'attn1': _init_attn(keys[7], D),
        'attn2': _init_attn(keys[8], D),
        'ffn': _init_ffn(keys[9], D),
        'ln1_g': jnp.ones((D,), jnp.float32), 'ln1_b': jnp.zeros((D,), jnp.float32),
        'ln2_g': jnp.ones((D,), jnp.float32), 'ln2_b': jnp.zeros((D,), jnp.float32),
        'ln3_g': jnp.ones((D,), jnp.float32), 'ln3_b': jnp.zeros((D,), jnp.float32),
    }
    # get_clones deep-copies the same module, so all blocks start identical.
    return {
        'encoder': [enc for _ in range(num_en)],
        'decoder': [dec for _ in range(num_de)],
        'out_w': 0.05 * jax.random.normal(keys[10], (1, D), jnp.float32),
        'out_b': 0.01 * jax.random.normal(keys[11], (1,), jnp.float32),
    }


# ----------------------------------------------------------------------------
# Main
# ----------------------------------------------------------------------------

if __name__ == "__main__":
    B, S, D = 2, 8, 32
    num_en, num_de = 2, 2
    heads_en = heads_de = 4
    total_ex, total_cat, total_in = 50, 10, 3

    raw_params = init_saint_params(jax.random.PRNGKey(0), D, S,
                                   total_ex, total_cat, total_in, num_en, num_de)
    params = prepare_params(raw_params, seq_len=S)

    k1, k2, k3 = jax.random.split(jax.random.PRNGKey(0), 3)
    in_ex = jax.random.randint(k1, (B, S), 0, total_ex, dtype=jnp.int32)
    in_cat = jax.random.randint(k2, (B, S), 0, total_cat, dtype=jnp.int32)
    in_in = jax.random.randint(k3, (B, S), 0, total_in, dtype=jnp.int32)

    fwd = jax.jit(functools.partial(saint_forward, num_en=num_en, num_de=num_de,
                                    heads_en=heads_en, heads_de=heads_de))
    out = jax.block_until_ready(fwd(params, in_ex, in_cat, in_in))
    assert out.shape == (B, S, 1), out.shape
    assert bool(jnp.all(jnp.isfinite(out)))
    print("KERNEL_OK")
</pallas_src>

<mosaic_0001>
module attributes {stable_mosaic.version = 11 : i64} {
  func.func @_saint_kernel(%arg0: memref<16x32xf32, #tpu.memory_space<vmem>>, %arg1: memref<16x32xf32, #tpu.memory_space<vmem>>, %arg2: memref<256x96xf32, #tpu.memory_space<vmem>>, %arg3: memref<48x32xf32, #tpu.memory_space<vmem>>, %arg4: memref<448x96xf32, #tpu.memory_space<vmem>>, %arg5: memref<56x32xf32, #tpu.memory_space<vmem>>, %arg6: memref<16x1xf32, #tpu.memory_space<vmem>>) attributes {dimension_semantics = [], scalar_prefetch = 0 : i64, scratch_operands = 0 : i64, tpu.core_type = #tpu.core_type<tc>} {
    %0 = tpu.iota {dimensions = array<i32: 0>} : vector<8x8xi32>
    %1 = tpu.iota {dimensions = array<i32: 1>} : vector<8x8xi32>
    %2 = arith.cmpi sgt, %1, %0 : vector<8x8xi32>
    %cst = arith.constant -1.000000e+30 : f32
    %cst_0 = arith.constant 0.000000e+00 : f32
    %3 = vector.broadcast %cst : f32 to vector<8x8xf32>
    %4 = vector.broadcast %cst_0 : f32 to vector<8x8xf32>
    %5 = arith.select %2, %3, %4 : vector<8x8xi1>, vector<8x8xf32>
    %c0 = arith.constant 0 : index
    %c0_1 = arith.constant 0 : index
    %6 = vector.load %arg0[%c0, %c0_1] : memref<16x32xf32, #tpu.memory_space<vmem>>, vector<16x32xf32>
    %c0_2 = arith.constant 0 : index
    %c0_3 = arith.constant 0 : index
    %7 = vector.load %arg3[%c0_2, %c0_3] : memref<48x32xf32, #tpu.memory_space<vmem>>, vector<8x32xf32>
    %c8 = arith.constant 8 : index
    %c0_4 = arith.constant 0 : index
    %8 = vector.load %arg3[%c8, %c0_4] : memref<48x32xf32, #tpu.memory_space<vmem>>, vector<1x32xf32>
    %c9 = arith.constant 9 : index
    %c0_5 = arith.constant 0 : index
    %9 = vector.load %arg3[%c9, %c0_5] : memref<48x32xf32, #tpu.memory_space<vmem>>, vector<1x32xf32>
    %c10 = arith.constant 10 : index
    %c0_6 = arith.constant 0 : index
    %10 = vector.load %arg3[%c10, %c0_6] : memref<48x32xf32, #tpu.memory_space<vmem>>, vector<1x32xf32>
    %c11 = arith.constant 11 : index
    %c0_7 = arith.constant 0 : index
    %11 = vector.load %arg3[%c11, %c0_7] : memref<48x32xf32, #tpu.memory_space<vmem>>, vector<1x32xf32>
    %c12 = arith.constant 12 : index
    %c0_8 = arith.constant 0 : index
    %12 = vector.load %arg3[%c12, %c0_8] : memref<48x32xf32, #tpu.memory_space<vmem>>, vector<1x32xf32>
    %c13 = arith.constant 13 : index
    %c0_9 = arith.constant 0 : index
    %13 = vector.load %arg3[%c13, %c0_9] : memref<48x32xf32, #tpu.memory_space<vmem>>, vector<1x32xf32>
    %c14 = arith.constant 14 : index
    %c0_10 = arith.constant 0 : index
    %14 = vector.load %arg3[%c14, %c0_10] : memref<48x32xf32, #tpu.memory_space<vmem>>, vector<1x32xf32>
    %c15 = arith.constant 15 : index
    %c0_11 = arith.constant 0 : index
    %15 = vector.load %arg3[%c15, %c0_11] : memref<48x32xf32, #tpu.memory_space<vmem>>, vector<1x32xf32>
    %c16 = arith.constant 16 : index
    %c0_12 = arith.constant 0 : index
    %16 = vector.load %arg3[%c16, %c0_12] : memref<48x32xf32, #tpu.memory_space<vmem>>, vector<1x32xf32>
    %c17 = arith.constant 17 : index
    %c0_13 = arith.constant 0 : index
    %17 = vector.load %arg3[%c17, %c0_13] : memref<48x32xf32, #tpu.memory_space<vmem>>, vector<1x32xf32>
    %c0_14 = arith.constant 0 : index
    %c0_15 = arith.constant 0 : index
    %18 = vector.load %arg2[%c0_14, %c0_15] : memref<256x96xf32, #tpu.memory_space<vmem>>, vector<32x96xf32>
    %c32 = arith.constant 32 : index
    %c0_16 = arith.constant 0 : index
    %19 = vector.load %arg2[%c32, %c0_16] : memref<256x96xf32, #tpu.memory_space<vmem>>, vector<32x32xf32>
    %c64 = arith.constant 64 : index
    %c0_17 = arith.constant 0 : index
    %20 = vector.load %arg2[%c64, %c0_17] : memref<256x96xf32, #tpu.memory_space<vmem>>, vector<32x32xf32>
    %c96 = arith.constant 96 : index
    %c0_18 = arith.constant 0 : index
    %21 = vector.load %arg2[%c96, %c0_18] : memref<256x96xf32, #tpu.memory_space<vmem>>, vector<32x32xf32>
    %22 = vector.shape_cast %7 : vector<8x32xf32> to vector<1x8x32xf32>
    %23 = vector.shape_cast %22 : vector<1x8x32xf32> to vector<1x8x32xf32>
    %24 = vector.broadcast %23 : vector<1x8x32xf32> to vector<2x8x32xf32>
    %25 = vector.shape_cast %24 : vector<2x8x32xf32> to vector<16x32xf32>
    %26 = arith.addf %6, %25 : vector<16x32xf32>
    %cst_19 = arith.constant dense<0.000000e+00> : vector<16xf32>
    %27 = vector.multi_reduction <add>, %26, %cst_19 [1] : vector<16x32xf32> to vector<16xf32>
    %28 = vector.shape_cast %27 : vector<16xf32> to vector<16x1xf32>
    %cst_20 = arith.constant 3.200000e+01 : f32
    %29 = vector.broadcast %cst_20 : f32 to vector<16x1xf32>
    %30 = arith.divf %28, %29 : vector<16x1xf32>
    %31 = vector.broadcast %30 : vector<16x1xf32> to vector<16x32xf32>
    %32 = arith.subf %26, %31 : vector<16x32xf32>
    %33 = arith.mulf %32, %32 : vector<16x32xf32>
    %cst_21 = arith.constant dense<0.000000e+00> : vector<16xf32>
    %34 = vector.multi_reduction <add>, %33, %cst_21 [1] : vector<16x32xf32> to vector<16xf32>
    %35 = vector.shape_cast %34 : vector<16xf32> to vector<16x1xf32>
    %cst_22 = arith.constant 3.200000e+01 : f32
    %36 = vector.broadcast %cst_22 : f32 to vector<16x1xf32>
    %37 = arith.divf %35, %36 : vector<16x1xf32>
    %cst_23 = arith.constant 9.99999974E-6 : f32
    %38 = vector.broadcast %cst_23 : f32 to vector<16x1xf32>
    %39 = arith.addf %37, %38 : vector<16x1xf32>
    %40 = math.rsqrt %39 : vector<16x1xf32>
    %41 = vector.broadcast %40 : vector<16x1xf32> to vector<16x32xf32>
    %42 = arith.mulf %32, %41 : vector<16x32xf32>
    %43 = vector.broadcast %8 : vector<1x32xf32> to vector<16x32xf32>
    %44 = arith.mulf %42, %43 : vector<16x32xf32>
    %45 = vector.broadcast %9 : vector<1x32xf32> to vector<16x32xf32>
    %46 = arith.addf %44, %45 : vector<16x32xf32>
    %cst_24 = arith.constant dense<0.000000e+00> : vector<16x96xf32>
    %47 = tpu.matmul %46, %18, %cst_24 {dimension_numbers = #tpu.dot_dimension_numbers<[1], [0], [0], [1], [0, 0, 1, 1], [], []>} : vector<16x32xf32>, vector<32x96xf32>, vector<16x96xf32> -> vector<16x96xf32>
    %48 = vector.extract_strided_slice %47 {offsets = [0, 0], sizes = [16, 32], strides = [1, 1]} : vector<16x96xf32> to vector<16x32xf32>
    %49 = vector.broadcast %12 : vector<1x32xf32> to vector<16x32xf32>
    %50 = arith.addf %48, %49 : vector<16x32xf32>
    %51 = vector.extract_strided_slice %47 {offsets = [0, 32], sizes = [16, 32], strides = [1, 1]} : vector<16x96xf32> to vector<16x32xf32>
    %52 = vector.broadcast %13 : vector<1x32xf32> to vector<16x32xf32>
    %53 = arith.addf %51, %52 : vector<16x32xf32>
    %54 = vector.extract_strided_slice %47 {offsets = [0, 64], sizes = [16, 32], strides = [1, 1]} : vector<16x96xf32> to vector<16x32xf32>
    %55 = vector.broadcast %14 : vector<1x32xf32> to vector<16x32xf32>
    %56 = arith.addf %54, %55 : vector<16x32xf32>
    %57 = vector.extract_strided_slice %50 {offsets = [0, 0], sizes = [16, 8], strides = [1, 1]} : vector<16x32xf32> to vector<16x8xf32>
    %58 = vector.shape_cast %57 : vector<16x8xf32> to vector<2x8x8xf32>
    %59 = vector.extract_strided_slice %53 {offsets = [0, 0], sizes = [16, 8], strides = [1, 1]} : vector<16x32xf32> to vector<16x8xf32>
    %60 = vector.shape_cast %59 : vector<16x8xf32> to vector<2x8x8xf32>
    %61 = vector.extract_strided_slice %56 {offsets = [0, 0], sizes = [16, 8], strides = [1, 1]} : vector<16x32xf32> to vector<16x8xf32>
    %62 = vector.shape_cast %61 : vector<16x8xf32> to vector<2x8x8xf32>
    %cst_25 = arith.constant dense<0.000000e+00> : vector<2x8x8xf32>
    %63 = tpu.matmul %58, %60, %cst_25 {dimension_numbers = #tpu.dot_dimension_numbers<[2], [2], [1], [1], [0, 0, 0, 1, 1, 1], [0], [0]>} : vector<2x8x8xf32>, vector<2x8x8xf32>, vector<2x8x8xf32> -> vector<2x8x8xf32>
    %cst_26 = arith.constant 0.353553385 : f32
    %64 = vector.broadcast %cst_26 : f32 to vector<2x8x8xf32>
    %65 = arith.mulf %63, %64 : vector<2x8x8xf32>
    %66 = vector.shape_cast %5 : vector<8x8xf32> to vector<1x8x8xf32>
    %67 = vector.broadcast %66 : vector<1x8x8xf32> to vector<2x8x8xf32>
    %68 = arith.addf %65, %67 : vector<2x8x8xf32>
    %cst_27 = arith.constant dense<0xFF800000> : vector<2x8xf32>
    %69 = vector.multi_reduction <maximumf>, %68, %cst_27 [2] : vector<2x8x8xf32> to vector<2x8xf32>
    %70 = vector.shape_cast %69 : vector<2x8xf32> to vector<2x8x1xf32>
    %71 = vector.broadcast %70 : vector<2x8x1xf32> to vector<2x8x8xf32>
    %72 = arith.subf %68, %71 : vector<2x8x8xf32>
    %73 = math.exp %72 : vector<2x8x8xf32>
    %cst_28 = arith.constant dense<0.000000e+00> : vector<2x8xf32>
    %74 = vector.multi_reduction <add>, %73, %cst_28 [2] : vector<2x8x8xf32> to vector<2x8xf32>
    %75 = vector.shape_cast %74 : vector<2x8xf32> to vector<2x8x1xf32>
    %76 = tpu.reciprocal %75 {approx = true} : vector<2x8x1xf32> -> vector<2x8x1xf32>
    %77 = vector.broadcast %76 : vector<2x8x1xf32> to vector<2x8x8xf32>
    %78 = arith.mulf %73, %77 : vector<2x8x8xf32>
    %cst_29 = arith.constant dense<0.000000e+00> : vector<2x8x8xf32>
    %79 = tpu.matmul %78, %62, %cst_29 {dimension_numbers = #tpu.dot_dimension_numbers<[2], [1], [1], [2], [0, 0, 0, 1, 1, 2], [0], [0]>} : vector<2x8x8xf32>, vector<2x8x8xf32>, vector<2x8x8xf32> -> vector<2x8x8xf32>
    %80 = vector.extract_strided_slice %50 {offsets = [0, 8], sizes = [16, 8], strides = [1, 1]} : vector<16x32xf32> to vector<16x8xf32>
    %81 = vector.shape_cast %80 : vector<16x8xf32> to vector<2x8x8xf32>
    %82 = vector.extract_strided_slice %53 {offsets = [0, 8], sizes = [16, 8], strides = [1, 1]} : vector<16x32xf32> to vector<16x8xf32>
    %83 = vector.shape_cast %82 : vector<16x8xf32> to vector<2x8x8xf32>
    %84 = vector.extract_strided_slice %56 {offsets = [0, 8], sizes = [16, 8], strides = [1, 1]} : vector<16x32xf32> to vector<16x8xf32>
    %85 = vector.shape_cast %84 : vector<16x8xf32> to vector<2x8x8xf32>
    %cst_30 = arith.constant dense<0.000000e+00> : vector<2x8x8xf32>
    %86 = tpu.matmul %81, %83, %cst_30 {dimension_numbers = #tpu.dot_dimension_numbers<[2], [2], [1], [1], [0, 0, 0, 1, 1, 1], [0], [0]>} : vector<2x8x8xf32>, vector<2x8x8xf32>, vector<2x8x8xf32> -> vector<2x8x8xf32>
    %cst_31 = arith.constant 0.353553385 : f32
    %87 = vector.broadcast %cst_31 : f32 to vector<2x8x8xf32>
    %88 = arith.mulf %86, %87 : vector<2x8x8xf32>
    %89 = vector.shape_cast %5 : vector<8x8xf32> to vector<1x8x8xf32>
    %90 = vector.broadcast %89 : vector<1x8x8xf32> to vector<2x8x8xf32>
    %91 = arith.addf %88, %90 : vector<2x8x8xf32>
    %cst_32 = arith.constant dense<0xFF800000> : vector<2x8xf32>
    %92 = vector.multi_reduction <maximumf>, %91, %cst_32 [2] : vector<2x8x8xf32> to vector<2x8xf32>
    %93 = vector.shape_cast %92 : vector<2x8xf32> to vector<2x8x1xf32>
    %94 = vector.broadcast %93 : vector<2x8x1xf32> to vector<2x8x8xf32>
    %95 = arith.subf %91, %94 : vector<2x8x8xf32>
    %96 = math.exp %95 : vector<2x8x8xf32>
    %cst_33 = arith.constant dense<0.000000e+00> : vector<2x8xf32>
    %97 = vector.multi_reduction <add>, %96, %cst_33 [2] : vector<2x8x8xf32> to vector<2x8xf32>
    %98 = vector.shape_cast %97 : vector<2x8xf32> to vector<2x8x1xf32>
    %99 = tpu.reciprocal %98 {approx = true} : vector<2x8x1xf32> -> vector<2x8x1xf32>
    %100 = vector.broadcast %99 : vector<2x8x1xf32> to vector<2x8x8xf32>
    %101 = arith.mulf %96, %100 : vector<2x8x8xf32>
    %cst_34 = arith.constant dense<0.000000e+00> : vector<2x8x8xf32>
    %102 = tpu.matmul %101, %85, %cst_34 {dimension_numbers = #tpu.dot_dimension_numbers<[2], [1], [1], [2], [0, 0, 0, 1, 1, 2], [0], [0]>} : vector<2x8x8xf32>, vector<2x8x8xf32>, vector<2x8x8xf32> -> vector<2x8x8xf32>
    %103 = vector.extract_strided_slice %50 {offsets = [0, 16], sizes = [16, 8], strides = [1, 1]} : vector<16x32xf32> to vector<16x8xf32>
    %104 = vector.shape_cast %103 : vector<16x8xf32> to vector<2x8x8xf32>
    %105 = vector.extract_strided_slice %53 {offsets = [0, 16], sizes = [16, 8], strides = [1, 1]} : vector<16x32xf32> to vector<16x8xf32>
    %106 = vector.shape_cast %105 : vector<16x8xf32> to vector<2x8x8xf32>
    %107 = vector.extract_strided_slice %56 {offsets = [0, 16], sizes = [16, 8], strides = [1, 1]} : vector<16x32xf32> to vector<16x8xf32>
    %108 = vector.shape_cast %107 : vector<16x8xf32> to vector<2x8x8xf32>
    %cst_35 = arith.constant dense<0.000000e+00> : vector<2x8x8xf32>
    %109 = tpu.matmul %104, %106, %cst_35 {dimension_numbers = #tpu.dot_dimension_numbers<[2], [2], [1], [1], [0, 0, 0, 1, 1, 1], [0], [0]>} : vector<2x8x8xf32>, vector<2x8x8xf32>, vector<2x8x8xf32> -> vector<2x8x8xf32>
    %cst_36 = arith.constant 0.353553385 : f32
    %110 = vector.broadcast %cst_36 : f32 to vector<2x8x8xf32>
    %111 = arith.mulf %109, %110 : vector<2x8x8xf32>
    %112 = vector.shape_cast %5 : vector<8x8xf32> to vector<1x8x8xf32>
    %113 = vector.broadcast %112 : vector<1x8x8xf32> to vector<2x8x8xf32>
    %114 = arith.addf %111, %113 : vector<2x8x8xf32>
    %cst_37 = arith.constant dense<0xFF800000> : vector<2x8xf32>
    %115 = vector.multi_reduction <maximumf>, %114, %cst_37 [2] : vector<2x8x8xf32> to vector<2x8xf32>
    %116 = vector.shape_cast %115 : vector<2x8xf32> to vector<2x8x1xf32>
    %117 = vector.broadcast %116 : vector<2x8x1xf32> to vector<2x8x8xf32>
    %118 = arith.subf %114, %117 : vector<2x8x8xf32>
    %119 = math.exp %118 : vector<2x8x8xf32>
    %cst_38 = arith.constant dense<0.000000e+00> : vector<2x8xf32>
    %120 = vector.multi_reduction <add>, %119, %cst_38 [2] : vector<2x8x8xf32> to vector<2x8xf32>
    %121 = vector.shape_cast %120 : vector<2x8xf32> to vector<2x8x1xf32>
    %122 = tpu.reciprocal %121 {approx = true} : vector<2x8x1xf32> -> vector<2x8x1xf32>
    %123 = vector.broadcast %122 : vector<2x8x1xf32> to vector<2x8x8xf32>
    %124 = arith.mulf %119, %123 : vector<2x8x8xf32>
    %cst_39 = arith.constant dense<0.000000e+00> : vector<2x8x8xf32>
    %125 = tpu.matmul %124, %108, %cst_39 {dimension_numbers = #tpu.dot_dimension_numbers<[2], [1], [1], [2], [0, 0, 0, 1, 1, 2], [0], [0]>} : vector<2x8x8xf32>, vector<2x8x8xf32>, vector<2x8x8xf32> -> vector<2x8x8xf32>
    %126 = vector.extract_strided_slice %50 {offsets = [0, 24], sizes = [16, 8], strides = [1, 1]} : vector<16x32xf32> to vector<16x8xf32>
    %127 = vector.shape_cast %126 : vector<16x8xf32> to vector<2x8x8xf32>
    %128 = vector.extract_strided_slice %53 {offsets = [0, 24], sizes = [16, 8], strides = [1, 1]} : vector<16x32xf32> to vector<16x8xf32>
    %129 = vector.shape_cast %128 : vector<16x8xf32> to vector<2x8x8xf32>
    %130 = vector.extract_strided_slice %56 {offsets = [0, 24], sizes = [16, 8], strides = [1, 1]} : vector<16x32xf32> to vector<16x8xf32>
    %131 = vector.shape_cast %130 : vector<16x8xf32> to vector<2x8x8xf32>
    %cst_40 = arith.constant dense<0.000000e+00> : vector<2x8x8xf32>
    %132 = tpu.matmul %127, %129, %cst_40 {dimension_numbers = #tpu.dot_dimension_numbers<[2], [2], [1], [1], [0, 0, 0, 1, 1, 1], [0], [0]>} : vector<2x8x8xf32>, vector<2x8x8xf32>, vector<2x8x8xf32> -> vector<2x8x8xf32>
    %cst_41 = arith.constant 0.353553385 : f32
    %133 = vector.broadcast %cst_41 : f32 to vector<2x8x8xf32>
    %134 = arith.mulf %132, %133 : vector<2x8x8xf32>
    %135 = vector.shape_cast %5 : vector<8x8xf32> to vector<1x8x8xf32>
    %136 = vector.broadcast %135 : vector<1x8x8xf32> to vector<2x8x8xf32>
    %137 = arith.addf %134, %136 : vector<2x8x8xf32>
    %cst_42 = arith.constant dense<0xFF800000> : vector<2x8xf32>
    %138 = vector.multi_reduction <maximumf>, %137, %cst_42 [2] : vector<2x8x8xf32> to vector<2x8xf32>
    %139 = vector.shape_cast %138 : vector<2x8xf32> to vector<2x8x1xf32>
    %140 = vector.broadcast %139 : vector<2x8x1xf32> to vector<2x8x8xf32>
    %141 = arith.subf %137, %140 : vector<2x8x8xf32>
    %142 = math.exp %141 : vector<2x8x8xf32>
    %cst_43 = arith.constant dense<0.000000e+00> : vector<2x8xf32>
    %143 = vector.multi_reduction <add>, %142, %cst_43 [2] : vector<2x8x8xf32> to vector<2x8xf32>
    %144 = vector.shape_cast %143 : vector<2x8xf32> to vector<2x8x1xf32>
    %145 = tpu.reciprocal %144 {approx = true} : vector<2x8x1xf32> -> vector<2x8x1xf32>
    %146 = vector.broadcast %145 : vector<2x8x1xf32> to vector<2x8x8xf32>
    %147 = arith.mulf %142, %146 : vector<2x8x8xf32>
    %cst_44 = arith.constant dense<0.000000e+00> : vector<2x8x8xf32>
    %148 = tpu.matmul %147, %131, %cst_44 {dimension_numbers = #tpu.dot_dimension_numbers<[2], [1], [1], [2], [0, 0, 0, 1, 1, 2], [0], [0]>} : vector<2x8x8xf32>, vector<2x8x8xf32>, vector<2x8x8xf32> -> vector<2x8x8xf32>
    %149 = tpu.concatenate %79, %102, %125, %148 in 2 : vector<2x8x8xf32>, vector<2x8x8xf32>, vector<2x8x8xf32>, vector<2x8x8xf32> -> vector<2x8x32xf32>
    %150 = vector.shape_cast %149 : vector<2x8x32xf32> to vector<16x32xf32>
    %cst_45 = arith.constant dense<0.000000e+00> : vector<16x32xf32>
    %151 = tpu.matmul %150, %19, %cst_45 {dimension_numbers = #tpu.dot_dimension_numbers<[1], [0], [0], [1], [0, 0, 1, 1], [], []>} : vector<16x32xf32>, vector<32x32xf32>, vector<16x32xf32> -> vector<16x32xf32>
    %152 = vector.broadcast %15 : vector<1x32xf32> to vector<16x32xf32>
    %153 = arith.addf %151, %152 : vector<16x32xf32>
    %154 = arith.addf %46, %153 : vector<16x32xf32>
    %cst_46 = arith.constant dense<0.000000e+00> : vector<16xf32>
    %155 = vector.multi_reduction <add>, %154, %cst_46 [1] : vector<16x32xf32> to vector<16xf32>
    %156 = vector.shape_cast %155 : vector<16xf32> to vector<16x1xf32>
    %cst_47 = arith.constant 3.200000e+01 : f32
    %157 = vector.broadcast %cst_47 : f32 to vector<16x1xf32>
    %158 = arith.divf %156, %157 : vector<16x1xf32>
    %159 = vector.broadcast %158 : vector<16x1xf32> to vector<16x32xf32>
    %160 = arith.subf %154, %159 : vector<16x32xf32>
    %161 = arith.mulf %160, %160 : vector<16x32xf32>
    %cst_48 = arith.constant dense<0.000000e+00> : vector<16xf32>
    %162 = vector.multi_reduction <add>, %161, %cst_48 [1] : vector<16x32xf32> to vector<16xf32>
    %163 = vector.shape_cast %162 : vector<16xf32> to vector<16x1xf32>
    %cst_49 = arith.constant 3.200000e+01 : f32
    %164 = vector.broadcast %cst_49 : f32 to vector<16x1xf32>
    %165 = arith.divf %163, %164 : vector<16x1xf32>
    %cst_50 = arith.constant 9.99999974E-6 : f32
    %166 = vector.broadcast %cst_50 : f32 to vector<16x1xf32>
    %167 = arith.addf %165, %166 : vector<16x1xf32>
    %168 = math.rsqrt %167 : vector<16x1xf32>
    %169 = vector.broadcast %168 : vector<16x1xf32> to vector<16x32xf32>
    %170 = arith.mulf %160, %169 : vector<16x32xf32>
    %171 = vector.broadcast %10 : vector<1x32xf32> to vector<16x32xf32>
    %172 = arith.mulf %170, %171 : vector<16x32xf32>
    %173 = vector.broadcast %11 : vector<1x32xf32> to vector<16x32xf32>
    %174 = arith.addf %172, %173 : vector<16x32xf32>
    %cst_51 = arith.constant dense<0.000000e+00> : vector<16x32xf32>
    %175 = tpu.matmul %174, %20, %cst_51 {dimension_numbers = #tpu.dot_dimension_numbers<[1], [0], [0], [1], [0, 0, 1, 1], [], []>} : vector<16x32xf32>, vector<32x32xf32>, vector<16x32xf32> -> vector<16x32xf32>
    %176 = vector.broadcast %16 : vector<1x32xf32> to vector<16x32xf32>
    %177 = arith.addf %175, %176 : vector<16x32xf32>
    %cst_52 = arith.constant 0.000000e+00 : f32
    %178 = vector.broadcast %cst_52 : f32 to vector<16x32xf32>
    %179 = arith.maximumf %177, %178 : vector<16x32xf32>
    %cst_53 = arith.constant dense<0.000000e+00> : vector<16x32xf32>
    %180 = tpu.matmul %179, %21, %cst_53 {dimension_numbers = #tpu.dot_dimension_numbers<[1], [0], [0], [1], [0, 0, 1, 1], [], []>} : vector<16x32xf32>, vector<32x32xf32>, vector<16x32xf32> -> vector<16x32xf32>
    %181 = vector.broadcast %17 : vector<1x32xf32> to vector<16x32xf32>
    %182 = arith.addf %180, %181 : vector<16x32xf32>
    %183 = arith.addf %174, %182 : vector<16x32xf32>
    %c24 = arith.constant 24 : index
    %c0_54 = arith.constant 0 : index
    %184 = vector.load %arg3[%c24, %c0_54] : memref<48x32xf32, #tpu.memory_space<vmem>>, vector<8x32xf32>
    %c32_55 = arith.constant 32 : index
    %c0_56 = arith.constant 0 : index
    %185 = vector.load %arg3[%c32_55, %c0_56] : memref<48x32xf32, #tpu.memory_space<vmem>>, vector<1x32xf32>
    %c33 = arith.constant 33 : index
    %c0_57 = arith.constant 0 : index
    %186 = vector.load %arg3[%c33, %c0_57] : memref<48x32xf32, #tpu.memory_space<vmem>>, vector<1x32xf32>
    %c34 = arith.constant 34 : index
    %c0_58 = arith.constant 0 : index
    %187 = vector.load %arg3[%c34, %c0_58] : memref<48x32xf32, #tpu.memory_space<vmem>>, vector<1x32xf32>
    %c35 = arith.constant 35 : index
    %c0_59 = arith.constant 0 : index
    %188 = vector.load %arg3[%c35, %c0_59] : memref<48x32xf32, #tpu.memory_space<vmem>>, vector<1x32xf32>
    %c36 = arith.constant 36 : index
    %c0_60 = arith.constant 0 : index
    %189 = vector.load %arg3[%c36, %c0_60] : memref<48x32xf32, #tpu.memory_space<vmem>>, vector<1x32xf32>
    %c37 = arith.constant 37 : index
    %c0_61 = arith.constant 0 : index
    %190 = vector.load %arg3[%c37, %c0_61] : memref<48x32xf32, #tpu.memory_space<vmem>>, vector<1x32xf32>
    %c38 = arith.constant 38 : index
    %c0_62 = arith.constant 0 : index
    %191 = vector.load %arg3[%c38, %c0_62] : memref<48x32xf32, #tpu.memory_space<vmem>>, vector<1x32xf32>
    %c39 = arith.constant 39 : index
    %c0_63 = arith.constant 0 : index
    %192 = vector.load %arg3[%c39, %c0_63] : memref<48x32xf32, #tpu.memory_space<vmem>>, vector<1x32xf32>
    %c40 = arith.constant 40 : index
    %c0_64 = arith.constant 0 : index
    %193 = vector.load %arg3[%c40, %c0_64] : memref<48x32xf32, #tpu.memory_space<vmem>>, vector<1x32xf32>
    %c41 = arith.constant 41 : index
    %c0_65 = arith.constant 0 : index
    %194 = vector.load %arg3[%c41, %c0_65] : memref<48x32xf32, #tpu.memory_space<vmem>>, vector<1x32xf32>
    %c128 = arith.constant 128 : index
    %c0_66 = arith.constant 0 : index
    %195 = vector.load %arg2[%c128, %c0_66] : memref<256x96xf32, #tpu.memory_space<vmem>>, vector<32x96xf32>
    %c160 = arith.constant 160 : index
    %c0_67 = arith.constant 0 : index
    %196 = vector.load %arg2[%c160, %c0_67] : memref<256x96xf32, #tpu.memory_space<vmem>>, vector<32x32xf32>
    %c192 = arith.constant 192 : index
    %c0_68 = arith.constant 0 : index
    %197 = vector.load %arg2[%c192, %c0_68] : memref<256x96xf32, #tpu.memory_space<vmem>>, vector<32x32xf32>
    %c224 = arith.constant 224 : index
    %c0_69 = arith.constant 0 : index
    %198 = vector.load %arg2[%c224, %c0_69] : memref<256x96xf32, #tpu.memory_space<vmem>>, vector<32x32xf32>
    %199 = vector.shape_cast %184 : vector<8x32xf32> to vector<1x8x32xf32>
    %200 = vector.shape_cast %199 : vector<1x8x32xf32> to vector<1x8x32xf32>
    %201 = vector.broadcast %200 : vector<1x8x32xf32> to vector<2x8x32xf32>
    %202 = vector.shape_cast %201 : vector<2x8x32xf32> to vector<16x32xf32>
    %203 = arith.addf %183, %202 : vector<16x32xf32>
    %cst_70 = arith.constant dense<0.000000e+00> : vector<16xf32>
    %204 = vector.multi_reduction <add>, %203, %cst_70 [1] : vector<16x32xf32> to vector<16xf32>
    %205 = vector.shape_cast %204 : vector<16xf32> to vector<16x1xf32>
    %cst_71 = arith.constant 3.200000e+01 : f32
    %206 = vector.broadcast %cst_71 : f32 to vector<16x1xf32>
    %207 = arith.divf %205, %206 : vector<16x1xf32>
    %208 = vector.broadcast %207 : vector<16x1xf32> to vector<16x32xf32>
    %209 = arith.subf %203, %208 : vector<16x32xf32>
    %210 = arith.mulf %209, %209 : vector<16x32xf32>
    %cst_72 = arith.constant dense<0.000000e+00> : vector<16xf32>
    %211 = vector.multi_reduction <add>, %210, %cst_72 [1] : vector<16x32xf32> to vector<16xf32>
    %212 = vector.shape_cast %211 : vector<16xf32> to vector<16x1xf32>
    %cst_73 = arith.constant 3.200000e+01 : f32
    %213 = vector.broadcast %cst_73 : f32 to vector<16x1xf32>
    %214 = arith.divf %212, %213 : vector<16x1xf32>
    %cst_74 = arith.constant 9.99999974E-6 : f32
    %215 = vector.broadcast %cst_74 : f32 to vector<16x1xf32>
    %216 = arith.addf %214, %215 : vector<16x1xf32>
    %217 = math.rsqrt %216 : vector<16x1xf32>
    %218 = vector.broadcast %217 : vector<16x1xf32> to vector<16x32xf32>
    %219 = arith.mulf %209, %218 : vector<16x32xf32>
    %220 = vector.broadcast %185 : vector<1x32xf32> to vector<16x32xf32>
    %221 = arith.mulf %219, %220 : vector<16x32xf32>
    %222 = vector.broadcast %186 : vector<1x32xf32> to vector<16x32xf32>
    %223 = arith.addf %221, %222 : vector<16x32xf32>
    %cst_75 = arith.constant dense<0.000000e+00> : vector<16x96xf32>
    %224 = tpu.matmul %223, %195, %cst_75 {dimension_numbers = #tpu.dot_dimension_numbers<[1], [0], [0], [1], [0, 0, 1, 1], [], []>} : vector<16x32xf32>, vector<32x96xf32>, vector<16x96xf32> -> vector<16x96xf32>
    %225 = vector.extract_strided_slice %224 {offsets = [0, 0], sizes = [16, 32], strides = [1, 1]} : vector<16x96xf32> to vector<16x32xf32>
    %226 = vector.broadcast %189 : vector<1x32xf32> to vector<16x32xf32>
    %227 = arith.addf %225, %226 : vector<16x32xf32>
    %228 = vector.extract_strided_slice %224 {offsets = [0, 32], sizes = [16, 32], strides = [1, 1]} : vector<16x96xf32> to vector<16x32xf32>
    %229 = vector.broadcast %190 : vector<1x32xf32> to vector<16x32xf32>
    %230 = arith.addf %228, %229 : vector<16x32xf32>
    %231 = vector.extract_strided_slice %224 {offsets = [0, 64], sizes = [16, 32], strides = [1, 1]} : vector<16x96xf32> to vector<16x32xf32>
    %232 = vector.broadcast %191 : vector<1x32xf32> to vector<16x32xf32>
    %233 = arith.addf %231, %232 : vector<16x32xf32>
    %234 = vector.extract_strided_slice %227 {offsets = [0, 0], sizes = [16, 8], strides = [1, 1]} : vector<16x32xf32> to vector<16x8xf32>
    %235 = vector.shape_cast %234 : vector<16x8xf32> to vector<2x8x8xf32>
    %236 = vector.extract_strided_slice %230 {offsets = [0, 0], sizes = [16, 8], strides = [1, 1]} : vector<16x32xf32> to vector<16x8xf32>
    %237 = vector.shape_cast %236 : vector<16x8xf32> to vector<2x8x8xf32>
    %238 = vector.extract_strided_slice %233 {offsets = [0, 0], sizes = [16, 8], strides = [1, 1]} : vector<16x32xf32> to vector<16x8xf32>
    %239 = vector.shape_cast %238 : vector<16x8xf32> to vector<2x8x8xf32>
    %cst_76 = arith.constant dense<0.000000e+00> : vector<2x8x8xf32>
    %240 = tpu.matmul %235, %237, %cst_76 {dimension_numbers = #tpu.dot_dimension_numbers<[2], [2], [1], [1], [0, 0, 0, 1, 1, 1], [0], [0]>} : vector<2x8x8xf32>, vector<2x8x8xf32>, vector<2x8x8xf32> -> vector<2x8x8xf32>
    %cst_77 = arith.constant 0.353553385 : f32
    %241 = vector.broadcast %cst_77 : f32 to vector<2x8x8xf32>
    %242 = arith.mulf %240, %241 : vector<2x8x8xf32>
    %243 = vector.shape_cast %5 : vector<8x8xf32> to vector<1x8x8xf32>
    %244 = vector.broadcast %243 : vector<1x8x8xf32> to vector<2x8x8xf32>
    %245 = arith.addf %242, %244 : vector<2x8x8xf32>
    %cst_78 = arith.constant dense<0xFF800000> : vector<2x8xf32>
    %246 = vector.multi_reduction <maximumf>, %245, %cst_78 [2] : vector<2x8x8xf32> to vector<2x8xf32>
    %247 = vector.shape_cast %246 : vector<2x8xf32> to vector<2x8x1xf32>
    %248 = vector.broadcast %247 : vector<2x8x1xf32> to vector<2x8x8xf32>
    %249 = arith.subf %245, %248 : vector<2x8x8xf32>
    %250 = math.exp %249 : vector<2x8x8xf32>
    %cst_79 = arith.constant dense<0.000000e+00> : vector<2x8xf32>
    %251 = vector.multi_reduction <add>, %250, %cst_79 [2] : vector<2x8x8xf32> to vector<2x8xf32>
    %252 = vector.shape_cast %251 : vector<2x8xf32> to vector<2x8x1xf32>
    %253 = tpu.reciprocal %252 {approx = true} : vector<2x8x1xf32> -> vector<2x8x1xf32>
    %254 = vector.broadcast %253 : vector<2x8x1xf32> to vector<2x8x8xf32>
    %255 = arith.mulf %250, %254 : vector<2x8x8xf32>
    %cst_80 = arith.constant dense<0.000000e+00> : vector<2x8x8xf32>
    %256 = tpu.matmul %255, %239, %cst_80 {dimension_numbers = #tpu.dot_dimension_numbers<[2], [1], [1], [2], [0, 0, 0, 1, 1, 2], [0], [0]>} : vector<2x8x8xf32>, vector<2x8x8xf32>, vector<2x8x8xf32> -> vector<2x8x8xf32>
    %257 = vector.extract_strided_slice %227 {offsets = [0, 8], sizes = [16, 8], strides = [1, 1]} : vector<16x32xf32> to vector<16x8xf32>
    %258 = vector.shape_cast %257 : vector<16x8xf32> to vector<2x8x8xf32>
    %259 = vector.extract_strided_slice %230 {offsets = [0, 8], sizes = [16, 8], strides = [1, 1]} : vector<16x32xf32> to vector<16x8xf32>
    %260 = vector.shape_cast %259 : vector<16x8xf32> to vector<2x8x8xf32>
    %261 = vector.extract_strided_slice %233 {offsets = [0, 8], sizes = [16, 8], strides = [1, 1]} : vector<16x32xf32> to vector<16x8xf32>
    %262 = vector.shape_cast %261 : vector<16x8xf32> to vector<2x8x8xf32>
    %cst_81 = arith.constant dense<0.000000e+00> : vector<2x8x8xf32>
    %263 = tpu.matmul %258, %260, %cst_81 {dimension_numbers = #tpu.dot_dimension_numbers<[2], [2], [1], [1], [0, 0, 0, 1, 1, 1], [0], [0]>} : vector<2x8x8xf32>, vector<2x8x8xf32>, vector<2x8x8xf32> -> vector<2x8x8xf32>
    %cst_82 = arith.constant 0.353553385 : f32
    %264 = vector.broadcast %cst_82 : f32 to vector<2x8x8xf32>
    %265 = arith.mulf %263, %264 : vector<2x8x8xf32>
    %266 = vector.shape_cast %5 : vector<8x8xf32> to vector<1x8x8xf32>
    %267 = vector.broadcast %266 : vector<1x8x8xf32> to vector<2x8x8xf32>
    %268 = arith.addf %265, %267 : vector<2x8x8xf32>
    %cst_83 = arith.constant dense<0xFF800000> : vector<2x8xf32>
    %269 = vector.multi_reduction <maximumf>, %268, %cst_83 [2] : vector<2x8x8xf32> to vector<2x8xf32>
    %270 = vector.shape_cast %269 : vector<2x8xf32> to vector<2x8x1xf32>
    %271 = vector.broadcast %270 : vector<2x8x1xf32> to vector<2x8x8xf32>
    %272 = arith.subf %268, %271 : vector<2x8x8xf32>
    %273 = math.exp %272 : vector<2x8x8xf32>
    %cst_84 = arith.constant dense<0.000000e+00> : vector<2x8xf32>
    %274 = vector.multi_reduction <add>, %273, %cst_84 [2] : vector<2x8x8xf32> to vector<2x8xf32>
    %275 = vector.shape_cast %274 : vector<2x8xf32> to vector<2x8x1xf32>
    %276 = tpu.reciprocal %275 {approx = true} : vector<2x8x1xf32> -> vector<2x8x1xf32>
    %277 = vector.broadcast %276 : vector<2x8x1xf32> to vector<2x8x8xf32>
    %278 = arith.mulf %273, %277 : vector<2x8x8xf32>
    %cst_85 = arith.constant dense<0.000000e+00> : vector<2x8x8xf32>
    %279 = tpu.matmul %278, %262, %cst_85 {dimension_numbers = #tpu.dot_dimension_numbers<[2], [1], [1], [2], [0, 0, 0, 1, 1, 2], [0], [0]>} : vector<2x8x8xf32>, vector<2x8x8xf32>, vector<2x8x8xf32> -> vector<2x8x8xf32>
    %280 = vector.extract_strided_slice %227 {offsets = [0, 16], sizes = [16, 8], strides = [1, 1]} : vector<16x32xf32> to vector<16x8xf32>
    %281 = vector.shape_cast %280 : vector<16x8xf32> to vector<2x8x8xf32>
    %282 = vector.extract_strided_slice %230 {offsets = [0, 16], sizes = [16, 8], strides = [1, 1]} : vector<16x32xf32> to vector<16x8xf32>
    %283 = vector.shape_cast %282 : vector<16x8xf32> to vector<2x8x8xf32>
    %284 = vector.extract_strided_slice %233 {offsets = [0, 16], sizes = [16, 8], strides = [1, 1]} : vector<16x32xf32> to vector<16x8xf32>
    %285 = vector.shape_cast %284 : vector<16x8xf32> to vector<2x8x8xf32>
    %cst_86 = arith.constant dense<0.000000e+00> : vector<2x8x8xf32>
    %286 = tpu.matmul %281, %283, %cst_86 {dimension_numbers = #tpu.dot_dimension_numbers<[2], [2], [1], [1], [0, 0, 0, 1, 1, 1], [0], [0]>} : vector<2x8x8xf32>, vector<2x8x8xf32>, vector<2x8x8xf32> -> vector<2x8x8xf32>
    %cst_87 = arith.constant 0.353553385 : f32
    %287 = vector.broadcast %cst_87 : f32 to vector<2x8x8xf32>
    %288 = arith.mulf %286, %287 : vector<2x8x8xf32>
    %289 = vector.shape_cast %5 : vector<8x8xf32> to vector<1x8x8xf32>
    %290 = vector.broadcast %289 : vector<1x8x8xf32> to vector<2x8x8xf32>
    %291 = arith.addf %288, %290 : vector<2x8x8xf32>
    %cst_88 = arith.constant dense<0xFF800000> : vector<2x8xf32>
    %292 = vector.multi_reduction <maximumf>, %291, %cst_88 [2] : vector<2x8x8xf32> to vector<2x8xf32>
    %293 = vector.shape_cast %292 : vector<2x8xf32> to vector<2x8x1xf32>
    %294 = vector.broadcast %293 : vector<2x8x1xf32> to vector<2x8x8xf32>
    %295 = arith.subf %291, %294 : vector<2x8x8xf32>
    %296 = math.exp %295 : vector<2x8x8xf32>
    %cst_89 = arith.constant dense<0.000000e+00> : vector<2x8xf32>
    %297 = vector.multi_reduction <add>, %296, %cst_89 [2] : vector<2x8x8xf32> to vector<2x8xf32>
    %298 = vector.shape_cast %297 : vector<2x8xf32> to vector<2x8x1xf32>
    %299 = tpu.reciprocal %298 {approx = true} : vector<2x8x1xf32> -> vector<2x8x1xf32>
    %300 = vector.broadcast %299 : vector<2x8x1xf32> to vector<2x8x8xf32>
    %301 = arith.mulf %296, %300 : vector<2x8x8xf32>
    %cst_90 = arith.constant dense<0.000000e+00> : vector<2x8x8xf32>
    %302 = tpu.matmul %301, %285, %cst_90 {dimension_numbers = #tpu.dot_dimension_numbers<[2], [1], [1], [2], [0, 0, 0, 1, 1, 2], [0], [0]>} : vector<2x8x8xf32>, vector<2x8x8xf32>, vector<2x8x8xf32> -> vector<2x8x8xf32>
    %303 = vector.extract_strided_slice %227 {offsets = [0, 24], sizes = [16, 8], strides = [1, 1]} : vector<16x32xf32> to vector<16x8xf32>
    %304 = vector.shape_cast %303 : vector<16x8xf32> to vector<2x8x8xf32>
    %305 = vector.extract_strided_slice %230 {offsets = [0, 24], sizes = [16, 8], strides = [1, 1]} : vector<16x32xf32> to vector<16x8xf32>
    %306 = vector.shape_cast %305 : vector<16x8xf32> to vector<2x8x8xf32>
    %307 = vector.extract_strided_slice %233 {offsets = [0, 24], sizes = [16, 8], strides = [1, 1]} : vector<16x32xf32> to vector<16x8xf32>
    %308 = vector.shape_cast %307 : vector<16x8xf32> to vector<2x8x8xf32>
    %cst_91 = arith.constant dense<0.000000e+00> : vector<2x8x8xf32>
    %309 = tpu.matmul %304, %306, %cst_91 {dimension_numbers = #tpu.dot_dimension_numbers<[2], [2], [1], [1], [0, 0, 0, 1, 1, 1], [0], [0]>} : vector<2x8x8xf32>, vector<2x8x8xf32>, vector<2x8x8xf32> -> vector<2x8x8xf32>
    %cst_92 = arith.constant 0.353553385 : f32
    %310 = vector.broadcast %cst_92 : f32 to vector<2x8x8xf32>
    %311 = arith.mulf %309, %310 : vector<2x8x8xf32>
    %312 = vector.shape_cast %5 : vector<8x8xf32> to vector<1x8x8xf32>
    %313 = vector.broadcast %312 : vector<1x8x8xf32> to vector<2x8x8xf32>
    %314 = arith.addf %311, %313 : vector<2x8x8xf32>
    %cst_93 = arith.constant dense<0xFF800000> : vector<2x8xf32>
    %315 = vector.multi_reduction <maximumf>, %314, %cst_93 [2] : vector<2x8x8xf32> to vector<2x8xf32>
    %316 = vector.shape_cast %315 : vector<2x8xf32> to vector<2x8x1xf32>
    %317 = vector.broadcast %316 : vector<2x8x1xf32> to vector<2x8x8xf32>
    %318 = arith.subf %314, %317 : vector<2x8x8xf32>
    %319 = math.exp %318 : vector<2x8x8xf32>
    %cst_94 = arith.constant dense<0.000000e+00> : vector<2x8xf32>
    %320 = vector.multi_reduction <add>, %319, %cst_94 [2] : vector<2x8x8xf32> to vector<2x8xf32>
    %321 = vector.shape_cast %320 : vector<2x8xf32> to vector<2x8x1xf32>
    %322 = tpu.reciprocal %321 {approx = true} : vector<2x8x1xf32> -> vector<2x8x1xf32>
    %323 = vector.broadcast %322 : vector<2x8x1xf32> to vector<2x8x8xf32>
    %324 = arith.mulf %319, %323 : vector<2x8x8xf32>
    %cst_95 = arith.constant dense<0.000000e+00> : vector<2x8x8xf32>
    %325 = tpu.matmul %324, %308, %cst_95 {dimension_numbers = #tpu.dot_dimension_numbers<[2], [1], [1], [2], [0, 0, 0, 1, 1, 2], [0], [0]>} : vector<2x8x8xf32>, vector<2x8x8xf32>, vector<2x8x8xf32> -> vector<2x8x8xf32>
    %326 = tpu.concatenate %256, %279, %302, %325 in 2 : vector<2x8x8xf32>, vector<2x8x8xf32>, vector<2x8x8xf32>, vector<2x8x8xf32> -> vector<2x8x32xf32>
    %327 = vector.shape_cast %326 : vector<2x8x32xf32> to vector<16x32xf32>
    %cst_96 = arith.constant dense<0.000000e+00> : vector<16x32xf32>
    %328 = tpu.matmul %327, %196, %cst_96 {dimension_numbers = #tpu.dot_dimension_numbers<[1], [0], [0], [1], [0, 0, 1, 1], [], []>} : vector<16x32xf32>, vector<32x32xf32>, vector<16x32xf32> -> vector<16x32xf32>
    %329 = vector.broadcast %192 : vector<1x32xf32> to vector<16x32xf32>
    %330 = arith.addf %328, %329 : vector<16x32xf32>
    %331 = arith.addf %223, %330 : vector<16x32xf32>
    %cst_97 = arith.constant dense<0.000000e+00> : vector<16xf32>
    %332 = vector.multi_reduction <add>, %331, %cst_97 [1] : vector<16x32xf32> to vector<16xf32>
    %333 = vector.shape_cast %332 : vector<16xf32> to vector<16x1xf32>
    %cst_98 = arith.constant 3.200000e+01 : f32
    %334 = vector.broadcast %cst_98 : f32 to vector<16x1xf32>
    %335 = arith.divf %333, %334 : vector<16x1xf32>
    %336 = vector.broadcast %335 : vector<16x1xf32> to vector<16x32xf32>
    %337 = arith.subf %331, %336 : vector<16x32xf32>
    %338 = arith.mulf %337, %337 : vector<16x32xf32>
    %cst_99 = arith.constant dense<0.000000e+00> : vector<16xf32>
    %339 = vector.multi_reduction <add>, %338, %cst_99 [1] : vector<16x32xf32> to vector<16xf32>
    %340 = vector.shape_cast %339 : vector<16xf32> to vector<16x1xf32>
    %cst_100 = arith.constant 3.200000e+01 : f32
    %341 = vector.broadcast %cst_100 : f32 to vector<16x1xf32>
    %342 = arith.divf %340, %341 : vector<16x1xf32>
    %cst_101 = arith.constant 9.99999974E-6 : f32
    %343 = vector.broadcast %cst_101 : f32 to vector<16x1xf32>
    %344 = arith.addf %342, %343 : vector<16x1xf32>
    %345 = math.rsqrt %344 : vector<16x1xf32>
    %346 = vector.broadcast %345 : vector<16x1xf32> to vector<16x32xf32>
    %347 = arith.mulf %337, %346 : vector<16x32xf32>
    %348 = vector.broadcast %187 : vector<1x32xf32> to vector<16x32xf32>
    %349 = arith.mulf %347, %348 : vector<16x32xf32>
    %350 = vector.broadcast %188 : vector<1x32xf32> to vector<16x32xf32>
    %351 = arith.addf %349, %350 : vector<16x32xf32>
    %cst_102 = arith.constant dense<0.000000e+00> : vector<16x32xf32>
    %352 = tpu.matmul %351, %197, %cst_102 {dimension_numbers = #tpu.dot_dimension_numbers<[1], [0], [0], [1], [0, 0, 1, 1], [], []>} : vector<16x32xf32>, vector<32x32xf32>, vector<16x32xf32> -> vector<16x32xf32>
    %353 = vector.broadcast %193 : vector<1x32xf32> to vector<16x32xf32>
    %354 = arith.addf %352, %353 : vector<16x32xf32>
    %cst_103 = arith.constant 0.000000e+00 : f32
    %355 = vector.broadcast %cst_103 : f32 to vector<16x32xf32>
    %356 = arith.maximumf %354, %355 : vector<16x32xf32>
    %cst_104 = arith.constant dense<0.000000e+00> : vector<16x32xf32>
    %357 = tpu.matmul %356, %198, %cst_104 {dimension_numbers = #tpu.dot_dimension_numbers<[1], [0], [0], [1], [0, 0, 1, 1], [], []>} : vector<16x32xf32>, vector<32x32xf32>, vector<16x32xf32> -> vector<16x32xf32>
    %358 = vector.broadcast %194 : vector<1x32xf32> to vector<16x32xf32>
    %359 = arith.addf %357, %358 : vector<16x32xf32>
    %360 = arith.addf %351, %359 : vector<16x32xf32>
    %c0_105 = arith.constant 0 : index
    %c0_106 = arith.constant 0 : index
    %361 = vector.load %arg1[%c0_105, %c0_106] : memref<16x32xf32, #tpu.memory_space<vmem>>, vector<16x32xf32>
    %c0_107 = arith.constant 0 : index
    %c0_108 = arith.constant 0 : index
    %362 = vector.load %arg5[%c0_107, %c0_108] : memref<56x32xf32, #tpu.memory_space<vmem>>, vector<8x32xf32>
    %c8_109 = arith.constant 8 : index
    %c0_110 = arith.constant 0 : index
    %363 = vector.load %arg5[%c8_109, %c0_110] : memref<56x32xf32, #tpu.memory_space<vmem>>, vector<1x32xf32>
    %c9_111 = arith.constant 9 : index
    %c0_112 = arith.constant 0 : index
    %364 = vector.load %arg5[%c9_111, %c0_112] : memref<56x32xf32, #tpu.memory_space<vmem>>, vector<1x32xf32>
    %c10_113 = arith.constant 10 : index
    %c0_114 = arith.constant 0 : index
    %365 = vector.load %arg5[%c10_113, %c0_114] : memref<56x32xf32, #tpu.memory_space<vmem>>, vector<1x32xf32>
    %c11_115 = arith.constant 11 : index
    %c0_116 = arith.constant 0 : index
    %366 = vector.load %arg5[%c11_115, %c0_116] : memref<56x32xf32, #tpu.memory_space<vmem>>, vector<1x32xf32>
    %c12_117 = arith.constant 12 : index
    %c0_118 = arith.constant 0 : index
    %367 = vector.load %arg5[%c12_117, %c0_118] : memref<56x32xf32, #tpu.memory_space<vmem>>, vector<1x32xf32>
    %c13_119 = arith.constant 13 : index
    %c0_120 = arith.constant 0 : index
    %368 = vector.load %arg5[%c13_119, %c0_120] : memref<56x32xf32, #tpu.memory_space<vmem>>, vector<1x32xf32>
    %c14_121 = arith.constant 14 : index
    %c0_122 = arith.constant 0 : index
    %369 = vector.load %arg5[%c14_121, %c0_122] : memref<56x32xf32, #tpu.memory_space<vmem>>, vector<1x32xf32>
    %c15_123 = arith.constant 15 : index
    %c0_124 = arith.constant 0 : index
    %370 = vector.load %arg5[%c15_123, %c0_124] : memref<56x32xf32, #tpu.memory_space<vmem>>, vector<1x32xf32>
    %c16_125 = arith.constant 16 : index
    %c0_126 = arith.constant 0 : index
    %371 = vector.load %arg5[%c16_125, %c0_126] : memref<56x32xf32, #tpu.memory_space<vmem>>, vector<1x32xf32>
    %c17_127 = arith.constant 17 : index
    %c0_128 = arith.constant 0 : index
    %372 = vector.load %arg5[%c17_127, %c0_128] : memref<56x32xf32, #tpu.memory_space<vmem>>, vector<1x32xf32>
    %c18 = arith.constant 18 : index
    %c0_129 = arith.constant 0 : index
    %373 = vector.load %arg5[%c18, %c0_129] : memref<56x32xf32, #tpu.memory_space<vmem>>, vector<1x32xf32>
    %c19 = arith.constant 19 : index
    %c0_130 = arith.constant 0 : index
    %374 = vector.load %arg5[%c19, %c0_130] : memref<56x32xf32, #tpu.memory_space<vmem>>, vector<1x32xf32>
    %c20 = arith.constant 20 : index
    %c0_131 = arith.constant 0 : index
    %375 = vector.load %arg5[%c20, %c0_131] : memref<56x32xf32, #tpu.memory_space<vmem>>, vector<1x32xf32>
    %c21 = arith.constant 21 : index
    %c0_132 = arith.constant 0 : index
    %376 = vector.load %arg5[%c21, %c0_132] : memref<56x32xf32, #tpu.memory_space<vmem>>, vector<1x32xf32>
    %c22 = arith.constant 22 : index
    %c0_133 = arith.constant 0 : index
    %377 = vector.load %arg5[%c22, %c0_133] : memref<56x32xf32, #tpu.memory_space<vmem>>, vector<1x32xf32>
    %c23 = arith.constant 23 : index
    %c0_134 = arith.constant 0 : index
    %378 = vector.load %arg5[%c23, %c0_134] : memref<56x32xf32, #tpu.memory_space<vmem>>, vector<1x32xf32>
    %c0_135 = arith.constant 0 : index
    %c0_136 = arith.constant 0 : index
    %379 = vector.load %arg4[%c0_135, %c0_136] : memref<448x96xf32, #tpu.memory_space<vmem>>, vector<32x96xf32>
    %c32_137 = arith.constant 32 : index
    %c0_138 = arith.constant 0 : index
    %380 = vector.load %arg4[%c32_137, %c0_138] : memref<448x96xf32, #tpu.memory_space<vmem>>, vector<32x32xf32>
    %c64_139 = arith.constant 64 : index
    %c0_140 = arith.constant 0 : index
    %381 = vector.load %arg4[%c64_139, %c0_140] : memref<448x96xf32, #tpu.memory_space<vmem>>, vector<32x32xf32>
    %c96_141 = arith.constant 96 : index
    %c0_142 = arith.constant 0 : index
    %382 = vector.load %arg4[%c96_141, %c0_142] : memref<448x96xf32, #tpu.memory_space<vmem>>, vector<32x64xf32>
    %c128_143 = arith.constant 128 : index
    %c0_144 = arith.constant 0 : index
    %383 = vector.load %arg4[%c128_143, %c0_144] : memref<448x96xf32, #tpu.memory_space<vmem>>, vector<32x32xf32>
    %c160_145 = arith.constant 160 : index
    %c0_146 = arith.constant 0 : index
    %384 = vector.load %arg4[%c160_145, %c0_146] : memref<448x96xf32, #tpu.memory_space<vmem>>, vector<32x32xf32>
    %c192_147 = arith.constant 192 : index
    %c0_148 = arith.constant 0 : index
    %385 = vector.load %arg4[%c192_147, %c0_148] : memref<448x96xf32, #tpu.memory_space<vmem>>, vector<32x32xf32>
    %386 = vector.shape_cast %362 : vector<8x32xf32> to vector<1x8x32xf32>
    %387 = vector.shape_cast %386 : vector<1x8x32xf32> to vector<1x8x32xf32>
    %388 = vector.broadcast %387 : vector<1x8x32xf32> to vector<2x8x32xf32>
    %389 = vector.shape_cast %388 : vector<2x8x32xf32> to vector<16x32xf32>
    %390 = arith.addf %361, %389 : vector<16x32xf32>
    %cst_149 = arith.constant dense<0.000000e+00> : vector<16xf32>
    %391 = vector.multi_reduction <add>, %390, %cst_149 [1] : vector<16x32xf32> to vector<16xf32>
    %392 = vector.shape_cast %391 : vector<16xf32> to vector<16x1xf32>
    %cst_150 = arith.constant 3.200000e+01 : f32
    %393 = vector.broadcast %cst_150 : f32 to vector<16x1xf32>
    %394 = arith.divf %392, %393 : vector<16x1xf32>
    %395 = vector.broadcast %394 : vector<16x1xf32> to vector<16x32xf32>
    %396 = arith.subf %390, %395 : vector<16x32xf32>
    %397 = arith.mulf %396, %396 : vector<16x32xf32>
    %cst_151 = arith.constant dense<0.000000e+00> : vector<16xf32>
    %398 = vector.multi_reduction <add>, %397, %cst_151 [1] : vector<16x32xf32> to vector<16xf32>
    %399 = vector.shape_cast %398 : vector<16xf32> to vector<16x1xf32>
    %cst_152 = arith.constant 3.200000e+01 : f32
    %400 = vector.broadcast %cst_152 : f32 to vector<16x1xf32>
    %401 = arith.divf %399, %400 : vector<16x1xf32>
    %cst_153 = arith.constant 9.99999974E-6 : f32
    %402 = vector.broadcast %cst_153 : f32 to vector<16x1xf32>
    %403 = arith.addf %401, %402 : vector<16x1xf32>
    %404 = math.rsqrt %403 : vector<16x1xf32>
    %405 = vector.broadcast %404 : vector<16x1xf32> to vector<16x32xf32>
    %406 = arith.mulf %396, %405 : vector<16x32xf32>
    %407 = vector.broadcast %363 : vector<1x32xf32> to vector<16x32xf32>
    %408 = arith.mulf %406, %407 : vector<16x32xf32>
    %409 = vector.broadcast %364 : vector<1x32xf32> to vector<16x32xf32>
    %410 = arith.addf %408, %409 : vector<16x32xf32>
    %cst_154 = arith.constant dense<0.000000e+00> : vector<16x96xf32>
    %411 = tpu.matmul %410, %379, %cst_154 {dimension_numbers = #tpu.dot_dimension_numbers<[1], [0], [0], [1], [0, 0, 1, 1], [], []>} : vector<16x32xf32>, vector<32x96xf32>, vector<16x96xf32> -> vector<16x96xf32>
    %412 = vector.extract_strided_slice %411 {offsets = [0, 0], sizes = [16, 32], strides = [1, 1]} : vector<16x96xf32> to vector<16x32xf32>
    %413 = vector.broadcast %369 : vector<1x32xf32> to vector<16x32xf32>
    %414 = arith.addf %412, %413 : vector<16x32xf32>
    %415 = vector.extract_strided_slice %411 {offsets = [0, 32], sizes = [16, 32], strides = [1, 1]} : vector<16x96xf32> to vector<16x32xf32>
    %416 = vector.broadcast %370 : vector<1x32xf32> to vector<16x32xf32>
    %417 = arith.addf %415, %416 : vector<16x32xf32>
    %418 = vector.extract_strided_slice %411 {offsets = [0, 64], sizes = [16, 32], strides = [1, 1]} : vector<16x96xf32> to vector<16x32xf32>
    %419 = vector.broadcast %371 : vector<1x32xf32> to vector<16x32xf32>
    %420 = arith.addf %418, %419 : vector<16x32xf32>
    %421 = vector.extract_strided_slice %414 {offsets = [0, 0], sizes = [16, 8], strides = [1, 1]} : vector<16x32xf32> to vector<16x8xf32>
    %422 = vector.shape_cast %421 : vector<16x8xf32> to vector<2x8x8xf32>
    %423 = vector.extract_strided_slice %417 {offsets = [0, 0], sizes = [16, 8], strides = [1, 1]} : vector<16x32xf32> to vector<16x8xf32>
    %424 = vector.shape_cast %423 : vector<16x8xf32> to vector<2x8x8xf32>
    %425 = vector.extract_strided_slice %420 {offsets = [0, 0], sizes = [16, 8], strides = [1, 1]} : vector<16x32xf32> to vector<16x8xf32>
    %426 = vector.shape_cast %425 : vector<16x8xf32> to vector<2x8x8xf32>
    %cst_155 = arith.constant dense<0.000000e+00> : vector<2x8x8xf32>
    %427 = tpu.matmul %422, %424, %cst_155 {dimension_numbers = #tpu.dot_dimension_numbers<[2], [2], [1], [1], [0, 0, 0, 1, 1, 1], [0], [0]>} : vector<2x8x8xf32>, vector<2x8x8xf32>, vector<2x8x8xf32> -> vector<2x8x8xf32>
    %cst_156 = arith.constant 0.353553385 : f32
    %428 = vector.broadcast %cst_156 : f32 to vector<2x8x8xf32>
    %429 = arith.mulf %427, %428 : vector<2x8x8xf32>
    %430 = vector.shape_cast %5 : vector<8x8xf32> to vector<1x8x8xf32>
    %431 = vector.broadcast %430 : vector<1x8x8xf32> to vector<2x8x8xf32>
    %432 = arith.addf %429, %431 : vector<2x8x8xf32>
    %cst_157 = arith.constant dense<0xFF800000> : vector<2x8xf32>
    %433 = vector.multi_reduction <maximumf>, %432, %cst_157 [2] : vector<2x8x8xf32> to vector<2x8xf32>
    %434 = vector.shape_cast %433 : vector<2x8xf32> to vector<2x8x1xf32>
    %435 = vector.broadcast %434 : vector<2x8x1xf32> to vector<2x8x8xf32>
    %436 = arith.subf %432, %435 : vector<2x8x8xf32>
    %437 = math.exp %436 : vector<2x8x8xf32>
    %cst_158 = arith.constant dense<0.000000e+00> : vector<2x8xf32>
    %438 = vector.multi_reduction <add>, %437, %cst_158 [2] : vector<2x8x8xf32> to vector<2x8xf32>
    %439 = vector.shape_cast %438 : vector<2x8xf32> to vector<2x8x1xf32>
    %440 = tpu.reciprocal %439 {approx = true} : vector<2x8x1xf32> -> vector<2x8x1xf32>
    %441 = vector.broadcast %440 : vector<2x8x1xf32> to vector<2x8x8xf32>
    %442 = arith.mulf %437, %441 : vector<2x8x8xf32>
    %cst_159 = arith.constant dense<0.000000e+00> : vector<2x8x8xf32>
    %443 = tpu.matmul %442, %426, %cst_159 {dimension_numbers = #tpu.dot_dimension_numbers<[2], [1], [1], [2], [0, 0, 0, 1, 1, 2], [0], [0]>} : vector<2x8x8xf32>, vector<2x8x8xf32>, vector<2x8x8xf32> -> vector<2x8x8xf32>
    %444 = vector.extract_strided_slice %414 {offsets = [0, 8], sizes = [16, 8], strides = [1, 1]} : vector<16x32xf32> to vector<16x8xf32>
    %445 = vector.shape_cast %444 : vector<16x8xf32> to vector<2x8x8xf32>
    %446 = vector.extract_strided_slice %417 {offsets = [0, 8], sizes = [16, 8], strides = [1, 1]} : vector<16x32xf32> to vector<16x8xf32>
    %447 = vector.shape_cast %446 : vector<16x8xf32> to vector<2x8x8xf32>
    %448 = vector.extract_strided_slice %420 {offsets = [0, 8], sizes = [16, 8], strides = [1, 1]} : vector<16x32xf32> to vector<16x8xf32>
    %449 = vector.shape_cast %448 : vector<16x8xf32> to vector<2x8x8xf32>
    %cst_160 = arith.constant dense<0.000000e+00> : vector<2x8x8xf32>
    %450 = tpu.matmul %445, %447, %cst_160 {dimension_numbers = #tpu.dot_dimension_numbers<[2], [2], [1], [1], [0, 0, 0, 1, 1, 1], [0], [0]>} : vector<2x8x8xf32>, vector<2x8x8xf32>, vector<2x8x8xf32> -> vector<2x8x8xf32>
    %cst_161 = arith.constant 0.353553385 : f32
    %451 = vector.broadcast %cst_161 : f32 to vector<2x8x8xf32>
    %452 = arith.mulf %450, %451 : vector<2x8x8xf32>
    %453 = vector.shape_cast %5 : vector<8x8xf32> to vector<1x8x8xf32>
    %454 = vector.broadcast %453 : vector<1x8x8xf32> to vector<2x8x8xf32>
    %455 = arith.addf %452, %454 : vector<2x8x8xf32>
    %cst_162 = arith.constant dense<0xFF800000> : vector<2x8xf32>
    %456 = vector.multi_reduction <maximumf>, %455, %cst_162 [2] : vector<2x8x8xf32> to vector<2x8xf32>
    %457 = vector.shape_cast %456 : vector<2x8xf32> to vector<2x8x1xf32>
    %458 = vector.broadcast %457 : vector<2x8x1xf32> to vector<2x8x8xf32>
    %459 = arith.subf %455, %458 : vector<2x8x8xf32>
    %460 = math.exp %459 : vector<2x8x8xf32>
    %cst_163 = arith.constant dense<0.000000e+00> : vector<2x8xf32>
    %461 = vector.multi_reduction <add>, %460, %cst_163 [2] : vector<2x8x8xf32> to vector<2x8xf32>
    %462 = vector.shape_cast %461 : vector<2x8xf32> to vector<2x8x1xf32>
    %463 = tpu.reciprocal %462 {approx = true} : vector<2x8x1xf32> -> vector<2x8x1xf32>
    %464 = vector.broadcast %463 : vector<2x8x1xf32> to vector<2x8x8xf32>
    %465 = arith.mulf %460, %464 : vector<2x8x8xf32>
    %cst_164 = arith.constant dense<0.000000e+00> : vector<2x8x8xf32>
    %466 = tpu.matmul %465, %449, %cst_164 {dimension_numbers = #tpu.dot_dimension_numbers<[2], [1], [1], [2], [0, 0, 0, 1, 1, 2], [0], [0]>} : vector<2x8x8xf32>, vector<2x8x8xf32>, vector<2x8x8xf32> -> vector<2x8x8xf32>
    %467 = vector.extract_strided_slice %414 {offsets = [0, 16], sizes = [16, 8], strides = [1, 1]} : vector<16x32xf32> to vector<16x8xf32>
    %468 = vector.shape_cast %467 : vector<16x8xf32> to vector<2x8x8xf32>
    %469 = vector.extract_strided_slice %417 {offsets = [0, 16], sizes = [16, 8], strides = [1, 1]} : vector<16x32xf32> to vector<16x8xf32>
    %470 = vector.shape_cast %469 : vector<16x8xf32> to vector<2x8x8xf32>
    %471 = vector.extract_strided_slice %420 {offsets = [0, 16], sizes = [16, 8], strides = [1, 1]} : vector<16x32xf32> to vector<16x8xf32>
    %472 = vector.shape_cast %471 : vector<16x8xf32> to vector<2x8x8xf32>
    %cst_165 = arith.constant dense<0.000000e+00> : vector<2x8x8xf32>
    %473 = tpu.matmul %468, %470, %cst_165 {dimension_numbers = #tpu.dot_dimension_numbers<[2], [2], [1], [1], [0, 0, 0, 1, 1, 1], [0], [0]>} : vector<2x8x8xf32>, vector<2x8x8xf32>, vector<2x8x8xf32> -> vector<2x8x8xf32>
    %cst_166 = arith.constant 0.353553385 : f32
    %474 = vector.broadcast %cst_166 : f32 to vector<2x8x8xf32>
    %475 = arith.mulf %473, %474 : vector<2x8x8xf32>
    %476 = vector.shape_cast %5 : vector<8x8xf32> to vector<1x8x8xf32>
    %477 = vector.broadcast %476 : vector<1x8x8xf32> to vector<2x8x8xf32>
    %478 = arith.addf %475, %477 : vector<2x8x8xf32>
    %cst_167 = arith.constant dense<0xFF800000> : vector<2x8xf32>
    %479 = vector.multi_reduction <maximumf>, %478, %cst_167 [2] : vector<2x8x8xf32> to vector<2x8xf32>
    %480 = vector.shape_cast %479 : vector<2x8xf32> to vector<2x8x1xf32>
    %481 = vector.broadcast %480 : vector<2x8x1xf32> to vector<2x8x8xf32>
    %482 = arith.subf %478, %481 : vector<2x8x8xf32>
    %483 = math.exp %482 : vector<2x8x8xf32>
    %cst_168 = arith.constant dense<0.000000e+00> : vector<2x8xf32>
    %484 = vector.multi_reduction <add>, %483, %cst_168 [2] : vector<2x8x8xf32> to vector<2x8xf32>
    %485 = vector.shape_cast %484 : vector<2x8xf32> to vector<2x8x1xf32>
    %486 = tpu.reciprocal %485 {approx = true} : vector<2x8x1xf32> -> vector<2x8x1xf32>
    %487 = vector.broadcast %486 : vector<2x8x1xf32> to vector<2x8x8xf32>
    %488 = arith.mulf %483, %487 : vector<2x8x8xf32>
    %cst_169 = arith.constant dense<0.000000e+00> : vector<2x8x8xf32>
    %489 = tpu.matmul %488, %472, %cst_169 {dimension_numbers = #tpu.dot_dimension_numbers<[2], [1], [1], [2], [0, 0, 0, 1, 1, 2], [0], [0]>} : vector<2x8x8xf32>, vector<2x8x8xf32>, vector<2x8x8xf32> -> vector<2x8x8xf32>
    %490 = vector.extract_strided_slice %414 {offsets = [0, 24], sizes = [16, 8], strides = [1, 1]} : vector<16x32xf32> to vector<16x8xf32>
    %491 = vector.shape_cast %490 : vector<16x8xf32> to vector<2x8x8xf32>
    %492 = vector.extract_strided_slice %417 {offsets = [0, 24], sizes = [16, 8], strides = [1, 1]} : vector<16x32xf32> to vector<16x8xf32>
    %493 = vector.shape_cast %492 : vector<16x8xf32> to vector<2x8x8xf32>
    %494 = vector.extract_strided_slice %420 {offsets = [0, 24], sizes = [16, 8], strides = [1, 1]} : vector<16x32xf32> to vector<16x8xf32>
    %495 = vector.shape_cast %494 : vector<16x8xf32> to vector<2x8x8xf32>
    %cst_170 = arith.constant dense<0.000000e+00> : vector<2x8x8xf32>
    %496 = tpu.matmul %491, %493, %cst_170 {dimension_numbers = #tpu.dot_dimension_numbers<[2], [2], [1], [1], [0, 0, 0, 1, 1, 1], [0], [0]>} : vector<2x8x8xf32>, vector<2x8x8xf32>, vector<2x8x8xf32> -> vector<2x8x8xf32>
    %cst_171 = arith.constant 0.353553385 : f32
    %497 = vector.broadcast %cst_171 : f32 to vector<2x8x8xf32>
    %498 = arith.mulf %496, %497 : vector<2x8x8xf32>
    %499 = vector.shape_cast %5 : vector<8x8xf32> to vector<1x8x8xf32>
    %500 = vector.broadcast %499 : vector<1x8x8xf32> to vector<2x8x8xf32>
    %501 = arith.addf %498, %500 : vector<2x8x8xf32>
    %cst_172 = arith.constant dense<0xFF800000> : vector<2x8xf32>
    %502 = vector.multi_reduction <maximumf>, %501, %cst_172 [2] : vector<2x8x8xf32> to vector<2x8xf32>
    %503 = vector.shape_cast %502 : vector<2x8xf32> to vector<2x8x1xf32>
    %504 = vector.broadcast %503 : vector<2x8x1xf32> to vector<2x8x8xf32>
    %505 = arith.subf %501, %504 : vector<2x8x8xf32>
    %506 = math.exp %505 : vector<2x8x8xf32>
    %cst_173 = arith.constant dense<0.000000e+00> : vector<2x8xf32>
    %507 = vector.multi_reduction <add>, %506, %cst_173 [2] : vector<2x8x8xf32> to vector<2x8xf32>
    %508 = vector.shape_cast %507 : vector<2x8xf32> to vector<2x8x1xf32>
    %509 = tpu.reciprocal %508 {approx = true} : vector<2x8x1xf32> -> vector<2x8x1xf32>
    %510 = vector.broadcast %509 : vector<2x8x1xf32> to vector<2x8x8xf32>
    %511 = arith.mulf %506, %510 : vector<2x8x8xf32>
    %cst_174 = arith.constant dense<0.000000e+00> : vector<2x8x8xf32>
    %512 = tpu.matmul %511, %495, %cst_174 {dimension_numbers = #tpu.dot_dimension_numbers<[2], [1], [1], [2], [0, 0, 0, 1, 1, 2], [0], [0]>} : vector<2x8x8xf32>, vector<2x8x8xf32>, vector<2x8x8xf32> -> vector<2x8x8xf32>
    %513 = tpu.concatenate %443, %466, %489, %512 in 2 : vector<2x8x8xf32>, vector<2x8x8xf32>, vector<2x8x8xf32>, vector<2x8x8xf32> -> vector<2x8x32xf32>
    %514 = vector.shape_cast %513 : vector<2x8x32xf32> to vector<16x32xf32>
    %cst_175 = arith.constant dense<0.000000e+00> : vector<16x32xf32>
    %515 = tpu.matmul %514, %380, %cst_175 {dimension_numbers = #tpu.dot_dimension_numbers<[1], [0], [0], [1], [0, 0, 1, 1], [], []>} : vector<16x32xf32>, vector<32x32xf32>, vector<16x32xf32> -> vector<16x32xf32>
    %516 = vector.broadcast %372 : vector<1x32xf32> to vector<16x32xf32>
    %517 = arith.addf %515, %516 : vector<16x32xf32>
    %518 = arith.addf %410, %517 : vector<16x32xf32>
    %cst_176 = arith.constant dense<0.000000e+00> : vector<16xf32>
    %519 = vector.multi_reduction <add>, %360, %cst_176 [1] : vector<16x32xf32> to vector<16xf32>
    %520 = vector.shape_cast %519 : vector<16xf32> to vector<16x1xf32>
    %cst_177 = arith.constant 3.200000e+01 : f32
    %521 = vector.broadcast %cst_177 : f32 to vector<16x1xf32>
    %522 = arith.divf %520, %521 : vector<16x1xf32>
    %523 = vector.broadcast %522 : vector<16x1xf32> to vector<16x32xf32>
    %524 = arith.subf %360, %523 : vector<16x32xf32>
    %525 = arith.mulf %524, %524 : vector<16x32xf32>
    %cst_178 = arith.constant dense<0.000000e+00> : vector<16xf32>
    %526 = vector.multi_reduction <add>, %525, %cst_178 [1] : vector<16x32xf32> to vector<16xf32>
    %527 = vector.shape_cast %526 : vector<16xf32> to vector<16x1xf32>
    %cst_179 = arith.constant 3.200000e+01 : f32
    %528 = vector.broadcast %cst_179 : f32 to vector<16x1xf32>
    %529 = arith.divf %527, %528 : vector<16x1xf32>
    %cst_180 = arith.constant 9.99999974E-6 : f32
    %530 = vector.broadcast %cst_180 : f32 to vector<16x1xf32>
    %531 = arith.addf %529, %530 : vector<16x1xf32>
    %532 = math.rsqrt %531 : vector<16x1xf32>
    %533 = vector.broadcast %532 : vector<16x1xf32> to vector<16x32xf32>
    %534 = arith.mulf %524, %533 : vector<16x32xf32>
    %535 = vector.broadcast %365 : vector<1x32xf32> to vector<16x32xf32>
    %536 = arith.mulf %534, %535 : vector<16x32xf32>
    %537 = vector.broadcast %366 : vector<1x32xf32> to vector<16x32xf32>
    %538 = arith.addf %536, %537 : vector<16x32xf32>
    %cst_181 = arith.constant dense<0.000000e+00> : vector<16x32xf32>
    %539 = tpu.matmul %518, %381, %cst_181 {dimension_numbers = #tpu.dot_dimension_numbers<[1], [0], [0], [1], [0, 0, 1, 1], [], []>} : vector<16x32xf32>, vector<32x32xf32>, vector<16x32xf32> -> vector<16x32xf32>
    %540 = vector.broadcast %373 : vector<1x32xf32> to vector<16x32xf32>
    %541 = arith.addf %539, %540 : vector<16x32xf32>
    %cst_182 = arith.constant dense<0.000000e+00> : vector<16x64xf32>
    %542 = tpu.matmul %538, %382, %cst_182 {dimension_numbers = #tpu.dot_dimension_numbers<[1], [0], [0], [1], [0, 0, 1, 1], [], []>} : vector<16x32xf32>, vector<32x64xf32>, vector<16x64xf32> -> vector<16x64xf32>
    %543 = vector.extract_strided_slice %542 {offsets = [0, 0], sizes = [16, 32], strides = [1, 1]} : vector<16x64xf32> to vector<16x32xf32>
    %544 = vector.broadcast %374 : vector<1x32xf32> to vector<16x32xf32>
    %545 = arith.addf %543, %544 : vector<16x32xf32>
    %546 = vector.extract_strided_slice %542 {offsets = [0, 32], sizes = [16, 32], strides = [1, 1]} : vector<16x64xf32> to vector<16x32xf32>
    %547 = vector.broadcast %375 : vector<1x32xf32> to vector<16x32xf32>
    %548 = arith.addf %546, %547 : vector<16x32xf32>
    %549 = vector.extract_strided_slice %541 {offsets = [0, 0], sizes = [16, 8], strides = [1, 1]} : vector<16x32xf32> to vector<16x8xf32>
    %550 = vector.shape_cast %549 : vector<16x8xf32> to vector<2x8x8xf32>
    %551 = vector.extract_strided_slice %545 {offsets = [0, 0], sizes = [16, 8], strides = [1, 1]} : vector<16x32xf32> to vector<16x8xf32>
    %552 = vector.shape_cast %551 : vector<16x8xf32> to vector<2x8x8xf32>
    %553 = vector.extract_strided_slice %548 {offsets = [0, 0], sizes = [16, 8], strides = [1, 1]} : vector<16x32xf32> to vector<16x8xf32>
    %554 = vector.shape_cast %553 : vector<16x8xf32> to vector<2x8x8xf32>
    %cst_183 = arith.constant dense<0.000000e+00> : vector<2x8x8xf32>
    %555 = tpu.matmul %550, %552, %cst_183 {dimension_numbers = #tpu.dot_dimension_numbers<[2], [2], [1], [1], [0, 0, 0, 1, 1, 1], [0], [0]>} : vector<2x8x8xf32>, vector<2x8x8xf32>, vector<2x8x8xf32> -> vector<2x8x8xf32>
    %cst_184 = arith.constant 0.353553385 : f32
    %556 = vector.broadcast %cst_184 : f32 to vector<2x8x8xf32>
    %557 = arith.mulf %555, %556 : vector<2x8x8xf32>
    %558 = vector.shape_cast %5 : vector<8x8xf32> to vector<1x8x8xf32>
    %559 = vector.broadcast %558 : vector<1x8x8xf32> to vector<2x8x8xf32>
    %560 = arith.addf %557, %559 : vector<2x8x8xf32>
    %cst_185 = arith.constant dense<0xFF800000> : vector<2x8xf32>
    %561 = vector.multi_reduction <maximumf>, %560, %cst_185 [2] : vector<2x8x8xf32> to vector<2x8xf32>
    %562 = vector.shape_cast %561 : vector<2x8xf32> to vector<2x8x1xf32>
    %563 = vector.broadcast %562 : vector<2x8x1xf32> to vector<2x8x8xf32>
    %564 = arith.subf %560, %563 : vector<2x8x8xf32>
    %565 = math.exp %564 : vector<2x8x8xf32>
    %cst_186 = arith.constant dense<0.000000e+00> : vector<2x8xf32>
    %566 = vector.multi_reduction <add>, %565, %cst_186 [2] : vector<2x8x8xf32> to vector<2x8xf32>
    %567 = vector.shape_cast %566 : vector<2x8xf32> to vector<2x8x1xf32>
    %568 = tpu.reciprocal %567 {approx = true} : vector<2x8x1xf32> -> vector<2x8x1xf32>
    %569 = vector.broadcast %568 : vector<2x8x1xf32> to vector<2x8x8xf32>
    %570 = arith.mulf %565, %569 : vector<2x8x8xf32>
    %cst_187 = arith.constant dense<0.000000e+00> : vector<2x8x8xf32>
    %571 = tpu.matmul %570, %554, %cst_187 {dimension_numbers = #tpu.dot_dimension_numbers<[2], [1], [1], [2], [0, 0, 0, 1, 1, 2], [0], [0]>} : vector<2x8x8xf32>, vector<2x8x8xf32>, vector<2x8x8xf32> -> vector<2x8x8xf32>
    %572 = vector.extract_strided_slice %541 {offsets = [0, 8], sizes = [16, 8], strides = [1, 1]} : vector<16x32xf32> to vector<16x8xf32>
    %573 = vector.shape_cast %572 : vector<16x8xf32> to vector<2x8x8xf32>
    %574 = vector.extract_strided_slice %545 {offsets = [0, 8], sizes = [16, 8], strides = [1, 1]} : vector<16x32xf32> to vector<16x8xf32>
    %575 = vector.shape_cast %574 : vector<16x8xf32> to vector<2x8x8xf32>
    %576 = vector.extract_strided_slice %548 {offsets = [0, 8], sizes = [16, 8], strides = [1, 1]} : vector<16x32xf32> to vector<16x8xf32>
    %577 = vector.shape_cast %576 : vector<16x8xf32> to vector<2x8x8xf32>
    %cst_188 = arith.constant dense<0.000000e+00> : vector<2x8x8xf32>
    %578 = tpu.matmul %573, %575, %cst_188 {dimension_numbers = #tpu.dot_dimension_numbers<[2], [2], [1], [1], [0, 0, 0, 1, 1, 1], [0], [0]>} : vector<2x8x8xf32>, vector<2x8x8xf32>, vector<2x8x8xf32> -> vector<2x8x8xf32>
    %cst_189 = arith.constant 0.353553385 : f32
    %579 = vector.broadcast %cst_189 : f32 to vector<2x8x8xf32>
    %580 = arith.mulf %578, %579 : vector<2x8x8xf32>
    %581 = vector.shape_cast %5 : vector<8x8xf32> to vector<1x8x8xf32>
    %582 = vector.broadcast %581 : vector<1x8x8xf32> to vector<2x8x8xf32>
    %583 = arith.addf %580, %582 : vector<2x8x8xf32>
    %cst_190 = arith.constant dense<0xFF800000> : vector<2x8xf32>
    %584 = vector.multi_reduction <maximumf>, %583, %cst_190 [2] : vector<2x8x8xf32> to vector<2x8xf32>
    %585 = vector.shape_cast %584 : vector<2x8xf32> to vector<2x8x1xf32>
    %586 = vector.broadcast %585 : vector<2x8x1xf32> to vector<2x8x8xf32>
    %587 = arith.subf %583, %586 : vector<2x8x8xf32>
    %588 = math.exp %587 : vector<2x8x8xf32>
    %cst_191 = arith.constant dense<0.000000e+00> : vector<2x8xf32>
    %589 = vector.multi_reduction <add>, %588, %cst_191 [2] : vector<2x8x8xf32> to vector<2x8xf32>
    %590 = vector.shape_cast %589 : vector<2x8xf32> to vector<2x8x1xf32>
    %591 = tpu.reciprocal %590 {approx = true} : vector<2x8x1xf32> -> vector<2x8x1xf32>
    %592 = vector.broadcast %591 : vector<2x8x1xf32> to vector<2x8x8xf32>
    %593 = arith.mulf %588, %592 : vector<2x8x8xf32>
    %cst_192 = arith.constant dense<0.000000e+00> : vector<2x8x8xf32>
    %594 = tpu.matmul %593, %577, %cst_192 {dimension_numbers = #tpu.dot_dimension_numbers<[2], [1], [1], [2], [0, 0, 0, 1, 1, 2], [0], [0]>} : vector<2x8x8xf32>, vector<2x8x8xf32>, vector<2x8x8xf32> -> vector<2x8x8xf32>
    %595 = vector.extract_strided_slice %541 {offsets = [0, 16], sizes = [16, 8], strides = [1, 1]} : vector<16x32xf32> to vector<16x8xf32>
    %596 = vector.shape_cast %595 : vector<16x8xf32> to vector<2x8x8xf32>
    %597 = vector.extract_strided_slice %545 {offsets = [0, 16], sizes = [16, 8], strides = [1, 1]} : vector<16x32xf32> to vector<16x8xf32>
    %598 = vector.shape_cast %597 : vector<16x8xf32> to vector<2x8x8xf32>
    %599 = vector.extract_strided_slice %548 {offsets = [0, 16], sizes = [16, 8], strides = [1, 1]} : vector<16x32xf32> to vector<16x8xf32>
    %600 = vector.shape_cast %599 : vector<16x8xf32> to vector<2x8x8xf32>
    %cst_193 = arith.constant dense<0.000000e+00> : vector<2x8x8xf32>
    %601 = tpu.matmul %596, %598, %cst_193 {dimension_numbers = #tpu.dot_dimension_numbers<[2], [2], [1], [1], [0, 0, 0, 1, 1, 1], [0], [0]>} : vector<2x8x8xf32>, vector<2x8x8xf32>, vector<2x8x8xf32> -> vector<2x8x8xf32>
    %cst_194 = arith.constant 0.353553385 : f32
    %602 = vector.broadcast %cst_194 : f32 to vector<2x8x8xf32>
    %603 = arith.mulf %601, %602 : vector<2x8x8xf32>
    %604 = vector.shape_cast %5 : vector<8x8xf32> to vector<1x8x8xf32>
    %605 = vector.broadcast %604 : vector<1x8x8xf32> to vector<2x8x8xf32>
    %606 = arith.addf %603, %605 : vector<2x8x8xf32>
    %cst_195 = arith.constant dense<0xFF800000> : vector<2x8xf32>
    %607 = vector.multi_reduction <maximumf>, %606, %cst_195 [2] : vector<2x8x8xf32> to vector<2x8xf32>
    %608 = vector.shape_cast %607 : vector<2x8xf32> to vector<2x8x1xf32>
    %609 = vector.broadcast %608 : vector<2x8x1xf32> to vector<2x8x8xf32>
    %610 = arith.subf %606, %609 : vector<2x8x8xf32>
    %611 = math.exp %610 : vector<2x8x8xf32>
    %cst_196 = arith.constant dense<0.000000e+00> : vector<2x8xf32>
    %612 = vector.multi_reduction <add>, %611, %cst_196 [2] : vector<2x8x8xf32> to vector<2x8xf32>
    %613 = vector.shape_cast %612 : vector<2x8xf32> to vector<2x8x1xf32>
    %614 = tpu.reciprocal %613 {approx = true} : vector<2x8x1xf32> -> vector<2x8x1xf32>
    %615 = vector.broadcast %614 : vector<2x8x1xf32> to vector<2x8x8xf32>
    %616 = arith.mulf %611, %615 : vector<2x8x8xf32>
    %cst_197 = arith.constant dense<0.000000e+00> : vector<2x8x8xf32>
    %617 = tpu.matmul %616, %600, %cst_197 {dimension_numbers = #tpu.dot_dimension_numbers<[2], [1], [1], [2], [0, 0, 0, 1, 1, 2], [0], [0]>} : vector<2x8x8xf32>, vector<2x8x8xf32>, vector<2x8x8xf32> -> vector<2x8x8xf32>
    %618 = vector.extract_strided_slice %541 {offsets = [0, 24], sizes = [16, 8], strides = [1, 1]} : vector<16x32xf32> to vector<16x8xf32>
    %619 = vector.shape_cast %618 : vector<16x8xf32> to vector<2x8x8xf32>
    %620 = vector.extract_strided_slice %545 {offsets = [0, 24], sizes = [16, 8], strides = [1, 1]} : vector<16x32xf32> to vector<16x8xf32>
    %621 = vector.shape_cast %620 : vector<16x8xf32> to vector<2x8x8xf32>
    %622 = vector.extract_strided_slice %548 {offsets = [0, 24], sizes = [16, 8], strides = [1, 1]} : vector<16x32xf32> to vector<16x8xf32>
    %623 = vector.shape_cast %622 : vector<16x8xf32> to vector<2x8x8xf32>
    %cst_198 = arith.constant dense<0.000000e+00> : vector<2x8x8xf32>
    %624 = tpu.matmul %619, %621, %cst_198 {dimension_numbers = #tpu.dot_dimension_numbers<[2], [2], [1], [1], [0, 0, 0, 1, 1, 1], [0], [0]>} : vector<2x8x8xf32>, vector<2x8x8xf32>, vector<2x8x8xf32> -> vector<2x8x8xf32>
    %cst_199 = arith.constant 0.353553385 : f32
    %625 = vector.broadcast %cst_199 : f32 to vector<2x8x8xf32>
    %626 = arith.mulf %624, %625 : vector<2x8x8xf32>
    %627 = vector.shape_cast %5 : vector<8x8xf32> to vector<1x8x8xf32>
    %628 = vector.broadcast %627 : vector<1x8x8xf32> to vector<2x8x8xf32>
    %629 = arith.addf %626, %628 : vector<2x8x8xf32>
    %cst_200 = arith.constant dense<0xFF800000> : vector<2x8xf32>
    %630 = vector.multi_reduction <maximumf>, %629, %cst_200 [2] : vector<2x8x8xf32> to vector<2x8xf32>
    %631 = vector.shape_cast %630 : vector<2x8xf32> to vector<2x8x1xf32>
    %632 = vector.broadcast %631 : vector<2x8x1xf32> to vector<2x8x8xf32>
    %633 = arith.subf %629, %632 : vector<2x8x8xf32>
    %634 = math.exp %633 : vector<2x8x8xf32>
    %cst_201 = arith.constant dense<0.000000e+00> : vector<2x8xf32>
    %635 = vector.multi_reduction <add>, %634, %cst_201 [2] : vector<2x8x8xf32> to vector<2x8xf32>
    %636 = vector.shape_cast %635 : vector<2x8xf32> to vector<2x8x1xf32>
    %637 = tpu.reciprocal %636 {approx = true} : vector<2x8x1xf32> -> vector<2x8x1xf32>
    %638 = vector.broadcast %637 : vector<2x8x1xf32> to vector<2x8x8xf32>
    %639 = arith.mulf %634, %638 : vector<2x8x8xf32>
    %cst_202 = arith.constant dense<0.000000e+00> : vector<2x8x8xf32>
    %640 = tpu.matmul %639, %623, %cst_202 {dimension_numbers = #tpu.dot_dimension_numbers<[2], [1], [1], [2], [0, 0, 0, 1, 1, 2], [0], [0]>} : vector<2x8x8xf32>, vector<2x8x8xf32>, vector<2x8x8xf32> -> vector<2x8x8xf32>
    %641 = tpu.concatenate %571, %594, %617, %640 in 2 : vector<2x8x8xf32>, vector<2x8x8xf32>, vector<2x8x8xf32>, vector<2x8x8xf32> -> vector<2x8x32xf32>
    %642 = vector.shape_cast %641 : vector<2x8x32xf32> to vector<16x32xf32>
    %cst_203 = arith.constant dense<0.000000e+00> : vector<16x32xf32>
    %643 = tpu.matmul %642, %383, %cst_203 {dimension_numbers = #tpu.dot_dimension_numbers<[1], [0], [0], [1], [0, 0, 1, 1], [], []>} : vector<16x32xf32>, vector<32x32xf32>, vector<16x32xf32> -> vector<16x32xf32>
    %644 = vector.broadcast %376 : vector<1x32xf32> to vector<16x32xf32>
    %645 = arith.addf %643, %644 : vector<16x32xf32>
    %646 = arith.addf %518, %645 : vector<16x32xf32>
    %cst_204 = arith.constant dense<0.000000e+00> : vector<16xf32>
    %647 = vector.multi_reduction <add>, %646, %cst_204 [1] : vector<16x32xf32> to vector<16xf32>
    %648 = vector.shape_cast %647 : vector<16xf32> to vector<16x1xf32>
    %cst_205 = arith.constant 3.200000e+01 : f32
    %649 = vector.broadcast %cst_205 : f32 to vector<16x1xf32>
    %650 = arith.divf %648, %649 : vector<16x1xf32>
    %651 = vector.broadcast %650 : vector<16x1xf32> to vector<16x32xf32>
    %652 = arith.subf %646, %651 : vector<16x32xf32>
    %653 = arith.mulf %652, %652 : vector<16x32xf32>
    %cst_206 = arith.constant dense<0.000000e+00> : vector<16xf32>
    %654 = vector.multi_reduction <add>, %653, %cst_206 [1] : vector<16x32xf32> to vector<16xf32>
    %655 = vector.shape_cast %654 : vector<16xf32> to vector<16x1xf32>
    %cst_207 = arith.constant 3.200000e+01 : f32
    %656 = vector.broadcast %cst_207 : f32 to vector<16x1xf32>
    %657 = arith.divf %655, %656 : vector<16x1xf32>
    %cst_208 = arith.constant 9.99999974E-6 : f32
    %658 = vector.broadcast %cst_208 : f32 to vector<16x1xf32>
    %659 = arith.addf %657, %658 : vector<16x1xf32>
    %660 = math.rsqrt %659 : vector<16x1xf32>
    %661 = vector.broadcast %660 : vector<16x1xf32> to vector<16x32xf32>
    %662 = arith.mulf %652, %661 : vector<16x32xf32>
    %663 = vector.broadcast %367 : vector<1x32xf32> to vector<16x32xf32>
    %664 = arith.mulf %662, %663 : vector<16x32xf32>
    %665 = vector.broadcast %368 : vector<1x32xf32> to vector<16x32xf32>
    %666 = arith.addf %664, %665 : vector<16x32xf32>
    %cst_209 = arith.constant dense<0.000000e+00> : vector<16x32xf32>
    %667 = tpu.matmul %666, %384, %cst_209 {dimension_numbers = #tpu.dot_dimension_numbers<[1], [0], [0], [1], [0, 0, 1, 1], [], []>} : vector<16x32xf32>, vector<32x32xf32>, vector<16x32xf32> -> vector<16x32xf32>
    %668 = vector.broadcast %377 : vector<1x32xf32> to vector<16x32xf32>
    %669 = arith.addf %667, %668 : vector<16x32xf32>
    %cst_210 = arith.constant 0.000000e+00 : f32
    %670 = vector.broadcast %cst_210 : f32 to vector<16x32xf32>
    %671 = arith.maximumf %669, %670 : vector<16x32xf32>
    %cst_211 = arith.constant dense<0.000000e+00> : vector<16x32xf32>
    %672 = tpu.matmul %671, %385, %cst_211 {dimension_numbers = #tpu.dot_dimension_numbers<[1], [0], [0], [1], [0, 0, 1, 1], [], []>} : vector<16x32xf32>, vector<32x32xf32>, vector<16x32xf32> -> vector<16x32xf32>
    %673 = vector.broadcast %378 : vector<1x32xf32> to vector<16x32xf32>
    %674 = arith.addf %672, %673 : vector<16x32xf32>
    %675 = arith.addf %666, %674 : vector<16x32xf32>
    %c24_212 = arith.constant 24 : index
    %c0_213 = arith.constant 0 : index
    %676 = vector.load %arg5[%c24_212, %c0_213] : memref<56x32xf32, #tpu.memory_space<vmem>>, vector<8x32xf32>
    %c32_214 = arith.constant 32 : index
    %c0_215 = arith.constant 0 : index
    %677 = vector.load %arg5[%c32_214, %c0_215] : memref<56x32xf32, #tpu.memory_space<vmem>>, vector<1x32xf32>
    %c33_216 = arith.constant 33 : index
    %c0_217 = arith.constant 0 : index
    %678 = vector.load %arg5[%c33_216, %c0_217] : memref<56x32xf32, #tpu.memory_space<vmem>>, vector<1x32xf32>
    %c34_218 = arith.constant 34 : index
    %c0_219 = arith.constant 0 : index
    %679 = vector.load %arg5[%c34_218, %c0_219] : memref<56x32xf32, #tpu.memory_space<vmem>>, vector<1x32xf32>
    %c35_220 = arith.constant 35 : index
    %c0_221 = arith.constant 0 : index
    %680 = vector.load %arg5[%c35_220, %c0_221] : memref<56x32xf32, #tpu.memory_space<vmem>>, vector<1x32xf32>
    %c36_222 = arith.constant 36 : index
    %c0_223 = arith.constant 0 : index
    %681 = vector.load %arg5[%c36_222, %c0_223] : memref<56x32xf32, #tpu.memory_space<vmem>>, vector<1x32xf32>
    %c37_224 = arith.constant 37 : index
    %c0_225 = arith.constant 0 : index
    %682 = vector.load %arg5[%c37_224, %c0_225] : memref<56x32xf32, #tpu.memory_space<vmem>>, vector<1x32xf32>
    %c38_226 = arith.constant 38 : index
    %c0_227 = arith.constant 0 : index
    %683 = vector.load %arg5[%c38_226, %c0_227] : memref<56x32xf32, #tpu.memory_space<vmem>>, vector<1x32xf32>
    %c39_228 = arith.constant 39 : index
    %c0_229 = arith.constant 0 : index
    %684 = vector.load %arg5[%c39_228, %c0_229] : memref<56x32xf32, #tpu.memory_space<vmem>>, vector<1x32xf32>
    %c40_230 = arith.constant 40 : index
    %c0_231 = arith.constant 0 : index
    %685 = vector.load %arg5[%c40_230, %c0_231] : memref<56x32xf32, #tpu.memory_space<vmem>>, vector<1x32xf32>
    %c41_232 = arith.constant 41 : index
    %c0_233 = arith.constant 0 : index
    %686 = vector.load %arg5[%c41_232, %c0_233] : memref<56x32xf32, #tpu.memory_space<vmem>>, vector<1x32xf32>
    %c42 = arith.constant 42 : index
    %c0_234 = arith.constant 0 : index
    %687 = vector.load %arg5[%c42, %c0_234] : memref<56x32xf32, #tpu.memory_space<vmem>>, vector<1x32xf32>
    %c43 = arith.constant 43 : index
    %c0_235 = arith.constant 0 : index
    %688 = vector.load %arg5[%c43, %c0_235] : memref<56x32xf32, #tpu.memory_space<vmem>>, vector<1x32xf32>
    %c44 = arith.constant 44 : index
    %c0_236 = arith.constant 0 : index
    %689 = vector.load %arg5[%c44, %c0_236] : memref<56x32xf32, #tpu.memory_space<vmem>>, vector<1x32xf32>
    %c45 = arith.constant 45 : index
    %c0_237 = arith.constant 0 : index
    %690 = vector.load %arg5[%c45, %c0_237] : memref<56x32xf32, #tpu.memory_space<vmem>>, vector<1x32xf32>
    %c46 = arith.constant 46 : index
    %c0_238 = arith.constant 0 : index
    %691 = vector.load %arg5[%c46, %c0_238] : memref<56x32xf32, #tpu.memory_space<vmem>>, vector<1x32xf32>
    %c47 = arith.constant 47 : index
    %c0_239 = arith.constant 0 : index
    %692 = vector.load %arg5[%c47, %c0_239] : memref<56x32xf32, #tpu.memory_space<vmem>>, vector<1x32xf32>
    %c224_240 = arith.constant 224 : index
    %c0_241 = arith.constant 0 : index
    %693 = vector.load %arg4[%c224_240, %c0_241] : memref<448x96xf32, #tpu.memory_space<vmem>>, vector<32x96xf32>
    %c256 = arith.constant 256 : index
    %c0_242 = arith.constant 0 : index
    %694 = vector.load %arg4[%c256, %c0_242] : memref<448x96xf32, #tpu.memory_space<vmem>>, vector<32x32xf32>
    %c288 = arith.constant 288 : index
    %c0_243 = arith.constant 0 : index
    %695 = vector.load %arg4[%c288, %c0_243] : memref<448x96xf32, #tpu.memory_space<vmem>>, vector<32x32xf32>
    %c320 = arith.constant 320 : index
    %c0_244 = arith.constant 0 : index
    %696 = vector.load %arg4[%c320, %c0_244] : memref<448x96xf32, #tpu.memory_space<vmem>>, vector<32x64xf32>
    %c352 = arith.constant 352 : index
    %c0_245 = arith.constant 0 : index
    %697 = vector.load %arg4[%c352, %c0_245] : memref<448x96xf32, #tpu.memory_space<vmem>>, vector<32x32xf32>
    %c384 = arith.constant 384 : index
    %c0_246 = arith.constant 0 : index
    %698 = vector.load %arg4[%c384, %c0_246] : memref<448x96xf32, #tpu.memory_space<vmem>>, vector<32x32xf32>
    %c416 = arith.constant 416 : index
    %c0_247 = arith.constant 0 : index
    %699 = vector.load %arg4[%c416, %c0_247] : memref<448x96xf32, #tpu.memory_space<vmem>>, vector<32x32xf32>
    %700 = vector.shape_cast %676 : vector<8x32xf32> to vector<1x8x32xf32>
    %701 = vector.shape_cast %700 : vector<1x8x32xf32> to vector<1x8x32xf32>
    %702 = vector.broadcast %701 : vector<1x8x32xf32> to vector<2x8x32xf32>
    %703 = vector.shape_cast %702 : vector<2x8x32xf32> to vector<16x32xf32>
    %704 = arith.addf %675, %703 : vector<16x32xf32>
    %cst_248 = arith.constant dense<0.000000e+00> : vector<16xf32>
    %705 = vector.multi_reduction <add>, %704, %cst_248 [1] : vector<16x32xf32> to vector<16xf32>
    %706 = vector.shape_cast %705 : vector<16xf32> to vector<16x1xf32>
    %cst_249 = arith.constant 3.200000e+01 : f32
    %707 = vector.broadcast %cst_249 : f32 to vector<16x1xf32>
    %708 = arith.divf %706, %707 : vector<16x1xf32>
    %709 = vector.broadcast %708 : vector<16x1xf32> to vector<16x32xf32>
    %710 = arith.subf %704, %709 : vector<16x32xf32>
    %711 = arith.mulf %710, %710 : vector<16x32xf32>
    %cst_250 = arith.constant dense<0.000000e+00> : vector<16xf32>
    %712 = vector.multi_reduction <add>, %711, %cst_250 [1] : vector<16x32xf32> to vector<16xf32>
    %713 = vector.shape_cast %712 : vector<16xf32> to vector<16x1xf32>
    %cst_251 = arith.constant 3.200000e+01 : f32
    %714 = vector.broadcast %cst_251 : f32 to vector<16x1xf32>
    %715 = arith.divf %713, %714 : vector<16x1xf32>
    %cst_252 = arith.constant 9.99999974E-6 : f32
    %716 = vector.broadcast %cst_252 : f32 to vector<16x1xf32>
    %717 = arith.addf %715, %716 : vector<16x1xf32>
    %718 = math.rsqrt %717 : vector<16x1xf32>
    %719 = vector.broadcast %718 : vector<16x1xf32> to vector<16x32xf32>
    %720 = arith.mulf %710, %719 : vector<16x32xf32>
    %721 = vector.broadcast %677 : vector<1x32xf32> to vector<16x32xf32>
    %722 = arith.mulf %720, %721 : vector<16x32xf32>
    %723 = vector.broadcast %678 : vector<1x32xf32> to vector<16x32xf32>
    %724 = arith.addf %722, %723 : vector<16x32xf32>
    %cst_253 = arith.constant dense<0.000000e+00> : vector<16x96xf32>
    %725 = tpu.matmul %724, %693, %cst_253 {dimension_numbers = #tpu.dot_dimension_numbers<[1], [0], [0], [1], [0, 0, 1, 1], [], []>} : vector<16x32xf32>, vector<32x96xf32>, vector<16x96xf32> -> vector<16x96xf32>
    %726 = vector.extract_strided_slice %725 {offsets = [0, 0], sizes = [16, 32], strides = [1, 1]} : vector<16x96xf32> to vector<16x32xf32>
    %727 = vector.broadcast %683 : vector<1x32xf32> to vector<16x32xf32>
    %728 = arith.addf %726, %727 : vector<16x32xf32>
    %729 = vector.extract_strided_slice %725 {offsets = [0, 32], sizes = [16, 32], strides = [1, 1]} : vector<16x96xf32> to vector<16x32xf32>
    %730 = vector.broadcast %684 : vector<1x32xf32> to vector<16x32xf32>
    %731 = arith.addf %729, %730 : vector<16x32xf32>
    %732 = vector.extract_strided_slice %725 {offsets = [0, 64], sizes = [16, 32], strides = [1, 1]} : vector<16x96xf32> to vector<16x32xf32>
    %733 = vector.broadcast %685 : vector<1x32xf32> to vector<16x32xf32>
    %734 = arith.addf %732, %733 : vector<16x32xf32>
    %735 = vector.extract_strided_slice %728 {offsets = [0, 0], sizes = [16, 8], strides = [1, 1]} : vector<16x32xf32> to vector<16x8xf32>
    %736 = vector.shape_cast %735 : vector<16x8xf32> to vector<2x8x8xf32>
    %737 = vector.extract_strided_slice %731 {offsets = [0, 0], sizes = [16, 8], strides = [1, 1]} : vector<16x32xf32> to vector<16x8xf32>
    %738 = vector.shape_cast %737 : vector<16x8xf32> to vector<2x8x8xf32>
    %739 = vector.extract_strided_slice %734 {offsets = [0, 0], sizes = [16, 8], strides = [1, 1]} : vector<16x32xf32> to vector<16x8xf32>
    %740 = vector.shape_cast %739 : vector<16x8xf32> to vector<2x8x8xf32>
    %cst_254 = arith.constant dense<0.000000e+00> : vector<2x8x8xf32>
    %741 = tpu.matmul %736, %738, %cst_254 {dimension_numbers = #tpu.dot_dimension_numbers<[2], [2], [1], [1], [0, 0, 0, 1, 1, 1], [0], [0]>} : vector<2x8x8xf32>, vector<2x8x8xf32>, vector<2x8x8xf32> -> vector<2x8x8xf32>
    %cst_255 = arith.constant 0.353553385 : f32
    %742 = vector.broadcast %cst_255 : f32 to vector<2x8x8xf32>
    %743 = arith.mulf %741, %742 : vector<2x8x8xf32>
    %744 = vector.shape_cast %5 : vector<8x8xf32> to vector<1x8x8xf32>
    %745 = vector.broadcast %744 : vector<1x8x8xf32> to vector<2x8x8xf32>
    %746 = arith.addf %743, %745 : vector<2x8x8xf32>
    %cst_256 = arith.constant dense<0xFF800000> : vector<2x8xf32>
    %747 = vector.multi_reduction <maximumf>, %746, %cst_256 [2] : vector<2x8x8xf32> to vector<2x8xf32>
    %748 = vector.shape_cast %747 : vector<2x8xf32> to vector<2x8x1xf32>
    %749 = vector.broadcast %748 : vector<2x8x1xf32> to vector<2x8x8xf32>
    %750 = arith.subf %746, %749 : vector<2x8x8xf32>
    %751 = math.exp %750 : vector<2x8x8xf32>
    %cst_257 = arith.constant dense<0.000000e+00> : vector<2x8xf32>
    %752 = vector.multi_reduction <add>, %751, %cst_257 [2] : vector<2x8x8xf32> to vector<2x8xf32>
    %753 = vector.shape_cast %752 : vector<2x8xf32> to vector<2x8x1xf32>
    %754 = tpu.reciprocal %753 {approx = true} : vector<2x8x1xf32> -> vector<2x8x1xf32>
    %755 = vector.broadcast %754 : vector<2x8x1xf32> to vector<2x8x8xf32>
    %756 = arith.mulf %751, %755 : vector<2x8x8xf32>
    %cst_258 = arith.constant dense<0.000000e+00> : vector<2x8x8xf32>
    %757 = tpu.matmul %756, %740, %cst_258 {dimension_numbers = #tpu.dot_dimension_numbers<[2], [1], [1], [2], [0, 0, 0, 1, 1, 2], [0], [0]>} : vector<2x8x8xf32>, vector<2x8x8xf32>, vector<2x8x8xf32> -> vector<2x8x8xf32>
    %758 = vector.extract_strided_slice %728 {offsets = [0, 8], sizes = [16, 8], strides = [1, 1]} : vector<16x32xf32> to vector<16x8xf32>
    %759 = vector.shape_cast %758 : vector<16x8xf32> to vector<2x8x8xf32>
    %760 = vector.extract_strided_slice %731 {offsets = [0, 8], sizes = [16, 8], strides = [1, 1]} : vector<16x32xf32> to vector<16x8xf32>
    %761 = vector.shape_cast %760 : vector<16x8xf32> to vector<2x8x8xf32>
    %762 = vector.extract_strided_slice %734 {offsets = [0, 8], sizes = [16, 8], strides = [1, 1]} : vector<16x32xf32> to vector<16x8xf32>
    %763 = vector.shape_cast %762 : vector<16x8xf32> to vector<2x8x8xf32>
    %cst_259 = arith.constant dense<0.000000e+00> : vector<2x8x8xf32>
    %764 = tpu.matmul %759, %761, %cst_259 {dimension_numbers = #tpu.dot_dimension_numbers<[2], [2], [1], [1], [0, 0, 0, 1, 1, 1], [0], [0]>} : vector<2x8x8xf32>, vector<2x8x8xf32>, vector<2x8x8xf32> -> vector<2x8x8xf32>
    %cst_260 = arith.constant 0.353553385 : f32
    %765 = vector.broadcast %cst_260 : f32 to vector<2x8x8xf32>
    %766 = arith.mulf %764, %765 : vector<2x8x8xf32>
    %767 = vector.shape_cast %5 : vector<8x8xf32> to vector<1x8x8xf32>
    %768 = vector.broadcast %767 : vector<1x8x8xf32> to vector<2x8x8xf32>
    %769 = arith.addf %766, %768 : vector<2x8x8xf32>
    %cst_261 = arith.constant dense<0xFF800000> : vector<2x8xf32>
    %770 = vector.multi_reduction <maximumf>, %769, %cst_261 [2] : vector<2x8x8xf32> to vector<2x8xf32>
    %771 = vector.shape_cast %770 : vector<2x8xf32> to vector<2x8x1xf32>
    %772 = vector.broadcast %771 : vector<2x8x1xf32> to vector<2x8x8xf32>
    %773 = arith.subf %769, %772 : vector<2x8x8xf32>
    %774 = math.exp %773 : vector<2x8x8xf32>
    %cst_262 = arith.constant dense<0.000000e+00> : vector<2x8xf32>
    %775 = vector.multi_reduction <add>, %774, %cst_262 [2] : vector<2x8x8xf32> to vector<2x8xf32>
    %776 = vector.shape_cast %775 : vector<2x8xf32> to vector<2x8x1xf32>
    %777 = tpu.reciprocal %776 {approx = true} : vector<2x8x1xf32> -> vector<2x8x1xf32>
    %778 = vector.broadcast %777 : vector<2x8x1xf32> to vector<2x8x8xf32>
    %779 = arith.mulf %774, %778 : vector<2x8x8xf32>
    %cst_263 = arith.constant dense<0.000000e+00> : vector<2x8x8xf32>
    %780 = tpu.matmul %779, %763, %cst_263 {dimension_numbers = #tpu.dot_dimension_numbers<[2], [1], [1], [2], [0, 0, 0, 1, 1, 2], [0], [0]>} : vector<2x8x8xf32>, vector<2x8x8xf32>, vector<2x8x8xf32> -> vector<2x8x8xf32>
    %781 = vector.extract_strided_slice %728 {offsets = [0, 16], sizes = [16, 8], strides = [1, 1]} : vector<16x32xf32> to vector<16x8xf32>
    %782 = vector.shape_cast %781 : vector<16x8xf32> to vector<2x8x8xf32>
    %783 = vector.extract_strided_slice %731 {offsets = [0, 16], sizes = [16, 8], strides = [1, 1]} : vector<16x32xf32> to vector<16x8xf32>
    %784 = vector.shape_cast %783 : vector<16x8xf32> to vector<2x8x8xf32>
    %785 = vector.extract_strided_slice %734 {offsets = [0, 16], sizes = [16, 8], strides = [1, 1]} : vector<16x32xf32> to vector<16x8xf32>
    %786 = vector.shape_cast %785 : vector<16x8xf32> to vector<2x8x8xf32>
    %cst_264 = arith.constant dense<0.000000e+00> : vector<2x8x8xf32>
    %787 = tpu.matmul %782, %784, %cst_264 {dimension_numbers = #tpu.dot_dimension_numbers<[2], [2], [1], [1], [0, 0, 0, 1, 1, 1], [0], [0]>} : vector<2x8x8xf32>, vector<2x8x8xf32>, vector<2x8x8xf32> -> vector<2x8x8xf32>
    %cst_265 = arith.constant 0.353553385 : f32
    %788 = vector.broadcast %cst_265 : f32 to vector<2x8x8xf32>
    %789 = arith.mulf %787, %788 : vector<2x8x8xf32>
    %790 = vector.shape_cast %5 : vector<8x8xf32> to vector<1x8x8xf32>
    %791 = vector.broadcast %790 : vector<1x8x8xf32> to vector<2x8x8xf32>
    %792 = arith.addf %789, %791 : vector<2x8x8xf32>
    %cst_266 = arith.constant dense<0xFF800000> : vector<2x8xf32>
    %793 = vector.multi_reduction <maximumf>, %792, %cst_266 [2] : vector<2x8x8xf32> to vector<2x8xf32>
    %794 = vector.shape_cast %793 : vector<2x8xf32> to vector<2x8x1xf32>
    %795 = vector.broadcast %794 : vector<2x8x1xf32> to vector<2x8x8xf32>
    %796 = arith.subf %792, %795 : vector<2x8x8xf32>
    %797 = math.exp %796 : vector<2x8x8xf32>
    %cst_267 = arith.constant dense<0.000000e+00> : vector<2x8xf32>
    %798 = vector.multi_reduction <add>, %797, %cst_267 [2] : vector<2x8x8xf32> to vector<2x8xf32>
    %799 = vector.shape_cast %798 : vector<2x8xf32> to vector<2x8x1xf32>
    %800 = tpu.reciprocal %799 {approx = true} : vector<2x8x1xf32> -> vector<2x8x1xf32>
    %801 = vector.broadcast %800 : vector<2x8x1xf32> to vector<2x8x8xf32>
    %802 = arith.mulf %797, %801 : vector<2x8x8xf32>
    %cst_268 = arith.constant dense<0.000000e+00> : vector<2x8x8xf32>
    %803 = tpu.matmul %802, %786, %cst_268 {dimension_numbers = #tpu.dot_dimension_numbers<[2], [1], [1], [2], [0, 0, 0, 1, 1, 2], [0], [0]>} : vector<2x8x8xf32>, vector<2x8x8xf32>, vector<2x8x8xf32> -> vector<2x8x8xf32>
    %804 = vector.extract_strided_slice %728 {offsets = [0, 24], sizes = [16, 8], strides = [1, 1]} : vector<16x32xf32> to vector<16x8xf32>
    %805 = vector.shape_cast %804 : vector<16x8xf32> to vector<2x8x8xf32>
    %806 = vector.extract_strided_slice %731 {offsets = [0, 24], sizes = [16, 8], strides = [1, 1]} : vector<16x32xf32> to vector<16x8xf32>
    %807 = vector.shape_cast %806 : vector<16x8xf32> to vector<2x8x8xf32>
    %808 = vector.extract_strided_slice %734 {offsets = [0, 24], sizes = [16, 8], strides = [1, 1]} : vector<16x32xf32> to vector<16x8xf32>
    %809 = vector.shape_cast %808 : vector<16x8xf32> to vector<2x8x8xf32>
    %cst_269 = arith.constant dense<0.000000e+00> : vector<2x8x8xf32>
    %810 = tpu.matmul %805, %807, %cst_269 {dimension_numbers = #tpu.dot_dimension_numbers<[2], [2], [1], [1], [0, 0, 0, 1, 1, 1], [0], [0]>} : vector<2x8x8xf32>, vector<2x8x8xf32>, vector<2x8x8xf32> -> vector<2x8x8xf32>
    %cst_270 = arith.constant 0.353553385 : f32
    %811 = vector.broadcast %cst_270 : f32 to vector<2x8x8xf32>
    %812 = arith.mulf %810, %811 : vector<2x8x8xf32>
    %813 = vector.shape_cast %5 : vector<8x8xf32> to vector<1x8x8xf32>
    %814 = vector.broadcast %813 : vector<1x8x8xf32> to vector<2x8x8xf32>
    %815 = arith.addf %812, %814 : vector<2x8x8xf32>
    %cst_271 = arith.constant dense<0xFF800000> : vector<2x8xf32>
    %816 = vector.multi_reduction <maximumf>, %815, %cst_271 [2] : vector<2x8x8xf32> to vector<2x8xf32>
    %817 = vector.shape_cast %816 : vector<2x8xf32> to vector<2x8x1xf32>
    %818 = vector.broadcast %817 : vector<2x8x1xf32> to vector<2x8x8xf32>
    %819 = arith.subf %815, %818 : vector<2x8x8xf32>
    %820 = math.exp %819 : vector<2x8x8xf32>
    %cst_272 = arith.constant dense<0.000000e+00> : vector<2x8xf32>
    %821 = vector.multi_reduction <add>, %820, %cst_272 [2] : vector<2x8x8xf32> to vector<2x8xf32>
    %822 = vector.shape_cast %821 : vector<2x8xf32> to vector<2x8x1xf32>
    %823 = tpu.reciprocal %822 {approx = true} : vector<2x8x1xf32> -> vector<2x8x1xf32>
    %824 = vector.broadcast %823 : vector<2x8x1xf32> to vector<2x8x8xf32>
    %825 = arith.mulf %820, %824 : vector<2x8x8xf32>
    %cst_273 = arith.constant dense<0.000000e+00> : vector<2x8x8xf32>
    %826 = tpu.matmul %825, %809, %cst_273 {dimension_numbers = #tpu.dot_dimension_numbers<[2], [1], [1], [2], [0, 0, 0, 1, 1, 2], [0], [0]>} : vector<2x8x8xf32>, vector<2x8x8xf32>, vector<2x8x8xf32> -> vector<2x8x8xf32>
    %827 = tpu.concatenate %757, %780, %803, %826 in 2 : vector<2x8x8xf32>, vector<2x8x8xf32>, vector<2x8x8xf32>, vector<2x8x8xf32> -> vector<2x8x32xf32>
    %828 = vector.shape_cast %827 : vector<2x8x32xf32> to vector<16x32xf32>
    %cst_274 = arith.constant dense<0.000000e+00> : vector<16x32xf32>
    %829 = tpu.matmul %828, %694, %cst_274 {dimension_numbers = #tpu.dot_dimension_numbers<[1], [0], [0], [1], [0, 0, 1, 1], [], []>} : vector<16x32xf32>, vector<32x32xf32>, vector<16x32xf32> -> vector<16x32xf32>
    %830 = vector.broadcast %686 : vector<1x32xf32> to vector<16x32xf32>
    %831 = arith.addf %829, %830 : vector<16x32xf32>
    %832 = arith.addf %724, %831 : vector<16x32xf32>
    %cst_275 = arith.constant dense<0.000000e+00> : vector<16xf32>
    %833 = vector.multi_reduction <add>, %360, %cst_275 [1] : vector<16x32xf32> to vector<16xf32>
    %834 = vector.shape_cast %833 : vector<16xf32> to vector<16x1xf32>
    %cst_276 = arith.constant 3.200000e+01 : f32
    %835 = vector.broadcast %cst_276 : f32 to vector<16x1xf32>
    %836 = arith.divf %834, %835 : vector<16x1xf32>
    %837 = vector.broadcast %836 : vector<16x1xf32> to vector<16x32xf32>
    %838 = arith.subf %360, %837 : vector<16x32xf32>
    %839 = arith.mulf %838, %838 : vector<16x32xf32>
    %cst_277 = arith.constant dense<0.000000e+00> : vector<16xf32>
    %840 = vector.multi_reduction <add>, %839, %cst_277 [1] : vector<16x32xf32> to vector<16xf32>
    %841 = vector.shape_cast %840 : vector<16xf32> to vector<16x1xf32>
    %cst_278 = arith.constant 3.200000e+01 : f32
    %842 = vector.broadcast %cst_278 : f32 to vector<16x1xf32>
    %843 = arith.divf %841, %842 : vector<16x1xf32>
    %cst_279 = arith.constant 9.99999974E-6 : f32
    %844 = vector.broadcast %cst_279 : f32 to vector<16x1xf32>
    %845 = arith.addf %843, %844 : vector<16x1xf32>
    %846 = math.rsqrt %845 : vector<16x1xf32>
    %847 = vector.broadcast %846 : vector<16x1xf32> to vector<16x32xf32>
    %848 = arith.mulf %838, %847 : vector<16x32xf32>
    %849 = vector.broadcast %679 : vector<1x32xf32> to vector<16x32xf32>
    %850 = arith.mulf %848, %849 : vector<16x32xf32>
    %851 = vector.broadcast %680 : vector<1x32xf32> to vector<16x32xf32>
    %852 = arith.addf %850, %851 : vector<16x32xf32>
    %cst_280 = arith.constant dense<0.000000e+00> : vector<16x32xf32>
    %853 = tpu.matmul %832, %695, %cst_280 {dimension_numbers = #tpu.dot_dimension_numbers<[1], [0], [0], [1], [0, 0, 1, 1], [], []>} : vector<16x32xf32>, vector<32x32xf32>, vector<16x32xf32> -> vector<16x32xf32>
    %854 = vector.broadcast %687 : vector<1x32xf32> to vector<16x32xf32>
    %855 = arith.addf %853, %854 : vector<16x32xf32>
    %cst_281 = arith.constant dense<0.000000e+00> : vector<16x64xf32>
    %856 = tpu.matmul %852, %696, %cst_281 {dimension_numbers = #tpu.dot_dimension_numbers<[1], [0], [0], [1], [0, 0, 1, 1], [], []>} : vector<16x32xf32>, vector<32x64xf32>, vector<16x64xf32> -> vector<16x64xf32>
    %857 = vector.extract_strided_slice %856 {offsets = [0, 0], sizes = [16, 32], strides = [1, 1]} : vector<16x64xf32> to vector<16x32xf32>
    %858 = vector.broadcast %688 : vector<1x32xf32> to vector<16x32xf32>
    %859 = arith.addf %857, %858 : vector<16x32xf32>
    %860 = vector.extract_strided_slice %856 {offsets = [0, 32], sizes = [16, 32], strides = [1, 1]} : vector<16x64xf32> to vector<16x32xf32>
    %861 = vector.broadcast %689 : vector<1x32xf32> to vector<16x32xf32>
    %862 = arith.addf %860, %861 : vector<16x32xf32>
    %863 = vector.extract_strided_slice %855 {offsets = [0, 0], sizes = [16, 8], strides = [1, 1]} : vector<16x32xf32> to vector<16x8xf32>
    %864 = vector.shape_cast %863 : vector<16x8xf32> to vector<2x8x8xf32>
    %865 = vector.extract_strided_slice %859 {offsets = [0, 0], sizes = [16, 8], strides = [1, 1]} : vector<16x32xf32> to vector<16x8xf32>
    %866 = vector.shape_cast %865 : vector<16x8xf32> to vector<2x8x8xf32>
    %867 = vector.extract_strided_slice %862 {offsets = [0, 0], sizes = [16, 8], strides = [1, 1]} : vector<16x32xf32> to vector<16x8xf32>
    %868 = vector.shape_cast %867 : vector<16x8xf32> to vector<2x8x8xf32>
    %cst_282 = arith.constant dense<0.000000e+00> : vector<2x8x8xf32>
    %869 = tpu.matmul %864, %866, %cst_282 {dimension_numbers = #tpu.dot_dimension_numbers<[2], [2], [1], [1], [0, 0, 0, 1, 1, 1], [0], [0]>} : vector<2x8x8xf32>, vector<2x8x8xf32>, vector<2x8x8xf32> -> vector<2x8x8xf32>
    %cst_283 = arith.constant 0.353553385 : f32
    %870 = vector.broadcast %cst_283 : f32 to vector<2x8x8xf32>
    %871 = arith.mulf %869, %870 : vector<2x8x8xf32>
    %872 = vector.shape_cast %5 : vector<8x8xf32> to vector<1x8x8xf32>
    %873 = vector.broadcast %872 : vector<1x8x8xf32> to vector<2x8x8xf32>
    %874 = arith.addf %871, %873 : vector<2x8x8xf32>
    %cst_284 = arith.constant dense<0xFF800000> : vector<2x8xf32>
    %875 = vector.multi_reduction <maximumf>, %874, %cst_284 [2] : vector<2x8x8xf32> to vector<2x8xf32>
    %876 = vector.shape_cast %875 : vector<2x8xf32> to vector<2x8x1xf32>
    %877 = vector.broadcast %876 : vector<2x8x1xf32> to vector<2x8x8xf32>
    %878 = arith.subf %874, %877 : vector<2x8x8xf32>
    %879 = math.exp %878 : vector<2x8x8xf32>
    %cst_285 = arith.constant dense<0.000000e+00> : vector<2x8xf32>
    %880 = vector.multi_reduction <add>, %879, %cst_285 [2] : vector<2x8x8xf32> to vector<2x8xf32>
    %881 = vector.shape_cast %880 : vector<2x8xf32> to vector<2x8x1xf32>
    %882 = tpu.reciprocal %881 {approx = true} : vector<2x8x1xf32> -> vector<2x8x1xf32>
    %883 = vector.broadcast %882 : vector<2x8x1xf32> to vector<2x8x8xf32>
    %884 = arith.mulf %879, %883 : vector<2x8x8xf32>
    %cst_286 = arith.constant dense<0.000000e+00> : vector<2x8x8xf32>
    %885 = tpu.matmul %884, %868, %cst_286 {dimension_numbers = #tpu.dot_dimension_numbers<[2], [1], [1], [2], [0, 0, 0, 1, 1, 2], [0], [0]>} : vector<2x8x8xf32>, vector<2x8x8xf32>, vector<2x8x8xf32> -> vector<2x8x8xf32>
    %886 = vector.extract_strided_slice %855 {offsets = [0, 8], sizes = [16, 8], strides = [1, 1]} : vector<16x32xf32> to vector<16x8xf32>
    %887 = vector.shape_cast %886 : vector<16x8xf32> to vector<2x8x8xf32>
    %888 = vector.extract_strided_slice %859 {offsets = [0, 8], sizes = [16, 8], strides = [1, 1]} : vector<16x32xf32> to vector<16x8xf32>
    %889 = vector.shape_cast %888 : vector<16x8xf32> to vector<2x8x8xf32>
    %890 = vector.extract_strided_slice %862 {offsets = [0, 8], sizes = [16, 8], strides = [1, 1]} : vector<16x32xf32> to vector<16x8xf32>
    %891 = vector.shape_cast %890 : vector<16x8xf32> to vector<2x8x8xf32>
    %cst_287 = arith.constant dense<0.000000e+00> : vector<2x8x8xf32>
    %892 = tpu.matmul %887, %889, %cst_287 {dimension_numbers = #tpu.dot_dimension_numbers<[2], [2], [1], [1], [0, 0, 0, 1, 1, 1], [0], [0]>} : vector<2x8x8xf32>, vector<2x8x8xf32>, vector<2x8x8xf32> -> vector<2x8x8xf32>
    %cst_288 = arith.constant 0.353553385 : f32
    %893 = vector.broadcast %cst_288 : f32 to vector<2x8x8xf32>
    %894 = arith.mulf %892, %893 : vector<2x8x8xf32>
    %895 = vector.shape_cast %5 : vector<8x8xf32> to vector<1x8x8xf32>
    %896 = vector.broadcast %895 : vector<1x8x8xf32> to vector<2x8x8xf32>
    %897 = arith.addf %894, %896 : vector<2x8x8xf32>
    %cst_289 = arith.constant dense<0xFF800000> : vector<2x8xf32>
    %898 = vector.multi_reduction <maximumf>, %897, %cst_289 [2] : vector<2x8x8xf32> to vector<2x8xf32>
    %899 = vector.shape_cast %898 : vector<2x8xf32> to vector<2x8x1xf32>
    %900 = vector.broadcast %899 : vector<2x8x1xf32> to vector<2x8x8xf32>
    %901 = arith.subf %897, %900 : vector<2x8x8xf32>
    %902 = math.exp %901 : vector<2x8x8xf32>
    %cst_290 = arith.constant dense<0.000000e+00> : vector<2x8xf32>
    %903 = vector.multi_reduction <add>, %902, %cst_290 [2] : vector<2x8x8xf32> to vector<2x8xf32>
    %904 = vector.shape_cast %903 : vector<2x8xf32> to vector<2x8x1xf32>
    %905 = tpu.reciprocal %904 {approx = true} : vector<2x8x1xf32> -> vector<2x8x1xf32>
    %906 = vector.broadcast %905 : vector<2x8x1xf32> to vector<2x8x8xf32>
    %907 = arith.mulf %902, %906 : vector<2x8x8xf32>
    %cst_291 = arith.constant dense<0.000000e+00> : vector<2x8x8xf32>
    %908 = tpu.matmul %907, %891, %cst_291 {dimension_numbers = #tpu.dot_dimension_numbers<[2], [1], [1], [2], [0, 0, 0, 1, 1, 2], [0], [0]>} : vector<2x8x8xf32>, vector<2x8x8xf32>, vector<2x8x8xf32> -> vector<2x8x8xf32>
    %909 = vector.extract_strided_slice %855 {offsets = [0, 16], sizes = [16, 8], strides = [1, 1]} : vector<16x32xf32> to vector<16x8xf32>
    %910 = vector.shape_cast %909 : vector<16x8xf32> to vector<2x8x8xf32>
    %911 = vector.extract_strided_slice %859 {offsets = [0, 16], sizes = [16, 8], strides = [1, 1]} : vector<16x32xf32> to vector<16x8xf32>
    %912 = vector.shape_cast %911 : vector<16x8xf32> to vector<2x8x8xf32>
    %913 = vector.extract_strided_slice %862 {offsets = [0, 16], sizes = [16, 8], strides = [1, 1]} : vector<16x32xf32> to vector<16x8xf32>
    %914 = vector.shape_cast %913 : vector<16x8xf32> to vector<2x8x8xf32>
    %cst_292 = arith.constant dense<0.000000e+00> : vector<2x8x8xf32>
    %915 = tpu.matmul %910, %912, %cst_292 {dimension_numbers = #tpu.dot_dimension_numbers<[2], [2], [1], [1], [0, 0, 0, 1, 1, 1], [0], [0]>} : vector<2x8x8xf32>, vector<2x8x8xf32>, vector<2x8x8xf32> -> vector<2x8x8xf32>
    %cst_293 = arith.constant 0.353553385 : f32
    %916 = vector.broadcast %cst_293 : f32 to vector<2x8x8xf32>
    %917 = arith.mulf %915, %916 : vector<2x8x8xf32>
    %918 = vector.shape_cast %5 : vector<8x8xf32> to vector<1x8x8xf32>
    %919 = vector.broadcast %918 : vector<1x8x8xf32> to vector<2x8x8xf32>
    %920 = arith.addf %917, %919 : vector<2x8x8xf32>
    %cst_294 = arith.constant dense<0xFF800000> : vector<2x8xf32>
    %921 = vector.multi_reduction <maximumf>, %920, %cst_294 [2] : vector<2x8x8xf32> to vector<2x8xf32>
    %922 = vector.shape_cast %921 : vector<2x8xf32> to vector<2x8x1xf32>
    %923 = vector.broadcast %922 : vector<2x8x1xf32> to vector<2x8x8xf32>
    %924 = arith.subf %920, %923 : vector<2x8x8xf32>
    %925 = math.exp %924 : vector<2x8x8xf32>
    %cst_295 = arith.constant dense<0.000000e+00> : vector<2x8xf32>
    %926 = vector.multi_reduction <add>, %925, %cst_295 [2] : vector<2x8x8xf32> to vector<2x8xf32>
    %927 = vector.shape_cast %926 : vector<2x8xf32> to vector<2x8x1xf32>
    %928 = tpu.reciprocal %927 {approx = true} : vector<2x8x1xf32> -> vector<2x8x1xf32>
    %929 = vector.broadcast %928 : vector<2x8x1xf32> to vector<2x8x8xf32>
    %930 = arith.mulf %925, %929 : vector<2x8x8xf32>
    %cst_296 = arith.constant dense<0.000000e+00> : vector<2x8x8xf32>
    %931 = tpu.matmul %930, %914, %cst_296 {dimension_numbers = #tpu.dot_dimension_numbers<[2], [1], [1], [2], [0, 0, 0, 1, 1, 2], [0], [0]>} : vector<2x8x8xf32>, vector<2x8x8xf32>, vector<2x8x8xf32> -> vector<2x8x8xf32>
    %932 = vector.extract_strided_slice %855 {offsets = [0, 24], sizes = [16, 8], strides = [1, 1]} : vector<16x32xf32> to vector<16x8xf32>
    %933 = vector.shape_cast %932 : vector<16x8xf32> to vector<2x8x8xf32>
    %934 = vector.extract_strided_slice %859 {offsets = [0, 24], sizes = [16, 8], strides = [1, 1]} : vector<16x32xf32> to vector<16x8xf32>
    %935 = vector.shape_cast %934 : vector<16x8xf32> to vector<2x8x8xf32>
    %936 = vector.extract_strided_slice %862 {offsets = [0, 24], sizes = [16, 8], strides = [1, 1]} : vector<16x32xf32> to vector<16x8xf32>
    %937 = vector.shape_cast %936 : vector<16x8xf32> to vector<2x8x8xf32>
    %cst_297 = arith.constant dense<0.000000e+00> : vector<2x8x8xf32>
    %938 = tpu.matmul %933, %935, %cst_297 {dimension_numbers = #tpu.dot_dimension_numbers<[2], [2], [1], [1], [0, 0, 0, 1, 1, 1], [0], [0]>} : vector<2x8x8xf32>, vector<2x8x8xf32>, vector<2x8x8xf32> -> vector<2x8x8xf32>
    %cst_298 = arith.constant 0.353553385 : f32
    %939 = vector.broadcast %cst_298 : f32 to vector<2x8x8xf32>
    %940 = arith.mulf %938, %939 : vector<2x8x8xf32>
    %941 = vector.shape_cast %5 : vector<8x8xf32> to vector<1x8x8xf32>
    %942 = vector.broadcast %941 : vector<1x8x8xf32> to vector<2x8x8xf32>
    %943 = arith.addf %940, %942 : vector<2x8x8xf32>
    %cst_299 = arith.constant dense<0xFF800000> : vector<2x8xf32>
    %944 = vector.multi_reduction <maximumf>, %943, %cst_299 [2] : vector<2x8x8xf32> to vector<2x8xf32>
    %945 = vector.shape_cast %944 : vector<2x8xf32> to vector<2x8x1xf32>
    %946 = vector.broadcast %945 : vector<2x8x1xf32> to vector<2x8x8xf32>
    %947 = arith.subf %943, %946 : vector<2x8x8xf32>
    %948 = math.exp %947 : vector<2x8x8xf32>
    %cst_300 = arith.constant dense<0.000000e+00> : vector<2x8xf32>
    %949 = vector.multi_reduction <add>, %948, %cst_300 [2] : vector<2x8x8xf32> to vector<2x8xf32>
    %950 = vector.shape_cast %949 : vector<2x8xf32> to vector<2x8x1xf32>
    %951 = tpu.reciprocal %950 {approx = true} : vector<2x8x1xf32> -> vector<2x8x1xf32>
    %952 = vector.broadcast %951 : vector<2x8x1xf32> to vector<2x8x8xf32>
    %953 = arith.mulf %948, %952 : vector<2x8x8xf32>
    %cst_301 = arith.constant dense<0.000000e+00> : vector<2x8x8xf32>
    %954 = tpu.matmul %953, %937, %cst_301 {dimension_numbers = #tpu.dot_dimension_numbers<[2], [1], [1], [2], [0, 0, 0, 1, 1, 2], [0], [0]>} : vector<2x8x8xf32>, vector<2x8x8xf32>, vector<2x8x8xf32> -> vector<2x8x8xf32>
    %955 = tpu.concatenate %885, %908, %931, %954 in 2 : vector<2x8x8xf32>, vector<2x8x8xf32>, vector<2x8x8xf32>, vector<2x8x8xf32> -> vector<2x8x32xf32>
    %956 = vector.shape_cast %955 : vector<2x8x32xf32> to vector<16x32xf32>
    %cst_302 = arith.constant dense<0.000000e+00> : vector<16x32xf32>
    %957 = tpu.matmul %956, %697, %cst_302 {dimension_numbers = #tpu.dot_dimension_numbers<[1], [0], [0], [1], [0, 0, 1, 1], [], []>} : vector<16x32xf32>, vector<32x32xf32>, vector<16x32xf32> -> vector<16x32xf32>
    %958 = vector.broadcast %690 : vector<1x32xf32> to vector<16x32xf32>
    %959 = arith.addf %957, %958 : vector<16x32xf32>
    %960 = arith.addf %832, %959 : vector<16x32xf32>
    %cst_303 = arith.constant dense<0.000000e+00> : vector<16xf32>
    %961 = vector.multi_reduction <add>, %960, %cst_303 [1] : vector<16x32xf32> to vector<16xf32>
    %962 = vector.shape_cast %961 : vector<16xf32> to vector<16x1xf32>
    %cst_304 = arith.constant 3.200000e+01 : f32
    %963 = vector.broadcast %cst_304 : f32 to vector<16x1xf32>
    %964 = arith.divf %962, %963 : vector<16x1xf32>
    %965 = vector.broadcast %964 : vector<16x1xf32> to vector<16x32xf32>
    %966 = arith.subf %960, %965 : vector<16x32xf32>
    %967 = arith.mulf %966, %966 : vector<16x32xf32>
    %cst_305 = arith.constant dense<0.000000e+00> : vector<16xf32>
    %968 = vector.multi_reduction <add>, %967, %cst_305 [1] : vector<16x32xf32> to vector<16xf32>
    %969 = vector.shape_cast %968 : vector<16xf32> to vector<16x1xf32>
    %cst_306 = arith.constant 3.200000e+01 : f32
    %970 = vector.broadcast %cst_306 : f32 to vector<16x1xf32>
    %971 = arith.divf %969, %970 : vector<16x1xf32>
    %cst_307 = arith.constant 9.99999974E-6 : f32
    %972 = vector.broadcast %cst_307 : f32 to vector<16x1xf32>
    %973 = arith.addf %971, %972 : vector<16x1xf32>
    %974 = math.rsqrt %973 : vector<16x1xf32>
    %975 = vector.broadcast %974 : vector<16x1xf32> to vector<16x32xf32>
    %976 = arith.mulf %966, %975 : vector<16x32xf32>
    %977 = vector.broadcast %681 : vector<1x32xf32> to vector<16x32xf32>
    %978 = arith.mulf %976, %977 : vector<16x32xf32>
    %979 = vector.broadcast %682 : vector<1x32xf32> to vector<16x32xf32>
    %980 = arith.addf %978, %979 : vector<16x32xf32>
    %cst_308 = arith.constant dense<0.000000e+00> : vector<16x32xf32>
    %981 = tpu.matmul %980, %698, %cst_308 {dimension_numbers = #tpu.dot_dimension_numbers<[1], [0], [0], [1], [0, 0, 1, 1], [], []>} : vector<16x32xf32>, vector<32x32xf32>, vector<16x32xf32> -> vector<16x32xf32>
    %982 = vector.broadcast %691 : vector<1x32xf32> to vector<16x32xf32>
    %983 = arith.addf %981, %982 : vector<16x32xf32>
    %cst_309 = arith.constant 0.000000e+00 : f32
    %984 = vector.broadcast %cst_309 : f32 to vector<16x32xf32>
    %985 = arith.maximumf %983, %984 : vector<16x32xf32>
    %cst_310 = arith.constant dense<0.000000e+00> : vector<16x32xf32>
    %986 = tpu.matmul %985, %699, %cst_310 {dimension_numbers = #tpu.dot_dimension_numbers<[1], [0], [0], [1], [0, 0, 1, 1], [], []>} : vector<16x32xf32>, vector<32x32xf32>, vector<16x32xf32> -> vector<16x32xf32>
    %987 = vector.broadcast %692 : vector<1x32xf32> to vector<16x32xf32>
    %988 = arith.addf %986, %987 : vector<16x32xf32>
    %989 = arith.addf %980, %988 : vector<16x32xf32>
    %c48 = arith.constant 48 : index
    %c0_311 = arith.constant 0 : index
    %990 = vector.load %arg5[%c48, %c0_311] : memref<56x32xf32, #tpu.memory_space<vmem>>, vector<1x32xf32>
    %c49 = arith.constant 49 : index
    %c0_312 = arith.constant 0 : index
    %991 = vector.load %arg5[%c49, %c0_312] : memref<56x32xf32, #tpu.memory_space<vmem>>, vector<1x1xf32>
    %992 = vector.broadcast %990 : vector<1x32xf32> to vector<16x32xf32>
    %993 = arith.mulf %989, %992 : vector<16x32xf32>
    %cst_313 = arith.constant dense<0.000000e+00> : vector<16xf32>
    %994 = vector.multi_reduction <add>, %993, %cst_313 [1] : vector<16x32xf32> to vector<16xf32>
    %995 = vector.shape_cast %994 : vector<16xf32> to vector<16x1xf32>
    %996 = vector.broadcast %991 : vector<1x1xf32> to vector<16x1xf32>
    %997 = arith.addf %995, %996 : vector<16x1xf32>
    %c0_314 = arith.constant 0 : index
    %c0_315 = arith.constant 0 : index
    %998 = vector.load %arg6[%c0_314, %c0_315] : memref<16x1xf32, #tpu.memory_space<vmem>>, vector<16x1xf32>
    tpu.vector_store %arg6[%c0_314, %c0_315], %997 {strides = array<i32>} : memref<16x1xf32, #tpu.memory_space<vmem>>, vector<16x1xf32>,
    return
  }
}

</mosaic_0001>

<llo_original>
// kernel: saint_forward.1
$region0: #{saint_forward.1}
  #allocation0 [shape = 'u32[]', space=smem, size = 0x4, offset = 0x4, fixed_abs, tag = 'smem constant byte address 0x4 - core index']
  #allocation1 [shape = 'u32[144,128]{1,0:T(1,128)}', space=vmem, size = 0x12000, scoped, tag = 'internal scratch']
  %s0 = inlined_call_operand.vmem [shape: f32[16,32], index: 0, kind: input, shape index: {}]
  %s1 = inlined_call_operand.vmem [shape: f32[16,32], index: 1, kind: input, shape index: {}]
  %s2 = inlined_call_operand.vmem [shape: f32[256,96], index: 2, kind: input, shape index: {}]
  %s3 = inlined_call_operand.vmem [shape: f32[48,32], index: 3, kind: input, shape index: {}]
  %s4 = inlined_call_operand.vmem [shape: f32[448,96], index: 4, kind: input, shape index: {}]
  %s5 = inlined_call_operand.vmem [shape: f32[56,32], index: 5, kind: input, shape index: {}]
  %s6 = inlined_call_operand.vmem [shape: f32[16,1], index: 6, kind: output, shape index: {}]
  %s7 = sld [smem:[#allocation0]]
  $region34: #{saint_forward.1} parent=0
    _
  %s9 = ssub.s32 1, %s7
  %s10 = scalar_select 0, %s9, %s7
  // Predicated region
  $region2: #{saint_forward.1} parent=0 // pred_check
    _
  $region3: #{saint_forward.1} parent=0 // pred_check_branch
    %12 = sbr.rel (0) target = $region5
  $region4: #{saint_forward.1} parent=0 // pred_region
    _
  $region5: #{saint_forward.1} parent=0 // pred_fallthru
    _
  // Predicated region
  $region6: #{saint_forward.1} parent=0 // pred_check
    _
  $region7: #{saint_forward.1} parent=0 // pred_check_branch
    %14 = sbr.rel (0) target = $region9
  $region8: #{saint_forward.1} parent=0 // pred_region
    _
  $region9: #{saint_forward.1} parent=0 // pred_fallthru
    _
  // Predicated region
  $region10: #{saint_forward.1} parent=0 // pred_check
    _
  $region11: #{saint_forward.1} parent=0 // pred_check_branch
    %16 = sbr.rel (0) target = $region13
  $region12: #{saint_forward.1} parent=0 // pred_region
    _
  $region13: #{saint_forward.1} parent=0 // pred_fallthru
    _
  // Predicated region
  $region14: #{saint_forward.1} parent=0 // pred_check
    _
  $region15: #{saint_forward.1} parent=0 // pred_check_branch
    %18 = sbr.rel (0) target = $region17
  $region16: #{saint_forward.1} parent=0 // pred_region
    _
  $region17: #{saint_forward.1} parent=0 // pred_fallthru
    _
  // Predicated region
  $region18: #{saint_forward.1} parent=0 // pred_check
    _
  $region19: #{saint_forward.1} parent=0 // pred_check_branch
    %20 = sbr.rel (0) target = $region21
  $region20: #{saint_forward.1} parent=0 // pred_region
    _
  $region21: #{saint_forward.1} parent=0 // pred_fallthru
    _
  // Predicated region
  $region22: #{saint_forward.1} parent=0 // pred_check
    _
  $region23: #{saint_forward.1} parent=0 // pred_check_branch
    %22 = sbr.rel (0) target = $region25
  $region24: #{saint_forward.1} parent=0 // pred_region
    _
  $region25: #{saint_forward.1} parent=0 // pred_fallthru
    _
  %v23 = vlaneseq
  %v24 = vshrl.u32 %v23, 7
  %v25 = vlaneseq
  %v26 = vand.u32 %v25, 127
  %vm27 = vcmp.gt.s32.totalorder %v26, %v24
  %v28 = vsel %vm27, -1e+30, 0.0
  %v29 = vld [vmem:[%s0] sm:$0xff]
  %v30 = vld [vmem:[%s0 + $0x8] sm:$0xff]
  %v31 = vld [vmem:[%s3] sm:$0xff]
  %v32 = vld [vmem:[%s3 + $0x8] sm:$0x1]
  %v33 = vld [vmem:[%s3 + $0x9] sm:$0x1]
  %v34 = vld [vmem:[%s3 + $0xa] sm:$0x1]
  %v35 = vld [vmem:[%s3 + $0xb] sm:$0x1]
  %v36 = vld [vmem:[%s3 + $0xc] sm:$0x1]
  %v37 = vld [vmem:[%s3 + $0xd] sm:$0x1]
  %v38 = vld [vmem:[%s3 + $0xe] sm:$0x1]
  %v39 = vld [vmem:[%s3 + $0xf] sm:$0x1]
  %v40 = vld [vmem:[%s3 + $0x10] sm:$0x1]
  %v41 = vld [vmem:[%s3 + $0x11] sm:$0x1]
  %v42 = vld [vmem:[%s2] sm:$0xff]
  %v43 = vld [vmem:[%s2 + $0x8] sm:$0xff]
  %v44 = vld [vmem:[%s2 + $0x10] sm:$0xff]
  %v45 = vld [vmem:[%s2 + $0x18] sm:$0xff]
  %v46 = vld [vmem:[%s2 + $0x20] sm:$0xff]
  %v47 = vld [vmem:[%s2 + $0x28] sm:$0xff]
  %v48 = vld [vmem:[%s2 + $0x30] sm:$0xff]
  %v49 = vld [vmem:[%s2 + $0x38] sm:$0xff]
  %v50 = vld [vmem:[%s2 + $0x40] sm:$0xff]
  %v51 = vld [vmem:[%s2 + $0x48] sm:$0xff]
  %v52 = vld [vmem:[%s2 + $0x50] sm:$0xff]
  %v53 = vld [vmem:[%s2 + $0x58] sm:$0xff]
  %v54 = vld [vmem:[%s2 + $0x60] sm:$0xff]
  %v55 = vld [vmem:[%s2 + $0x68] sm:$0xff]
  %v56 = vld [vmem:[%s2 + $0x70] sm:$0xff]
  %v57 = vld [vmem:[%s2 + $0x78] sm:$0xff]
  %v58 = vadd.f32 %v29, %v31
  %v59 = vadd.f32 %v30, %v31
  %vm60 = vcmask 261120
  %v61 = vsel %vm60, %v58, 0.0
  %62 = vadd.xlane.f32.xlu0 %v61
  %v63 = vpop.xlane.xlu0 %62
  %v64 = vsel %vm60, %v59, 0.0
  %65 = vadd.xlane.f32.xlu0 %v64
  %v66 = vpop.xlane.xlu0 %65
  %v67 = vrcp.pop 32.0
  %v68 = vmul.f32 %v63, %v67
  %v69 = vmul.f32 %v66, %v67
  %v70 = vsub.f32 %v58, %v68
  %v71 = vsub.f32 %v59, %v69
  %v72 = vmul.f32 %v70, %v70
  %v73 = vmul.f32 %v71, %v71
  %v74 = vsel %vm60, %v72, 0.0
  %75 = vadd.xlane.f32.xlu0 %v74
  %v76 = vpop.xlane.xlu0 %75
  %v77 = vsel %vm60, %v73, 0.0
  %78 = vadd.xlane.f32.xlu0 %v77
  %v79 = vpop.xlane.xlu0 %78
  %v80 = vmul.f32 %v76, %v67
  %v81 = vmul.f32 %v79, %v67
  %v82 = vadd.f32 %v80, 1e-05
  %v83 = vadd.f32 %v81, 1e-05
  %v84 = vrsqrt.pop %v82
  %v85 = vrsqrt.pop %v83
  %v86 = vmul.f32 %v70, %v84
  %v87 = vmul.f32 %v71, %v85
  %v88 = vlaneseq
  %v89 = vshrl.u32 %v88, 7
  %v90 = vsub.s32 0, %v89
  %v91 = vrot.slane %v32, %v90
  %v92 = vmul.f32 %v86, %v91
  %v93 = vmul.f32 %v87, %v91
  %v94 = vlaneseq
  %v95 = vshrl.u32 %v94, 7
  %v96 = vsub.s32 0, %v95
  %v97 = vrot.slane %v33, %v96
  %v98 = vadd.f32 %v92, %v97
  %v99 = vadd.f32 %v93, %v97
  %v101 = vsel %vm60, %v98, 0
  %v104 = vsel %vm60, %v99, 0
  %106 = vmatprep.subr.mxu0 0.0
  %107 = vmatpush1.msra.mxu0 %v42
  %108 = vmatprep.subr.mxu0 0.0
  %109 = vmatpush1.msra.mxu0 %v43
  %110 = vmatprep.subr.mxu0 0.0
  %111 = vmatpush1.msra.mxu0 %v44
  %112 = vmatprep.subr.mxu0 0.0
  %113 = vmatpush1.msra.mxu0 %v45
  %114 = vmatprep.subr.mxu0 0.0
  %115 = vmatpush1.msra.mxu0 0.0
  %116 = vmatprep.subr.mxu0 0.0
  %117 = vmatpush1.msra.mxu0 0.0
  %118 = vmatprep.subr.mxu0 0.0
  %119 = vmatpush1.msra.mxu0 0.0
  %120 = vmatprep.subr.mxu0 0.0
  %121 = vmatpush1.msra.mxu0 0.0
  %122 = vmatprep.subr.mxu0 0.0
  %123 = vmatpush1.msra.mxu0 0.0
  %124 = vmatprep.subr.mxu0 0.0
  %125 = vmatpush1.msra.mxu0 0.0
  %126 = vmatprep.subr.mxu0 0.0
  %127 = vmatpush1.msra.mxu0 0.0
  %128 = vmatprep.subr.mxu0 0.0
  %129 = vmatpush1.msra.mxu0 0.0
  %130 = vmatprep.subr.mxu0 0.0
  %131 = vmatpush1.msra.mxu0 0.0
  %132 = vmatprep.subr.mxu0 0.0
  %133 = vmatpush1.msra.mxu0 0.0
  %134 = vmatprep.subr.mxu0 0.0
  %135 = vmatpush1.msra.mxu0 0.0
  %136 = vmatprep.subr.mxu0 0.0
  %137 = vmatpush1.msra.mxu0 0.0
  %138 = vmatprep.subr.mxu0 0.0
  %139 = vmatpush1.msra.mxu0 0.0
  %140 = vmatprep.subr.mxu0 0.0
  %141 = vmatpush1.msra.mxu0 0.0
  %142 = vmatprep.subr.mxu0 0.0
  %143 = vmatpush1.msra.mxu0 0.0
  %144 = vmatprep.subr.mxu0 0.0
  %145 = vmatpush1.msra.mxu0 0.0
  %146 = vmatprep.subr.mxu0 0.0
  %147 = vmatpush1.msra.mxu0 0.0
  %148 = vmatprep.subr.mxu0 0.0
  %149 = vmatpush1.msra.mxu0 0.0
  %150 = vmatprep.subr.mxu0 0.0
  %151 = vmatpush1.msra.mxu0 0.0
  %152 = vmatprep.subr.mxu0 0.0
  %153 = vmatpush1.msra.mxu0 0.0
  %154 = vmatprep.subr.mxu0 0.0
  %155 = vmatpush1.msra.mxu0 0.0
  %156 = vmatprep.subr.mxu0 0.0
  %157 = vmatpush1.msra.mxu0 0.0
  %158 = vmatprep.subr.mxu0 0.0
  %159 = vmatpush1.msra.mxu0 0.0
  %160 = vmatprep.subr.mxu0 0.0
  %161 = vmatpush1.msra.mxu0 0.0
  %162 = vmatprep.subr.mxu0 0.0
  %163 = vmatpush1.msra.mxu0 0.0
  %164 = vmatprep.subr.mxu0 0.0
  %165 = vmatpush1.msra.mxu0 0.0
  %166 = vmatprep.subr.mxu0 0.0
  %167 = vmatpush1.msra.mxu0 0.0
  %168 = vmatprep.subr.mxu0 0.0
  %169 = vmatpush1.msra.mxu0 0.0
  %170 = vmatprep.mubr.f32.mxu0 0.0
  %171 = vmatmul.mubr.f32.gmra.mrb[0].mxu0 %v101
  %v172 = vpop.f32.mrb[0].mxu0
  %v173 = vadd.f32 0.0, %v172
  %v174 = vpop.f32.mrb[0].mxu0
  %175 = vmatprep.mubr.f32.mxu0 0.0
  %176 = vmatmul.mubr.f32.gmra.mrb[0].mxu0 %v104
  %v177 = vpop.f32.mrb[0].mxu0
  %v178 = vadd.f32 0.0, %v177
  %v179 = vpop.f32.mrb[0].mxu0
  %180 = vdwg.mxu0
  %v181 = vlaneseq
  %v182 = vshrl.u32 %v181, 7
  %v183 = vsub.s32 0, %v182
  %v184 = vrot.slane %v36, %v183
  %v185 = vadd.f32 %v173, %v184
  %v186 = vadd.f32 %v178, %v184
  %v187 = vlaneseq
  %v188 = vshrl.u32 %v187, 7
  %v189 = vsub.s32 0, %v188
  %v190 = vrot.slane %v37, %v189
  %192 = vrot.lane.b32.xlu0 %v190, 32
  %v193 = vpop.permute.xlu0 %192
  %v195 = vadd.f32 %v173, %v193
  %v196 = vadd.f32 %v178, %v193
  %v197 = vlaneseq
  %v198 = vshrl.u32 %v197, 7
  %v199 = vsub.s32 0, %v198
  %v200 = vrot.slane %v38, %v199
  %202 = vrot.lane.b32.xlu0 %v200, 64
  %v203 = vpop.permute.xlu0 %202
  %v205 = vadd.f32 %v173, %v203
  %v206 = vadd.f32 %v178, %v203
  %208 = vrot.lane.b32.xlu0 %v195, 96
  %v209 = vpop.permute.xlu0 %208
  %vm210 = vcmask 64512
  %v212 = vsel %vm210, %v185, 0
  %v214 = vsel %vm210, %v209, 0
  %216 = vmatprep.subr.mxu0 0.0
  %217 = vmatpush1.xpose.msra.mxu0 %v214
  %218 = vmatprep.subr.mxu0 0.0
  %219 = vmatpush1.xpose.msra.mxu0 0.0
  %220 = vmatprep.subr.mxu0 0.0
  %221 = vmatpush1.xpose.msra.mxu0 0.0
  %222 = vmatprep.subr.mxu0 0.0
  %223 = vmatpush1.xpose.msra.mxu0 0.0
  %224 = vmatprep.subr.mxu0 0.0
  %225 = vmatpush1.xpose.msra.mxu0 0.0
  %226 = vmatprep.subr.mxu0 0.0
  %227 = vmatpush1.xpose.msra.mxu0 0.0
  %228 = vmatprep.subr.mxu0 0.0
  %229 = vmatpush1.xpose.msra.mxu0 0.0
  %230 = vmatprep.subr.mxu0 0.0
  %231 = vmatpush1.xpose.msra.mxu0 0.0
  %232 = vmatprep.subr.mxu0 0.0
  %233 = vmatpush1.xpose.msra.mxu0 0.0
  %234 = vmatprep.subr.mxu0 0.0
  %235 = vmatpush1.xpose.msra.mxu0 0.0
  %236 = vmatprep.subr.mxu0 0.0
  %237 = vmatpush1.xpose.msra.mxu0 0.0
  %238 = vmatprep.subr.mxu0 0.0
  %239 = vmatpush1.xpose.msra.mxu0 0.0
  %240 = vmatprep.subr.mxu0 0.0
  %241 = vmatpush1.xpose.msra.mxu0 0.0
  %242 = vmatprep.subr.mxu0 0.0
  %243 = vmatpush1.xpose.msra.mxu0 0.0
  %244 = vmatprep.subr.mxu0 0.0
  %245 = vmatpush1.xpose.msra.mxu0 0.0
  %246 = vmatprep.subr.mxu0 0.0
  %247 = vmatpush1.xpose.msra.mxu0 0.0
  %248 = vmatprep.subr.mxu0 0.0
  %249 = vmatpush1.xpose.msra.mxu0 0.0
  %250 = vmatprep.subr.mxu0 0.0
  %251 = vmatpush1.xpose.msra.mxu0 0.0
  %252 = vmatprep.subr.mxu0 0.0
  %253 = vmatpush1.xpose.msra.mxu0 0.0
  %254 = vmatprep.subr.mxu0 0.0
  %255 = vmatpush1.xpose.msra.mxu0 0.0
  %256 = vmatprep.subr.mxu0 0.0
  %257 = vmatpush1.xpose.msra.mxu0 0.0
  %258 = vmatprep.subr.mxu0 0.0
  %259 = vmatpush1.xpose.msra.mxu0 0.0
  %260 = vmatprep.subr.mxu0 0.0
  %261 = vmatpush1.xpose.msra.mxu0 0.0
  %262 = vmatprep.subr.mxu0 0.0
  %263 = vmatpush1.xpose.msra.mxu0 0.0
  %264 = vmatprep.subr.mxu0 0.0
  %265 = vmatpush1.xpose.msra.mxu0 0.0
  %266 = vmatprep.subr.mxu0 0.0
  %267 = vmatpush1.xpose.msra.mxu0 0.0
  %268 = vmatprep.subr.mxu0 0.0
  %269 = vmatpush1.xpose.msra.mxu0 0.0
  %270 = vmatprep.subr.mxu0 0.0
  %271 = vmatpush1.xpose.msra.mxu0 0.0
  %272 = vmatprep.subr.mxu0 0.0
  %273 = vmatpush1.xpose.msra.mxu0 0.0
  %274 = vmatprep.subr.mxu0 0.0
  %275 = vmatpush1.xpose.msra.mxu0 0.0
  %276 = vmatprep.subr.mxu0 0.0
  %277 = vmatpush1.xpose.msra.mxu0 0.0
  %278 = vmatprep.subr.mxu0 0.0
  %279 = vmatpush1.xpose.msra.mxu0 0.0
  %280 = vmatprep.mubr.f32.mxu0 0.0
  %281 = vmatmul.mubr.f32.gmra.mrb[0].mxu0 %v212
  %v282 = vpop.f32.mrb[0].mxu0
  %v283 = vadd.f32 0.0, %v282
  %v284 = vpop.f32.mrb[0].mxu0
  %285 = vdwg.mxu0
  %287 = vrot.lane.b32.xlu0 %v196, 96
  %v288 = vpop.permute.xlu0 %287
  %v290 = vsel %vm210, %v186, 0
  %v292 = vsel %vm210, %v288, 0
  %294 = vmatprep.subr.mxu0 0.0
  %295 = vmatpush1.xpose.msra.mxu0 %v292
  %296 = vmatprep.subr.mxu0 0.0
  %297 = vmatpush1.xpose.msra.mxu0 0.0
  %298 = vmatprep.subr.mxu0 0.0
  %299 = vmatpush1.xpose.msra.mxu0 0.0
  %300 = vmatprep.subr.mxu0 0.0
  %301 = vmatpush1.xpose.msra.mxu0 0.0
  %302 = vmatprep.subr.mxu0 0.0
  %303 = vmatpush1.xpose.msra.mxu0 0.0
  %304 = vmatprep.subr.mxu0 0.0
  %305 = vmatpush1.xpose.msra.mxu0 0.0
  %306 = vmatprep.subr.mxu0 0.0
  %307 = vmatpush1.xpose.msra.mxu0 0.0
  %308 = vmatprep.subr.mxu0 0.0
  %309 = vmatpush1.xpose.msra.mxu0 0.0
  %310 = vmatprep.subr.mxu0 0.0
  %311 = vmatpush1.xpose.msra.mxu0 0.0
  %312 = vmatprep.subr.mxu0 0.0
  %313 = vmatpush1.xpose.msra.mxu0 0.0
  %314 = vmatprep.subr.mxu0 0.0
  %315 = vmatpush1.xpose.msra.mxu0 0.0
  %316 = vmatprep.subr.mxu0 0.0
  %317 = vmatpush1.xpose.msra.mxu0 0.0
  %318 = vmatprep.subr.mxu0 0.0
  %319 = vmatpush1.xpose.msra.mxu0 0.0
  %320 = vmatprep.subr.mxu0 0.0
  %321 = vmatpush1.xpose.msra.mxu0 0.0
  %322 = vmatprep.subr.mxu0 0.0
  %323 = vmatpush1.xpose.msra.mxu0 0.0
  %324 = vmatprep.subr.mxu0 0.0
  %325 = vmatpush1.xpose.msra.mxu0 0.0
  %326 = vmatprep.subr.mxu0 0.0
  %327 = vmatpush1.xpose.msra.mxu0 0.0
  %328 = vmatprep.subr.mxu0 0.0
  %329 = vmatpush1.xpose.msra.mxu0 0.0
  %330 = vmatprep.subr.mxu0 0.0
  %331 = vmatpush1.xpose.msra.mxu0 0.0
  %332 = vmatprep.subr.mxu0 0.0
  %333 = vmatpush1.xpose.msra.mxu0 0.0
  %334 = vmatprep.subr.mxu0 0.0
  %335 = vmatpush1.xpose.msra.mxu0 0.0
  %336 = vmatprep.subr.mxu0 0.0
  %337 = vmatpush1.xpose.msra.mxu0 0.0
  %338 = vmatprep.subr.mxu0 0.0
  %339 = vmatpush1.xpose.msra.mxu0 0.0
  %340 = vmatprep.subr.mxu0 0.0
  %341 = vmatpush1.xpose.msra.mxu0 0.0
  %342 = vmatprep.subr.mxu0 0.0
  %343 = vmatpush1.xpose.msra.mxu0 0.0
  %344 = vmatprep.subr.mxu0 0.0
  %345 = vmatpush1.xpose.msra.mxu0 0.0
  %346 = vmatprep.subr.mxu0 0.0
  %347 = vmatpush1.xpose.msra.mxu0 0.0
  %348 = vmatprep.subr.mxu0 0.0
  %349 = vmatpush1.xpose.msra.mxu0 0.0
  %350 = vmatprep.subr.mxu0 0.0
  %351 = vmatpush1.xpose.msra.mxu0 0.0
  %352 = vmatprep.subr.mxu0 0.0
  %353 = vmatpush1.xpose.msra.mxu0 0.0
  %354 = vmatprep.subr.mxu0 0.0
  %355 = vmatpush1.xpose.msra.mxu0 0.0
  %356 = vmatprep.subr.mxu0 0.0
  %357 = vmatpush1.xpose.msra.mxu0 0.0
  %358 = vmatprep.mubr.f32.mxu0 0.0
  %359 = vmatmul.mubr.f32.gmra.mrb[0].mxu0 %v290
  %v360 = vpop.f32.mrb[0].mxu0
  %v361 = vadd.f32 0.0, %v360
  %v362 = vpop.f32.mrb[0].mxu0
  %363 = vdwg.mxu0
  %v364 = vmul.f32 %v283, 0.35355338
  %v365 = vmul.f32 %v361, 0.35355338
  %v366 = vadd.f32 %v364, %v28
  %v367 = vadd.f32 %v365, %v28
  %v368 = vsel %vm210, %v366, -inf
  %369 = vmax.xlane.f32.xlu0 %v368
  %v370 = vpop.xlane.xlu0 %369
  %v371 = vsel %vm210, %v367, -inf
  %372 = vmax.xlane.f32.xlu0 %v371
  %v373 = vpop.xlane.xlu0 %372
  %v374 = vsub.f32 %v366, %v370
  %v375 = vsub.f32 %v367, %v373
  %v376 = vmul.f32 %v374, 1.442695
  %v377 = vpow.pop %v376
  %v378 = vmul.f32 %v375, 1.442695
  %v379 = vpow.pop %v378
  %v380 = vsel %vm210, %v377, 0.0
  %381 = vadd.xlane.f32.xlu0 %v380
  %v382 = vpop.xlane.xlu0 %381
  %v383 = vsel %vm210, %v379, 0.0
  %384 = vadd.xlane.f32.xlu0 %v383
  %v385 = vpop.xlane.xlu0 %384
  %v386 = vrcp.pop %v382
  %v387 = vrcp.pop %v385
  %v388 = vmul.f32 %v377, %v386
  %v389 = vmul.f32 %v379, %v387
  %391 = vrot.lane.b32.xlu0 %v205, 64
  %v392 = vpop.permute.xlu0 %391
  %v395 = vsel %vm210, %v388, 0
  %397 = vmatprep.subr.mxu0 0.0
  %398 = vmatpush1.msra.mxu0 %v392
  %399 = vmatprep.subr.mxu0 0.0
  %400 = vmatpush1.msra.mxu0 0.0
  %401 = vmatprep.subr.mxu0 0.0
  %402 = vmatpush1.msra.mxu0 0.0
  %403 = vmatprep.subr.mxu0 0.0
  %404 = vmatpush1.msra.mxu0 0.0
  %405 = vmatprep.subr.mxu0 0.0
  %406 = vmatpush1.msra.mxu0 0.0
  %407 = vmatprep.subr.mxu0 0.0
  %408 = vmatpush1.msra.mxu0 0.0
  %409 = vmatprep.subr.mxu0 0.0
  %410 = vmatpush1.msra.mxu0 0.0
  %411 = vmatprep.subr.mxu0 0.0
  %412 = vmatpush1.msra.mxu0 0.0
  %413 = vmatprep.subr.mxu0 0.0
  %414 = vmatpush1.msra.mxu0 0.0
  %415 = vmatprep.subr.mxu0 0.0
  %416 = vmatpush1.msra.mxu0 0.0
  %417 = vmatprep.subr.mxu0 0.0
  %418 = vmatpush1.msra.mxu0 0.0
  %419 = vmatprep.subr.mxu0 0.0
  %420 = vmatpush1.msra.mxu0 0.0
  %421 = vmatprep.subr.mxu0 0.0
  %422 = vmatpush1.msra.mxu0 0.0
  %423 = vmatprep.subr.mxu0 0.0
  %424 = vmatpush1.msra.mxu0 0.0
  %425 = vmatprep.subr.mxu0 0.0
  %426 = vmatpush1.msra.mxu0 0.0
  %427 = vmatprep.subr.mxu0 0.0
  %428 = vmatpush1.msra.mxu0 0.0
  %429 = vmatprep.subr.mxu0 0.0
  %430 = vmatpush1.msra.mxu0 0.0
  %431 = vmatprep.subr.mxu0 0.0
  %432 = vmatpush1.msra.mxu0 0.0
  %433 = vmatprep.subr.mxu0 0.0
  %434 = vmatpush1.msra.mxu0 0.0
  %435 = vmatprep.subr.mxu0 0.0
  %436 = vmatpush1.msra.mxu0 0.0
  %437 = vmatprep.subr.mxu0 0.0
  %438 = vmatpush1.msra.mxu0 0.0
  %439 = vmatprep.subr.mxu0 0.0
  %440 = vmatpush1.msra.mxu0 0.0
  %441 = vmatprep.subr.mxu0 0.0
  %442 = vmatpush1.msra.mxu0 0.0
  %443 = vmatprep.subr.mxu0 0.0
  %444 = vmatpush1.msra.mxu0 0.0
  %445 = vmatprep.subr.mxu0 0.0
  %446 = vmatpush1.msra.mxu0 0.0
  %447 = vmatprep.subr.mxu0 0.0
  %448 = vmatpush1.msra.mxu0 0.0
  %449 = vmatprep.subr.mxu0 0.0
  %450 = vmatpush1.msra.mxu0 0.0
  %451 = vmatprep.subr.mxu0 0.0
  %452 = vmatpush1.msra.mxu0 0.0
  %453 = vmatprep.subr.mxu0 0.0
  %454 = vmatpush1.msra.mxu0 0.0
  %455 = vmatprep.subr.mxu0 0.0
  %456 = vmatpush1.msra.mxu0 0.0
  %457 = vmatprep.subr.mxu0 0.0
  %458 = vmatpush1.msra.mxu0 0.0
  %459 = vmatprep.subr.mxu0 0.0
  %460 = vmatpush1.msra.mxu0 0.0
  %461 = vmatprep.mubr.f32.mxu0 0.0
  %462 = vmatmul.mubr.f32.gmra.mrb[0].mxu0 %v395
  %v463 = vpop.f32.mrb[0].mxu0
  %v464 = vadd.f32 0.0, %v463
  %v465 = vpop.f32.mrb[0].mxu0
  %466 = vdwg.mxu0
  %468 = vrot.lane.b32.xlu0 %v206, 64
  %v469 = vpop.permute.xlu0 %468
  %v472 = vsel %vm210, %v389, 0
  %474 = vmatprep.subr.mxu0 0.0
  %475 = vmatpush1.msra.mxu0 %v469
  %476 = vmatprep.subr.mxu0 0.0
  %477 = vmatpush1.msra.mxu0 0.0
  %478 = vmatprep.subr.mxu0 0.0
  %479 = vmatpush1.msra.mxu0 0.0
  %480 = vmatprep.subr.mxu0 0.0
  %481 = vmatpush1.msra.mxu0 0.0
  %482 = vmatprep.subr.mxu0 0.0
  %483 = vmatpush1.msra.mxu0 0.0
  %484 = vmatprep.subr.mxu0 0.0
  %485 = vmatpush1.msra.mxu0 0.0
  %486 = vmatprep.subr.mxu0 0.0
  %487 = vmatpush1.msra.mxu0 0.0
  %488 = vmatprep.subr.mxu0 0.0
  %489 = vmatpush1.msra.mxu0 0.0
  %490 = vmatprep.subr.mxu0 0.0
  %491 = vmatpush1.msra.mxu0 0.0
  %492 = vmatprep.subr.mxu0 0.0
  %493 = vmatpush1.msra.mxu0 0.0
  %494 = vmatprep.subr.mxu0 0.0
  %495 = vmatpush1.msra.mxu0 0.0
  %496 = vmatprep.subr.mxu0 0.0
  %497 = vmatpush1.msra.mxu0 0.0
  %498 = vmatprep.subr.mxu0 0.0
  %499 = vmatpush1.msra.mxu0 0.0
  %500 = vmatprep.subr.mxu0 0.0
  %501 = vmatpush1.msra.mxu0 0.0
  %502 = vmatprep.subr.mxu0 0.0
  %503 = vmatpush1.msra.mxu0 0.0
  %504 = vmatprep.subr.mxu0 0.0
  %505 = vmatpush1.msra.mxu0 0.0
  %506 = vmatprep.subr.mxu0 0.0
  %507 = vmatpush1.msra.mxu0 0.0
  %508 = vmatprep.subr.mxu0 0.0
  %509 = vmatpush1.msra.mxu0 0.0
  %510 = vmatprep.subr.mxu0 0.0
  %511 = vmatpush1.msra.mxu0 0.0
  %512 = vmatprep.subr.mxu0 0.0
  %513 = vmatpush1.msra.mxu0 0.0
  %514 = vmatprep.subr.mxu0 0.0
  %515 = vmatpush1.msra.mxu0 0.0
  %516 = vmatprep.subr.mxu0 0.0
  %517 = vmatpush1.msra.mxu0 0.0
  %518 = vmatprep.subr.mxu0 0.0
  %519 = vmatpush1.msra.mxu0 0.0
  %520 = vmatprep.subr.mxu0 0.0
  %521 = vmatpush1.msra.mxu0 0.0
  %522 = vmatprep.subr.mxu0 0.0
  %523 = vmatpush1.msra.mxu0 0.0
  %524 = vmatprep.subr.mxu0 0.0
  %525 = vmatpush1.msra.mxu0 0.0
  %526 = vmatprep.subr.mxu0 0.0
  %527 = vmatpush1.msra.mxu0 0.0
  %528 = vmatprep.subr.mxu0 0.0
  %529 = vmatpush1.msra.mxu0 0.0
  %530 = vmatprep.subr.mxu0 0.0
  %531 = vmatpush1.msra.mxu0 0.0
  %532 = vmatprep.subr.mxu0 0.0
  %533 = vmatpush1.msra.mxu0 0.0
  %534 = vmatprep.subr.mxu0 0.0
  %535 = vmatpush1.msra.mxu0 0.0
  %536 = vmatprep.subr.mxu0 0.0
  %537 = vmatpush1.msra.mxu0 0.0
  %538 = vmatprep.mubr.f32.mxu0 0.0
  %539 = vmatmul.mubr.f32.gmra.mrb[0].mxu0 %v472
  %v540 = vpop.f32.mrb[0].mxu0
  %v541 = vadd.f32 0.0, %v540
  %v542 = vpop.f32.mrb[0].mxu0
  %543 = vdwg.mxu0
  %544 = vrot.lane.b32.xlu0 %v185, 120
  %v545 = vpop.permute.xlu0 %544
  %546 = vrot.lane.b32.xlu0 %v195, 88
  %v547 = vpop.permute.xlu0 %546
  %v548 = vsel %vm210, %v545, 0
  %v550 = vsel %vm210, %v547, 0
  %552 = vmatprep.subr.mxu0 0.0
  %553 = vmatpush1.xpose.msra.mxu0 %v550
  %554 = vmatprep.subr.mxu0 0.0
  %555 = vmatpush1.xpose.msra.mxu0 0.0
  %556 = vmatprep.subr.mxu0 0.0
  %557 = vmatpush1.xpose.msra.mxu0 0.0
  %558 = vmatprep.subr.mxu0 0.0
  %559 = vmatpush1.xpose.msra.mxu0 0.0
  %560 = vmatprep.subr.mxu0 0.0
  %561 = vmatpush1.xpose.msra.mxu0 0.0
  %562 = vmatprep.subr.mxu0 0.0
  %563 = vmatpush1.xpose.msra.mxu0 0.0
  %564 = vmatprep.subr.mxu0 0.0
  %565 = vmatpush1.xpose.msra.mxu0 0.0
  %566 = vmatprep.subr.mxu0 0.0
  %567 = vmatpush1.xpose.msra.mxu0 0.0
  %568 = vmatprep.subr.mxu0 0.0
  %569 = vmatpush1.xpose.msra.mxu0 0.0
  %570 = vmatprep.subr.mxu0 0.0
  %571 = vmatpush1.xpose.msra.mxu0 0.0
  %572 = vmatprep.subr.mxu0 0.0
  %573 = vmatpush1.xpose.msra.mxu0 0.0
  %574 = vmatprep.subr.mxu0 0.0
  %575 = vmatpush1.xpose.msra.mxu0 0.0
  %576 = vmatprep.subr.mxu0 0.0
  %577 = vmatpush1.xpose.msra.mxu0 0.0
  %578 = vmatprep.subr.mxu0 0.0
  %579 = vmatpush1.xpose.msra.mxu0 0.0
  %580 = vmatprep.subr.mxu0 0.0
  %581 = vmatpush1.xpose.msra.mxu0 0.0
  %582 = vmatprep.subr.mxu0 0.0
  %583 = vmatpush1.xpose.msra.mxu0 0.0
  %584 = vmatprep.subr.mxu0 0.0
  %585 = vmatpush1.xpose.msra.mxu0 0.0
  %586 = vmatprep.subr.mxu0 0.0
  %587 = vmatpush1.xpose.msra.mxu0 0.0
  %588 = vmatprep.subr.mxu0 0.0
  %589 = vmatpush1.xpose.msra.mxu0 0.0
  %590 = vmatprep.subr.mxu0 0.0
  %591 = vmatpush1.xpose.msra.mxu0 0.0
  %592 = vmatprep.subr.mxu0 0.0
  %593 = vmatpush1.xpose.msra.mxu0 0.0
  %594 = vmatprep.subr.mxu0 0.0
  %595 = vmatpush1.xpose.msra.mxu0 0.0
  %596 = vmatprep.subr.mxu0 0.0
  %597 = vmatpush1.xpose.msra.mxu0 0.0
  %598 = vmatprep.subr.mxu0 0.0
  %599 = vmatpush1.xpose.msra.mxu0 0.0
  %600 = vmatprep.subr.mxu0 0.0
  %601 = vmatpush1.xpose.msra.mxu0 0.0
  %602 = vmatprep.subr.mxu0 0.0
  %603 = vmatpush1.xpose.msra.mxu0 0.0
  %604 = vmatprep.subr.mxu0 0.0
  %605 = vmatpush1.xpose.msra.mxu0 0.0
  %606 = vmatprep.subr.mxu0 0.0
  %607 = vmatpush1.xpose.msra.mxu0 0.0
  %608 = vmatprep.subr.mxu0 0.0
  %609 = vmatpush1.xpose.msra.mxu0 0.0
  %610 = vmatprep.subr.mxu0 0.0
  %611 = vmatpush1.xpose.msra.mxu0 0.0
  %612 = vmatprep.subr.mxu0 0.0
  %613 = vmatpush1.xpose.msra.mxu0 0.0
  %614 = vmatprep.subr.mxu0 0.0
  %615 = vmatpush1.xpose.msra.mxu0 0.0
  %616 = vmatprep.mubr.f32.mxu0 0.0
  %617 = vmatmul.mubr.f32.gmra.mrb[0].mxu0 %v548
  %v618 = vpop.f32.mrb[0].mxu0
  %v619 = vadd.f32 0.0, %v618
  %v620 = vpop.f32.mrb[0].mxu0
  %621 = vdwg.mxu0
  %622 = vrot.lane.b32.xlu0 %v186, 120
  %v623 = vpop.permute.xlu0 %622
  %624 = vrot.lane.b32.xlu0 %v196, 88
  %v625 = vpop.permute.xlu0 %624
  %v626 = vsel %vm210, %v623, 0
  %v628 = vsel %vm210, %v625, 0
  %630 = vmatprep.subr.mxu0 0.0
  %631 = vmatpush1.xpose.msra.mxu0 %v628
  %632 = vmatprep.subr.mxu0 0.0
  %633 = vmatpush1.xpose.msra.mxu0 0.0
  %634 = vmatprep.subr.mxu0 0.0
  %635 = vmatpush1.xpose.msra.mxu0 0.0
  %636 = vmatprep.subr.mxu0 0.0
  %637 = vmatpush1.xpose.msra.mxu0 0.0
  %638 = vmatprep.subr.mxu0 0.0
  %639 = vmatpush1.xpose.msra.mxu0 0.0
  %640 = vmatprep.subr.mxu0 0.0
  %641 = vmatpush1.xpose.msra.mxu0 0.0
  %642 = vmatprep.subr.mxu0 0.0
  %643 = vmatpush1.xpose.msra.mxu0 0.0
  %644 = vmatprep.subr.mxu0 0.0
  %645 = vmatpush1.xpose.msra.mxu0 0.0
  %646 = vmatprep.subr.mxu0 0.0
  %647 = vmatpush1.xpose.msra.mxu0 0.0
  %648 = vmatprep.subr.mxu0 0.0
  %649 = vmatpush1.xpose.msra.mxu0 0.0
  %650 = vmatprep.subr.mxu0 0.0
  %651 = vmatpush1.xpose.msra.mxu0 0.0
  %652 = vmatprep.subr.mxu0 0.0
  %653 = vmatpush1.xpose.msra.mxu0 0.0
  %654 = vmatprep.subr.mxu0 0.0
  %655 = vmatpush1.xpose.msra.mxu0 0.0
  %656 = vmatprep.subr.mxu0 0.0
  %657 = vmatpush1.xpose.msra.mxu0 0.0
  %658 = vmatprep.subr.mxu0 0.0
  %659 = vmatpush1.xpose.msra.mxu0 0.0
  %660 = vmatprep.subr.mxu0 0.0
  %661 = vmatpush1.xpose.msra.mxu0 0.0
  %662 = vmatprep.subr.mxu0 0.0
  %663 = vmatpush1.xpose.msra.mxu0 0.0
  %664 = vmatprep.subr.mxu0 0.0
  %665 = vmatpush1.xpose.msra.mxu0 0.0
  %666 = vmatprep.subr.mxu0 0.0
  %667 = vmatpush1.xpose.msra.mxu0 0.0
  %668 = vmatprep.subr.mxu0 0.0
  %669 = vmatpush1.xpose.msra.mxu0 0.0
  %670 = vmatprep.subr.mxu0 0.0
  %671 = vmatpush1.xpose.msra.mxu0 0.0
  %672 = vmatprep.subr.mxu0 0.0
  %673 = vmatpush1.xpose.msra.mxu0 0.0
  %674 = vmatprep.subr.mxu0 0.0
  %675 = vmatpush1.xpose.msra.mxu0 0.0
  %676 = vmatprep.subr.mxu0 0.0
  %677 = vmatpush1.xpose.msra.mxu0 0.0
  %678 = vmatprep.subr.mxu0 0.0
  %679 = vmatpush1.xpose.msra.mxu0 0.0
  %680 = vmatprep.subr.mxu0 0.0
  %681 = vmatpush1.xpose.msra.mxu0 0.0
  %682 = vmatprep.subr.mxu0 0.0
  %683 = vmatpush1.xpose.msra.mxu0 0.0
  %684 = vmatprep.subr.mxu0 0.0
  %685 = vmatpush1.xpose.msra.mxu0 0.0
  %686 = vmatprep.subr.mxu0 0.0
  %687 = vmatpush1.xpose.msra.mxu0 0.0
  %688 = vmatprep.subr.mxu0 0.0
  %689 = vmatpush1.xpose.msra.mxu0 0.0
  %690 = vmatprep.subr.mxu0 0.0
  %691 = vmatpush1.xpose.msra.mxu0 0.0
  %692 = vmatprep.subr.mxu0 0.0
  %693 = vmatpush1.xpose.msra.mxu0 0.0
  %694 = vmatprep.mubr.f32.mxu0 0.0
  %695 = vmatmul.mubr.f32.gmra.mrb[0].mxu0 %v626
  %v696 = vpop.f32.mrb[0].mxu0
  %v697 = vadd.f32 0.0, %v696
  %v698 = vpop.f32.mrb[0].mxu0
  %699 = vdwg.mxu0
  %v700 = vmul.f32 %v619, 0.35355338
  %v701 = vmul.f32 %v697, 0.35355338
  %v702 = vadd.f32 %v700, %v28
  %v703 = vadd.f32 %v701, %v28
  %v704 = vsel %vm210, %v702, -inf
  %705 = vmax.xlane.f32.xlu0 %v704
  %v706 = vpop.xlane.xlu0 %705
  %v707 = vsel %vm210, %v703, -inf
  %708 = vmax.xlane.f32.xlu0 %v707
  %v709 = vpop.xlane.xlu0 %708
  %v710 = vsub.f32 %v702, %v706
  %v711 = vsub.f32 %v703, %v709
  %v712 = vmul.f32 %v710, 1.442695
  %v713 = vpow.pop %v712
  %v714 = vmul.f32 %v711, 1.442695
  %v715 = vpow.pop %v714
  %v716 = vsel %vm210, %v713, 0.0
  %717 = vadd.xlane.f32.xlu0 %v716
  %v718 = vpop.xlane.xlu0 %717
  %v719 = vsel %vm210, %v715, 0.0
  %720 = vadd.xlane.f32.xlu0 %v719
  %v721 = vpop.xlane.xlu0 %720
  %v722 = vrcp.pop %v718
  %v723 = vrcp.pop %v721
  %v724 = vmul.f32 %v713, %v722
  %v725 = vmul.f32 %v715, %v723
  %726 = vrot.lane.b32.xlu0 %v205, 56
  %v727 = vpop.permute.xlu0 %726
  %v730 = vsel %vm210, %v724, 0
  %732 = vmatprep.subr.mxu0 0.0
  %733 = vmatpush1.msra.mxu0 %v727
  %734 = vmatprep.subr.mxu0 0.0
  %735 = vmatpush1.msra.mxu0 0.0
  %736 = vmatprep.subr.mxu0 0.0
  %737 = vmatpush1.msra.mxu0 0.0
  %738 = vmatprep.subr.mxu0 0.0
  %739 = vmatpush1.msra.mxu0 0.0
  %740 = vmatprep.subr.mxu0 0.0
  %741 = vmatpush1.msra.mxu0 0.0
  %742 = vmatprep.subr.mxu0 0.0
  %743 = vmatpush1.msra.mxu0 0.0
  %744 = vmatprep.subr.mxu0 0.0
  %745 = vmatpush1.msra.mxu0 0.0
  %746 = vmatprep.subr.mxu0 0.0
  %747 = vmatpush1.msra.mxu0 0.0
  %748 = vmatprep.subr.mxu0 0.0
  %749 = vmatpush1.msra.mxu0 0.0
  %750 = vmatprep.subr.mxu0 0.0
  %751 = vmatpush1.msra.mxu0 0.0
  %752 = vmatprep.subr.mxu0 0.0
  %753 = vmatpush1.msra.mxu0 0.0
  %754 = vmatprep.subr.mxu0 0.0
  %755 = vmatpush1.msra.mxu0 0.0
  %756 = vmatprep.subr.mxu0 0.0
  %757 = vmatpush1.msra.mxu0 0.0
  %758 = vmatprep.subr.mxu0 0.0
  %759 = vmatpush1.msra.mxu0 0.0
  %760 = vmatprep.subr.mxu0 0.0
  %761 = vmatpush1.msra.mxu0 0.0
  %762 = vmatprep.subr.mxu0 0.0
  %763 = vmatpush1.msra.mxu0 0.0
  %764 = vmatprep.subr.mxu0 0.0
  %765 = vmatpush1.msra.mxu0 0.0
  %766 = vmatprep.subr.mxu0 0.0
  %767 = vmatpush1.msra.mxu0 0.0
  %768 = vmatprep.subr.mxu0 0.0
  %769 = vmatpush1.msra.mxu0 0.0
  %770 = vmatprep.subr.mxu0 0.0
  %771 = vmatpush1.msra.mxu0 0.0
  %772 = vmatprep.subr.mxu0 0.0
  %773 = vmatpush1.msra.mxu0 0.0
  %774 = vmatprep.subr.mxu0 0.0
  %775 = vmatpush1.msra.mxu0 0.0
  %776 = vmatprep.subr.mxu0 0.0
  %777 = vmatpush1.msra.mxu0 0.0
  %778 = vmatprep.subr.mxu0 0.0
  %779 = vmatpush1.msra.mxu0 0.0
  %780 = vmatprep.subr.mxu0 0.0
  %781 = vmatpush1.msra.mxu0 0.0
  %782 = vmatprep.subr.mxu0 0.0
  %783 = vmatpush1.msra.mxu0 0.0
  %784 = vmatprep.subr.mxu0 0.0
  %785 = vmatpush1.msra.mxu0 0.0
  %786 = vmatprep.subr.mxu0 0.0
  %787 = vmatpush1.msra.mxu0 0.0
  %788 = vmatprep.subr.mxu0 0.0
  %789 = vmatpush1.msra.mxu0 0.0
  %790 = vmatprep.subr.mxu0 0.0
  %791 = vmatpush1.msra.mxu0 0.0
  %792 = vmatprep.subr.mxu0 0.0
  %793 = vmatpush1.msra.mxu0 0.0
  %794 = vmatprep.subr.mxu0 0.0
  %795 = vmatpush1.msra.mxu0 0.0
  %796 = vmatprep.mubr.f32.mxu0 0.0
  %797 = vmatmul.mubr.f32.gmra.mrb[0].mxu0 %v730
  %v798 = vpop.f32.mrb[0].mxu0
  %v799 = vadd.f32 0.0, %v798
  %v800 = vpop.f32.mrb[0].mxu0
  %801 = vdwg.mxu0
  %802 = vrot.lane.b32.xlu0 %v206, 56
  %v803 = vpop.permute.xlu0 %802
  %v806 = vsel %vm210, %v725, 0
  %808 = vmatprep.subr.mxu0 0.0
  %809 = vmatpush1.msra.mxu0 %v803
  %810 = vmatprep.subr.mxu0 0.0
  %811 = vmatpush1.msra.mxu0 0.0
  %812 = vmatprep.subr.mxu0 0.0
  %813 = vmatpush1.msra.mxu0 0.0
  %814 = vmatprep.subr.mxu0 0.0
  %815 = vmatpush1.msra.mxu0 0.0
  %816 = vmatprep.subr.mxu0 0.0
  %817 = vmatpush1.msra.mxu0 0.0
  %818 = vmatprep.subr.mxu0 0.0
  %819 = vmatpush1.msra.mxu0 0.0
  %820 = vmatprep.subr.mxu0 0.0
  %821 = vmatpush1.msra.mxu0 0.0
  %822 = vmatprep.subr.mxu0 0.0
  %823 = vmatpush1.msra.mxu0 0.0
  %824 = vmatprep.subr.mxu0 0.0
  %825 = vmatpush1.msra.mxu0 0.0
  %826 = vmatprep.subr.mxu0 0.0
  %827 = vmatpush1.msra.mxu0 0.0
  %828 = vmatprep.subr.mxu0 0.0
  %829 = vmatpush1.msra.mxu0 0.0
  %830 = vmatprep.subr.mxu0 0.0
  %831 = vmatpush1.msra.mxu0 0.0
  %832 = vmatprep.subr.mxu0 0.0
  %833 = vmatpush1.msra.mxu0 0.0
  %834 = vmatprep.subr.mxu0 0.0
  %835 = vmatpush1.msra.mxu0 0.0
  %836 = vmatprep.subr.mxu0 0.0
  %837 = vmatpush1.msra.mxu0 0.0
  %838 = vmatprep.subr.mxu0 0.0
  %839 = vmatpush1.msra.mxu0 0.0
  %840 = vmatprep.subr.mxu0 0.0
  %841 = vmatpush1.msra.mxu0 0.0
  %842 = vmatprep.subr.mxu0 0.0
  %843 = vmatpush1.msra.mxu0 0.0
  %844 = vmatprep.subr.mxu0 0.0
  %845 = vmatpush1.msra.mxu0 0.0
  %846 = vmatprep.subr.mxu0 0.0
  %847 = vmatpush1.msra.mxu0 0.0
  %848 = vmatprep.subr.mxu0 0.0
  %849 = vmatpush1.msra.mxu0 0.0
  %850 = vmatprep.subr.mxu0 0.0
  %851 = vmatpush1.msra.mxu0 0.0
  %852 = vmatprep.subr.mxu0 0.0
  %853 = vmatpush1.msra.mxu0 0.0
  %854 = vmatprep.subr.mxu0 0.0
  %855 = vmatpush1.msra.mxu0 0.0
  %856 = vmatprep.subr.mxu0 0.0
  %857 = vmatpush1.msra.mxu0 0.0
  %858 = vmatprep.subr.mxu0 0.0
  %859 = vmatpush1.msra.mxu0 0.0
  %860 = vmatprep.subr.mxu0 0.0
  %861 = vmatpush1.msra.mxu0 0.0
  %862 = vmatprep.subr.mxu0 0.0
  %863 = vmatpush1.msra.mxu0 0.0
  %864 = vmatprep.subr.mxu0 0.0
  %865 = vmatpush1.msra.mxu0 0.0
  %866 = vmatprep.subr.mxu0 0.0
  %867 = vmatpush1.msra.mxu0 0.0
  %868 = vmatprep.subr.mxu0 0.0
  %869 = vmatpush1.msra.mxu0 0.0
  %870 = vmatprep.subr.mxu0 0.0
  %871 = vmatpush1.msra.mxu0 0.0
  %872 = vmatprep.mubr.f32.mxu0 0.0
  %873 = vmatmul.mubr.f32.gmra.mrb[0].mxu0 %v806
  %v874 = vpop.f32.mrb[0].mxu0
  %v875 = vadd.f32 0.0, %v874
  %v876 = vpop.f32.mrb[0].mxu0
  %877 = vdwg.mxu0
  %878 = vrot.lane.b32.xlu0 %v185, 112
  %v879 = vpop.permute.xlu0 %878
  %880 = vrot.lane.b32.xlu0 %v195, 80
  %v881 = vpop.permute.xlu0 %880
  %v882 = vsel %vm210, %v879, 0
  %v884 = vsel %vm210, %v881, 0
  %886 = vmatprep.subr.mxu0 0.0
  %887 = vmatpush1.xpose.msra.mxu0 %v884
  %888 = vmatprep.subr.mxu0 0.0
  %889 = vmatpush1.xpose.msra.mxu0 0.0
  %890 = vmatprep.subr.mxu0 0.0
  %891 = vmatpush1.xpose.msra.mxu0 0.0
  %892 = vmatprep.subr.mxu0 0.0
  %893 = vmatpush1.xpose.msra.mxu0 0.0
  %894 = vmatprep.subr.mxu0 0.0
  %895 = vmatpush1.xpose.msra.mxu0 0.0
  %896 = vmatprep.subr.mxu0 0.0
  %897 = vmatpush1.xpose.msra.mxu0 0.0
  %898 = vmatprep.subr.mxu0 0.0
  %899 = vmatpush1.xpose.msra.mxu0 0.0
  %900 = vmatprep.subr.mxu0 0.0
  %901 = vmatpush1.xpose.msra.mxu0 0.0
  %902 = vmatprep.subr.mxu0 0.0
  %903 = vmatpush1.xpose.msra.mxu0 0.0
  %904 = vmatprep.subr.mxu0 0.0
  %905 = vmatpush1.xpose.msra.mxu0 0.0
  %906 = vmatprep.subr.mxu0 0.0
  %907 = vmatpush1.xpose.msra.mxu0 0.0
  %908 = vmatprep.subr.mxu0 0.0
  %909 = vmatpush1.xpose.msra.mxu0 0.0
  %910 = vmatprep.subr.mxu0 0.0
  %911 = vmatpush1.xpose.msra.mxu0 0.0
  %912 = vmatprep.subr.mxu0 0.0
  %913 = vmatpush1.xpose.msra.mxu0 0.0
  %914 = vmatprep.subr.mxu0 0.0
  %915 = vmatpush1.xpose.msra.mxu0 0.0
  %916 = vmatprep.subr.mxu0 0.0
  %917 = vmatpush1.xpose.msra.mxu0 0.0
  %918 = vmatprep.subr.mxu0 0.0
  %919 = vmatpush1.xpose.msra.mxu0 0.0
  %920 = vmatprep.subr.mxu0 0.0
  %921 = vmatpush1.xpose.msra.mxu0 0.0
  %922 = vmatprep.subr.mxu0 0.0
  %923 = vmatpush1.xpose.msra.mxu0 0.0
  %924 = vmatprep.subr.mxu0 0.0
  %925 = vmatpush1.xpose.msra.mxu0 0.0
  %926 = vmatprep.subr.mxu0 0.0
  %927 = vmatpush1.xpose.msra.mxu0 0.0
  %928 = vmatprep.subr.mxu0 0.0
  %929 = vmatpush1.xpose.msra.mxu0 0.0
  %930 = vmatprep.subr.mxu0 0.0
  %931 = vmatpush1.xpose.msra.mxu0 0.0
  %932 = vmatprep.subr.mxu0 0.0
  %933 = vmatpush1.xpose.msra.mxu0 0.0
  %934 = vmatprep.subr.mxu0 0.0
  %935 = vmatpush1.xpose.msra.mxu0 0.0
  %936 = vmatprep.subr.mxu0 0.0
  %937 = vmatpush1.xpose.msra.mxu0 0.0
  %938 = vmatprep.subr.mxu0 0.0
  %939 = vmatpush1.xpose.msra.mxu0 0.0
  %940 = vmatprep.subr.mxu0 0.0
  %941 = vmatpush1.xpose.msra.mxu0 0.0
  %942 = vmatprep.subr.mxu0 0.0
  %943 = vmatpush1.xpose.msra.mxu0 0.0
  %944 = vmatprep.subr.mxu0 0.0
  %945 = vmatpush1.xpose.msra.mxu0 0.0
  %946 = vmatprep.subr.mxu0 0.0
  %947 = vmatpush1.xpose.msra.mxu0 0.0
  %948 = vmatprep.subr.mxu0 0.0
  %949 = vmatpush1.xpose.msra.mxu0 0.0
  %950 = vmatprep.mubr.f32.mxu0 0.0
  %951 = vmatmul.mubr.f32.gmra.mrb[0].mxu0 %v882
  %v952 = vpop.f32.mrb[0].mxu0
  %v953 = vadd.f32 0.0, %v952
  %v954 = vpop.f32.mrb[0].mxu0
  %955 = vdwg.mxu0
  %956 = vrot.lane.b32.xlu0 %v186, 112
  %v957 = vpop.permute.xlu0 %956
  %958 = vrot.lane.b32.xlu0 %v196, 80
  %v959 = vpop.permute.xlu0 %958
  %v960 = vsel %vm210, %v957, 0
  %v962 = vsel %vm210, %v959, 0
  %964 = vmatprep.subr.mxu0 0.0
  %965 = vmatpush1.xpose.msra.mxu0 %v962
  %966 = vmatprep.subr.mxu0 0.0
  %967 = vmatpush1.xpose.msra.mxu0 0.0
  %968 = vmatprep.subr.mxu0 0.0
  %969 = vmatpush1.xpose.msra.mxu0 0.0
  %970 = vmatprep.subr.mxu0 0.0
  %971 = vmatpush1.xpose.msra.mxu0 0.0
  %972 = vmatprep.subr.mxu0 0.0
  %973 = vmatpush1.xpose.msra.mxu0 0.0
  %974 = vmatprep.subr.mxu0 0.0
  %975 = vmatpush1.xpose.msra.mxu0 0.0
  %976 = vmatprep.subr.mxu0 0.0
  %977 = vmatpush1.xpose.msra.mxu0 0.0
  %978 = vmatprep.subr.mxu0 0.0
  %979 = vmatpush1.xpose.msra.mxu0 0.0
  %980 = vmatprep.subr.mxu0 0.0
  %981 = vmatpush1.xpose.msra.mxu0 0.0
  %982 = vmatprep.subr.mxu0 0.0
  %983 = vmatpush1.xpose.msra.mxu0 0.0
  %984 = vmatprep.subr.mxu0 0.0
  %985 = vmatpush1.xpose.msra.mxu0 0.0
  %986 = vmatprep.subr.mxu0 0.0
  %987 = vmatpush1.xpose.msra.mxu0 0.0
  %988 = vmatprep.subr.mxu0 0.0
  %989 = vmatpush1.xpose.msra.mxu0 0.0
  %990 = vmatprep.subr.mxu0 0.0
  %991 = vmatpush1.xpose.msra.mxu0 0.0
  %992 = vmatprep.subr.mxu0 0.0
  %993 = vmatpush1.xpose.msra.mxu0 0.0
  %994 = vmatprep.subr.mxu0 0.0
  %995 = vmatpush1.xpose.msra.mxu0 0.0
  %996 = vmatprep.subr.mxu0 0.0
  %997 = vmatpush1.xpose.msra.mxu0 0.0
  %998 = vmatprep.subr.mxu0 0.0
  %999 = vmatpush1.xpose.msra.mxu0 0.0
  %1000 = vmatprep.subr.mxu0 0.0
  %1001 = vmatpush1.xpose.msra.mxu0 0.0
  %1002 = vmatprep.subr.mxu0 0.0
  %1003 = vmatpush1.xpose.msra.mxu0 0.0
  %1004 = vmatprep.subr.mxu0 0.0
  %1005 = vmatpush1.xpose.msra.mxu0 0.0
  %1006 = vmatprep.subr.mxu0 0.0
  %1007 = vmatpush1.xpose.msra.mxu0 0.0
  %1008 = vmatprep.subr.mxu0 0.0
  %1009 = vmatpush1.xpose.msra.mxu0 0.0
  %1010 = vmatprep.subr.mxu0 0.0
  %1011 = vmatpush1.xpose.msra.mxu0 0.0
  %1012 = vmatprep.subr.mxu0 0.0
  %1013 = vmatpush1.xpose.msra.mxu0 0.0
  %1014 = vmatprep.subr.mxu0 0.0
  %1015 = vmatpush1.xpose.msra.mxu0 0.0
  %1016 = vmatprep.subr.mxu0 0.0
  %1017 = vmatpush1.xpose.msra.mxu0 0.0
  %1018 = vmatprep.subr.mxu0 0.0
  %1019 = vmatpush1.xpose.msra.mxu0 0.0
  %1020 = vmatprep.subr.mxu0 0.0
  %1021 = vmatpush1.xpose.msra.mxu0 0.0
  %1022 = vmatprep.subr.mxu0 0.0
  %1023 = vmatpush1.xpose.msra.mxu0 0.0
  %1024 = vmatprep.subr.mxu0 0.0
  %1025 = vmatpush1.xpose.msra.mxu0 0.0
  %1026 = vmatprep.subr.mxu0 0.0
  %1027 = vmatpush1.xpose.msra.mxu0 0.0
  %1028 = vmatprep.mubr.f32.mxu0 0.0
  %1029 = vmatmul.mubr.f32.gmra.mrb[0].mxu0 %v960
  %v1030 = vpop.f32.mrb[0].mxu0
  %v1031 = vadd.f32 0.0, %v1030
  %v1032 = vpop.f32.mrb[0].mxu0
  %1033 = vdwg.mxu0
  %v1034 = vmul.f32 %v953, 0.35355338
  %v1035 = vmul.f32 %v1031, 0.35355338
  %v1036 = vadd.f32 %v1034, %v28
  %v1037 = vadd.f32 %v1035, %v28
  %v1038 = vsel %vm210, %v1036, -inf
  %1039 = vmax.xlane.f32.xlu0 %v1038
  %v1040 = vpop.xlane.xlu0 %1039
  %v1041 = vsel %vm210, %v1037, -inf
  %1042 = vmax.xlane.f32.xlu0 %v1041
  %v1043 = vpop.xlane.xlu0 %1042
  %v1044 = vsub.f32 %v1036, %v1040
  %v1045 = vsub.f32 %v1037, %v1043
  %v1046 = vmul.f32 %v1044, 1.442695
  %v1047 = vpow.pop %v1046
  %v1048 = vmul.f32 %v1045, 1.442695
  %v1049 = vpow.pop %v1048
  %v1050 = vsel %vm210, %v1047, 0.0
  %1051 = vadd.xlane.f32.xlu0 %v1050
  %v1052 = vpop.xlane.xlu0 %1051
  %v1053 = vsel %vm210, %v1049, 0.0
  %1054 = vadd.xlane.f32.xlu0 %v1053
  %v1055 = vpop.xlane.xlu0 %1054
  %v1056 = vrcp.pop %v1052
  %v1057 = vrcp.pop %v1055
  %v1058 = vmul.f32 %v1047, %v1056
  %v1059 = vmul.f32 %v1049, %v1057
  %1060 = vrot.lane.b32.xlu0 %v205, 48
  %v1061 = vpop.permute.xlu0 %1060
  %v1064 = vsel %vm210, %v1058, 0
  %1066 = vmatprep.subr.mxu0 0.0
  %1067 = vmatpush1.msra.mxu0 %v1061
  %1068 = vmatprep.subr.mxu0 0.0
  %1069 = vmatpush1.msra.mxu0 0.0
  %1070 = vmatprep.subr.mxu0 0.0
  %1071 = vmatpush1.msra.mxu0 0.0
  %1072 = vmatprep.subr.mxu0 0.0
  %1073 = vmatpush1.msra.mxu0 0.0
  %1074 = vmatprep.subr.mxu0 0.0
  %1075 = vmatpush1.msra.mxu0 0.0
  %1076 = vmatprep.subr.mxu0 0.0
  %1077 = vmatpush1.msra.mxu0 0.0
  %1078 = vmatprep.subr.mxu0 0.0
  %1079 = vmatpush1.msra.mxu0 0.0
  %1080 = vmatprep.subr.mxu0 0.0
  %1081 = vmatpush1.msra.mxu0 0.0
  %1082 = vmatprep.subr.mxu0 0.0
  %1083 = vmatpush1.msra.mxu0 0.0
  %1084 = vmatprep.subr.mxu0 0.0
  %1085 = vmatpush1.msra.mxu0 0.0
  %1086 = vmatprep.subr.mxu0 0.0
  %1087 = vmatpush1.msra.mxu0 0.0
  %1088 = vmatprep.subr.mxu0 0.0
  %1089 = vmatpush1.msra.mxu0 0.0
  %1090 = vmatprep.subr.mxu0 0.0
  %1091 = vmatpush1.msra.mxu0 0.0
  %1092 = vmatprep.subr.mxu0 0.0
  %1093 = vmatpush1.msra.mxu0 0.0
  %1094 = vmatprep.subr.mxu0 0.0
  %1095 = vmatpush1.msra.mxu0 0.0
  %1096 = vmatprep.subr.mxu0 0.0
  %1097 = vmatpush1.msra.mxu0 0.0
  %1098 = vmatprep.subr.mxu0 0.0
  %1099 = vmatpush1.msra.mxu0 0.0
  %1100 = vmatprep.subr.mxu0 0.0
  %1101 = vmatpush1.msra.mxu0 0.0
  %1102 = vmatprep.subr.mxu0 0.0
  %1103 = vmatpush1.msra.mxu0 0.0
  %1104 = vmatprep.subr.mxu0 0.0
  %1105 = vmatpush1.msra.mxu0 0.0
  %1106 = vmatprep.subr.mxu0 0.0
  %1107 = vmatpush1.msra.mxu0 0.0
  %1108 = vmatprep.subr.mxu0 0.0
  %1109 = vmatpush1.msra.mxu0 0.0
  %1110 = vmatprep.subr.mxu0 0.0
  %1111 = vmatpush1.msra.mxu0 0.0
  %1112 = vmatprep.subr.mxu0 0.0
  %1113 = vmatpush1.msra.mxu0 0.0
  %1114 = vmatprep.subr.mxu0 0.0
  %1115 = vmatpush1.msra.mxu0 0.0
  %1116 = vmatprep.subr.mxu0 0.0
  %1117 = vmatpush1.msra.mxu0 0.0
  %1118 = vmatprep.subr.mxu0 0.0
  %1119 = vmatpush1.msra.mxu0 0.0
  %1120 = vmatprep.subr.mxu0 0.0
  %1121 = vmatpush1.msra.mxu0 0.0
  %1122 = vmatprep.subr.mxu0 0.0
  %1123 = vmatpush1.msra.mxu0 0.0
  %1124 = vmatprep.subr.mxu0 0.0
  %1125 = vmatpush1.msra.mxu0 0.0
  %1126 = vmatprep.subr.mxu0 0.0
  %1127 = vmatpush1.msra.mxu0 0.0
  %1128 = vmatprep.subr.mxu0 0.0
  %1129 = vmatpush1.msra.mxu0 0.0
  %1130 = vmatprep.mubr.f32.mxu0 0.0
  %1131 = vmatmul.mubr.f32.gmra.mrb[0].mxu0 %v1064
  %v1132 = vpop.f32.mrb[0].mxu0
  %v1133 = vadd.f32 0.0, %v1132
  %v1134 = vpop.f32.mrb[0].mxu0
  %1135 = vdwg.mxu0
  %1136 = vrot.lane.b32.xlu0 %v206, 48
  %v1137 = vpop.permute.xlu0 %1136
  %v1140 = vsel %vm210, %v1059, 0
  %1142 = vmatprep.subr.mxu0 0.0
  %1143 = vmatpush1.msra.mxu0 %v1137
  %1144 = vmatprep.subr.mxu0 0.0
  %1145 = vmatpush1.msra.mxu0 0.0
  %1146 = vmatprep.subr.mxu0 0.0
  %1147 = vmatpush1.msra.mxu0 0.0
  %1148 = vmatprep.subr.mxu0 0.0
  %1149 = vmatpush1.msra.mxu0 0.0
  %1150 = vmatprep.subr.mxu0 0.0
  %1151 = vmatpush1.msra.mxu0 0.0
  %1152 = vmatprep.subr.mxu0 0.0
  %1153 = vmatpush1.msra.mxu0 0.0
  %1154 = vmatprep.subr.mxu0 0.0
  %1155 = vmatpush1.msra.mxu0 0.0
  %1156 = vmatprep.subr.mxu0 0.0
  %1157 = vmatpush1.msra.mxu0 0.0
  %1158 = vmatprep.subr.mxu0 0.0
  %1159 = vmatpush1.msra.mxu0 0.0
  %1160 = vmatprep.subr.mxu0 0.0
  %1161 = vmatpush1.msra.mxu0 0.0
  %1162 = vmatprep.subr.mxu0 0.0
  %1163 = vmatpush1.msra.mxu0 0.0
  %1164 = vmatprep.subr.mxu0 0.0
  %1165 = vmatpush1.msra.mxu0 0.0
  %1166 = vmatprep.subr.mxu0 0.0
  %1167 = vmatpush1.msra.mxu0 0.0
  %1168 = vmatprep.subr.mxu0 0.0
  %1169 = vmatpush1.msra.mxu0 0.0
  %1170 = vmatprep.subr.mxu0 0.0
  %1171 = vmatpush1.msra.mxu0 0.0
  %1172 = vmatprep.subr.mxu0 0.0
  %1173 = vmatpush1.msra.mxu0 0.0
  %1174 = vmatprep.subr.mxu0 0.0
  %1175 = vmatpush1.msra.mxu0 0.0
  %1176 = vmatprep.subr.mxu0 0.0
  %1177 = vmatpush1.msra.mxu0 0.0
  %1178 = vmatprep.subr.mxu0 0.0
  %1179 = vmatpush1.msra.mxu0 0.0
  %1180 = vmatprep.subr.mxu0 0.0
  %1181 = vmatpush1.msra.mxu0 0.0
  %1182 = vmatprep.subr.mxu0 0.0
  %1183 = vmatpush1.msra.mxu0 0.0
  %1184 = vmatprep.subr.mxu0 0.0
  %1185 = vmatpush1.msra.mxu0 0.0
  %1186 = vmatprep.subr.mxu0 0.0
  %1187 = vmatpush1.msra.mxu0 0.0
  %1188 = vmatprep.subr.mxu0 0.0
  %1189 = vmatpush1.msra.mxu0 0.0
  %1190 = vmatprep.subr.mxu0 0.0
  %1191 = vmatpush1.msra.mxu0 0.0
  %1192 = vmatprep.subr.mxu0 0.0
  %1193 = vmatpush1.msra.mxu0 0.0
  %1194 = vmatprep.subr.mxu0 0.0
  %1195 = vmatpush1.msra.mxu0 0.0
  %1196 = vmatprep.subr.mxu0 0.0
  %1197 = vmatpush1.msra.mxu0 0.0
  %1198 = vmatprep.subr.mxu0 0.0
  %1199 = vmatpush1.msra.mxu0 0.0
  %1200 = vmatprep.subr.mxu0 0.0
  %1201 = vmatpush1.msra.mxu0 0.0
  %1202 = vmatprep.subr.mxu0 0.0
  %1203 = vmatpush1.msra.mxu0 0.0
  %1204 = vmatprep.subr.mxu0 0.0
  %1205 = vmatpush1.msra.mxu0 0.0
  %1206 = vmatprep.mubr.f32.mxu0 0.0
  %1207 = vmatmul.mubr.f32.gmra.mrb[0].mxu0 %v1140
  %v1208 = vpop.f32.mrb[0].mxu0
  %v1209 = vadd.f32 0.0, %v1208
  %v1210 = vpop.f32.mrb[0].mxu0
  %1211 = vdwg.mxu0
  %1212 = vrot.lane.b32.xlu0 %v185, 104
  %v1213 = vpop.permute.xlu0 %1212
  %1214 = vrot.lane.b32.xlu0 %v195, 72
  %v1215 = vpop.permute.xlu0 %1214
  %v1216 = vsel %vm210, %v1213, 0
  %v1218 = vsel %vm210, %v1215, 0
  %1220 = vmatprep.subr.mxu0 0.0
  %1221 = vmatpush1.xpose.msra.mxu0 %v1218
  %1222 = vmatprep.subr.mxu0 0.0
  %1223 = vmatpush1.xpose.msra.mxu0 0.0
  %1224 = vmatprep.subr.mxu0 0.0
  %1225 = vmatpush1.xpose.msra.mxu0 0.0
  %1226 = vmatprep.subr.mxu0 0.0
  %1227 = vmatpush1.xpose.msra.mxu0 0.0
  %1228 = vmatprep.subr.mxu0 0.0
  %1229 = vmatpush1.xpose.msra.mxu0 0.0
  %1230 = vmatprep.subr.mxu0 0.0
  %1231 = vmatpush1.xpose.msra.mxu0 0.0
  %1232 = vmatprep.subr.mxu0 0.0
  %1233 = vmatpush1.xpose.msra.mxu0 0.0
  %1234 = vmatprep.subr.mxu0 0.0
  %1235 = vmatpush1.xpose.msra.mxu0 0.0
  %1236 = vmatprep.subr.mxu0 0.0
  %1237 = vmatpush1.xpose.msra.mxu0 0.0
  %1238 = vmatprep.subr.mxu0 0.0
  %1239 = vmatpush1.xpose.msra.mxu0 0.0
  %1240 = vmatprep.subr.mxu0 0.0
  %1241 = vmatpush1.xpose.msra.mxu0 0.0
  %1242 = vmatprep.subr.mxu0 0.0
  %1243 = vmatpush1.xpose.msra.mxu0 0.0
  %1244 = vmatprep.subr.mxu0 0.0
  %1245 = vmatpush1.xpose.msra.mxu0 0.0
  %1246 = vmatprep.subr.mxu0 0.0
  %1247 = vmatpush1.xpose.msra.mxu0 0.0
  %1248 = vmatprep.subr.mxu0 0.0
  %1249 = vmatpush1.xpose.msra.mxu0 0.0
  %1250 = vmatprep.subr.mxu0 0.0
  %1251 = vmatpush1.xpose.msra.mxu0 0.0
  %1252 = vmatprep.subr.mxu0 0.0
  %1253 = vmatpush1.xpose.msra.mxu0 0.0
  %1254 = vmatprep.subr.mxu0 0.0
  %1255 = vmatpush1.xpose.msra.mxu0 0.0
  %1256 = vmatprep.subr.mxu0 0.0
  %1257 = vmatpush1.xpose.msra.mxu0 0.0
  %1258 = vmatprep.subr.mxu0 0.0
  %1259 = vmatpush1.xpose.msra.mxu0 0.0
  %1260 = vmatprep.subr.mxu0 0.0
  %1261 = vmatpush1.xpose.msra.mxu0 0.0
  %1262 = vmatprep.subr.mxu0 0.0
  %1263 = vmatpush1.xpose.msra.mxu0 0.0
  %1264 = vmatprep.subr.mxu0 0.0
  %1265 = vmatpush1.xpose.msra.mxu0 0.0
  %1266 = vmatprep.subr.mxu0 0.0
  %1267 = vmatpush1.xpose.msra.mxu0 0.0
  %1268 = vmatprep.subr.mxu0 0.0
  %1269 = vmatpush1.xpose.msra.mxu0 0.0
  %1270 = vmatprep.subr.mxu0 0.0
  %1271 = vmatpush1.xpose.msra.mxu0 0.0
  %1272 = vmatprep.subr.mxu0 0.0
  %1273 = vmatpush1.xpose.msra.mxu0 0.0
  %1274 = vmatprep.subr.mxu0 0.0
  %1275 = vmatpush1.xpose.msra.mxu0 0.0
  %1276 = vmatprep.subr.mxu0 0.0
  %1277 = vmatpush1.xpose.msra.mxu0 0.0
  %1278 = vmatprep.subr.mxu0 0.0
  %1279 = vmatpush1.xpose.msra.mxu0 0.0
  %1280 = vmatprep.subr.mxu0 0.0
  %1281 = vmatpush1.xpose.msra.mxu0 0.0
  %1282 = vmatprep.subr.mxu0 0.0
  %1283 = vmatpush1.xpose.msra.mxu0 0.0
  %1284 = vmatprep.mubr.f32.mxu0 0.0
  %1285 = vmatmul.mubr.f32.gmra.mrb[0].mxu0 %v1216
  %v1286 = vpop.f32.mrb[0].mxu0
  %v1287 = vadd.f32 0.0, %v1286
  %v1288 = vpop.f32.mrb[0].mxu0
  %1289 = vdwg.mxu0
  %1290 = vrot.lane.b32.xlu0 %v186, 104
  %v1291 = vpop.permute.xlu0 %1290
  %1292 = vrot.lane.b32.xlu0 %v196, 72
  %v1293 = vpop.permute.xlu0 %1292
  %v1294 = vsel %vm210, %v1291, 0
  %v1296 = vsel %vm210, %v1293, 0
  %1298 = vmatprep.subr.mxu0 0.0
  %1299 = vmatpush1.xpose.msra.mxu0 %v1296
  %1300 = vmatprep.subr.mxu0 0.0
  %1301 = vmatpush1.xpose.msra.mxu0 0.0
  %1302 = vmatprep.subr.mxu0 0.0
  %1303 = vmatpush1.xpose.msra.mxu0 0.0
  %1304 = vmatprep.subr.mxu0 0.0
  %1305 = vmatpush1.xpose.msra.mxu0 0.0
  %1306 = vmatprep.subr.mxu0 0.0
  %1307 = vmatpush1.xpose.msra.mxu0 0.0
  %1308 = vmatprep.subr.mxu0 0.0
  %1309 = vmatpush1.xpose.msra.mxu0 0.0
  %1310 = vmatprep.subr.mxu0 0.0
  %1311 = vmatpush1.xpose.msra.mxu0 0.0
  %1312 = vmatprep.subr.mxu0 0.0
  %1313 = vmatpush1.xpose.msra.mxu0 0.0
  %1314 = vmatprep.subr.mxu0 0.0
  %1315 = vmatpush1.xpose.msra.mxu0 0.0
  %1316 = vmatprep.subr.mxu0 0.0
  %1317 = vmatpush1.xpose.msra.mxu0 0.0
  %1318 = vmatprep.subr.mxu0 0.0
  %1319 = vmatpush1.xpose.msra.mxu0 0.0
  %1320 = vmatprep.subr.mxu0 0.0
  %1321 = vmatpush1.xpose.msra.mxu0 0.0
  %1322 = vmatprep.subr.mxu0 0.0
  %1323 = vmatpush1.xpose.msra.mxu0 0.0
  %1324 = vmatprep.subr.mxu0 0.0
  %1325 = vmatpush1.xpose.msra.mxu0 0.0
  %1326 = vmatprep.subr.mxu0 0.0
  %1327 = vmatpush1.xpose.msra.mxu0 0.0
  %1328 = vmatprep.subr.mxu0 0.0
  %1329 = vmatpush1.xpose.msra.mxu0 0.0
  %1330 = vmatprep.subr.mxu0 0.0
  %1331 = vmatpush1.xpose.msra.mxu0 0.0
  %1332 = vmatprep.subr.mxu0 0.0
  %1333 = vmatpush1.xpose.msra.mxu0 0.0
  %1334 = vmatprep.subr.mxu0 0.0
  %1335 = vmatpush1.xpose.msra.mxu0 0.0
  %1336 = vmatprep.subr.mxu0 0.0
  %1337 = vmatpush1.xpose.msra.mxu0 0.0
  %1338 = vmatprep.subr.mxu0 0.0
  %1339 = vmatpush1.xpose.msra.mxu0 0.0
  %1340 = vmatprep.subr.mxu0 0.0
  %1341 = vmatpush1.xpose.msra.mxu0 0.0
  %1342 = vmatprep.subr.mxu0 0.0
  %1343 = vmatpush1.xpose.msra.mxu0 0.0
  %1344 = vmatprep.subr.mxu0 0.0
  %1345 = vmatpush1.xpose.msra.mxu0 0.0
  %1346 = vmatprep.subr.mxu0 0.0
  %1347 = vmatpush1.xpose.msra.mxu0 0.0
  %1348 = vmatprep.subr.mxu0 0.0
  %1349 = vmatpush1.xpose.msra.mxu0 0.0
  %1350 = vmatprep.subr.mxu0 0.0
  %1351 = vmatpush1.xpose.msra.mxu0 0.0
  %1352 = vmatprep.subr.mxu0 0.0
  %1353 = vmatpush1.xpose.msra.mxu0 0.0
  %1354 = vmatprep.subr.mxu0 0.0
  %1355 = vmatpush1.xpose.msra.mxu0 0.0
  %1356 = vmatprep.subr.mxu0 0.0
  %1357 = vmatpush1.xpose.msra.mxu0 0.0
  %1358 = vmatprep.subr.mxu0 0.0
  %1359 = vmatpush1.xpose.msra.mxu0 0.0
  %1360 = vmatprep.subr.mxu0 0.0
  %1361 = vmatpush1.xpose.msra.mxu0 0.0
  %1362 = vmatprep.mubr.f32.mxu0 0.0
  %1363 = vmatmul.mubr.f32.gmra.mrb[0].mxu0 %v1294
  %v1364 = vpop.f32.mrb[0].mxu0
  %v1365 = vadd.f32 0.0, %v1364
  %v1366 = vpop.f32.mrb[0].mxu0
  %1367 = vdwg.mxu0
  %v1368 = vmul.f32 %v1287, 0.35355338
  %v1369 = vmul.f32 %v1365, 0.35355338
  %v1370 = vadd.f32 %v1368, %v28
  %v1371 = vadd.f32 %v1369, %v28
  %v1372 = vsel %vm210, %v1370, -inf
  %1373 = vmax.xlane.f32.xlu0 %v1372
  %v1374 = vpop.xlane.xlu0 %1373
  %v1375 = vsel %vm210, %v1371, -inf
  %1376 = vmax.xlane.f32.xlu0 %v1375
  %v1377 = vpop.xlane.xlu0 %1376
  %v1378 = vsub.f32 %v1370, %v1374
  %v1379 = vsub.f32 %v1371, %v1377
  %v1380 = vmul.f32 %v1378, 1.442695
  %v1381 = vpow.pop %v1380
  %v1382 = vmul.f32 %v1379, 1.442695
  %v1383 = vpow.pop %v1382
  %v1384 = vsel %vm210, %v1381, 0.0
  %1385 = vadd.xlane.f32.xlu0 %v1384
  %v1386 = vpop.xlane.xlu0 %1385
  %v1387 = vsel %vm210, %v1383, 0.0
  %1388 = vadd.xlane.f32.xlu0 %v1387
  %v1389 = vpop.xlane.xlu0 %1388
  %v1390 = vrcp.pop %v1386
  %v1391 = vrcp.pop %v1389
  %v1392 = vmul.f32 %v1381, %v1390
  %v1393 = vmul.f32 %v1383, %v1391
  %1394 = vrot.lane.b32.xlu0 %v205, 40
  %v1395 = vpop.permute.xlu0 %1394
  %v1398 = vsel %vm210, %v1392, 0
  %1400 = vmatprep.subr.mxu0 0.0
  %1401 = vmatpush1.msra.mxu0 %v1395
  %1402 = vmatprep.subr.mxu0 0.0
  %1403 = vmatpush1.msra.mxu0 0.0
  %1404 = vmatprep.subr.mxu0 0.0
  %1405 = vmatpush1.msra.mxu0 0.0
  %1406 = vmatprep.subr.mxu0 0.0
  %1407 = vmatpush1.msra.mxu0 0.0
  %1408 = vmatprep.subr.mxu0 0.0
  %1409 = vmatpush1.msra.mxu0 0.0
  %1410 = vmatprep.subr.mxu0 0.0
  %1411 = vmatpush1.msra.mxu0 0.0
  %1412 = vmatprep.subr.mxu0 0.0
  %1413 = vmatpush1.msra.mxu0 0.0
  %1414 = vmatprep.subr.mxu0 0.0
  %1415 = vmatpush1.msra.mxu0 0.0
  %1416 = vmatprep.subr.mxu0 0.0
  %1417 = vmatpush1.msra.mxu0 0.0
  %1418 = vmatprep.subr.mxu0 0.0
  %1419 = vmatpush1.msra.mxu0 0.0
  %1420 = vmatprep.subr.mxu0 0.0
  %1421 = vmatpush1.msra.mxu0 0.0
  %1422 = vmatprep.subr.mxu0 0.0
  %1423 = vmatpush1.msra.mxu0 0.0
  %1424 = vmatprep.subr.mxu0 0.0
  %1425 = vmatpush1.msra.mxu0 0.0
  %1426 = vmatprep.subr.mxu0 0.0
  %1427 = vmatpush1.msra.mxu0 0.0
  %1428 = vmatprep.subr.mxu0 0.0
  %1429 = vmatpush1.msra.mxu0 0.0
  %1430 = vmatprep.subr.mxu0 0.0
  %1431 = vmatpush1.msra.mxu0 0.0
  %1432 = vmatprep.subr.mxu0 0.0
  %1433 = vmatpush1.msra.mxu0 0.0
  %1434 = vmatprep.subr.mxu0 0.0
  %1435 = vmatpush1.msra.mxu0 0.0
  %1436 = vmatprep.subr.mxu0 0.0
  %1437 = vmatpush1.msra.mxu0 0.0
  %1438 = vmatprep.subr.mxu0 0.0
  %1439 = vmatpush1.msra.mxu0 0.0
  %1440 = vmatprep.subr.mxu0 0.0
  %1441 = vmatpush1.msra.mxu0 0.0
  %1442 = vmatprep.subr.mxu0 0.0
  %1443 = vmatpush1.msra.mxu0 0.0
  %1444 = vmatprep.subr.mxu0 0.0
  %1445 = vmatpush1.msra.mxu0 0.0
  %1446 = vmatprep.subr.mxu0 0.0
  %1447 = vmatpush1.msra.mxu0 0.0
  %1448 = vmatprep.subr.mxu0 0.0
  %1449 = vmatpush1.msra.mxu0 0.0
  %1450 = vmatprep.subr.mxu0 0.0
  %1451 = vmatpush1.msra.mxu0 0.0
  %1452 = vmatprep.subr.mxu0 0.0
  %1453 = vmatpush1.msra.mxu0 0.0
  %1454 = vmatprep.subr.mxu0 0.0
  %1455 = vmatpush1.msra.mxu0 0.0
  %1456 = vmatprep.subr.mxu0 0.0
  %1457 = vmatpush1.msra.mxu0 0.0
  %1458 = vmatprep.subr.mxu0 0.0
  %1459 = vmatpush1.msra.mxu0 0.0
  %1460 = vmatprep.subr.mxu0 0.0
  %1461 = vmatpush1.msra.mxu0 0.0
  %1462 = vmatprep.subr.mxu0 0.0
  %1463 = vmatpush1.msra.mxu0 0.0
  %1464 = vmatprep.mubr.f32.mxu0 0.0
  %1465 = vmatmul.mubr.f32.gmra.mrb[0].mxu0 %v1398
  %v1466 = vpop.f32.mrb[0].mxu0
  %v1467 = vadd.f32 0.0, %v1466
  %v1468 = vpop.f32.mrb[0].mxu0
  %1469 = vdwg.mxu0
  %1470 = vrot.lane.b32.xlu0 %v206, 40
  %v1471 = vpop.permute.xlu0 %1470
  %v1474 = vsel %vm210, %v1393, 0
  %1476 = vmatprep.subr.mxu0 0.0
  %1477 = vmatpush1.msra.mxu0 %v1471
  %1478 = vmatprep.subr.mxu0 0.0
  %1479 = vmatpush1.msra.mxu0 0.0
  %1480 = vmatprep.subr.mxu0 0.0
  %1481 = vmatpush1.msra.mxu0 0.0
  %1482 = vmatprep.subr.mxu0 0.0
  %1483 = vmatpush1.msra.mxu0 0.0
  %1484 = vmatprep.subr.mxu0 0.0
  %1485 = vmatpush1.msra.mxu0 0.0
  %1486 = vmatprep.subr.mxu0 0.0
  %1487 = vmatpush1.msra.mxu0 0.0
  %1488 = vmatprep.subr.mxu0 0.0
  %1489 = vmatpush1.msra.mxu0 0.0
  %1490 = vmatprep.subr.mxu0 0.0
  %1491 = vmatpush1.msra.mxu0 0.0
  %1492 = vmatprep.subr.mxu0 0.0
  %1493 = vmatpush1.msra.mxu0 0.0
  %1494 = vmatprep.subr.mxu0 0.0
  %1495 = vmatpush1.msra.mxu0 0.0
  %1496 = vmatprep.subr.mxu0 0.0
  %1497 = vmatpush1.msra.mxu0 0.0
  %1498 = vmatprep.subr.mxu0 0.0
  %1499 = vmatpush1.msra.mxu0 0.0
  %1500 = vmatprep.subr.mxu0 0.0
  %1501 = vmatpush1.msra.mxu0 0.0
  %1502 = vmatprep.subr.mxu0 0.0
  %1503 = vmatpush1.msra.mxu0 0.0
  %1504 = vmatprep.subr.mxu0 0.0
  %1505 = vmatpush1.msra.mxu0 0.0
  %1506 = vmatprep.subr.mxu0 0.0
  %1507 = vmatpush1.msra.mxu0 0.0
  %1508 = vmatprep.subr.mxu0 0.0
  %1509 = vmatpush1.msra.mxu0 0.0
  %1510 = vmatprep.subr.mxu0 0.0
  %1511 = vmatpush1.msra.mxu0 0.0
  %1512 = vmatprep.subr.mxu0 0.0
  %1513 = vmatpush1.msra.mxu0 0.0
  %1514 = vmatprep.subr.mxu0 0.0
  %1515 = vmatpush1.msra.mxu0 0.0
  %1516 = vmatprep.subr.mxu0 0.0
  %1517 = vmatpush1.msra.mxu0 0.0
  %1518 = vmatprep.subr.mxu0 0.0
  %1519 = vmatpush1.msra.mxu0 0.0
  %1520 = vmatprep.subr.mxu0 0.0
  %1521 = vmatpush1.msra.mxu0 0.0
  %1522 = vmatprep.subr.mxu0 0.0
  %1523 = vmatpush1.msra.mxu0 0.0
  %1524 = vmatprep.subr.mxu0 0.0
  %1525 = vmatpush1.msra.mxu0 0.0
  %1526 = vmatprep.subr.mxu0 0.0
  %1527 = vmatpush1.msra.mxu0 0.0
  %1528 = vmatprep.subr.mxu0 0.0
  %1529 = vmatpush1.msra.mxu0 0.0
  %1530 = vmatprep.subr.mxu0 0.0
  %1531 = vmatpush1.msra.mxu0 0.0
  %1532 = vmatprep.subr.mxu0 0.0
  %1533 = vmatpush1.msra.mxu0 0.0
  %1534 = vmatprep.subr.mxu0 0.0
  %1535 = vmatpush1.msra.mxu0 0.0
  %1536 = vmatprep.subr.mxu0 0.0
  %1537 = vmatpush1.msra.mxu0 0.0
  %1538 = vmatprep.subr.mxu0 0.0
  %1539 = vmatpush1.msra.mxu0 0.0
  %1540 = vmatprep.mubr.f32.mxu0 0.0
  %1541 = vmatmul.mubr.f32.gmra.mrb[0].mxu0 %v1474
  %v1542 = vpop.f32.mrb[0].mxu0
  %v1543 = vadd.f32 0.0, %v1542
  %v1544 = vpop.f32.mrb[0].mxu0
  %1545 = vdwg.mxu0
  %1548 = vrot.lane.b32.xlu0 %v799, 8
  %v1549 = vpop.permute.xlu0 %1548
  %1550 = vrot.lane.b32.xlu0 %v875, 8
  %v1551 = vpop.permute.xlu0 %1550
  %1556 = vrot.lane.b32.xlu0 %v1133, 16
  %v1557 = vpop.permute.xlu0 %1556
  %1558 = vrot.lane.b32.xlu0 %v1209, 16
  %v1559 = vpop.permute.xlu0 %1558
  %1564 = vrot.lane.b32.xlu0 %v1467, 24
  %v1565 = vpop.permute.xlu0 %1564
  %1566 = vrot.lane.b32.xlu0 %v1543, 24
  %v1567 = vpop.permute.xlu0 %1566
  %v1570 = vsel %vm210, %v464, %v1549
  %v1571 = vsel %vm210, %v541, %v1551
  %vm1572 = vcmask 130048
  %v1573 = vsel %vm1572, %v1570, %v1557
  %v1574 = vsel %vm1572, %v1571, %v1559
  %vm1575 = vcmask 195584
  %v1576 = vsel %vm1575, %v1573, %v1565
  %v1577 = vsel %vm1575, %v1574, %v1567
  %v1578 = vlaneseq
  %v1579 = vshrl.u32 %v1578, 7
  %v1580 = vsub.s32 0, %v1579
  %v1581 = vrot.slane %v39, %v1580
  %v1583 = vsel %vm60, %v1576, 0
  %v1586 = vsel %vm60, %v1577, 0
  %1588 = vmatprep.subr.mxu0 0.0
  %1589 = vmatpush1.msra.mxu0 %v46
  %1590 = vmatprep.subr.mxu0 0.0
  %1591 = vmatpush1.msra.mxu0 %v47
  %1592 = vmatprep.subr.mxu0 0.0
  %1593 = vmatpush1.msra.mxu0 %v48
  %1594 = vmatprep.subr.mxu0 0.0
  %1595 = vmatpush1.msra.mxu0 %v49
  %1596 = vmatprep.subr.mxu0 0.0
  %1597 = vmatpush1.msra.mxu0 0.0
  %1598 = vmatprep.subr.mxu0 0.0
  %1599 = vmatpush1.msra.mxu0 0.0
  %1600 = vmatprep.subr.mxu0 0.0
  %1601 = vmatpush1.msra.mxu0 0.0
  %1602 = vmatprep.subr.mxu0 0.0
  %1603 = vmatpush1.msra.mxu0 0.0
  %1604 = vmatprep.subr.mxu0 0.0
  %1605 = vmatpush1.msra.mxu0 0.0
  %1606 = vmatprep.subr.mxu0 0.0
  %1607 = vmatpush1.msra.mxu0 0.0
  %1608 = vmatprep.subr.mxu0 0.0
  %1609 = vmatpush1.msra.mxu0 0.0
  %1610 = vmatprep.subr.mxu0 0.0
  %1611 = vmatpush1.msra.mxu0 0.0
  %1612 = vmatprep.subr.mxu0 0.0
  %1613 = vmatpush1.msra.mxu0 0.0
  %1614 = vmatprep.subr.mxu0 0.0
  %1615 = vmatpush1.msra.mxu0 0.0
  %1616 = vmatprep.subr.mxu0 0.0
  %1617 = vmatpush1.msra.mxu0 0.0
  %1618 = vmatprep.subr.mxu0 0.0
  %1619 = vmatpush1.msra.mxu0 0.0
  %1620 = vmatprep.subr.mxu0 0.0
  %1621 = vmatpush1.msra.mxu0 0.0
  %1622 = vmatprep.subr.mxu0 0.0
  %1623 = vmatpush1.msra.mxu0 0.0
  %1624 = vmatprep.subr.mxu0 0.0
  %1625 = vmatpush1.msra.mxu0 0.0
  %1626 = vmatprep.subr.mxu0 0.0
  %1627 = vmatpush1.msra.mxu0 0.0
  %1628 = vmatprep.subr.mxu0 0.0
  %1629 = vmatpush1.msra.mxu0 0.0
  %1630 = vmatprep.subr.mxu0 0.0
  %1631 = vmatpush1.msra.mxu0 0.0
  %1632 = vmatprep.subr.mxu0 0.0
  %1633 = vmatpush1.msra.mxu0 0.0
  %1634 = vmatprep.subr.mxu0 0.0
  %1635 = vmatpush1.msra.mxu0 0.0
  %1636 = vmatprep.subr.mxu0 0.0
  %1637 = vmatpush1.msra.mxu0 0.0
  %1638 = vmatprep.subr.mxu0 0.0
  %1639 = vmatpush1.msra.mxu0 0.0
  %1640 = vmatprep.subr.mxu0 0.0
  %1641 = vmatpush1.msra.mxu0 0.0
  %1642 = vmatprep.subr.mxu0 0.0
  %1643 = vmatpush1.msra.mxu0 0.0
  %1644 = vmatprep.subr.mxu0 0.0
  %1645 = vmatpush1.msra.mxu0 0.0
  %1646 = vmatprep.subr.mxu0 0.0
  %1647 = vmatpush1.msra.mxu0 0.0
  %1648 = vmatprep.subr.mxu0 0.0
  %1649 = vmatpush1.msra.mxu0 0.0
  %1650 = vmatprep.subr.mxu0 0.0
  %1651 = vmatpush1.msra.mxu0 0.0
  %1652 = vmatprep.mubr.f32.mxu0 0.0
  %1653 = vmatmul.mubr.f32.gmra.mrb[0].mxu0 %v1583
  %v1654 = vpop.f32.mrb[0].mxu0
  %v1655 = vadd.f32 %v1581, %v1654
  %v1656 = vpop.f32.mrb[0].mxu0
  %1657 = vmatprep.mubr.f32.mxu0 0.0
  %1658 = vmatmul.mubr.f32.gmra.mrb[0].mxu0 %v1586
  %v1659 = vpop.f32.mrb[0].mxu0
  %v1660 = vadd.f32 %v1581, %v1659
  %v1661 = vpop.f32.mrb[0].mxu0
  %1662 = vdwg.mxu0
  %v1663 = vadd.f32 %v98, %v1655
  %v1664 = vadd.f32 %v99, %v1660
  %v1665 = vsel %vm60, %v1663, 0.0
  %1666 = vadd.xlane.f32.xlu0 %v1665
  %v1667 = vpop.xlane.xlu0 %1666
  %v1668 = vsel %vm60, %v1664, 0.0
  %1669 = vadd.xlane.f32.xlu0 %v1668
  %v1670 = vpop.xlane.xlu0 %1669
  %v1671 = vmul.f32 %v1667, %v67
  %v1672 = vmul.f32 %v1670, %v67
  %v1673 = vsub.f32 %v1663, %v1671
  %v1674 = vsub.f32 %v1664, %v1672
  %v1675 = vmul.f32 %v1673, %v1673
  %v1676 = vmul.f32 %v1674, %v1674
  %v1677 = vsel %vm60, %v1675, 0.0
  %1678 = vadd.xlane.f32.xlu0 %v1677
  %v1679 = vpop.xlane.xlu0 %1678
  %v1680 = vsel %vm60, %v1676, 0.0
  %1681 = vadd.xlane.f32.xlu0 %v1680
  %v1682 = vpop.xlane.xlu0 %1681
  %v1683 = vmul.f32 %v1679, %v67
  %v1684 = vmul.f32 %v1682, %v67
  %v1685 = vadd.f32 %v1683, 1e-05
  %v1686 = vadd.f32 %v1684, 1e-05
  %v1687 = vrsqrt.pop %v1685
  %v1688 = vrsqrt.pop %v1686
  %v1689 = vmul.f32 %v1673, %v1687
  %v1690 = vmul.f32 %v1674, %v1688
  %v1691 = vlaneseq
  %v1692 = vshrl.u32 %v1691, 7
  %v1693 = vsub.s32 0, %v1692
  %v1694 = vrot.slane %v34, %v1693
  %v1695 = vmul.f32 %v1689, %v1694
  %v1696 = vmul.f32 %v1690, %v1694
  %v1697 = vlaneseq
  %v1698 = vshrl.u32 %v1697, 7
  %v1699 = vsub.s32 0, %v1698
  %v1700 = vrot.slane %v35, %v1699
  %v1701 = vadd.f32 %v1695, %v1700
  %v1702 = vadd.f32 %v1696, %v1700
  %v1703 = vlaneseq
  %v1704 = vshrl.u32 %v1703, 7
  %v1705 = vsub.s32 0, %v1704
  %v1706 = vrot.slane %v40, %v1705
  %v1708 = vsel %vm60, %v1701, 0
  %v1711 = vsel %vm60, %v1702, 0
  %1713 = vmatprep.subr.mxu0 0.0
  %1714 = vmatpush1.msra.mxu0 %v50
  %1715 = vmatprep.subr.mxu0 0.0
  %1716 = vmatpush1.msra.mxu0 %v51
  %1717 = vmatprep.subr.mxu0 0.0
  %1718 = vmatpush1.msra.mxu0 %v52
  %1719 = vmatprep.subr.mxu0 0.0
  %1720 = vmatpush1.msra.mxu0 %v53
  %1721 = vmatprep.subr.mxu0 0.0
  %1722 = vmatpush1.msra.mxu0 0.0
  %1723 = vmatprep.subr.mxu0 0.0
  %1724 = vmatpush1.msra.mxu0 0.0
  %1725 = vmatprep.subr.mxu0 0.0
  %1726 = vmatpush1.msra.mxu0 0.0
  %1727 = vmatprep.subr.mxu0 0.0
  %1728 = vmatpush1.msra.mxu0 0.0
  %1729 = vmatprep.subr.mxu0 0.0
  %1730 = vmatpush1.msra.mxu0 0.0
  %1731 = vmatprep.subr.mxu0 0.0
  %1732 = vmatpush1.msra.mxu0 0.0
  %1733 = vmatprep.subr.mxu0 0.0
  %1734 = vmatpush1.msra.mxu0 0.0
  %1735 = vmatprep.subr.mxu0 0.0
  %1736 = vmatpush1.msra.mxu0 0.0
  %1737 = vmatprep.subr.mxu0 0.0
  %1738 = vmatpush1.msra.mxu0 0.0
  %1739 = vmatprep.subr.mxu0 0.0
  %1740 = vmatpush1.msra.mxu0 0.0
  %1741 = vmatprep.subr.mxu0 0.0
  %1742 = vmatpush1.msra.mxu0 0.0
  %1743 = vmatprep.subr.mxu0 0.0
  %1744 = vmatpush1.msra.mxu0 0.0
  %1745 = vmatprep.subr.mxu0 0.0
  %1746 = vmatpush1.msra.mxu0 0.0
  %1747 = vmatprep.subr.mxu0 0.0
  %1748 = vmatpush1.msra.mxu0 0.0
  %1749 = vmatprep.subr.mxu0 0.0
  %1750 = vmatpush1.msra.mxu0 0.0
  %1751 = vmatprep.subr.mxu0 0.0
  %1752 = vmatpush1.msra.mxu0 0.0
  %1753 = vmatprep.subr.mxu0 0.0
  %1754 = vmatpush1.msra.mxu0 0.0
  %1755 = vmatprep.subr.mxu0 0.0
  %1756 = vmatpush1.msra.mxu0 0.0
  %1757 = vmatprep.subr.mxu0 0.0
  %1758 = vmatpush1.msra.mxu0 0.0
  %1759 = vmatprep.subr.mxu0 0.0
  %1760 = vmatpush1.msra.mxu0 0.0
  %1761 = vmatprep.subr.mxu0 0.0
  %1762 = vmatpush1.msra.mxu0 0.0
  %1763 = vmatprep.subr.mxu0 0.0
  %1764 = vmatpush1.msra.mxu0 0.0
  %1765 = vmatprep.subr.mxu0 0.0
  %1766 = vmatpush1.msra.mxu0 0.0
  %1767 = vmatprep.subr.mxu0 0.0
  %1768 = vmatpush1.msra.mxu0 0.0
  %1769 = vmatprep.subr.mxu0 0.0
  %1770 = vmatpush1.msra.mxu0 0.0
  %1771 = vmatprep.subr.mxu0 0.0
  %1772 = vmatpush1.msra.mxu0 0.0
  %1773 = vmatprep.subr.mxu0 0.0
  %1774 = vmatpush1.msra.mxu0 0.0
  %1775 = vmatprep.subr.mxu0 0.0
  %1776 = vmatpush1.msra.mxu0 0.0
  %1777 = vmatprep.mubr.f32.mxu0 0.0
  %1778 = vmatmul.mubr.f32.gmra.mrb[0].mxu0 %v1708
  %v1779 = vpop.f32.mrb[0].mxu0
  %v1780 = vadd.f32 %v1706, %v1779
  %v1781 = vpop.f32.mrb[0].mxu0
  %1782 = vmatprep.mubr.f32.mxu0 0.0
  %1783 = vmatmul.mubr.f32.gmra.mrb[0].mxu0 %v1711
  %v1784 = vpop.f32.mrb[0].mxu0
  %v1785 = vadd.f32 %v1706, %v1784
  %v1786 = vpop.f32.mrb[0].mxu0
  %1787 = vdwg.mxu0
  %v1788 = vmax.f32 %v1780, 0.0
  %v1789 = vmax.f32 %v1785, 0.0
  %v1790 = vlaneseq
  %v1791 = vshrl.u32 %v1790, 7
  %v1792 = vsub.s32 0, %v1791
  %v1793 = vrot.slane %v41, %v1792
  %v1795 = vsel %vm60, %v1788, 0
  %v1798 = vsel %vm60, %v1789, 0
  %1800 = vmatprep.subr.mxu0 0.0
  %1801 = vmatpush1.msra.mxu0 %v54
  %1802 = vmatprep.subr.mxu0 0.0
  %1803 = vmatpush1.msra.mxu0 %v55
  %1804 = vmatprep.subr.mxu0 0.0
  %1805 = vmatpush1.msra.mxu0 %v56
  %1806 = vmatprep.subr.mxu0 0.0
  %1807 = vmatpush1.msra.mxu0 %v57
  %1808 = vmatprep.subr.mxu0 0.0
  %1809 = vmatpush1.msra.mxu0 0.0
  %1810 = vmatprep.subr.mxu0 0.0
  %1811 = vmatpush1.msra.mxu0 0.0
  %1812 = vmatprep.subr.mxu0 0.0
  %1813 = vmatpush1.msra.mxu0 0.0
  %1814 = vmatprep.subr.mxu0 0.0
  %1815 = vmatpush1.msra.mxu0 0.0
  %1816 = vmatprep.subr.mxu0 0.0
  %1817 = vmatpush1.msra.mxu0 0.0
  %1818 = vmatprep.subr.mxu0 0.0
  %1819 = vmatpush1.msra.mxu0 0.0
  %1820 = vmatprep.subr.mxu0 0.0
  %1821 = vmatpush1.msra.mxu0 0.0
  %1822 = vmatprep.subr.mxu0 0.0
  %1823 = vmatpush1.msra.mxu0 0.0
  %1824 = vmatprep.subr.mxu0 0.0
  %1825 = vmatpush1.msra.mxu0 0.0
  %1826 = vmatprep.subr.mxu0 0.0
  %1827 = vmatpush1.msra.mxu0 0.0
  %1828 = vmatprep.subr.mxu0 0.0
  %1829 = vmatpush1.msra.mxu0 0.0
  %1830 = vmatprep.subr.mxu0 0.0
  %1831 = vmatpush1.msra.mxu0 0.0
  %1832 = vmatprep.subr.mxu0 0.0
  %1833 = vmatpush1.msra.mxu0 0.0
  %1834 = vmatprep.subr.mxu0 0.0
  %1835 = vmatpush1.msra.mxu0 0.0
  %1836 = vmatprep.subr.mxu0 0.0
  %1837 = vmatpush1.msra.mxu0 0.0
  %1838 = vmatprep.subr.mxu0 0.0
  %1839 = vmatpush1.msra.mxu0 0.0
  %1840 = vmatprep.subr.mxu0 0.0
  %1841 = vmatpush1.msra.mxu0 0.0
  %1842 = vmatprep.subr.mxu0 0.0
  %1843 = vmatpush1.msra.mxu0 0.0
  %1844 = vmatprep.subr.mxu0 0.0
  %1845 = vmatpush1.msra.mxu0 0.0
  %1846 = vmatprep.subr.mxu0 0.0
  %1847 = vmatpush1.msra.mxu0 0.0
  %1848 = vmatprep.subr.mxu0 0.0
  %1849 = vmatpush1.msra.mxu0 0.0
  %1850 = vmatprep.subr.mxu0 0.0
  %1851 = vmatpush1.msra.mxu0 0.0
  %1852 = vmatprep.subr.mxu0 0.0
  %1853 = vmatpush1.msra.mxu0 0.0
  %1854 = vmatprep.subr.mxu0 0.0
  %1855 = vmatpush1.msra.mxu0 0.0
  %1856 = vmatprep.subr.mxu0 0.0
  %1857 = vmatpush1.msra.mxu0 0.0
  %1858 = vmatprep.subr.mxu0 0.0
  %1859 = vmatpush1.msra.mxu0 0.0
  %1860 = vmatprep.subr.mxu0 0.0
  %1861 = vmatpush1.msra.mxu0 0.0
  %1862 = vmatprep.subr.mxu0 0.0
  %1863 = vmatpush1.msra.mxu0 0.0
  %1864 = vmatprep.mubr.f32.mxu0 0.0
  %1865 = vmatmul.mubr.f32.gmra.mrb[0].mxu0 %v1795
  %v1866 = vpop.f32.mrb[0].mxu0
  %v1867 = vadd.f32 %v1793, %v1866
  %v1868 = vpop.f32.mrb[0].mxu0
  %1869 = vmatprep.mubr.f32.mxu0 0.0
  %1870 = vmatmul.mubr.f32.gmra.mrb[0].mxu0 %v1798
  %v1871 = vpop.f32.mrb[0].mxu0
  %v1872 = vadd.f32 %v1793, %v1871
  %v1873 = vpop.f32.mrb[0].mxu0
  %1874 = vdwg.mxu0
  %v1875 = vadd.f32 %v1701, %v1867
  %v1876 = vadd.f32 %v1702, %v1872
  %v1877 = vld [vmem:[%s3 + $0x18] sm:$0xff]
  %v1878 = vld [vmem:[%s3 + $0x20] sm:$0x1]
  %v1879 = vld [vmem:[%s3 + $0x21] sm:$0x1]
  %v1880 = vld [vmem:[%s3 + $0x22] sm:$0x1]
  %v1881 = vld [vmem:[%s3 + $0x23] sm:$0x1]
  %v1882 = vld [vmem:[%s3 + $0x24] sm:$0x1]
  %v1883 = vld [vmem:[%s3 + $0x25] sm:$0x1]
  %v1884 = vld [vmem:[%s3 + $0x26] sm:$0x1]
  %v1885 = vld [vmem:[%s3 + $0x27] sm:$0x1]
  %v1886 = vld [vmem:[%s3 + $0x28] sm:$0x1]
  %v1887 = vld [vmem:[%s3 + $0x29] sm:$0x1]
  %v1888 = vld [vmem:[%s2 + $0x80] sm:$0xff]
  %v1889 = vld [vmem:[%s2 + $0x88] sm:$0xff]
  %v1890 = vld [vmem:[%s2 + $0x90] sm:$0xff]
  %v1891 = vld [vmem:[%s2 + $0x98] sm:$0xff]
  %v1892 = vld [vmem:[%s2 + $0xa0] sm:$0xff]
  %v1893 = vld [vmem:[%s2 + $0xa8] sm:$0xff]
  %v1894 = vld [vmem:[%s2 + $0xb0] sm:$0xff]
  %v1895 = vld [vmem:[%s2 + $0xb8] sm:$0xff]
  %v1896 = vld [vmem:[%s2 + $0xc0] sm:$0xff]
  %v1897 = vld [vmem:[%s2 + $0xc8] sm:$0xff]
  %v1898 = vld [vmem:[%s2 + $0xd0] sm:$0xff]
  %v1899 = vld [vmem:[%s2 + $0xd8] sm:$0xff]
  %v1900 = vld [vmem:[%s2 + $0xe0] sm:$0xff]
  %v1901 = vld [vmem:[%s2 + $0xe8] sm:$0xff]
  %v1902 = vld [vmem:[%s2 + $0xf0] sm:$0xff]
  %v1903 = vld [vmem:[%s2 + $0xf8] sm:$0xff]
  %v1904 = vadd.f32 %v1875, %v1877
  %v1905 = vadd.f32 %v1876, %v1877
  %v1906 = vsel %vm60, %v1904, 0.0
  %1907 = vadd.xlane.f32.xlu0 %v1906
  %v1908 = vpop.xlane.xlu0 %1907
  %v1909 = vsel %vm60, %v1905, 0.0
  %1910 = vadd.xlane.f32.xlu0 %v1909
  %v1911 = vpop.xlane.xlu0 %1910
  %v1912 = vmul.f32 %v1908, %v67
  %v1913 = vmul.f32 %v1911, %v67
  %v1914 = vsub.f32 %v1904, %v1912
  %v1915 = vsub.f32 %v1905, %v1913
  %v1916 = vmul.f32 %v1914, %v1914
  %v1917 = vmul.f32 %v1915, %v1915
  %v1918 = vsel %vm60, %v1916, 0.0
  %1919 = vadd.xlane.f32.xlu0 %v1918
  %v1920 = vpop.xlane.xlu0 %1919
  %v1921 = vsel %vm60, %v1917, 0.0
  %1922 = vadd.xlane.f32.xlu0 %v1921
  %v1923 = vpop.xlane.xlu0 %1922
  %v1924 = vmul.f32 %v1920, %v67
  %v1925 = vmul.f32 %v1923, %v67
  %v1926 = vadd.f32 %v1924, 1e-05
  %v1927 = vadd.f32 %v1925, 1e-05
  %v1928 = vrsqrt.pop %v1926
  %v1929 = vrsqrt.pop %v1927
  %v1930 = vmul.f32 %v1914, %v1928
  %v1931 = vmul.f32 %v1915, %v1929
  %v1932 = vlaneseq
  %v1933 = vshrl.u32 %v1932, 7
  %v1934 = vsub.s32 0, %v1933
  %v1935 = vrot.slane %v1878, %v1934
  %v1936 = vmul.f32 %v1930, %v1935
  %v1937 = vmul.f32 %v1931, %v1935
  %v1938 = vlaneseq
  %v1939 = vshrl.u32 %v1938, 7
  %v1940 = vsub.s32 0, %v1939
  %v1941 = vrot.slane %v1879, %v1940
  %v1942 = vadd.f32 %v1936, %v1941
  %v1943 = vadd.f32 %v1937, %v1941
  %v1945 = vsel %vm60, %v1942, 0
  %v1948 = vsel %vm60, %v1943, 0
  %1950 = vmatprep.subr.mxu0 0.0
  %1951 = vmatpush1.msra.mxu0 %v1888
  %1952 = vmatprep.subr.mxu0 0.0
  %1953 = vmatpush1.msra.mxu0 %v1889
  %1954 = vmatprep.subr.mxu0 0.0
  %1955 = vmatpush1.msra.mxu0 %v1890
  %1956 = vmatprep.subr.mxu0 0.0
  %1957 = vmatpush1.msra.mxu0 %v1891
  %1958 = vmatprep.subr.mxu0 0.0
  %1959 = vmatpush1.msra.mxu0 0.0
  %1960 = vmatprep.subr.mxu0 0.0
  %1961 = vmatpush1.msra.mxu0 0.0
  %1962 = vmatprep.subr.mxu0 0.0
  %1963 = vmatpush1.msra.mxu0 0.0
  %1964 = vmatprep.subr.mxu0 0.0
  %1965 = vmatpush1.msra.mxu0 0.0
  %1966 = vmatprep.subr.mxu0 0.0
  %1967 = vmatpush1.msra.mxu0 0.0
  %1968 = vmatprep.subr.mxu0 0.0
  %1969 = vmatpush1.msra.mxu0 0.0
  %1970 = vmatprep.subr.mxu0 0.0
  %1971 = vmatpush1.msra.mxu0 0.0
  %1972 = vmatprep.subr.mxu0 0.0
  %1973 = vmatpush1.msra.mxu0 0.0
  %1974 = vmatprep.subr.mxu0 0.0
  %1975 = vmatpush1.msra.mxu0 0.0
  %1976 = vmatprep.subr.mxu0 0.0
  %1977 = vmatpush1.msra.mxu0 0.0
  %1978 = vmatprep.subr.mxu0 0.0
  %1979 = vmatpush1.msra.mxu0 0.0
  %1980 = vmatprep.subr.mxu0 0.0
  %1981 = vmatpush1.msra.mxu0 0.0
  %1982 = vmatprep.subr.mxu0 0.0
  %1983 = vmatpush1.msra.mxu0 0.0
  %1984 = vmatprep.subr.mxu0 0.0
  %1985 = vmatpush1.msra.mxu0 0.0
  %1986 = vmatprep.subr.mxu0 0.0
  %1987 = vmatpush1.msra.mxu0 0.0
  %1988 = vmatprep.subr.mxu0 0.0
  %1989 = vmatpush1.msra.mxu0 0.0
  %1990 = vmatprep.subr.mxu0 0.0
  %1991 = vmatpush1.msra.mxu0 0.0
  %1992 = vmatprep.subr.mxu0 0.0
  %1993 = vmatpush1.msra.mxu0 0.0
  %1994 = vmatprep.subr.mxu0 0.0
  %1995 = vmatpush1.msra.mxu0 0.0
  %1996 = vmatprep.subr.mxu0 0.0
  %1997 = vmatpush1.msra.mxu0 0.0
  %1998 = vmatprep.subr.mxu0 0.0
  %1999 = vmatpush1.msra.mxu0 0.0
  %2000 = vmatprep.subr.mxu0 0.0
  %2001 = vmatpush1.msra.mxu0 0.0
  %2002 = vmatprep.subr.mxu0 0.0
  %2003 = vmatpush1.msra.mxu0 0.0
  %2004 = vmatprep.subr.mxu0 0.0
  %2005 = vmatpush1.msra.mxu0 0.0
  %2006 = vmatprep.subr.mxu0 0.0
  %2007 = vmatpush1.msra.mxu0 0.0
  %2008 = vmatprep.subr.mxu0 0.0
  %2009 = vmatpush1.msra.mxu0 0.0
  %2010 = vmatprep.subr.mxu0 0.0
  %2011 = vmatpush1.msra.mxu0 0.0
  %2012 = vmatprep.subr.mxu0 0.0
  %2013 = vmatpush1.msra.mxu0 0.0
  %2014 = vmatprep.mubr.f32.mxu0 0.0
  %2015 = vmatmul.mubr.f32.gmra.mrb[0].mxu0 %v1945
  %v2016 = vpop.f32.mrb[0].mxu0
  %v2017 = vadd.f32 0.0, %v2016
  %v2018 = vpop.f32.mrb[0].mxu0
  %2019 = vmatprep.mubr.f32.mxu0 0.0
  %2020 = vmatmul.mubr.f32.gmra.mrb[0].mxu0 %v1948
  %v2021 = vpop.f32.mrb[0].mxu0
  %v2022 = vadd.f32 0.0, %v2021
  %v2023 = vpop.f32.mrb[0].mxu0
  %2024 = vdwg.mxu0
  %v2025 = vlaneseq
  %v2026 = vshrl.u32 %v2025, 7
  %v2027 = vsub.s32 0, %v2026
  %v2028 = vrot.slane %v1882, %v2027
  %v2029 = vadd.f32 %v2017, %v2028
  %v2030 = vadd.f32 %v2022, %v2028
  %v2031 = vlaneseq
  %v2032 = vshrl.u32 %v2031, 7
  %v2033 = vsub.s32 0, %v2032
  %v2034 = vrot.slane %v1883, %v2033
  %2036 = vrot.lane.b32.xlu0 %v2034, 32
  %v2037 = vpop.permute.xlu0 %2036
  %v2039 = vadd.f32 %v2017, %v2037
  %v2040 = vadd.f32 %v2022, %v2037
  %v2041 = vlaneseq
  %v2042 = vshrl.u32 %v2041, 7
  %v2043 = vsub.s32 0, %v2042
  %v2044 = vrot.slane %v1884, %v2043
  %2046 = vrot.lane.b32.xlu0 %v2044, 64
  %v2047 = vpop.permute.xlu0 %2046
  %v2049 = vadd.f32 %v2017, %v2047
  %v2050 = vadd.f32 %v2022, %v2047
  %2052 = vrot.lane.b32.xlu0 %v2039, 96
  %v2053 = vpop.permute.xlu0 %2052
  %v2055 = vsel %vm210, %v2029, 0
  %v2057 = vsel %vm210, %v2053, 0
  %2059 = vmatprep.subr.mxu0 0.0
  %2060 = vmatpush1.xpose.msra.mxu0 %v2057
  %2061 = vmatprep.subr.mxu0 0.0
  %2062 = vmatpush1.xpose.msra.mxu0 0.0
  %2063 = vmatprep.subr.mxu0 0.0
  %2064 = vmatpush1.xpose.msra.mxu0 0.0
  %2065 = vmatprep.subr.mxu0 0.0
  %2066 = vmatpush1.xpose.msra.mxu0 0.0
  %2067 = vmatprep.subr.mxu0 0.0
  %2068 = vmatpush1.xpose.msra.mxu0 0.0
  %2069 = vmatprep.subr.mxu0 0.0
  %2070 = vmatpush1.xpose.msra.mxu0 0.0
  %2071 = vmatprep.subr.mxu0 0.0
  %2072 = vmatpush1.xpose.msra.mxu0 0.0
  %2073 = vmatprep.subr.mxu0 0.0
  %2074 = vmatpush1.xpose.msra.mxu0 0.0
  %2075 = vmatprep.subr.mxu0 0.0
  %2076 = vmatpush1.xpose.msra.mxu0 0.0
  %2077 = vmatprep.subr.mxu0 0.0
  %2078 = vmatpush1.xpose.msra.mxu0 0.0
  %2079 = vmatprep.subr.mxu0 0.0
  %2080 = vmatpush1.xpose.msra.mxu0 0.0
  %2081 = vmatprep.subr.mxu0 0.0
  %2082 = vmatpush1.xpose.msra.mxu0 0.0
  %2083 = vmatprep.subr.mxu0 0.0
  %2084 = vmatpush1.xpose.msra.mxu0 0.0
  %2085 = vmatprep.subr.mxu0 0.0
  %2086 = vmatpush1.xpose.msra.mxu0 0.0
  %2087 = vmatprep.subr.mxu0 0.0
  %2088 = vmatpush1.xpose.msra.mxu0 0.0
  %2089 = vmatprep.subr.mxu0 0.0
  %2090 = vmatpush1.xpose.msra.mxu0 0.0
  %2091 = vmatprep.subr.mxu0 0.0
  %2092 = vmatpush1.xpose.msra.mxu0 0.0
  %2093 = vmatprep.subr.mxu0 0.0
  %2094 = vmatpush1.xpose.msra.mxu0 0.0
  %2095 = vmatprep.subr.mxu0 0.0
  %2096 = vmatpush1.xpose.msra.mxu0 0.0
  %2097 = vmatprep.subr.mxu0 0.0
  %2098 = vmatpush1.xpose.msra.mxu0 0.0
  %2099 = vmatprep.subr.mxu0 0.0
  %2100 = vmatpush1.xpose.msra.mxu0 0.0
  %2101 = vmatprep.subr.mxu0 0.0
  %2102 = vmatpush1.xpose.msra.mxu0 0.0
  %2103 = vmatprep.subr.mxu0 0.0
  %2104 = vmatpush1.xpose.msra.mxu0 0.0
  %2105 = vmatprep.subr.mxu0 0.0
  %2106 = vmatpush1.xpose.msra.mxu0 0.0
  %2107 = vmatprep.subr.mxu0 0.0
  %2108 = vmatpush1.xpose.msra.mxu0 0.0
  %2109 = vmatprep.subr.mxu0 0.0
  %2110 = vmatpush1.xpose.msra.mxu0 0.0
  %2111 = vmatprep.subr.mxu0 0.0
  %2112 = vmatpush1.xpose.msra.mxu0 0.0
  %2113 = vmatprep.subr.mxu0 0.0
  %2114 = vmatpush1.xpose.msra.mxu0 0.0
  %2115 = vmatprep.subr.mxu0 0.0
  %2116 = vmatpush1.xpose.msra.mxu0 0.0
  %2117 = vmatprep.subr.mxu0 0.0
  %2118 = vmatpush1.xpose.msra.mxu0 0.0
  %2119 = vmatprep.subr.mxu0 0.0
  %2120 = vmatpush1.xpose.msra.mxu0 0.0
  %2121 = vmatprep.subr.mxu0 0.0
  %2122 = vmatpush1.xpose.msra.mxu0 0.0
  %2123 = vmatprep.mubr.f32.mxu0 0.0
  %2124 = vmatmul.mubr.f32.gmra.mrb[0].mxu0 %v2055
  %v2125 = vpop.f32.mrb[0].mxu0
  %v2126 = vadd.f32 0.0, %v2125
  %v2127 = vpop.f32.mrb[0].mxu0
  %2128 = vdwg.mxu0
  %2130 = vrot.lane.b32.xlu0 %v2040, 96
  %v2131 = vpop.permute.xlu0 %2130
  %v2133 = vsel %vm210, %v2030, 0
  %v2135 = vsel %vm210, %v2131, 0
  %2137 = vmatprep.subr.mxu0 0.0
  %2138 = vmatpush1.xpose.msra.mxu0 %v2135
  %2139 = vmatprep.subr.mxu0 0.0
  %2140 = vmatpush1.xpose.msra.mxu0 0.0
  %2141 = vmatprep.subr.mxu0 0.0
  %2142 = vmatpush1.xpose.msra.mxu0 0.0
  %2143 = vmatprep.subr.mxu0 0.0
  %2144 = vmatpush1.xpose.msra.mxu0 0.0
  %2145 = vmatprep.subr.mxu0 0.0
  %2146 = vmatpush1.xpose.msra.mxu0 0.0
  %2147 = vmatprep.subr.mxu0 0.0
  %2148 = vmatpush1.xpose.msra.mxu0 0.0
  %2149 = vmatprep.subr.mxu0 0.0
  %2150 = vmatpush1.xpose.msra.mxu0 0.0
  %2151 = vmatprep.subr.mxu0 0.0
  %2152 = vmatpush1.xpose.msra.mxu0 0.0
  %2153 = vmatprep.subr.mxu0 0.0
  %2154 = vmatpush1.xpose.msra.mxu0 0.0
  %2155 = vmatprep.subr.mxu0 0.0
  %2156 = vmatpush1.xpose.msra.mxu0 0.0
  %2157 = vmatprep.subr.mxu0 0.0
  %2158 = vmatpush1.xpose.msra.mxu0 0.0
  %2159 = vmatprep.subr.mxu0 0.0
  %2160 = vmatpush1.xpose.msra.mxu0 0.0
  %2161 = vmatprep.subr.mxu0 0.0
  %2162 = vmatpush1.xpose.msra.mxu0 0.0
  %2163 = vmatprep.subr.mxu0 0.0
  %2164 = vmatpush1.xpose.msra.mxu0 0.0
  %2165 = vmatprep.subr.mxu0 0.0
  %2166 = vmatpush1.xpose.msra.mxu0 0.0
  %2167 = vmatprep.subr.mxu0 0.0
  %2168 = vmatpush1.xpose.msra.mxu0 0.0
  %2169 = vmatprep.subr.mxu0 0.0
  %2170 = vmatpush1.xpose.msra.mxu0 0.0
  %2171 = vmatprep.subr.mxu0 0.0
  %2172 = vmatpush1.xpose.msra.mxu0 0.0
  %2173 = vmatprep.subr.mxu0 0.0
  %2174 = vmatpush1.xpose.msra.mxu0 0.0
  %2175 = vmatprep.subr.mxu0 0.0
  %2176 = vmatpush1.xpose.msra.mxu0 0.0
  %2177 = vmatprep.subr.mxu0 0.0
  %2178 = vmatpush1.xpose.msra.mxu0 0.0
  %2179 = vmatprep.subr.mxu0 0.0
  %2180 = vmatpush1.xpose.msra.mxu0 0.0
  %2181 = vmatprep.subr.mxu0 0.0
  %2182 = vmatpush1.xpose.msra.mxu0 0.0
  %2183 = vmatprep.subr.mxu0 0.0
  %2184 = vmatpush1.xpose.msra.mxu0 0.0
  %2185 = vmatprep.subr.mxu0 0.0
  %2186 = vmatpush1.xpose.msra.mxu0 0.0
  %2187 = vmatprep.subr.mxu0 0.0
  %2188 = vmatpush1.xpose.msra.mxu0 0.0
  %2189 = vmatprep.subr.mxu0 0.0
  %2190 = vmatpush1.xpose.msra.mxu0 0.0
  %2191 = vmatprep.subr.mxu0 0.0
  %2192 = vmatpush1.xpose.msra.mxu0 0.0
  %2193 = vmatprep.subr.mxu0 0.0
  %2194 = vmatpush1.xpose.msra.mxu0 0.0
  %2195 = vmatprep.subr.mxu0 0.0
  %2196 = vmatpush1.xpose.msra.mxu0 0.0
  %2197 = vmatprep.subr.mxu0 0.0
  %2198 = vmatpush1.xpose.msra.mxu0 0.0
  %2199 = vmatprep.subr.mxu0 0.0
  %2200 = vmatpush1.xpose.msra.mxu0 0.0
  %2201 = vmatprep.mubr.f32.mxu0 0.0
  %2202 = vmatmul.mubr.f32.gmra.mrb[0].mxu0 %v2133
  %v2203 = vpop.f32.mrb[0].mxu0
  %v2204 = vadd.f32 0.0, %v2203
  %v2205 = vpop.f32.mrb[0].mxu0
  %2206 = vdwg.mxu0
  %v2207 = vmul.f32 %v2126, 0.35355338
  %v2208 = vmul.f32 %v2204, 0.35355338
  %v2209 = vadd.f32 %v2207, %v28
  %v2210 = vadd.f32 %v2208, %v28
  %v2211 = vsel %vm210, %v2209, -inf
  %2212 = vmax.xlane.f32.xlu0 %v2211
  %v2213 = vpop.xlane.xlu0 %2212
  %v2214 = vsel %vm210, %v2210, -inf
  %2215 = vmax.xlane.f32.xlu0 %v2214
  %v2216 = vpop.xlane.xlu0 %2215
  %v2217 = vsub.f32 %v2209, %v2213
  %v2218 = vsub.f32 %v2210, %v2216
  %v2219 = vmul.f32 %v2217, 1.442695
  %v2220 = vpow.pop %v2219
  %v2221 = vmul.f32 %v2218, 1.442695
  %v2222 = vpow.pop %v2221
  %v2223 = vsel %vm210, %v2220, 0.0
  %2224 = vadd.xlane.f32.xlu0 %v2223
  %v2225 = vpop.xlane.xlu0 %2224
  %v2226 = vsel %vm210, %v2222, 0.0
  %2227 = vadd.xlane.f32.xlu0 %v2226
  %v2228 = vpop.xlane.xlu0 %2227
  %v2229 = vrcp.pop %v2225
  %v2230 = vrcp.pop %v2228
  %v2231 = vmul.f32 %v2220, %v2229
  %v2232 = vmul.f32 %v2222, %v2230
  %2234 = vrot.lane.b32.xlu0 %v2049, 64
  %v2235 = vpop.permute.xlu0 %2234
  %v2238 = vsel %vm210, %v2231, 0
  %2240 = vmatprep.subr.mxu0 0.0
  %2241 = vmatpush1.msra.mxu0 %v2235
  %2242 = vmatprep.subr.mxu0 0.0
  %2243 = vmatpush1.msra.mxu0 0.0
  %2244 = vmatprep.subr.mxu0 0.0
  %2245 = vmatpush1.msra.mxu0 0.0
  %2246 = vmatprep.subr.mxu0 0.0
  %2247 = vmatpush1.msra.mxu0 0.0
  %2248 = vmatprep.subr.mxu0 0.0
  %2249 = vmatpush1.msra.mxu0 0.0
  %2250 = vmatprep.subr.mxu0 0.0
  %2251 = vmatpush1.msra.mxu0 0.0
  %2252 = vmatprep.subr.mxu0 0.0
  %2253 = vmatpush1.msra.mxu0 0.0
  %2254 = vmatprep.subr.mxu0 0.0
  %2255 = vmatpush1.msra.mxu0 0.0
  %2256 = vmatprep.subr.mxu0 0.0
  %2257 = vmatpush1.msra.mxu0 0.0
  %2258 = vmatprep.subr.mxu0 0.0
  %2259 = vmatpush1.msra.mxu0 0.0
  %2260 = vmatprep.subr.mxu0 0.0
  %2261 = vmatpush1.msra.mxu0 0.0
  %2262 = vmatprep.subr.mxu0 0.0
  %2263 = vmatpush1.msra.mxu0 0.0
  %2264 = vmatprep.subr.mxu0 0.0
  %2265 = vmatpush1.msra.mxu0 0.0
  %2266 = vmatprep.subr.mxu0 0.0
  %2267 = vmatpush1.msra.mxu0 0.0
  %2268 = vmatprep.subr.mxu0 0.0
  %2269 = vmatpush1.msra.mxu0 0.0
  %2270 = vmatprep.subr.mxu0 0.0
  %2271 = vmatpush1.msra.mxu0 0.0
  %2272 = vmatprep.subr.mxu0 0.0
  %2273 = vmatpush1.msra.mxu0 0.0
  %2274 = vmatprep.subr.mxu0 0.0
  %2275 = vmatpush1.msra.mxu0 0.0
  %2276 = vmatprep.subr.mxu0 0.0
  %2277 = vmatpush1.msra.mxu0 0.0
  %2278 = vmatprep.subr.mxu0 0.0
  %2279 = vmatpush1.msra.mxu0 0.0
  %2280 = vmatprep.subr.mxu0 0.0
  %2281 = vmatpush1.msra.mxu0 0.0
  %2282 = vmatprep.subr.mxu0 0.0
  %2283 = vmatpush1.msra.mxu0 0.0
  %2284 = vmatprep.subr.mxu0 0.0
  %2285 = vmatpush1.msra.mxu0 0.0
  %2286 = vmatprep.subr.mxu0 0.0
  %2287 = vmatpush1.msra.mxu0 0.0
  %2288 = vmatprep.subr.mxu0 0.0
  %2289 = vmatpush1.msra.mxu0 0.0
  %2290 = vmatprep.subr.mxu0 0.0
  %2291 = vmatpush1.msra.mxu0 0.0
  %2292 = vmatprep.subr.mxu0 0.0
  %2293 = vmatpush1.msra.mxu0 0.0
  %2294 = vmatprep.subr.mxu0 0.0
  %2295 = vmatpush1.msra.mxu0 0.0
  %2296 = vmatprep.subr.mxu0 0.0
  %2297 = vmatpush1.msra.mxu0 0.0
  %2298 = vmatprep.subr.mxu0 0.0
  %2299 = vmatpush1.msra.mxu0 0.0
  %2300 = vmatprep.subr.mxu0 0.0
  %2301 = vmatpush1.msra.mxu0 0.0
  %2302 = vmatprep.subr.mxu0 0.0
  %2303 = vmatpush1.msra.mxu0 0.0
  %2304 = vmatprep.mubr.f32.mxu0 0.0
  %2305 = vmatmul.mubr.f32.gmra.mrb[0].mxu0 %v2238
  %v2306 = vpop.f32.mrb[0].mxu0
  %v2307 = vadd.f32 0.0, %v2306
  %v2308 = vpop.f32.mrb[0].mxu0
  %2309 = vdwg.mxu0
  %2311 = vrot.lane.b32.xlu0 %v2050, 64
  %v2312 = vpop.permute.xlu0 %2311
  %v2315 = vsel %vm210, %v2232, 0
  %2317 = vmatprep.subr.mxu0 0.0
  %2318 = vmatpush1.msra.mxu0 %v2312
  %2319 = vmatprep.subr.mxu0 0.0
  %2320 = vmatpush1.msra.mxu0 0.0
  %2321 = vmatprep.subr.mxu0 0.0
  %2322 = vmatpush1.msra.mxu0 0.0
  %2323 = vmatprep.subr.mxu0 0.0
  %2324 = vmatpush1.msra.mxu0 0.0
  %2325 = vmatprep.subr.mxu0 0.0
  %2326 = vmatpush1.msra.mxu0 0.0
  %2327 = vmatprep.subr.mxu0 0.0
  %2328 = vmatpush1.msra.mxu0 0.0
  %2329 = vmatprep.subr.mxu0 0.0
  %2330 = vmatpush1.msra.mxu0 0.0
  %2331 = vmatprep.subr.mxu0 0.0
  %2332 = vmatpush1.msra.mxu0 0.0
  %2333 = vmatprep.subr.mxu0 0.0
  %2334 = vmatpush1.msra.mxu0 0.0
  %2335 = vmatprep.subr.mxu0 0.0
  %2336 = vmatpush1.msra.mxu0 0.0
  %2337 = vmatprep.subr.mxu0 0.0
  %2338 = vmatpush1.msra.mxu0 0.0
  %2339 = vmatprep.subr.mxu0 0.0
  %2340 = vmatpush1.msra.mxu0 0.0
  %2341 = vmatprep.subr.mxu0 0.0
  %2342 = vmatpush1.msra.mxu0 0.0
  %2343 = vmatprep.subr.mxu0 0.0
  %2344 = vmatpush1.msra.mxu0 0.0
  %2345 = vmatprep.subr.mxu0 0.0
  %2346 = vmatpush1.msra.mxu0 0.0
  %2347 = vmatprep.subr.mxu0 0.0
  %2348 = vmatpush1.msra.mxu0 0.0
  %2349 = vmatprep.subr.mxu0 0.0
  %2350 = vmatpush1.msra.mxu0 0.0
  %2351 = vmatprep.subr.mxu0 0.0
  %2352 = vmatpush1.msra.mxu0 0.0
  %2353 = vmatprep.subr.mxu0 0.0
  %2354 = vmatpush1.msra.mxu0 0.0
  %2355 = vmatprep.subr.mxu0 0.0
  %2356 = vmatpush1.msra.mxu0 0.0
  %2357 = vmatprep.subr.mxu0 0.0
  %2358 = vmatpush1.msra.mxu0 0.0
  %2359 = vmatprep.subr.mxu0 0.0
  %2360 = vmatpush1.msra.mxu0 0.0
  %2361 = vmatprep.subr.mxu0 0.0
  %2362 = vmatpush1.msra.mxu0 0.0
  %2363 = vmatprep.subr.mxu0 0.0
  %2364 = vmatpush1.msra.mxu0 0.0
  %2365 = vmatprep.subr.mxu0 0.0
  %2366 = vmatpush1.msra.mxu0 0.0
  %2367 = vmatprep.subr.mxu0 0.0
  %2368 = vmatpush1.msra.mxu0 0.0
  %2369 = vmatprep.subr.mxu0 0.0
  %2370 = vmatpush1.msra.mxu0 0.0
  %2371 = vmatprep.subr.mxu0 0.0
  %2372 = vmatpush1.msra.mxu0 0.0
  %2373 = vmatprep.subr.mxu0 0.0
  %2374 = vmatpush1.msra.mxu0 0.0
  %2375 = vmatprep.subr.mxu0 0.0
  %2376 = vmatpush1.msra.mxu0 0.0
  %2377 = vmatprep.subr.mxu0 0.0
  %2378 = vmatpush1.msra.mxu0 0.0
  %2379 = vmatprep.subr.mxu0 0.0
  %2380 = vmatpush1.msra.mxu0 0.0
  %2381 = vmatprep.mubr.f32.mxu0 0.0
  %2382 = vmatmul.mubr.f32.gmra.mrb[0].mxu0 %v2315
  %v2383 = vpop.f32.mrb[0].mxu0
  %v2384 = vadd.f32 0.0, %v2383
  %v2385 = vpop.f32.mrb[0].mxu0
  %2386 = vdwg.mxu0
  %2387 = vrot.lane.b32.xlu0 %v2029, 120
  %v2388 = vpop.permute.xlu0 %2387
  %2389 = vrot.lane.b32.xlu0 %v2039, 88
  %v2390 = vpop.permute.xlu0 %2389
  %v2391 = vsel %vm210, %v2388, 0
  %v2393 = vsel %vm210, %v2390, 0
  %2395 = vmatprep.subr.mxu0 0.0
  %2396 = vmatpush1.xpose.msra.mxu0 %v2393
  %2397 = vmatprep.subr.mxu0 0.0
  %2398 = vmatpush1.xpose.msra.mxu0 0.0
  %2399 = vmatprep.subr.mxu0 0.0
  %2400 = vmatpush1.xpose.msra.mxu0 0.0
  %2401 = vmatprep.subr.mxu0 0.0
  %2402 = vmatpush1.xpose.msra.mxu0 0.0
  %2403 = vmatprep.subr.mxu0 0.0
  %2404 = vmatpush1.xpose.msra.mxu0 0.0
  %2405 = vmatprep.subr.mxu0 0.0
  %2406 = vmatpush1.xpose.msra.mxu0 0.0
  %2407 = vmatprep.subr.mxu0 0.0
  %2408 = vmatpush1.xpose.msra.mxu0 0.0
  %2409 = vmatprep.subr.mxu0 0.0
  %2410 = vmatpush1.xpose.msra.mxu0 0.0
  %2411 = vmatprep.subr.mxu0 0.0
  %2412 = vmatpush1.xpose.msra.mxu0 0.0
  %2413 = vmatprep.subr.mxu0 0.0
  %2414 = vmatpush1.xpose.msra.mxu0 0.0
  %2415 = vmatprep.subr.mxu0 0.0
  %2416 = vmatpush1.xpose.msra.mxu0 0.0
  %2417 = vmatprep.subr.mxu0 0.0
  %2418 = vmatpush1.xpose.msra.mxu0 0.0
  %2419 = vmatprep.subr.mxu0 0.0
  %2420 = vmatpush1.xpose.msra.mxu0 0.0
  %2421 = vmatprep.subr.mxu0 0.0
  %2422 = vmatpush1.xpose.msra.mxu0 0.0
  %2423 = vmatprep.subr.mxu0 0.0
  %2424 = vmatpush1.xpose.msra.mxu0 0.0
  %2425 = vmatprep.subr.mxu0 0.0
  %2426 = vmatpush1.xpose.msra.mxu0 0.0
  %2427 = vmatprep.subr.mxu0 0.0
  %2428 = vmatpush1.xpose.msra.mxu0 0.0
  %2429 = vmatprep.subr.mxu0 0.0
  %2430 = vmatpush1.xpose.msra.mxu0 0.0
  %2431 = vmatprep.subr.mxu0 0.0
  %2432 = vmatpush1.xpose.msra.mxu0 0.0
  %2433 = vmatprep.subr.mxu0 0.0
  %2434 = vmatpush1.xpose.msra.mxu0 0.0
  %2435 = vmatprep.subr.mxu0 0.0
  %2436 = vmatpush1.xpose.msra.mxu0 0.0
  %2437 = vmatprep.subr.mxu0 0.0
  %2438 = vmatpush1.xpose.msra.mxu0 0.0
  %2439 = vmatprep.subr.mxu0 0.0
  %2440 = vmatpush1.xpose.msra.mxu0 0.0
  %2441 = vmatprep.subr.mxu0 0.0
  %2442 = vmatpush1.xpose.msra.mxu0 0.0
  %2443 = vmatprep.subr.mxu0 0.0
  %2444 = vmatpush1.xpose.msra.mxu0 0.0
  %2445 = vmatprep.subr.mxu0 0.0
  %2446 = vmatpush1.xpose.msra.mxu0 0.0
  %2447 = vmatprep.subr.mxu0 0.0
  %2448 = vmatpush1.xpose.msra.mxu0 0.0
  %2449 = vmatprep.subr.mxu0 0.0
  %2450 = vmatpush1.xpose.msra.mxu0 0.0
  %2451 = vmatprep.subr.mxu0 0.0
  %2452 = vmatpush1.xpose.msra.mxu0 0.0
  %2453 = vmatprep.subr.mxu0 0.0
  %2454 = vmatpush1.xpose.msra.mxu0 0.0
  %2455 = vmatprep.subr.mxu0 0.0
  %2456 = vmatpush1.xpose.msra.mxu0 0.0
  %2457 = vmatprep.subr.mxu0 0.0
  %2458 = vmatpush1.xpose.msra.mxu0 0.0
  %2459 = vmatprep.mubr.f32.mxu0 0.0
  %2460 = vmatmul.mubr.f32.gmra.mrb[0].mxu0 %v2391
  %v2461 = vpop.f32.mrb[0].mxu0
  %v2462 = vadd.f32 0.0, %v2461
  %v2463 = vpop.f32.mrb[0].mxu0
  %2464 = vdwg.mxu0
  %2465 = vrot.lane.b32.xlu0 %v2030, 120
  %v2466 = vpop.permute.xlu0 %2465
  %2467 = vrot.lane.b32.xlu0 %v2040, 88
  %v2468 = vpop.permute.xlu0 %2467
  %v2469 = vsel %vm210, %v2466, 0
  %v2471 = vsel %vm210, %v2468, 0
  %2473 = vmatprep.subr.mxu0 0.0
  %2474 = vmatpush1.xpose.msra.mxu0 %v2471
  %2475 = vmatprep.subr.mxu0 0.0
  %2476 = vmatpush1.xpose.msra.mxu0 0.0
  %2477 = vmatprep.subr.mxu0 0.0
  %2478 = vmatpush1.xpose.msra.mxu0 0.0
  %2479 = vmatprep.subr.mxu0 0.0
  %2480 = vmatpush1.xpose.msra.mxu0 0.0
  %2481 = vmatprep.subr.mxu0 0.0
  %2482 = vmatpush1.xpose.msra.mxu0 0.0
  %2483 = vmatprep.subr.mxu0 0.0
  %2484 = vmatpush1.xpose.msra.mxu0 0.0
  %2485 = vmatprep.subr.mxu0 0.0
  %2486 = vmatpush1.xpose.msra.mxu0 0.0
  %2487 = vmatprep.subr.mxu0 0.0
  %2488 = vmatpush1.xpose.msra.mxu0 0.0
  %2489 = vmatprep.subr.mxu0 0.0
  %2490 = vmatpush1.xpose.msra.mxu0 0.0
  %2491 = vmatprep.subr.mxu0 0.0
  %2492 = vmatpush1.xpose.msra.mxu0 0.0
  %2493 = vmatprep.subr.mxu0 0.0
  %2494 = vmatpush1.xpose.msra.mxu0 0.0
  %2495 = vmatprep.subr.mxu0 0.0
  %2496 = vmatpush1.xpose.msra.mxu0 0.0
  %2497 = vmatprep.subr.mxu0 0.0
  %2498 = vmatpush1.xpose.msra.mxu0 0.0
  %2499 = vmatprep.subr.mxu0 0.0
  %2500 = vmatpush1.xpose.msra.mxu0 0.0
  %2501 = vmatprep.subr.mxu0 0.0
  %2502 = vmatpush1.xpose.msra.mxu0 0.0
  %2503 = vmatprep.subr.mxu0 0.0
  %2504 = vmatpush1.xpose.msra.mxu0 0.0
  %2505 = vmatprep.subr.mxu0 0.0
  %2506 = vmatpush1.xpose.msra.mxu0 0.0
  %2507 = vmatprep.subr.mxu0 0.0
  %2508 = vmatpush1.xpose.msra.mxu0 0.0
  %2509 = vmatprep.subr.mxu0 0.0
  %2510 = vmatpush1.xpose.msra.mxu0 0.0
  %2511 = vmatprep.subr.mxu0 0.0
  %2512 = vmatpush1.xpose.msra.mxu0 0.0
  %2513 = vmatprep.subr.mxu0 0.0
  %2514 = vmatpush1.xpose.msra.mxu0 0.0
  %2515 = vmatprep.subr.mxu0 0.0
  %2516 = vmatpush1.xpose.msra.mxu0 0.0
  %2517 = vmatprep.subr.mxu0 0.0
  %2518 = vmatpush1.xpose.msra.mxu0 0.0
  %2519 = vmatprep.subr.mxu0 0.0
  %2520 = vmatpush1.xpose.msra.mxu0 0.0
  %2521 = vmatprep.subr.mxu0 0.0
  %2522 = vmatpush1.xpose.msra.mxu0 0.0
  %2523 = vmatprep.subr.mxu0 0.0
  %2524 = vmatpush1.xpose.msra.mxu0 0.0
  %2525 = vmatprep.subr.mxu0 0.0
  %2526 = vmatpush1.xpose.msra.mxu0 0.0
  %2527 = vmatprep.subr.mxu0 0.0
  %2528 = vmatpush1.xpose.msra.mxu0 0.0
  %2529 = vmatprep.subr.mxu0 0.0
  %2530 = vmatpush1.xpose.msra.mxu0 0.0
  %2531 = vmatprep.subr.mxu0 0.0
  %2532 = vmatpush1.xpose.msra.mxu0 0.0
  %2533 = vmatprep.subr.mxu0 0.0
  %2534 = vmatpush1.xpose.msra.mxu0 0.0
  %2535 = vmatprep.subr.mxu0 0.0
  %2536 = vmatpush1.xpose.msra.mxu0 0.0
  %2537 = vmatprep.mubr.f32.mxu0 0.0
  %2538 = vmatmul.mubr.f32.gmra.mrb[0].mxu0 %v2469
  %v2539 = vpop.f32.mrb[0].mxu0
  %v2540 = vadd.f32 0.0, %v2539
  %v2541 = vpop.f32.mrb[0].mxu0
  %2542 = vdwg.mxu0
  %v2543 = vmul.f32 %v2462, 0.35355338
  %v2544 = vmul.f32 %v2540, 0.35355338
  %v2545 = vadd.f32 %v2543, %v28
  %v2546 = vadd.f32 %v2544, %v28
  %v2547 = vsel %vm210, %v2545, -inf
  %2548 = vmax.xlane.f32.xlu0 %v2547
  %v2549 = vpop.xlane.xlu0 %2548
  %v2550 = vsel %vm210, %v2546, -inf
  %2551 = vmax.xlane.f32.xlu0 %v2550
  %v2552 = vpop.xlane.xlu0 %2551
  %v2553 = vsub.f32 %v2545, %v2549
  %v2554 = vsub.f32 %v2546, %v2552
  %v2555 = vmul.f32 %v2553, 1.442695
  %v2556 = vpow.pop %v2555
  %v2557 = vmul.f32 %v2554, 1.442695
  %v2558 = vpow.pop %v2557
  %v2559 = vsel %vm210, %v2556, 0.0
  %2560 = vadd.xlane.f32.xlu0 %v2559
  %v2561 = vpop.xlane.xlu0 %2560
  %v2562 = vsel %vm210, %v2558, 0.0
  %2563 = vadd.xlane.f32.xlu0 %v2562
  %v2564 = vpop.xlane.xlu0 %2563
  %v2565 = vrcp.pop %v2561
  %v2566 = vrcp.pop %v2564
  %v2567 = vmul.f32 %v2556, %v2565
  %v2568 = vmul.f32 %v2558, %v2566
  %2569 = vrot.lane.b32.xlu0 %v2049, 56
  %v2570 = vpop.permute.xlu0 %2569
  %v2573 = vsel %vm210, %v2567, 0
  %2575 = vmatprep.subr.mxu0 0.0
  %2576 = vmatpush1.msra.mxu0 %v2570
  %2577 = vmatprep.subr.mxu0 0.0
  %2578 = vmatpush1.msra.mxu0 0.0
  %2579 = vmatprep.subr.mxu0 0.0
  %2580 = vmatpush1.msra.mxu0 0.0
  %2581 = vmatprep.subr.mxu0 0.0
  %2582 = vmatpush1.msra.mxu0 0.0
  %2583 = vmatprep.subr.mxu0 0.0
  %2584 = vmatpush1.msra.mxu0 0.0
  %2585 = vmatprep.subr.mxu0 0.0
  %2586 = vmatpush1.msra.mxu0 0.0
  %2587 = vmatprep.subr.mxu0 0.0
  %2588 = vmatpush1.msra.mxu0 0.0
  %2589 = vmatprep.subr.mxu0 0.0
  %2590 = vmatpush1.msra.mxu0 0.0
  %2591 = vmatprep.subr.mxu0 0.0
  %2592 = vmatpush1.msra.mxu0 0.0
  %2593 = vmatprep.subr.mxu0 0.0
  %2594 = vmatpush1.msra.mxu0 0.0
  %2595 = vmatprep.subr.mxu0 0.0
  %2596 = vmatpush1.msra.mxu0 0.0
  %2597 = vmatprep.subr.mxu0 0.0
  %2598 = vmatpush1.msra.mxu0 0.0
  %2599 = vmatprep.subr.mxu0 0.0
  %2600 = vmatpush1.msra.mxu0 0.0
  %2601 = vmatprep.subr.mxu0 0.0
  %2602 = vmatpush1.msra.mxu0 0.0
  %2603 = vmatprep.subr.mxu0 0.0
  %2604 = vmatpush1.msra.mxu0 0.0
  %2605 = vmatprep.subr.mxu0 0.0
  %2606 = vmatpush1.msra.mxu0 0.0
  %2607 = vmatprep.subr.mxu0 0.0
  %2608 = vmatpush1.msra.mxu0 0.0
  %2609 = vmatprep.subr.mxu0 0.0
  %2610 = vmatpush1.msra.mxu0 0.0
  %2611 = vmatprep.subr.mxu0 0.0
  %2612 = vmatpush1.msra.mxu0 0.0
  %2613 = vmatprep.subr.mxu0 0.0
  %2614 = vmatpush1.msra.mxu0 0.0
  %2615 = vmatprep.subr.mxu0 0.0
  %2616 = vmatpush1.msra.mxu0 0.0
  %2617 = vmatprep.subr.mxu0 0.0
  %2618 = vmatpush1.msra.mxu0 0.0
  %2619 = vmatprep.subr.mxu0 0.0
  %2620 = vmatpush1.msra.mxu0 0.0
  %2621 = vmatprep.subr.mxu0 0.0
  %2622 = vmatpush1.msra.mxu0 0.0
  %2623 = vmatprep.subr.mxu0 0.0
  %2624 = vmatpush1.msra.mxu0 0.0
  %2625 = vmatprep.subr.mxu0 0.0
  %2626 = vmatpush1.msra.mxu0 0.0
  %2627 = vmatprep.subr.mxu0 0.0
  %2628 = vmatpush1.msra.mxu0 0.0
  %2629 = vmatprep.subr.mxu0 0.0
  %2630 = vmatpush1.msra.mxu0 0.0
  %2631 = vmatprep.subr.mxu0 0.0
  %2632 = vmatpush1.msra.mxu0 0.0
  %2633 = vmatprep.subr.mxu0 0.0
  %2634 = vmatpush1.msra.mxu0 0.0
  %2635 = vmatprep.subr.mxu0 0.0
  %2636 = vmatpush1.msra.mxu0 0.0
  %2637 = vmatprep.subr.mxu0 0.0
  %2638 = vmatpush1.msra.mxu0 0.0
  %2639 = vmatprep.mubr.f32.mxu0 0.0
  %2640 = vmatmul.mubr.f32.gmra.mrb[0].mxu0 %v2573
  %v2641 = vpop.f32.mrb[0].mxu0
  %v2642 = vadd.f32 0.0, %v2641
  %v2643 = vpop.f32.mrb[0].mxu0
  %2644 = vdwg.mxu0
  %2645 = vrot.lane.b32.xlu0 %v2050, 56
  %v2646 = vpop.permute.xlu0 %2645
  %v2649 = vsel %vm210, %v2568, 0
  %2651 = vmatprep.subr.mxu0 0.0
  %2652 = vmatpush1.msra.mxu0 %v2646
  %2653 = vmatprep.subr.mxu0 0.0
  %2654 = vmatpush1.msra.mxu0 0.0
  %2655 = vmatprep.subr.mxu0 0.0
  %2656 = vmatpush1.msra.mxu0 0.0
  %2657 = vmatprep.subr.mxu0 0.0
  %2658 = vmatpush1.msra.mxu0 0.0
  %2659 = vmatprep.subr.mxu0 0.0
  %2660 = vmatpush1.msra.mxu0 0.0
  %2661 = vmatprep.subr.mxu0 0.0
  %2662 = vmatpush1.msra.mxu0 0.0
  %2663 = vmatprep.subr.mxu0 0.0
  %2664 = vmatpush1.msra.mxu0 0.0
  %2665 = vmatprep.subr.mxu0 0.0
  %2666 = vmatpush1.msra.mxu0 0.0
  %2667 = vmatprep.subr.mxu0 0.0
  %2668 = vmatpush1.msra.mxu0 0.0
  %2669 = vmatprep.subr.mxu0 0.0
  %2670 = vmatpush1.msra.mxu0 0.0
  %2671 = vmatprep.subr.mxu0 0.0
  %2672 = vmatpush1.msra.mxu0 0.0
  %2673 = vmatprep.subr.mxu0 0.0
  %2674 = vmatpush1.msra.mxu0 0.0
  %2675 = vmatprep.subr.mxu0 0.0
  %2676 = vmatpush1.msra.mxu0 0.0
  %2677 = vmatprep.subr.mxu0 0.0
  %2678 = vmatpush1.msra.mxu0 0.0
  %2679 = vmatprep.subr.mxu0 0.0
  %2680 = vmatpush1.msra.mxu0 0.0
  %2681 = vmatprep.subr.mxu0 0.0
  %2682 = vmatpush1.msra.mxu0 0.0
  %2683 = vmatprep.subr.mxu0 0.0
  %2684 = vmatpush1.msra.mxu0 0.0
  %2685 = vmatprep.subr.mxu0 0.0
  %2686 = vmatpush1.msra.mxu0 0.0
  %2687 = vmatprep.subr.mxu0 0.0
  %2688 = vmatpush1.msra.mxu0 0.0
  %2689 = vmatprep.subr.mxu0 0.0
  %2690 = vmatpush1.msra.mxu0 0.0
  %2691 = vmatprep.subr.mxu0 0.0
  %2692 = vmatpush1.msra.mxu0 0.0
  %2693 = vmatprep.subr.mxu0 0.0
  %2694 = vmatpush1.msra.mxu0 0.0
  %2695 = vmatprep.subr.mxu0 0.0
  %2696 = vmatpush1.msra.mxu0 0.0
  %2697 = vmatprep.subr.mxu0 0.0
  %2698 = vmatpush1.msra.mxu0 0.0
  %2699 = vmatprep.subr.mxu0 0.0
  %2700 = vmatpush1.msra.mxu0 0.0
  %2701 = vmatprep.subr.mxu0 0.0
  %2702 = vmatpush1.msra.mxu0 0.0
  %2703 = vmatprep.subr.mxu0 0.0
  %2704 = vmatpush1.msra.mxu0 0.0
  %2705 = vmatprep.subr.mxu0 0.0
  %2706 = vmatpush1.msra.mxu0 0.0
  %2707 = vmatprep.subr.mxu0 0.0
  %2708 = vmatpush1.msra.mxu0 0.0
  %2709 = vmatprep.subr.mxu0 0.0
  %2710 = vmatpush1.msra.mxu0 0.0
  %2711 = vmatprep.subr.mxu0 0.0
  %2712 = vmatpush1.msra.mxu0 0.0
  %2713 = vmatprep.subr.mxu0 0.0
  %2714 = vmatpush1.msra.mxu0 0.0
  %2715 = vmatprep.mubr.f32.mxu0 0.0
  %2716 = vmatmul.mubr.f32.gmra.mrb[0].mxu0 %v2649
  %v2717 = vpop.f32.mrb[0].mxu0
  %v2718 = vadd.f32 0.0, %v2717
  %v2719 = vpop.f32.mrb[0].mxu0
  %2720 = vdwg.mxu0
  %2721 = vrot.lane.b32.xlu0 %v2029, 112
  %v2722 = vpop.permute.xlu0 %2721
  %2723 = vrot.lane.b32.xlu0 %v2039, 80
  %v2724 = vpop.permute.xlu0 %2723
  %v2725 = vsel %vm210, %v2722, 0
  %v2727 = vsel %vm210, %v2724, 0
  %2729 = vmatprep.subr.mxu0 0.0
  %2730 = vmatpush1.xpose.msra.mxu0 %v2727
  %2731 = vmatprep.subr.mxu0 0.0
  %2732 = vmatpush1.xpose.msra.mxu0 0.0
  %2733 = vmatprep.subr.mxu0 0.0
  %2734 = vmatpush1.xpose.msra.mxu0 0.0
  %2735 = vmatprep.subr.mxu0 0.0
  %2736 = vmatpush1.xpose.msra.mxu0 0.0
  %2737 = vmatprep.subr.mxu0 0.0
  %2738 = vmatpush1.xpose.msra.mxu0 0.0
  %2739 = vmatprep.subr.mxu0 0.0
  %2740 = vmatpush1.xpose.msra.mxu0 0.0
  %2741 = vmatprep.subr.mxu0 0.0
  %2742 = vmatpush1.xpose.msra.mxu0 0.0
  %2743 = vmatprep.subr.mxu0 0.0
  %2744 = vmatpush1.xpose.msra.mxu0 0.0
  %2745 = vmatprep.subr.mxu0 0.0
  %2746 = vmatpush1.xpose.msra.mxu0 0.0
  %2747 = vmatprep.subr.mxu0 0.0
  %2748 = vmatpush1.xpose.msra.mxu0 0.0
  %2749 = vmatprep.subr.mxu0 0.0
  %2750 = vmatpush1.xpose.msra.mxu0 0.0
  %2751 = vmatprep.subr.mxu0 0.0
  %2752 = vmatpush1.xpose.msra.mxu0 0.0
  %2753 = vmatprep.subr.mxu0 0.0
  %2754 = vmatpush1.xpose.msra.mxu0 0.0
  %2755 = vmatprep.subr.mxu0 0.0
  %2756 = vmatpush1.xpose.msra.mxu0 0.0
  %2757 = vmatprep.subr.mxu0 0.0
  %2758 = vmatpush1.xpose.msra.mxu0 0.0
  %2759 = vmatprep.subr.mxu0 0.0
  %2760 = vmatpush1.xpose.msra.mxu0 0.0
  %2761 = vmatprep.subr.mxu0 0.0
  %2762 = vmatpush1.xpose.msra.mxu0 0.0
  %2763 = vmatprep.subr.mxu0 0.0
  %2764 = vmatpush1.xpose.msra.mxu0 0.0
  %2765 = vmatprep.subr.mxu0 0.0
  %2766 = vmatpush1.xpose.msra.mxu0 0.0
  %2767 = vmatprep.subr.mxu0 0.0
  %2768 = vmatpush1.xpose.msra.mxu0 0.0
  %2769 = vmatprep.subr.mxu0 0.0
  %2770 = vmatpush1.xpose.msra.mxu0 0.0
  %2771 = vmatprep.subr.mxu0 0.0
  %2772 = vmatpush1.xpose.msra.mxu0 0.0
  %2773 = vmatprep.subr.mxu0 0.0
  %2774 = vmatpush1.xpose.msra.mxu0 0.0
  %2775 = vmatprep.subr.mxu0 0.0
  %2776 = vmatpush1.xpose.msra.mxu0 0.0
  %2777 = vmatprep.subr.mxu0 0.0
  %2778 = vmatpush1.xpose.msra.mxu0 0.0
  %2779 = vmatprep.subr.mxu0 0.0
  %2780 = vmatpush1.xpose.msra.mxu0 0.0
  %2781 = vmatprep.subr.mxu0 0.0
  %2782 = vmatpush1.xpose.msra.mxu0 0.0
  %2783 = vmatprep.subr.mxu0 0.0
  %2784 = vmatpush1.xpose.msra.mxu0 0.0
  %2785 = vmatprep.subr.mxu0 0.0
  %2786 = vmatpush1.xpose.msra.mxu0 0.0
  %2787 = vmatprep.subr.mxu0 0.0
  %2788 = vmatpush1.xpose.msra.mxu0 0.0
  %2789 = vmatprep.subr.mxu0 0.0
  %2790 = vmatpush1.xpose.msra.mxu0 0.0
  %2791 = vmatprep.subr.mxu0 0.0
  %2792 = vmatpush1.xpose.msra.mxu0 0.0
  %2793 = vmatprep.mubr.f32.mxu0 0.0
  %2794 = vmatmul.mubr.f32.gmra.mrb[0].mxu0 %v2725
  %v2795 = vpop.f32.mrb[0].mxu0
  %v2796 = vadd.f32 0.0, %v2795
  %v2797 = vpop.f32.mrb[0].mxu0
  %2798 = vdwg.mxu0
  %2799 = vrot.lane.b32.xlu0 %v2030, 112
  %v2800 = vpop.permute.xlu0 %2799
  %2801 = vrot.lane.b32.xlu0 %v2040, 80
  %v2802 = vpop.permute.xlu0 %2801
  %v2803 = vsel %vm210, %v2800, 0
  %v2805 = vsel %vm210, %v2802, 0
  %2807 = vmatprep.subr.mxu0 0.0
  %2808 = vmatpush1.xpose.msra.mxu0 %v2805
  %2809 = vmatprep.subr.mxu0 0.0
  %2810 = vmatpush1.xpose.msra.mxu0 0.0
  %2811 = vmatprep.subr.mxu0 0.0
  %2812 = vmatpush1.xpose.msra.mxu0 0.0
  %2813 = vmatprep.subr.mxu0 0.0
  %2814 = vmatpush1.xpose.msra.mxu0 0.0
  %2815 = vmatprep.subr.mxu0 0.0
  %2816 = vmatpush1.xpose.msra.mxu0 0.0
  %2817 = vmatprep.subr.mxu0 0.0
  %2818 = vmatpush1.xpose.msra.mxu0 0.0
  %2819 = vmatprep.subr.mxu0 0.0
  %2820 = vmatpush1.xpose.msra.mxu0 0.0
  %2821 = vmatprep.subr.mxu0 0.0
  %2822 = vmatpush1.xpose.msra.mxu0 0.0
  %2823 = vmatprep.subr.mxu0 0.0
  %2824 = vmatpush1.xpose.msra.mxu0 0.0
  %2825 = vmatprep.subr.mxu0 0.0
  %2826 = vmatpush1.xpose.msra.mxu0 0.0
  %2827 = vmatprep.subr.mxu0 0.0
  %2828 = vmatpush1.xpose.msra.mxu0 0.0
  %2829 = vmatprep.subr.mxu0 0.0
  %2830 = vmatpush1.xpose.msra.mxu0 0.0
  %2831 = vmatprep.subr.mxu0 0.0
  %2832 = vmatpush1.xpose.msra.mxu0 0.0
  %2833 = vmatprep.subr.mxu0 0.0
  %2834 = vmatpush1.xpose.msra.mxu0 0.0
  %2835 = vmatprep.subr.mxu0 0.0
  %2836 = vmatpush1.xpose.msra.mxu0 0.0
  %2837 = vmatprep.subr.mxu0 0.0
  %2838 = vmatpush1.xpose.msra.mxu0 0.0
  %2839 = vmatprep.subr.mxu0 0.0
  %2840 = vmatpush1.xpose.msra.mxu0 0.0
  %2841 = vmatprep.subr.mxu0 0.0
  %2842 = vmatpush1.xpose.msra.mxu0 0.0
  %2843 = vmatprep.subr.mxu0 0.0
  %2844 = vmatpush1.xpose.msra.mxu0 0.0
  %2845 = vmatprep.subr.mxu0 0.0
  %2846 = vmatpush1.xpose.msra.mxu0 0.0
  %2847 = vmatprep.subr.mxu0 0.0
  %2848 = vmatpush1.xpose.msra.mxu0 0.0
  %2849 = vmatprep.subr.mxu0 0.0
  %2850 = vmatpush1.xpose.msra.mxu0 0.0
  %2851 = vmatprep.subr.mxu0 0.0
  %2852 = vmatpush1.xpose.msra.mxu0 0.0
  %2853 = vmatprep.subr.mxu0 0.0
  %2854 = vmatpush1.xpose.msra.mxu0 0.0
  %2855 = vmatprep.subr.mxu0 0.0
  %2856 = vmatpush1.xpose.msra.mxu0 0.0
  %2857 = vmatprep.subr.mxu0 0.0
  %2858 = vmatpush1.xpose.msra.mxu0 0.0
  %2859 = vmatprep.subr.mxu0 0.0
  %2860 = vmatpush1.xpose.msra.mxu0 0.0
  %2861 = vmatprep.subr.mxu0 0.0
  %2862 = vmatpush1.xpose.msra.mxu0 0.0
  %2863 = vmatprep.subr.mxu0 0.0
  %2864 = vmatpush1.xpose.msra.mxu0 0.0
  %2865 = vmatprep.subr.mxu0 0.0
  %2866 = vmatpush1.xpose.msra.mxu0 0.0
  %2867 = vmatprep.subr.mxu0 0.0
  %2868 = vmatpush1.xpose.msra.mxu0 0.0
  %2869 = vmatprep.subr.mxu0 0.0
  %2870 = vmatpush1.xpose.msra.mxu0 0.0
  %2871 = vmatprep.mubr.f32.mxu0 0.0
  %2872 = vmatmul.mubr.f32.gmra.mrb[0].mxu0 %v2803
  %v2873 = vpop.f32.mrb[0].mxu0
  %v2874 = vadd.f32 0.0, %v2873
  %v2875 = vpop.f32.mrb[0].mxu0
  %2876 = vdwg.mxu0
  %v2877 = vmul.f32 %v2796, 0.35355338
  %v2878 = vmul.f32 %v2874, 0.35355338
  %v2879 = vadd.f32 %v2877, %v28
  %v2880 = vadd.f32 %v2878, %v28
  %v2881 = vsel %vm210, %v2879, -inf
  %2882 = vmax.xlane.f32.xlu0 %v2881
  %v2883 = vpop.xlane.xlu0 %2882
  %v2884 = vsel %vm210, %v2880, -inf
  %2885 = vmax.xlane.f32.xlu0 %v2884
  %v2886 = vpop.xlane.xlu0 %2885
  %v2887 = vsub.f32 %v2879, %v2883
  %v2888 = vsub.f32 %v2880, %v2886
  %v2889 = vmul.f32 %v2887, 1.442695
  %v2890 = vpow.pop %v2889
  %v2891 = vmul.f32 %v2888, 1.442695
  %v2892 = vpow.pop %v2891
  %v2893 = vsel %vm210, %v2890, 0.0
  %2894 = vadd.xlane.f32.xlu0 %v2893
  %v2895 = vpop.xlane.xlu0 %2894
  %v2896 = vsel %vm210, %v2892, 0.0
  %2897 = vadd.xlane.f32.xlu0 %v2896
  %v2898 = vpop.xlane.xlu0 %2897
  %v2899 = vrcp.pop %v2895
  %v2900 = vrcp.pop %v2898
  %v2901 = vmul.f32 %v2890, %v2899
  %v2902 = vmul.f32 %v2892, %v2900
  %2903 = vrot.lane.b32.xlu0 %v2049, 48
  %v2904 = vpop.permute.xlu0 %2903
  %v2907 = vsel %vm210, %v2901, 0
  %2909 = vmatprep.subr.mxu0 0.0
  %2910 = vmatpush1.msra.mxu0 %v2904
  %2911 = vmatprep.subr.mxu0 0.0
  %2912 = vmatpush1.msra.mxu0 0.0
  %2913 = vmatprep.subr.mxu0 0.0
  %2914 = vmatpush1.msra.mxu0 0.0
  %2915 = vmatprep.subr.mxu0 0.0
  %2916 = vmatpush1.msra.mxu0 0.0
  %2917 = vmatprep.subr.mxu0 0.0
  %2918 = vmatpush1.msra.mxu0 0.0
  %2919 = vmatprep.subr.mxu0 0.0
  %2920 = vmatpush1.msra.mxu0 0.0
  %2921 = vmatprep.subr.mxu0 0.0
  %2922 = vmatpush1.msra.mxu0 0.0
  %2923 = vmatprep.subr.mxu0 0.0
  %2924 = vmatpush1.msra.mxu0 0.0
  %2925 = vmatprep.subr.mxu0 0.0
  %2926 = vmatpush1.msra.mxu0 0.0
  %2927 = vmatprep.subr.mxu0 0.0
  %2928 = vmatpush1.msra.mxu0 0.0
  %2929 = vmatprep.subr.mxu0 0.0
  %2930 = vmatpush1.msra.mxu0 0.0
  %2931 = vmatprep.subr.mxu0 0.0
  %2932 = vmatpush1.msra.mxu0 0.0
  %2933 = vmatprep.subr.mxu0 0.0
  %2934 = vmatpush1.msra.mxu0 0.0
  %2935 = vmatprep.subr.mxu0 0.0
  %2936 = vmatpush1.msra.mxu0 0.0
  %2937 = vmatprep.subr.mxu0 0.0
  %2938 = vmatpush1.msra.mxu0 0.0
  %2939 = vmatprep.subr.mxu0 0.0
  %2940 = vmatpush1.msra.mxu0 0.0
  %2941 = vmatprep.subr.mxu0 0.0
  %2942 = vmatpush1.msra.mxu0 0.0
  %2943 = vmatprep.subr.mxu0 0.0
  %2944 = vmatpush1.msra.mxu0 0.0
  %2945 = vmatprep.subr.mxu0 0.0
  %2946 = vmatpush1.msra.mxu0 0.0
  %2947 = vmatprep.subr.mxu0 0.0
  %2948 = vmatpush1.msra.mxu0 0.0
  %2949 = vmatprep.subr.mxu0 0.0
  %2950 = vmatpush1.msra.mxu0 0.0
  %2951 = vmatprep.subr.mxu0 0.0
  %2952 = vmatpush1.msra.mxu0 0.0
  %2953 = vmatprep.subr.mxu0 0.0
  %2954 = vmatpush1.msra.mxu0 0.0
  %2955 = vmatprep.subr.mxu0 0.0
  %2956 = vmatpush1.msra.mxu0 0.0
  %2957 = vmatprep.subr.mxu0 0.0
  %2958 = vmatpush1.msra.mxu0 0.0
  %2959 = vmatprep.subr.mxu0 0.0
  %2960 = vmatpush1.msra.mxu0 0.0
  %2961 = vmatprep.subr.mxu0 0.0
  %2962 = vmatpush1.msra.mxu0 0.0
  %2963 = vmatprep.subr.mxu0 0.0
  %2964 = vmatpush1.msra.mxu0 0.0
  %2965 = vmatprep.subr.mxu0 0.0
  %2966 = vmatpush1.msra.mxu0 0.0
  %2967 = vmatprep.subr.mxu0 0.0
  %2968 = vmatpush1.msra.mxu0 0.0
  %2969 = vmatprep.subr.mxu0 0.0
  %2970 = vmatpush1.msra.mxu0 0.0
  %2971 = vmatprep.subr.mxu0 0.0
  %2972 = vmatpush1.msra.mxu0 0.0
  %2973 = vmatprep.mubr.f32.mxu0 0.0
  %2974 = vmatmul.mubr.f32.gmra.mrb[0].mxu0 %v2907
  %v2975 = vpop.f32.mrb[0].mxu0
  %v2976 = vadd.f32 0.0, %v2975
  %v2977 = vpop.f32.mrb[0].mxu0
  %2978 = vdwg.mxu0
  %2979 = vrot.lane.b32.xlu0 %v2050, 48
  %v2980 = vpop.permute.xlu0 %2979
  %v2983 = vsel %vm210, %v2902, 0
  %2985 = vmatprep.subr.mxu0 0.0
  %2986 = vmatpush1.msra.mxu0 %v2980
  %2987 = vmatprep.subr.mxu0 0.0
  %2988 = vmatpush1.msra.mxu0 0.0
  %2989 = vmatprep.subr.mxu0 0.0
  %2990 = vmatpush1.msra.mxu0 0.0
  %2991 = vmatprep.subr.mxu0 0.0
  %2992 = vmatpush1.msra.mxu0 0.0
  %2993 = vmatprep.subr.mxu0 0.0
  %2994 = vmatpush1.msra.mxu0 0.0
  %2995 = vmatprep.subr.mxu0 0.0
  %2996 = vmatpush1.msra.mxu0 0.0
  %2997 = vmatprep.subr.mxu0 0.0
  %2998 = vmatpush1.msra.mxu0 0.0
  %2999 = vmatprep.subr.mxu0 0.0
  %3000 = vmatpush1.msra.mxu0 0.0
  %3001 = vmatprep.subr.mxu0 0.0
  %3002 = vmatpush1.msra.mxu0 0.0
  %3003 = vmatprep.subr.mxu0 0.0
  %3004 = vmatpush1.msra.mxu0 0.0
  %3005 = vmatprep.subr.mxu0 0.0
  %3006 = vmatpush1.msra.mxu0 0.0
  %3007 = vmatprep.subr.mxu0 0.0
  %3008 = vmatpush1.msra.mxu0 0.0
  %3009 = vmatprep.subr.mxu0 0.0
  %3010 = vmatpush1.msra.mxu0 0.0
  %3011 = vmatprep.subr.mxu0 0.0
  %3012 = vmatpush1.msra.mxu0 0.0
  %3013 = vmatprep.subr.mxu0 0.0
  %3014 = vmatpush1.msra.mxu0 0.0
  %3015 = vmatprep.subr.mxu0 0.0
  %3016 = vmatpush1.msra.mxu0 0.0
  %3017 = vmatprep.subr.mxu0 0.0
  %3018 = vmatpush1.msra.mxu0 0.0
  %3019 = vmatprep.subr.mxu0 0.0
  %3020 = vmatpush1.msra.mxu0 0.0
  %3021 = vmatprep.subr.mxu0 0.0
  %3022 = vmatpush1.msra.mxu0 0.0
  %3023 = vmatprep.subr.mxu0 0.0
  %3024 = vmatpush1.msra.mxu0 0.0
  %3025 = vmatprep.subr.mxu0 0.0
  %3026 = vmatpush1.msra.mxu0 0.0
  %3027 = vmatprep.subr.mxu0 0.0
  %3028 = vmatpush1.msra.mxu0 0.0
  %3029 = vmatprep.subr.mxu0 0.0
  %3030 = vmatpush1.msra.mxu0 0.0
  %3031 = vmatprep.subr.mxu0 0.0
  %3032 = vmatpush1.msra.mxu0 0.0
  %3033 = vmatprep.subr.mxu0 0.0
  %3034 = vmatpush1.msra.mxu0 0.0
  %3035 = vmatprep.subr.mxu0 0.0
  %3036 = vmatpush1.msra.mxu0 0.0
  %3037 = vmatprep.subr.mxu0 0.0
  %3038 = vmatpush1.msra.mxu0 0.0
  %3039 = vmatprep.subr.mxu0 0.0
  %3040 = vmatpush1.msra.mxu0 0.0
  %3041 = vmatprep.subr.mxu0 0.0
  %3042 = vmatpush1.msra.mxu0 0.0
  %3043 = vmatprep.subr.mxu0 0.0
  %3044 = vmatpush1.msra.mxu0 0.0
  %3045 = vmatprep.subr.mxu0 0.0
  %3046 = vmatpush1.msra.mxu0 0.0
  %3047 = vmatprep.subr.mxu0 0.0
  %3048 = vmatpush1.msra.mxu0 0.0
  %3049 = vmatprep.mubr.f32.mxu0 0.0
  %3050 = vmatmul.mubr.f32.gmra.mrb[0].mxu0 %v2983
  %v3051 = vpop.f32.mrb[0].mxu0
  %v3052 = vadd.f32 0.0, %v3051
  %v3053 = vpop.f32.mrb[0].mxu0
  %3054 = vdwg.mxu0
  %3055 = vrot.lane.b32.xlu0 %v2029, 104
  %v3056 = vpop.permute.xlu0 %3055
  %3057 = vrot.lane.b32.xlu0 %v2039, 72
  %v3058 = vpop.permute.xlu0 %3057
  %v3059 = vsel %vm210, %v3056, 0
  %v3061 = vsel %vm210, %v3058, 0
  %3063 = vmatprep.subr.mxu0 0.0
  %3064 = vmatpush1.xpose.msra.mxu0 %v3061
  %3065 = vmatprep.subr.mxu0 0.0
  %3066 = vmatpush1.xpose.msra.mxu0 0.0
  %3067 = vmatprep.subr.mxu0 0.0
  %3068 = vmatpush1.xpose.msra.mxu0 0.0
  %3069 = vmatprep.subr.mxu0 0.0
  %3070 = vmatpush1.xpose.msra.mxu0 0.0
  %3071 = vmatprep.subr.mxu0 0.0
  %3072 = vmatpush1.xpose.msra.mxu0 0.0
  %3073 = vmatprep.subr.mxu0 0.0
  %3074 = vmatpush1.xpose.msra.mxu0 0.0
  %3075 = vmatprep.subr.mxu0 0.0
  %3076 = vmatpush1.xpose.msra.mxu0 0.0
  %3077 = vmatprep.subr.mxu0 0.0
  %3078 = vmatpush1.xpose.msra.mxu0 0.0
  %3079 = vmatprep.subr.mxu0 0.0
  %3080 = vmatpush1.xpose.msra.mxu0 0.0
  %3081 = vmatprep.subr.mxu0 0.0
  %3082 = vmatpush1.xpose.msra.mxu0 0.0
  %3083 = vmatprep.subr.mxu0 0.0
  %3084 = vmatpush1.xpose.msra.mxu0 0.0
  %3085 = vmatprep.subr.mxu0 0.0
  %3086 = vmatpush1.xpose.msra.mxu0 0.0
  %3087 = vmatprep.subr.mxu0 0.0
  %3088 = vmatpush1.xpose.msra.mxu0 0.0
  %3089 = vmatprep.subr.mxu0 0.0
  %3090 = vmatpush1.xpose.msra.mxu0 0.0
  %3091 = vmatprep.subr.mxu0 0.0
  %3092 = vmatpush1.xpose.msra.mxu0 0.0
  %3093 = vmatprep.subr.mxu0 0.0
  %3094 = vmatpush1.xpose.msra.mxu0 0.0
  %3095 = vmatprep.subr.mxu0 0.0
  %3096 = vmatpush1.xpose.msra.mxu0 0.0
  %3097 = vmatprep.subr.mxu0 0.0
  %3098 = vmatpush1.xpose.msra.mxu0 0.0
  %3099 = vmatprep.subr.mxu0 0.0
  %3100 = vmatpush1.xpose.msra.mxu0 0.0
  %3101 = vmatprep.subr.mxu0 0.0
  %3102 = vmatpush1.xpose.msra.mxu0 0.0
  %3103 = vmatprep.subr.mxu0 0.0
  %3104 = vmatpush1.xpose.msra.mxu0 0.0
  %3105 = vmatprep.subr.mxu0 0.0
  %3106 = vmatpush1.xpose.msra.mxu0 0.0
  %3107 = vmatprep.subr.mxu0 0.0
  %3108 = vmatpush1.xpose.msra.mxu0 0.0
  %3109 = vmatprep.subr.mxu0 0.0
  %3110 = vmatpush1.xpose.msra.mxu0 0.0
  %3111 = vmatprep.subr.mxu0 0.0
  %3112 = vmatpush1.xpose.msra.mxu0 0.0
  %3113 = vmatprep.subr.mxu0 0.0
  %3114 = vmatpush1.xpose.msra.mxu0 0.0
  %3115 = vmatprep.subr.mxu0 0.0
  %3116 = vmatpush1.xpose.msra.mxu0 0.0
  %3117 = vmatprep.subr.mxu0 0.0
  %3118 = vmatpush1.xpose.msra.mxu0 0.0
  %3119 = vmatprep.subr.mxu0 0.0
  %3120 = vmatpush1.xpose.msra.mxu0 0.0
  %3121 = vmatprep.subr.mxu0 0.0
  %3122 = vmatpush1.xpose.msra.mxu0 0.0
  %3123 = vmatprep.subr.mxu0 0.0
  %3124 = vmatpush1.xpose.msra.mxu0 0.0
  %3125 = vmatprep.subr.mxu0 0.0
  %3126 = vmatpush1.xpose.msra.mxu0 0.0
  %3127 = vmatprep.mubr.f32.mxu0 0.0
  %3128 = vmatmul.mubr.f32.gmra.mrb[0].mxu0 %v3059
  %v3129 = vpop.f32.mrb[0].mxu0
  %v3130 = vadd.f32 0.0, %v3129
  %v3131 = vpop.f32.mrb[0].mxu0
  %3132 = vdwg.mxu0
  %3133 = vrot.lane.b32.xlu0 %v2030, 104
  %v3134 = vpop.permute.xlu0 %3133
  %3135 = vrot.lane.b32.xlu0 %v2040, 72
  %v3136 = vpop.permute.xlu0 %3135
  %v3137 = vsel %vm210, %v3134, 0
  %v3139 = vsel %vm210, %v3136, 0
  %3141 = vmatprep.subr.mxu0 0.0
  %3142 = vmatpush1.xpose.msra.mxu0 %v3139
  %3143 = vmatprep.subr.mxu0 0.0
  %3144 = vmatpush1.xpose.msra.mxu0 0.0
  %3145 = vmatprep.subr.mxu0 0.0
  %3146 = vmatpush1.xpose.msra.mxu0 0.0
  %3147 = vmatprep.subr.mxu0 0.0
  %3148 = vmatpush1.xpose.msra.mxu0 0.0
  %3149 = vmatprep.subr.mxu0 0.0
  %3150 = vmatpush1.xpose.msra.mxu0 0.0
  %3151 = vmatprep.subr.mxu0 0.0
  %3152 = vmatpush1.xpose.msra.mxu0 0.0
  %3153 = vmatprep.subr.mxu0 0.0
  %3154 = vmatpush1.xpose.msra.mxu0 0.0
  %3155 = vmatprep.subr.mxu0 0.0
  %3156 = vmatpush1.xpose.msra.mxu0 0.0
  %3157 = vmatprep.subr.mxu0 0.0
  %3158 = vmatpush1.xpose.msra.mxu0 0.0
  %3159 = vmatprep.subr.mxu0 0.0
  %3160 = vmatpush1.xpose.msra.mxu0 0.0
  %3161 = vmatprep.subr.mxu0 0.0
  %3162 = vmatpush1.xpose.msra.mxu0 0.0
  %3163 = vmatprep.subr.mxu0 0.0
  %3164 = vmatpush1.xpose.msra.mxu0 0.0
  %3165 = vmatprep.subr.mxu0 0.0
  %3166 = vmatpush1.xpose.msra.mxu0 0.0
  %3167 = vmatprep.subr.mxu0 0.0
  %3168 = vmatpush1.xpose.msra.mxu0 0.0
  %3169 = vmatprep.subr.mxu0 0.0
  %3170 = vmatpush1.xpose.msra.mxu0 0.0
  %3171 = vmatprep.subr.mxu0 0.0
  %3172 = vmatpush1.xpose.msra.mxu0 0.0
  %3173 = vmatprep.subr.mxu0 0.0
  %3174 = vmatpush1.xpose.msra.mxu0 0.0
  %3175 = vmatprep.subr.mxu0 0.0
  %3176 = vmatpush1.xpose.msra.mxu0 0.0
  %3177 = vmatprep.subr.mxu0 0.0
  %3178 = vmatpush1.xpose.msra.mxu0 0.0
  %3179 = vmatprep.subr.mxu0 0.0
  %3180 = vmatpush1.xpose.msra.mxu0 0.0
  %3181 = vmatprep.subr.mxu0 0.0
  %3182 = vmatpush1.xpose.msra.mxu0 0.0
  %3183 = vmatprep.subr.mxu0 0.0
  %3184 = vmatpush1.xpose.msra.mxu0 0.0
  %3185 = vmatprep.subr.mxu0 0.0
  %3186 = vmatpush1.xpose.msra.mxu0 0.0
  %3187 = vmatprep.subr.mxu0 0.0
  %3188 = vmatpush1.xpose.msra.mxu0 0.0
  %3189 = vmatprep.subr.mxu0 0.0
  %3190 = vmatpush1.xpose.msra.mxu0 0.0
  %3191 = vmatprep.subr.mxu0 0.0
  %3192 = vmatpush1.xpose.msra.mxu0 0.0
  %3193 = vmatprep.subr.mxu0 0.0
  %3194 = vmatpush1.xpose.msra.mxu0 0.0
  %3195 = vmatprep.subr.mxu0 0.0
  %3196 = vmatpush1.xpose.msra.mxu0 0.0
  %3197 = vmatprep.subr.mxu0 0.0
  %3198 = vmatpush1.xpose.msra.mxu0 0.0
  %3199 = vmatprep.subr.mxu0 0.0
  %3200 = vmatpush1.xpose.msra.mxu0 0.0
  %3201 = vmatprep.subr.mxu0 0.0
  %3202 = vmatpush1.xpose.msra.mxu0 0.0
  %3203 = vmatprep.subr.mxu0 0.0
  %3204 = vmatpush1.xpose.msra.mxu0 0.0
  %3205 = vmatprep.mubr.f32.mxu0 0.0
  %3206 = vmatmul.mubr.f32.gmra.mrb[0].mxu0 %v3137
  %v3207 = vpop.f32.mrb[0].mxu0
  %v3208 = vadd.f32 0.0, %v3207
  %v3209 = vpop.f32.mrb[0].mxu0
  %3210 = vdwg.mxu0
  %v3211 = vmul.f32 %v3130, 0.35355338
  %v3212 = vmul.f32 %v3208, 0.35355338
  %v3213 = vadd.f32 %v3211, %v28
  %v3214 = vadd.f32 %v3212, %v28
  %v3215 = vsel %vm210, %v3213, -inf
  %3216 = vmax.xlane.f32.xlu0 %v3215
  %v3217 = vpop.xlane.xlu0 %3216
  %v3218 = vsel %vm210, %v3214, -inf
  %3219 = vmax.xlane.f32.xlu0 %v3218
  %v3220 = vpop.xlane.xlu0 %3219
  %v3221 = vsub.f32 %v3213, %v3217
  %v3222 = vsub.f32 %v3214, %v3220
  %v3223 = vmul.f32 %v3221, 1.442695
  %v3224 = vpow.pop %v3223
  %v3225 = vmul.f32 %v3222, 1.442695
  %v3226 = vpow.pop %v3225
  %v3227 = vsel %vm210, %v3224, 0.0
  %3228 = vadd.xlane.f32.xlu0 %v3227
  %v3229 = vpop.xlane.xlu0 %3228
  %v3230 = vsel %vm210, %v3226, 0.0
  %3231 = vadd.xlane.f32.xlu0 %v3230
  %v3232 = vpop.xlane.xlu0 %3231
  %v3233 = vrcp.pop %v3229
  %v3234 = vrcp.pop %v3232
  %v3235 = vmul.f32 %v3224, %v3233
  %v3236 = vmul.f32 %v3226, %v3234
  %3237 = vrot.lane.b32.xlu0 %v2049, 40
  %v3238 = vpop.permute.xlu0 %3237
  %v3241 = vsel %vm210, %v3235, 0
  %3243 = vmatprep.subr.mxu0 0.0
  %3244 = vmatpush1.msra.mxu0 %v3238
  %3245 = vmatprep.subr.mxu0 0.0
  %3246 = vmatpush1.msra.mxu0 0.0
  %3247 = vmatprep.subr.mxu0 0.0
  %3248 = vmatpush1.msra.mxu0 0.0
  %3249 = vmatprep.subr.mxu0 0.0
  %3250 = vmatpush1.msra.mxu0 0.0
  %3251 = vmatprep.subr.mxu0 0.0
  %3252 = vmatpush1.msra.mxu0 0.0
  %3253 = vmatprep.subr.mxu0 0.0
  %3254 = vmatpush1.msra.mxu0 0.0
  %3255 = vmatprep.subr.mxu0 0.0
  %3256 = vmatpush1.msra.mxu0 0.0
  %3257 = vmatprep.subr.mxu0 0.0
  %3258 = vmatpush1.msra.mxu0 0.0
  %3259 = vmatprep.subr.mxu0 0.0
  %3260 = vmatpush1.msra.mxu0 0.0
  %3261 = vmatprep.subr.mxu0 0.0
  %3262 = vmatpush1.msra.mxu0 0.0
  %3263 = vmatprep.subr.mxu0 0.0
  %3264 = vmatpush1.msra.mxu0 0.0
  %3265 = vmatprep.subr.mxu0 0.0
  %3266 = vmatpush1.msra.mxu0 0.0
  %3267 = vmatprep.subr.mxu0 0.0
  %3268 = vmatpush1.msra.mxu0 0.0
  %3269 = vmatprep.subr.mxu0 0.0
  %3270 = vmatpush1.msra.mxu0 0.0
  %3271 = vmatprep.subr.mxu0 0.0
  %3272 = vmatpush1.msra.mxu0 0.0
  %3273 = vmatprep.subr.mxu0 0.0
  %3274 = vmatpush1.msra.mxu0 0.0
  %3275 = vmatprep.subr.mxu0 0.0
  %3276 = vmatpush1.msra.mxu0 0.0
  %3277 = vmatprep.subr.mxu0 0.0
  %3278 = vmatpush1.msra.mxu0 0.0
  %3279 = vmatprep.subr.mxu0 0.0
  %3280 = vmatpush1.msra.mxu0 0.0
  %3281 = vmatprep.subr.mxu0 0.0
  %3282 = vmatpush1.msra.mxu0 0.0
  %3283 = vmatprep.subr.mxu0 0.0
  %3284 = vmatpush1.msra.mxu0 0.0
  %3285 = vmatprep.subr.mxu0 0.0
  %3286 = vmatpush1.msra.mxu0 0.0
  %3287 = vmatprep.subr.mxu0 0.0
  %3288 = vmatpush1.msra.mxu0 0.0
  %3289 = vmatprep.subr.mxu0 0.0
  %3290 = vmatpush1.msra.mxu0 0.0
  %3291 = vmatprep.subr.mxu0 0.0
  %3292 = vmatpush1.msra.mxu0 0.0
  %3293 = vmatprep.subr.mxu0 0.0
  %3294 = vmatpush1.msra.mxu0 0.0
  %3295 = vmatprep.subr.mxu0 0.0
  %3296 = vmatpush1.msra.mxu0 0.0
  %3297 = vmatprep.subr.mxu0 0.0
  %3298 = vmatpush1.msra.mxu0 0.0
  %3299 = vmatprep.subr.mxu0 0.0
  %3300 = vmatpush1.msra.mxu0 0.0
  %3301 = vmatprep.subr.mxu0 0.0
  %3302 = vmatpush1.msra.mxu0 0.0
  %3303 = vmatprep.subr.mxu0 0.0
  %3304 = vmatpush1.msra.mxu0 0.0
  %3305 = vmatprep.subr.mxu0 0.0
  %3306 = vmatpush1.msra.mxu0 0.0
  %3307 = vmatprep.mubr.f32.mxu0 0.0
  %3308 = vmatmul.mubr.f32.gmra.mrb[0].mxu0 %v3241
  %v3309 = vpop.f32.mrb[0].mxu0
  %v3310 = vadd.f32 0.0, %v3309
  %v3311 = vpop.f32.mrb[0].mxu0
  %3312 = vdwg.mxu0
  %3313 = vrot.lane.b32.xlu0 %v2050, 40
  %v3314 = vpop.permute.xlu0 %3313
  %v3317 = vsel %vm210, %v3236, 0
  %3319 = vmatprep.subr.mxu0 0.0
  %3320 = vmatpush1.msra.mxu0 %v3314
  %3321 = vmatprep.subr.mxu0 0.0
  %3322 = vmatpush1.msra.mxu0 0.0
  %3323 = vmatprep.subr.mxu0 0.0
  %3324 = vmatpush1.msra.mxu0 0.0
  %3325 = vmatprep.subr.mxu0 0.0
  %3326 = vmatpush1.msra.mxu0 0.0
  %3327 = vmatprep.subr.mxu0 0.0
  %3328 = vmatpush1.msra.mxu0 0.0
  %3329 = vmatprep.subr.mxu0 0.0
  %3330 = vmatpush1.msra.mxu0 0.0
  %3331 = vmatprep.subr.mxu0 0.0
  %3332 = vmatpush1.msra.mxu0 0.0
  %3333 = vmatprep.subr.mxu0 0.0
  %3334 = vmatpush1.msra.mxu0 0.0
  %3335 = vmatprep.subr.mxu0 0.0
  %3336 = vmatpush1.msra.mxu0 0.0
  %3337 = vmatprep.subr.mxu0 0.0
  %3338 = vmatpush1.msra.mxu0 0.0
  %3339 = vmatprep.subr.mxu0 0.0
  %3340 = vmatpush1.msra.mxu0 0.0
  %3341 = vmatprep.subr.mxu0 0.0
  %3342 = vmatpush1.msra.mxu0 0.0
  %3343 = vmatprep.subr.mxu0 0.0
  %3344 = vmatpush1.msra.mxu0 0.0
  %3345 = vmatprep.subr.mxu0 0.0
  %3346 = vmatpush1.msra.mxu0 0.0
  %3347 = vmatprep.subr.mxu0 0.0
  %3348 = vmatpush1.msra.mxu0 0.0
  %3349 = vmatprep.subr.mxu0 0.0
  %3350 = vmatpush1.msra.mxu0 0.0
  %3351 = vmatprep.subr.mxu0 0.0
  %3352 = vmatpush1.msra.mxu0 0.0
  %3353 = vmatprep.subr.mxu0 0.0
  %3354 = vmatpush1.msra.mxu0 0.0
  %3355 = vmatprep.subr.mxu0 0.0
  %3356 = vmatpush1.msra.mxu0 0.0
  %3357 = vmatprep.subr.mxu0 0.0
  %3358 = vmatpush1.msra.mxu0 0.0
  %3359 = vmatprep.subr.mxu0 0.0
  %3360 = vmatpush1.msra.mxu0 0.0
  %3361 = vmatprep.subr.mxu0 0.0
  %3362 = vmatpush1.msra.mxu0 0.0
  %3363 = vmatprep.subr.mxu0 0.0
  %3364 = vmatpush1.msra.mxu0 0.0
  %3365 = vmatprep.subr.mxu0 0.0
  %3366 = vmatpush1.msra.mxu0 0.0
  %3367 = vmatprep.subr.mxu0 0.0
  %3368 = vmatpush1.msra.mxu0 0.0
  %3369 = vmatprep.subr.mxu0 0.0
  %3370 = vmatpush1.msra.mxu0 0.0
  %3371 = vmatprep.subr.mxu0 0.0
  %3372 = vmatpush1.msra.mxu0 0.0
  %3373 = vmatprep.subr.mxu0 0.0
  %3374 = vmatpush1.msra.mxu0 0.0
  %3375 = vmatprep.subr.mxu0 0.0
  %3376 = vmatpush1.msra.mxu0 0.0
  %3377 = vmatprep.subr.mxu0 0.0
  %3378 = vmatpush1.msra.mxu0 0.0
  %3379 = vmatprep.subr.mxu0 0.0
  %3380 = vmatpush1.msra.mxu0 0.0
  %3381 = vmatprep.subr.mxu0 0.0
  %3382 = vmatpush1.msra.mxu0 0.0
  %3383 = vmatprep.mubr.f32.mxu0 0.0
  %3384 = vmatmul.mubr.f32.gmra.mrb[0].mxu0 %v3317
  %v3385 = vpop.f32.mrb[0].mxu0
  %v3386 = vadd.f32 0.0, %v3385
  %v3387 = vpop.f32.mrb[0].mxu0
  %3388 = vdwg.mxu0
  %3391 = vrot.lane.b32.xlu0 %v2642, 8
  %v3392 = vpop.permute.xlu0 %3391
  %3393 = vrot.lane.b32.xlu0 %v2718, 8
  %v3394 = vpop.permute.xlu0 %3393
  %3399 = vrot.lane.b32.xlu0 %v2976, 16
  %v3400 = vpop.permute.xlu0 %3399
  %3401 = vrot.lane.b32.xlu0 %v3052, 16
  %v3402 = vpop.permute.xlu0 %3401
  %3407 = vrot.lane.b32.xlu0 %v3310, 24
  %v3408 = vpop.permute.xlu0 %3407
  %3409 = vrot.lane.b32.xlu0 %v3386, 24
  %v3410 = vpop.permute.xlu0 %3409
  %v3413 = vsel %vm210, %v2307, %v3392
  %v3414 = vsel %vm210, %v2384, %v3394
  %v3415 = vsel %vm1572, %v3413, %v3400
  %v3416 = vsel %vm1572, %v3414, %v3402
  %v3417 = vsel %vm1575, %v3415, %v3408
  %v3418 = vsel %vm1575, %v3416, %v3410
  %v3419 = vlaneseq
  %v3420 = vshrl.u32 %v3419, 7
  %v3421 = vsub.s32 0, %v3420
  %v3422 = vrot.slane %v1885, %v3421
  %v3424 = vsel %vm60, %v3417, 0
  %v3427 = vsel %vm60, %v3418, 0
  %3429 = vmatprep.subr.mxu0 0.0
  %3430 = vmatpush1.msra.mxu0 %v1892
  %3431 = vmatprep.subr.mxu0 0.0
  %3432 = vmatpush1.msra.mxu0 %v1893
  %3433 = vmatprep.subr.mxu0 0.0
  %3434 = vmatpush1.msra.mxu0 %v1894
  %3435 = vmatprep.subr.mxu0 0.0
  %3436 = vmatpush1.msra.mxu0 %v1895
  %3437 = vmatprep.subr.mxu0 0.0
  %3438 = vmatpush1.msra.mxu0 0.0
  %3439 = vmatprep.subr.mxu0 0.0
  %3440 = vmatpush1.msra.mxu0 0.0
  %3441 = vmatprep.subr.mxu0 0.0
  %3442 = vmatpush1.msra.mxu0 0.0
  %3443 = vmatprep.subr.mxu0 0.0
  %3444 = vmatpush1.msra.mxu0 0.0
  %3445 = vmatprep.subr.mxu0 0.0
  %3446 = vmatpush1.msra.mxu0 0.0
  %3447 = vmatprep.subr.mxu0 0.0
  %3448 = vmatpush1.msra.mxu0 0.0
  %3449 = vmatprep.subr.mxu0 0.0
  %3450 = vmatpush1.msra.mxu0 0.0
  %3451 = vmatprep.subr.mxu0 0.0
  %3452 = vmatpush1.msra.mxu0 0.0
  %3453 = vmatprep.subr.mxu0 0.0
  %3454 = vmatpush1.msra.mxu0 0.0
  %3455 = vmatprep.subr.mxu0 0.0
  %3456 = vmatpush1.msra.mxu0 0.0
  %3457 = vmatprep.subr.mxu0 0.0
  %3458 = vmatpush1.msra.mxu0 0.0
  %3459 = vmatprep.subr.mxu0 0.0
  %3460 = vmatpush1.msra.mxu0 0.0
  %3461 = vmatprep.subr.mxu0 0.0
  %3462 = vmatpush1.msra.mxu0 0.0
  %3463 = vmatprep.subr.mxu0 0.0
  %3464 = vmatpush1.msra.mxu0 0.0
  %3465 = vmatprep.subr.mxu0 0.0
  %3466 = vmatpush1.msra.mxu0 0.0
  %3467 = vmatprep.subr.mxu0 0.0
  %3468 = vmatpush1.msra.mxu0 0.0
  %3469 = vmatprep.subr.mxu0 0.0
  %3470 = vmatpush1.msra.mxu0 0.0
  %3471 = vmatprep.subr.mxu0 0.0
  %3472 = vmatpush1.msra.mxu0 0.0
  %3473 = vmatprep.subr.mxu0 0.0
  %3474 = vmatpush1.msra.mxu0 0.0
  %3475 = vmatprep.subr.mxu0 0.0
  %3476 = vmatpush1.msra.mxu0 0.0
  %3477 = vmatprep.subr.mxu0 0.0
  %3478 = vmatpush1.msra.mxu0 0.0
  %3479 = vmatprep.subr.mxu0 0.0
  %3480 = vmatpush1.msra.mxu0 0.0
  %3481 = vmatprep.subr.mxu0 0.0
  %3482 = vmatpush1.msra.mxu0 0.0
  %3483 = vmatprep.subr.mxu0 0.0
  %3484 = vmatpush1.msra.mxu0 0.0
  %3485 = vmatprep.subr.mxu0 0.0
  %3486 = vmatpush1.msra.mxu0 0.0
  %3487 = vmatprep.subr.mxu0 0.0
  %3488 = vmatpush1.msra.mxu0 0.0
  %3489 = vmatprep.subr.mxu0 0.0
  %3490 = vmatpush1.msra.mxu0 0.0
  %3491 = vmatprep.subr.mxu0 0.0
  %3492 = vmatpush1.msra.mxu0 0.0
  %3493 = vmatprep.mubr.f32.mxu0 0.0
  %3494 = vmatmul.mubr.f32.gmra.mrb[0].mxu0 %v3424
  %v3495 = vpop.f32.mrb[0].mxu0
  %v3496 = vadd.f32 %v3422, %v3495
  %v3497 = vpop.f32.mrb[0].mxu0
  %3498 = vmatprep.mubr.f32.mxu0 0.0
  %3499 = vmatmul.mubr.f32.gmra.mrb[0].mxu0 %v3427
  %v3500 = vpop.f32.mrb[0].mxu0
  %v3501 = vadd.f32 %v3422, %v3500
  %v3502 = vpop.f32.mrb[0].mxu0
  %3503 = vdwg.mxu0
  %v3504 = vadd.f32 %v1942, %v3496
  %v3505 = vadd.f32 %v1943, %v3501
  %v3506 = vsel %vm60, %v3504, 0.0
  %3507 = vadd.xlane.f32.xlu0 %v3506
  %v3508 = vpop.xlane.xlu0 %3507
  %v3509 = vsel %vm60, %v3505, 0.0
  %3510 = vadd.xlane.f32.xlu0 %v3509
  %v3511 = vpop.xlane.xlu0 %3510
  %v3512 = vmul.f32 %v3508, %v67
  %v3513 = vmul.f32 %v3511, %v67
  %v3514 = vsub.f32 %v3504, %v3512
  %v3515 = vsub.f32 %v3505, %v3513
  %v3516 = vmul.f32 %v3514, %v3514
  %v3517 = vmul.f32 %v3515, %v3515
  %v3518 = vsel %vm60, %v3516, 0.0
  %3519 = vadd.xlane.f32.xlu0 %v3518
  %v3520 = vpop.xlane.xlu0 %3519
  %v3521 = vsel %vm60, %v3517, 0.0
  %3522 = vadd.xlane.f32.xlu0 %v3521
  %v3523 = vpop.xlane.xlu0 %3522
  %v3524 = vmul.f32 %v3520, %v67
  %v3525 = vmul.f32 %v3523, %v67
  %v3526 = vadd.f32 %v3524, 1e-05
  %v3527 = vadd.f32 %v3525, 1e-05
  %v3528 = vrsqrt.pop %v3526
  %v3529 = vrsqrt.pop %v3527
  %v3530 = vmul.f32 %v3514, %v3528
  %v3531 = vmul.f32 %v3515, %v3529
  %v3532 = vlaneseq
  %v3533 = vshrl.u32 %v3532, 7
  %v3534 = vsub.s32 0, %v3533
  %v3535 = vrot.slane %v1880, %v3534
  %v3536 = vmul.f32 %v3530, %v3535
  %v3537 = vmul.f32 %v3531, %v3535
  %v3538 = vlaneseq
  %v3539 = vshrl.u32 %v3538, 7
  %v3540 = vsub.s32 0, %v3539
  %v3541 = vrot.slane %v1881, %v3540
  %v3542 = vadd.f32 %v3536, %v3541
  %v3543 = vadd.f32 %v3537, %v3541
  %v3544 = vlaneseq
  %v3545 = vshrl.u32 %v3544, 7
  %v3546 = vsub.s32 0, %v3545
  %v3547 = vrot.slane %v1886, %v3546
  %v3549 = vsel %vm60, %v3542, 0
  %v3552 = vsel %vm60, %v3543, 0
  %3554 = vmatprep.subr.mxu0 0.0
  %3555 = vmatpush1.msra.mxu0 %v1896
  %3556 = vmatprep.subr.mxu0 0.0
  %3557 = vmatpush1.msra.mxu0 %v1897
  %3558 = vmatprep.subr.mxu0 0.0
  %3559 = vmatpush1.msra.mxu0 %v1898
  %3560 = vmatprep.subr.mxu0 0.0
  %3561 = vmatpush1.msra.mxu0 %v1899
  %3562 = vmatprep.subr.mxu0 0.0
  %3563 = vmatpush1.msra.mxu0 0.0
  %3564 = vmatprep.subr.mxu0 0.0
  %3565 = vmatpush1.msra.mxu0 0.0
  %3566 = vmatprep.subr.mxu0 0.0
  %3567 = vmatpush1.msra.mxu0 0.0
  %3568 = vmatprep.subr.mxu0 0.0
  %3569 = vmatpush1.msra.mxu0 0.0
  %3570 = vmatprep.subr.mxu0 0.0
  %3571 = vmatpush1.msra.mxu0 0.0
  %3572 = vmatprep.subr.mxu0 0.0
  %3573 = vmatpush1.msra.mxu0 0.0
  %3574 = vmatprep.subr.mxu0 0.0
  %3575 = vmatpush1.msra.mxu0 0.0
  %3576 = vmatprep.subr.mxu0 0.0
  %3577 = vmatpush1.msra.mxu0 0.0
  %3578 = vmatprep.subr.mxu0 0.0
  %3579 = vmatpush1.msra.mxu0 0.0
  %3580 = vmatprep.subr.mxu0 0.0
  %3581 = vmatpush1.msra.mxu0 0.0
  %3582 = vmatprep.subr.mxu0 0.0
  %3583 = vmatpush1.msra.mxu0 0.0
  %3584 = vmatprep.subr.mxu0 0.0
  %3585 = vmatpush1.msra.mxu0 0.0
  %3586 = vmatprep.subr.mxu0 0.0
  %3587 = vmatpush1.msra.mxu0 0.0
  %3588 = vmatprep.subr.mxu0 0.0
  %3589 = vmatpush1.msra.mxu0 0.0
  %3590 = vmatprep.subr.mxu0 0.0
  %3591 = vmatpush1.msra.mxu0 0.0
  %3592 = vmatprep.subr.mxu0 0.0
  %3593 = vmatpush1.msra.mxu0 0.0
  %3594 = vmatprep.subr.mxu0 0.0
  %3595 = vmatpush1.msra.mxu0 0.0
  %3596 = vmatprep.subr.mxu0 0.0
  %3597 = vmatpush1.msra.mxu0 0.0
  %3598 = vmatprep.subr.mxu0 0.0
  %3599 = vmatpush1.msra.mxu0 0.0
  %3600 = vmatprep.subr.mxu0 0.0
  %3601 = vmatpush1.msra.mxu0 0.0
  %3602 = vmatprep.subr.mxu0 0.0
  %3603 = vmatpush1.msra.mxu0 0.0
  %3604 = vmatprep.subr.mxu0 0.0
  %3605 = vmatpush1.msra.mxu0 0.0
  %3606 = vmatprep.subr.mxu0 0.0
  %3607 = vmatpush1.msra.mxu0 0.0
  %3608 = vmatprep.subr.mxu0 0.0
  %3609 = vmatpush1.msra.mxu0 0.0
  %3610 = vmatprep.subr.mxu0 0.0
  %3611 = vmatpush1.msra.mxu0 0.0
  %3612 = vmatprep.subr.mxu0 0.0
  %3613 = vmatpush1.msra.mxu0 0.0
  %3614 = vmatprep.subr.mxu0 0.0
  %3615 = vmatpush1.msra.mxu0 0.0
  %3616 = vmatprep.subr.mxu0 0.0
  %3617 = vmatpush1.msra.mxu0 0.0
  %3618 = vmatprep.mubr.f32.mxu0 0.0
  %3619 = vmatmul.mubr.f32.gmra.mrb[0].mxu0 %v3549
  %v3620 = vpop.f32.mrb[0].mxu0
  %v3621 = vadd.f32 %v3547, %v3620
  %v3622 = vpop.f32.mrb[0].mxu0
  %3623 = vmatprep.mubr.f32.mxu0 0.0
  %3624 = vmatmul.mubr.f32.gmra.mrb[0].mxu0 %v3552
  %v3625 = vpop.f32.mrb[0].mxu0
  %v3626 = vadd.f32 %v3547, %v3625
  %v3627 = vpop.f32.mrb[0].mxu0
  %3628 = vdwg.mxu0
  %v3629 = vmax.f32 %v3621, 0.0
  %v3630 = vmax.f32 %v3626, 0.0
  %v3631 = vlaneseq
  %v3632 = vshrl.u32 %v3631, 7
  %v3633 = vsub.s32 0, %v3632
  %v3634 = vrot.slane %v1887, %v3633
  %v3636 = vsel %vm60, %v3629, 0
  %v3639 = vsel %vm60, %v3630, 0
  %3641 = vmatprep.subr.mxu0 0.0
  %3642 = vmatpush1.msra.mxu0 %v1900
  %3643 = vmatprep.subr.mxu0 0.0
  %3644 = vmatpush1.msra.mxu0 %v1901
  %3645 = vmatprep.subr.mxu0 0.0
  %3646 = vmatpush1.msra.mxu0 %v1902
  %3647 = vmatprep.subr.mxu0 0.0
  %3648 = vmatpush1.msra.mxu0 %v1903
  %3649 = vmatprep.subr.mxu0 0.0
  %3650 = vmatpush1.msra.mxu0 0.0
  %3651 = vmatprep.subr.mxu0 0.0
  %3652 = vmatpush1.msra.mxu0 0.0
  %3653 = vmatprep.subr.mxu0 0.0
  %3654 = vmatpush1.msra.mxu0 0.0
  %3655 = vmatprep.subr.mxu0 0.0
  %3656 = vmatpush1.msra.mxu0 0.0
  %3657 = vmatprep.subr.mxu0 0.0
  %3658 = vmatpush1.msra.mxu0 0.0
  %3659 = vmatprep.subr.mxu0 0.0
  %3660 = vmatpush1.msra.mxu0 0.0
  %3661 = vmatprep.subr.mxu0 0.0
  %3662 = vmatpush1.msra.mxu0 0.0
  %3663 = vmatprep.subr.mxu0 0.0
  %3664 = vmatpush1.msra.mxu0 0.0
  %3665 = vmatprep.subr.mxu0 0.0
  %3666 = vmatpush1.msra.mxu0 0.0
  %3667 = vmatprep.subr.mxu0 0.0
  %3668 = vmatpush1.msra.mxu0 0.0
  %3669 = vmatprep.subr.mxu0 0.0
  %3670 = vmatpush1.msra.mxu0 0.0
  %3671 = vmatprep.subr.mxu0 0.0
  %3672 = vmatpush1.msra.mxu0 0.0
  %3673 = vmatprep.subr.mxu0 0.0
  %3674 = vmatpush1.msra.mxu0 0.0
  %3675 = vmatprep.subr.mxu0 0.0
  %3676 = vmatpush1.msra.mxu0 0.0
  %3677 = vmatprep.subr.mxu0 0.0
  %3678 = vmatpush1.msra.mxu0 0.0
  %3679 = vmatprep.subr.mxu0 0.0
  %3680 = vmatpush1.msra.mxu0 0.0
  %3681 = vmatprep.subr.mxu0 0.0
  %3682 = vmatpush1.msra.mxu0 0.0
  %3683 = vmatprep.subr.mxu0 0.0
  %3684 = vmatpush1.msra.mxu0 0.0
  %3685 = vmatprep.subr.mxu0 0.0
  %3686 = vmatpush1.msra.mxu0 0.0
  %3687 = vmatprep.subr.mxu0 0.0
  %3688 = vmatpush1.msra.mxu0 0.0
  %3689 = vmatprep.subr.mxu0 0.0
  %3690 = vmatpush1.msra.mxu0 0.0
  %3691 = vmatprep.subr.mxu0 0.0
  %3692 = vmatpush1.msra.mxu0 0.0
  %3693 = vmatprep.subr.mxu0 0.0
  %3694 = vmatpush1.msra.mxu0 0.0
  %3695 = vmatprep.subr.mxu0 0.0
  %3696 = vmatpush1.msra.mxu0 0.0
  %3697 = vmatprep.subr.mxu0 0.0
  %3698 = vmatpush1.msra.mxu0 0.0
  %3699 = vmatprep.subr.mxu0 0.0
  %3700 = vmatpush1.msra.mxu0 0.0
  %3701 = vmatprep.subr.mxu0 0.0
  %3702 = vmatpush1.msra.mxu0 0.0
  %3703 = vmatprep.subr.mxu0 0.0
  %3704 = vmatpush1.msra.mxu0 0.0
  %3705 = vmatprep.mubr.f32.mxu0 0.0
  %3706 = vmatmul.mubr.f32.gmra.mrb[0].mxu0 %v3636
  %v3707 = vpop.f32.mrb[0].mxu0
  %v3708 = vadd.f32 %v3634, %v3707
  %v3709 = vpop.f32.mrb[0].mxu0
  %3710 = vmatprep.mubr.f32.mxu0 0.0
  %3711 = vmatmul.mubr.f32.gmra.mrb[0].mxu0 %v3639
  %v3712 = vpop.f32.mrb[0].mxu0
  %v3713 = vadd.f32 %v3634, %v3712
  %v3714 = vpop.f32.mrb[0].mxu0
  %3715 = vdwg.mxu0
  %v3716 = vadd.f32 %v3542, %v3708
  %v3717 = vadd.f32 %v3543, %v3713
  %v3718 = vld [vmem:[%s1] sm:$0xff]
  %v3719 = vld [vmem:[%s1 + $0x8] sm:$0xff]
  %v3720 = vld [vmem:[%s5] sm:$0xff]
  %v3721 = vld [vmem:[%s5 + $0x8] sm:$0x1]
  %v3722 = vld [vmem:[%s5 + $0x9] sm:$0x1]
  %v3723 = vld [vmem:[%s5 + $0xa] sm:$0x1]
  %v3724 = vld [vmem:[%s5 + $0xb] sm:$0x1]
  %v3725 = vld [vmem:[%s5 + $0xc] sm:$0x1]
  %v3726 = vld [vmem:[%s5 + $0xd] sm:$0x1]
  %v3727 = vld [vmem:[%s5 + $0xe] sm:$0x1]
  %v3728 = vld [vmem:[%s5 + $0xf] sm:$0x1]
  %v3729 = vld [vmem:[%s5 + $0x10] sm:$0x1]
  %v3730 = vld [vmem:[%s5 + $0x11] sm:$0x1]
  %v3731 = vld [vmem:[%s5 + $0x12] sm:$0x1]
  %v3732 = vld [vmem:[%s5 + $0x13] sm:$0x1]
  %v3733 = vld [vmem:[%s5 + $0x14] sm:$0x1]
  %v3734 = vld [vmem:[%s5 + $0x15] sm:$0x1]
  %v3735 = vld [vmem:[%s5 + $0x16] sm:$0x1]
  %v3736 = vld [vmem:[%s5 + $0x17] sm:$0x1]
  %v3737 = vld [vmem:[%s4] sm:$0xff]
  %v3738 = vld [vmem:[%s4 + $0x8] sm:$0xff]
  %v3739 = vld [vmem:[%s4 + $0x10] sm:$0xff]
  %v3740 = vld [vmem:[%s4 + $0x18] sm:$0xff]
  %v3741 = vld [vmem:[%s4 + $0x20] sm:$0xff]
  %v3742 = vld [vmem:[%s4 + $0x28] sm:$0xff]
  %v3743 = vld [vmem:[%s4 + $0x30] sm:$0xff]
  %v3744 = vld [vmem:[%s4 + $0x38] sm:$0xff]
  %v3745 = vld [vmem:[%s4 + $0x40] sm:$0xff]
  %v3746 = vld [vmem:[%s4 + $0x48] sm:$0xff]
  %v3747 = vld [vmem:[%s4 + $0x50] sm:$0xff]
  %v3748 = vld [vmem:[%s4 + $0x58] sm:$0xff]
  %v3749 = vld [vmem:[%s4 + $0x60] sm:$0xff]
  %v3750 = vld [vmem:[%s4 + $0x68] sm:$0xff]
  %v3751 = vld [vmem:[%s4 + $0x70] sm:$0xff]
  %v3752 = vld [vmem:[%s4 + $0x78] sm:$0xff]
  %v3753 = vld [vmem:[%s4 + $0x80] sm:$0xff]
  %v3754 = vld [vmem:[%s4 + $0x88] sm:$0xff]
  %v3755 = vld [vmem:[%s4 + $0x90] sm:$0xff]
  %v3756 = vld [vmem:[%s4 + $0x98] sm:$0xff]
  %v3757 = vld [vmem:[%s4 + $0xa0] sm:$0xff]
  %v3758 = vld [vmem:[%s4 + $0xa8] sm:$0xff]
  %v3759 = vld [vmem:[%s4 + $0xb0] sm:$0xff]
  %v3760 = vld [vmem:[%s4 + $0xb8] sm:$0xff]
  %v3761 = vld [vmem:[%s4 + $0xc0] sm:$0xff]
  %v3762 = vld [vmem:[%s4 + $0xc8] sm:$0xff]
  %v3763 = vld [vmem:[%s4 + $0xd0] sm:$0xff]
  %v3764 = vld [vmem:[%s4 + $0xd8] sm:$0xff]
  %v3765 = vadd.f32 %v3718, %v3720
  %v3766 = vadd.f32 %v3719, %v3720
  %v3767 = vsel %vm60, %v3765, 0.0
  %3768 = vadd.xlane.f32.xlu0 %v3767
  %v3769 = vpop.xlane.xlu0 %3768
  %v3770 = vsel %vm60, %v3766, 0.0
  %3771 = vadd.xlane.f32.xlu0 %v3770
  %v3772 = vpop.xlane.xlu0 %3771
  %v3773 = vmul.f32 %v3769, %v67
  %v3774 = vmul.f32 %v3772, %v67
  %v3775 = vsub.f32 %v3765, %v3773
  %v3776 = vsub.f32 %v3766, %v3774
  %v3777 = vmul.f32 %v3775, %v3775
  %v3778 = vmul.f32 %v3776, %v3776
  %v3779 = vsel %vm60, %v3777, 0.0
  %3780 = vadd.xlane.f32.xlu0 %v3779
  %v3781 = vpop.xlane.xlu0 %3780
  %v3782 = vsel %vm60, %v3778, 0.0
  %3783 = vadd.xlane.f32.xlu0 %v3782
  %v3784 = vpop.xlane.xlu0 %3783
  %v3785 = vmul.f32 %v3781, %v67
  %v3786 = vmul.f32 %v3784, %v67
  %v3787 = vadd.f32 %v3785, 1e-05
  %v3788 = vadd.f32 %v3786, 1e-05
  %v3789 = vrsqrt.pop %v3787
  %v3790 = vrsqrt.pop %v3788
  %v3791 = vmul.f32 %v3775, %v3789
  %v3792 = vmul.f32 %v3776, %v3790
  %v3793 = vlaneseq
  %v3794 = vshrl.u32 %v3793, 7
  %v3795 = vsub.s32 0, %v3794
  %v3796 = vrot.slane %v3721, %v3795
  %v3797 = vmul.f32 %v3791, %v3796
  %v3798 = vmul.f32 %v3792, %v3796
  %v3799 = vlaneseq
  %v3800 = vshrl.u32 %v3799, 7
  %v3801 = vsub.s32 0, %v3800
  %v3802 = vrot.slane %v3722, %v3801
  %v3803 = vadd.f32 %v3797, %v3802
  %v3804 = vadd.f32 %v3798, %v3802
  %v3806 = vsel %vm60, %v3803, 0
  %v3809 = vsel %vm60, %v3804, 0
  %3811 = vmatprep.subr.mxu0 0.0
  %3812 = vmatpush1.msra.mxu0 %v3737
  %3813 = vmatprep.subr.mxu0 0.0
  %3814 = vmatpush1.msra.mxu0 %v3738
  %3815 = vmatprep.subr.mxu0 0.0
  %3816 = vmatpush1.msra.mxu0 %v3739
  %3817 = vmatprep.subr.mxu0 0.0
  %3818 = vmatpush1.msra.mxu0 %v3740
  %3819 = vmatprep.subr.mxu0 0.0
  %3820 = vmatpush1.msra.mxu0 0.0
  %3821 = vmatprep.subr.mxu0 0.0
  %3822 = vmatpush1.msra.mxu0 0.0
  %3823 = vmatprep.subr.mxu0 0.0
  %3824 = vmatpush1.msra.mxu0 0.0
  %3825 = vmatprep.subr.mxu0 0.0
  %3826 = vmatpush1.msra.mxu0 0.0
  %3827 = vmatprep.subr.mxu0 0.0
  %3828 = vmatpush1.msra.mxu0 0.0
  %3829 = vmatprep.subr.mxu0 0.0
  %3830 = vmatpush1.msra.mxu0 0.0
  %3831 = vmatprep.subr.mxu0 0.0
  %3832 = vmatpush1.msra.mxu0 0.0
  %3833 = vmatprep.subr.mxu0 0.0
  %3834 = vmatpush1.msra.mxu0 0.0
  %3835 = vmatprep.subr.mxu0 0.0
  %3836 = vmatpush1.msra.mxu0 0.0
  %3837 = vmatprep.subr.mxu0 0.0
  %3838 = vmatpush1.msra.mxu0 0.0
  %3839 = vmatprep.subr.mxu0 0.0
  %3840 = vmatpush1.msra.mxu0 0.0
  %3841 = vmatprep.subr.mxu0 0.0
  %3842 = vmatpush1.msra.mxu0 0.0
  %3843 = vmatprep.subr.mxu0 0.0
  %3844 = vmatpush1.msra.mxu0 0.0
  %3845 = vmatprep.subr.mxu0 0.0
  %3846 = vmatpush1.msra.mxu0 0.0
  %3847 = vmatprep.subr.mxu0 0.0
  %3848 = vmatpush1.msra.mxu0 0.0
  %3849 = vmatprep.subr.mxu0 0.0
  %3850 = vmatpush1.msra.mxu0 0.0
  %3851 = vmatprep.subr.mxu0 0.0
  %3852 = vmatpush1.msra.mxu0 0.0
  %3853 = vmatprep.subr.mxu0 0.0
  %3854 = vmatpush1.msra.mxu0 0.0
  %3855 = vmatprep.subr.mxu0 0.0
  %3856 = vmatpush1.msra.mxu0 0.0
  %3857 = vmatprep.subr.mxu0 0.0
  %3858 = vmatpush1.msra.mxu0 0.0
  %3859 = vmatprep.subr.mxu0 0.0
  %3860 = vmatpush1.msra.mxu0 0.0
  %3861 = vmatprep.subr.mxu0 0.0
  %3862 = vmatpush1.msra.mxu0 0.0
  %3863 = vmatprep.subr.mxu0 0.0
  %3864 = vmatpush1.msra.mxu0 0.0
  %3865 = vmatprep.subr.mxu0 0.0
  %3866 = vmatpush1.msra.mxu0 0.0
  %3867 = vmatprep.subr.mxu0 0.0
  %3868 = vmatpush1.msra.mxu0 0.0
  %3869 = vmatprep.subr.mxu0 0.0
  %3870 = vmatpush1.msra.mxu0 0.0
  %3871 = vmatprep.subr.mxu0 0.0
  %3872 = vmatpush1.msra.mxu0 0.0
  %3873 = vmatprep.subr.mxu0 0.0
  %3874 = vmatpush1.msra.mxu0 0.0
  %3875 = vmatprep.mubr.f32.mxu0 0.0
  %3876 = vmatmul.mubr.f32.gmra.mrb[0].mxu0 %v3806
  %v3877 = vpop.f32.mrb[0].mxu0
  %v3878 = vadd.f32 0.0, %v3877
  %v3879 = vpop.f32.mrb[0].mxu0
  %3880 = vmatprep.mubr.f32.mxu0 0.0
  %3881 = vmatmul.mubr.f32.gmra.mrb[0].mxu0 %v3809
  %v3882 = vpop.f32.mrb[0].mxu0
  %v3883 = vadd.f32 0.0, %v3882
  %v3884 = vpop.f32.mrb[0].mxu0
  %3885 = vdwg.mxu0
  %v3886 = vlaneseq
  %v3887 = vshrl.u32 %v3886, 7
  %v3888 = vsub.s32 0, %v3887
  %v3889 = vrot.slane %v3727, %v3888
  %v3890 = vadd.f32 %v3878, %v3889
  %v3891 = vadd.f32 %v3883, %v3889
  %v3892 = vlaneseq
  %v3893 = vshrl.u32 %v3892, 7
  %v3894 = vsub.s32 0, %v3893
  %v3895 = vrot.slane %v3728, %v3894
  %3897 = vrot.lane.b32.xlu0 %v3895, 32
  %v3898 = vpop.permute.xlu0 %3897
  %v3900 = vadd.f32 %v3878, %v3898
  %v3901 = vadd.f32 %v3883, %v3898
  %v3902 = vlaneseq
  %v3903 = vshrl.u32 %v3902, 7
  %v3904 = vsub.s32 0, %v3903
  %v3905 = vrot.slane %v3729, %v3904
  %3907 = vrot.lane.b32.xlu0 %v3905, 64
  %v3908 = vpop.permute.xlu0 %3907
  %v3910 = vadd.f32 %v3878, %v3908
  %v3911 = vadd.f32 %v3883, %v3908
  %3913 = vrot.lane.b32.xlu0 %v3900, 96
  %v3914 = vpop.permute.xlu0 %3913
  %v3916 = vsel %vm210, %v3890, 0
  %v3918 = vsel %vm210, %v3914, 0
  %3920 = vmatprep.subr.mxu0 0.0
  %3921 = vmatpush1.xpose.msra.mxu0 %v3918
  %3922 = vmatprep.subr.mxu0 0.0
  %3923 = vmatpush1.xpose.msra.mxu0 0.0
  %3924 = vmatprep.subr.mxu0 0.0
  %3925 = vmatpush1.xpose.msra.mxu0 0.0
  %3926 = vmatprep.subr.mxu0 0.0
  %3927 = vmatpush1.xpose.msra.mxu0 0.0
  %3928 = vmatprep.subr.mxu0 0.0
  %3929 = vmatpush1.xpose.msra.mxu0 0.0
  %3930 = vmatprep.subr.mxu0 0.0
  %3931 = vmatpush1.xpose.msra.mxu0 0.0
  %3932 = vmatprep.subr.mxu0 0.0
  %3933 = vmatpush1.xpose.msra.mxu0 0.0
  %3934 = vmatprep.subr.mxu0 0.0
  %3935 = vmatpush1.xpose.msra.mxu0 0.0
  %3936 = vmatprep.subr.mxu0 0.0
  %3937 = vmatpush1.xpose.msra.mxu0 0.0
  %3938 = vmatprep.subr.mxu0 0.0
  %3939 = vmatpush1.xpose.msra.mxu0 0.0
  %3940 = vmatprep.subr.mxu0 0.0
  %3941 = vmatpush1.xpose.msra.mxu0 0.0
  %3942 = vmatprep.subr.mxu0 0.0
  %3943 = vmatpush1.xpose.msra.mxu0 0.0
  %3944 = vmatprep.subr.mxu0 0.0
  %3945 = vmatpush1.xpose.msra.mxu0 0.0
  %3946 = vmatprep.subr.mxu0 0.0
  %3947 = vmatpush1.xpose.msra.mxu0 0.0
  %3948 = vmatprep.subr.mxu0 0.0
  %3949 = vmatpush1.xpose.msra.mxu0 0.0
  %3950 = vmatprep.subr.mxu0 0.0
  %3951 = vmatpush1.xpose.msra.mxu0 0.0
  %3952 = vmatprep.subr.mxu0 0.0
  %3953 = vmatpush1.xpose.msra.mxu0 0.0
  %3954 = vmatprep.subr.mxu0 0.0
  %3955 = vmatpush1.xpose.msra.mxu0 0.0
  %3956 = vmatprep.subr.mxu0 0.0
  %3957 = vmatpush1.xpose.msra.mxu0 0.0
  %3958 = vmatprep.subr.mxu0 0.0
  %3959 = vmatpush1.xpose.msra.mxu0 0.0
  %3960 = vmatprep.subr.mxu0 0.0
  %3961 = vmatpush1.xpose.msra.mxu0 0.0
  %3962 = vmatprep.subr.mxu0 0.0
  %3963 = vmatpush1.xpose.msra.mxu0 0.0
  %3964 = vmatprep.subr.mxu0 0.0
  %3965 = vmatpush1.xpose.msra.mxu0 0.0
  %3966 = vmatprep.subr.mxu0 0.0
  %3967 = vmatpush1.xpose.msra.mxu0 0.0
  %3968 = vmatprep.subr.mxu0 0.0
  %3969 = vmatpush1.xpose.msra.mxu0 0.0
  %3970 = vmatprep.subr.mxu0 0.0
  %3971 = vmatpush1.xpose.msra.mxu0 0.0
  %3972 = vmatprep.subr.mxu0 0.0
  %3973 = vmatpush1.xpose.msra.mxu0 0.0
  %3974 = vmatprep.subr.mxu0 0.0
  %3975 = vmatpush1.xpose.msra.mxu0 0.0
  %3976 = vmatprep.subr.mxu0 0.0
  %3977 = vmatpush1.xpose.msra.mxu0 0.0
  %3978 = vmatprep.subr.mxu0 0.0
  %3979 = vmatpush1.xpose.msra.mxu0 0.0
  %3980 = vmatprep.subr.mxu0 0.0
  %3981 = vmatpush1.xpose.msra.mxu0 0.0
  %3982 = vmatprep.subr.mxu0 0.0
  %3983 = vmatpush1.xpose.msra.mxu0 0.0
  %3984 = vmatprep.mubr.f32.mxu0 0.0
  %3985 = vmatmul.mubr.f32.gmra.mrb[0].mxu0 %v3916
  %v3986 = vpop.f32.mrb[0].mxu0
  %v3987 = vadd.f32 0.0, %v3986
  %v3988 = vpop.f32.mrb[0].mxu0
  %3989 = vdwg.mxu0
  %3991 = vrot.lane.b32.xlu0 %v3901, 96
  %v3992 = vpop.permute.xlu0 %3991
  %v3994 = vsel %vm210, %v3891, 0
  %v3996 = vsel %vm210, %v3992, 0
  %3998 = vmatprep.subr.mxu0 0.0
  %3999 = vmatpush1.xpose.msra.mxu0 %v3996
  %4000 = vmatprep.subr.mxu0 0.0
  %4001 = vmatpush1.xpose.msra.mxu0 0.0
  %4002 = vmatprep.subr.mxu0 0.0
  %4003 = vmatpush1.xpose.msra.mxu0 0.0
  %4004 = vmatprep.subr.mxu0 0.0
  %4005 = vmatpush1.xpose.msra.mxu0 0.0
  %4006 = vmatprep.subr.mxu0 0.0
  %4007 = vmatpush1.xpose.msra.mxu0 0.0
  %4008 = vmatprep.subr.mxu0 0.0
  %4009 = vmatpush1.xpose.msra.mxu0 0.0
  %4010 = vmatprep.subr.mxu0 0.0
  %4011 = vmatpush1.xpose.msra.mxu0 0.0
  %4012 = vmatprep.subr.mxu0 0.0
  %4013 = vmatpush1.xpose.msra.mxu0 0.0
  %4014 = vmatprep.subr.mxu0 0.0
  %4015 = vmatpush1.xpose.msra.mxu0 0.0
  %4016 = vmatprep.subr.mxu0 0.0
  %4017 = vmatpush1.xpose.msra.mxu0 0.0
  %4018 = vmatprep.subr.mxu0 0.0
  %4019 = vmatpush1.xpose.msra.mxu0 0.0
  %4020 = vmatprep.subr.mxu0 0.0
  %4021 = vmatpush1.xpose.msra.mxu0 0.0
  %4022 = vmatprep.subr.mxu0 0.0
  %4023 = vmatpush1.xpose.msra.mxu0 0.0
  %4024 = vmatprep.subr.mxu0 0.0
  %4025 = vmatpush1.xpose.msra.mxu0 0.0
  %4026 = vmatprep.subr.mxu0 0.0
  %4027 = vmatpush1.xpose.msra.mxu0 0.0
  %4028 = vmatprep.subr.mxu0 0.0
  %4029 = vmatpush1.xpose.msra.mxu0 0.0
  %4030 = vmatprep.subr.mxu0 0.0
  %4031 = vmatpush1.xpose.msra.mxu0 0.0
  %4032 = vmatprep.subr.mxu0 0.0
  %4033 = vmatpush1.xpose.msra.mxu0 0.0
  %4034 = vmatprep.subr.mxu0 0.0
  %4035 = vmatpush1.xpose.msra.mxu0 0.0
  %4036 = vmatprep.subr.mxu0 0.0
  %4037 = vmatpush1.xpose.msra.mxu0 0.0
  %4038 = vmatprep.subr.mxu0 0.0
  %4039 = vmatpush1.xpose.msra.mxu0 0.0
  %4040 = vmatprep.subr.mxu0 0.0
  %4041 = vmatpush1.xpose.msra.mxu0 0.0
  %4042 = vmatprep.subr.mxu0 0.0
  %4043 = vmatpush1.xpose.msra.mxu0 0.0
  %4044 = vmatprep.subr.mxu0 0.0
  %4045 = vmatpush1.xpose.msra.mxu0 0.0
  %4046 = vmatprep.subr.mxu0 0.0
  %4047 = vmatpush1.xpose.msra.mxu0 0.0
  %4048 = vmatprep.subr.mxu0 0.0
  %4049 = vmatpush1.xpose.msra.mxu0 0.0
  %4050 = vmatprep.subr.mxu0 0.0
  %4051 = vmatpush1.xpose.msra.mxu0 0.0
  %4052 = vmatprep.subr.mxu0 0.0
  %4053 = vmatpush1.xpose.msra.mxu0 0.0
  %4054 = vmatprep.subr.mxu0 0.0
  %4055 = vmatpush1.xpose.msra.mxu0 0.0
  %4056 = vmatprep.subr.mxu0 0.0
  %4057 = vmatpush1.xpose.msra.mxu0 0.0
  %4058 = vmatprep.subr.mxu0 0.0
  %4059 = vmatpush1.xpose.msra.mxu0 0.0
  %4060 = vmatprep.subr.mxu0 0.0
  %4061 = vmatpush1.xpose.msra.mxu0 0.0
  %4062 = vmatprep.mubr.f32.mxu0 0.0
  %4063 = vmatmul.mubr.f32.gmra.mrb[0].mxu0 %v3994
  %v4064 = vpop.f32.mrb[0].mxu0
  %v4065 = vadd.f32 0.0, %v4064
  %v4066 = vpop.f32.mrb[0].mxu0
  %4067 = vdwg.mxu0
  %v4068 = vmul.f32 %v3987, 0.35355338
  %v4069 = vmul.f32 %v4065, 0.35355338
  %v4070 = vadd.f32 %v4068, %v28
  %v4071 = vadd.f32 %v4069, %v28
  %v4072 = vsel %vm210, %v4070, -inf
  %4073 = vmax.xlane.f32.xlu0 %v4072
  %v4074 = vpop.xlane.xlu0 %4073
  %v4075 = vsel %vm210, %v4071, -inf
  %4076 = vmax.xlane.f32.xlu0 %v4075
  %v4077 = vpop.xlane.xlu0 %4076
  %v4078 = vsub.f32 %v4070, %v4074
  %v4079 = vsub.f32 %v4071, %v4077
  %v4080 = vmul.f32 %v4078, 1.442695
  %v4081 = vpow.pop %v4080
  %v4082 = vmul.f32 %v4079, 1.442695
  %v4083 = vpow.pop %v4082
  %v4084 = vsel %vm210, %v4081, 0.0
  %4085 = vadd.xlane.f32.xlu0 %v4084
  %v4086 = vpop.xlane.xlu0 %4085
  %v4087 = vsel %vm210, %v4083, 0.0
  %4088 = vadd.xlane.f32.xlu0 %v4087
  %v4089 = vpop.xlane.xlu0 %4088
  %v4090 = vrcp.pop %v4086
  %v4091 = vrcp.pop %v4089
  %v4092 = vmul.f32 %v4081, %v4090
  %v4093 = vmul.f32 %v4083, %v4091
  %4095 = vrot.lane.b32.xlu0 %v3910, 64
  %v4096 = vpop.permute.xlu0 %4095
  %v4099 = vsel %vm210, %v4092, 0
  %4101 = vmatprep.subr.mxu0 0.0
  %4102 = vmatpush1.msra.mxu0 %v4096
  %4103 = vmatprep.subr.mxu0 0.0
  %4104 = vmatpush1.msra.mxu0 0.0
  %4105 = vmatprep.subr.mxu0 0.0
  %4106 = vmatpush1.msra.mxu0 0.0
  %4107 = vmatprep.subr.mxu0 0.0
  %4108 = vmatpush1.msra.mxu0 0.0
  %4109 = vmatprep.subr.mxu0 0.0
  %4110 = vmatpush1.msra.mxu0 0.0
  %4111 = vmatprep.subr.mxu0 0.0
  %4112 = vmatpush1.msra.mxu0 0.0
  %4113 = vmatprep.subr.mxu0 0.0
  %4114 = vmatpush1.msra.mxu0 0.0
  %4115 = vmatprep.subr.mxu0 0.0
  %4116 = vmatpush1.msra.mxu0 0.0
  %4117 = vmatprep.subr.mxu0 0.0
  %4118 = vmatpush1.msra.mxu0 0.0
  %4119 = vmatprep.subr.mxu0 0.0
  %4120 = vmatpush1.msra.mxu0 0.0
  %4121 = vmatprep.subr.mxu0 0.0
  %4122 = vmatpush1.msra.mxu0 0.0
  %4123 = vmatprep.subr.mxu0 0.0
  %4124 = vmatpush1.msra.mxu0 0.0
  %4125 = vmatprep.subr.mxu0 0.0
  %4126 = vmatpush1.msra.mxu0 0.0
  %4127 = vmatprep.subr.mxu0 0.0
  %4128 = vmatpush1.msra.mxu0 0.0
  %4129 = vmatprep.subr.mxu0 0.0
  %4130 = vmatpush1.msra.mxu0 0.0
  %4131 = vmatprep.subr.mxu0 0.0
  %4132 = vmatpush1.msra.mxu0 0.0
  %4133 = vmatprep.subr.mxu0 0.0
  %4134 = vmatpush1.msra.mxu0 0.0
  %4135 = vmatprep.subr.mxu0 0.0
  %4136 = vmatpush1.msra.mxu0 0.0
  %4137 = vmatprep.subr.mxu0 0.0
  %4138 = vmatpush1.msra.mxu0 0.0
  %4139 = vmatprep.subr.mxu0 0.0
  %4140 = vmatpush1.msra.mxu0 0.0
  %4141 = vmatprep.subr.mxu0 0.0
  %4142 = vmatpush1.msra.mxu0 0.0
  %4143 = vmatprep.subr.mxu0 0.0
  %4144 = vmatpush1.msra.mxu0 0.0
  %4145 = vmatprep.subr.mxu0 0.0
  %4146 = vmatpush1.msra.mxu0 0.0
  %4147 = vmatprep.subr.mxu0 0.0
  %4148 = vmatpush1.msra.mxu0 0.0
  %4149 = vmatprep.subr.mxu0 0.0
  %4150 = vmatpush1.msra.mxu0 0.0
  %4151 = vmatprep.subr.mxu0 0.0
  %4152 = vmatpush1.msra.mxu0 0.0
  %4153 = vmatprep.subr.mxu0 0.0
  %4154 = vmatpush1.msra.mxu0 0.0
  %4155 = vmatprep.subr.mxu0 0.0
  %4156 = vmatpush1.msra.mxu0 0.0
  %4157 = vmatprep.subr.mxu0 0.0
  %4158 = vmatpush1.msra.mxu0 0.0
  %4159 = vmatprep.subr.mxu0 0.0
  %4160 = vmatpush1.msra.mxu0 0.0
  %4161 = vmatprep.subr.mxu0 0.0
  %4162 = vmatpush1.msra.mxu0 0.0
  %4163 = vmatprep.subr.mxu0 0.0
  %4164 = vmatpush1.msra.mxu0 0.0
  %4165 = vmatprep.mubr.f32.mxu0 0.0
  %4166 = vmatmul.mubr.f32.gmra.mrb[0].mxu0 %v4099
  %v4167 = vpop.f32.mrb[0].mxu0
  %v4168 = vadd.f32 0.0, %v4167
  %v4169 = vpop.f32.mrb[0].mxu0
  %4170 = vdwg.mxu0
  %4172 = vrot.lane.b32.xlu0 %v3911, 64
  %v4173 = vpop.permute.xlu0 %4172
  %v4176 = vsel %vm210, %v4093, 0
  %4178 = vmatprep.subr.mxu0 0.0
  %4179 = vmatpush1.msra.mxu0 %v4173
  %4180 = vmatprep.subr.mxu0 0.0
  %4181 = vmatpush1.msra.mxu0 0.0
  %4182 = vmatprep.subr.mxu0 0.0
  %4183 = vmatpush1.msra.mxu0 0.0
  %4184 = vmatprep.subr.mxu0 0.0
  %4185 = vmatpush1.msra.mxu0 0.0
  %4186 = vmatprep.subr.mxu0 0.0
  %4187 = vmatpush1.msra.mxu0 0.0
  %4188 = vmatprep.subr.mxu0 0.0
  %4189 = vmatpush1.msra.mxu0 0.0
  %4190 = vmatprep.subr.mxu0 0.0
  %4191 = vmatpush1.msra.mxu0 0.0
  %4192 = vmatprep.subr.mxu0 0.0
  %4193 = vmatpush1.msra.mxu0 0.0
  %4194 = vmatprep.subr.mxu0 0.0
  %4195 = vmatpush1.msra.mxu0 0.0
  %4196 = vmatprep.subr.mxu0 0.0
  %4197 = vmatpush1.msra.mxu0 0.0
  %4198 = vmatprep.subr.mxu0 0.0
  %4199 = vmatpush1.msra.mxu0 0.0
  %4200 = vmatprep.subr.mxu0 0.0
  %4201 = vmatpush1.msra.mxu0 0.0
  %4202 = vmatprep.subr.mxu0 0.0
  %4203 = vmatpush1.msra.mxu0 0.0
  %4204 = vmatprep.subr.mxu0 0.0
  %4205 = vmatpush1.msra.mxu0 0.0
  %4206 = vmatprep.subr.mxu0 0.0
  %4207 = vmatpush1.msra.mxu0 0.0
  %4208 = vmatprep.subr.mxu0 0.0
  %4209 = vmatpush1.msra.mxu0 0.0
  %4210 = vmatprep.subr.mxu0 0.0
  %4211 = vmatpush1.msra.mxu0 0.0
  %4212 = vmatprep.subr.mxu0 0.0
  %4213 = vmatpush1.msra.mxu0 0.0
  %4214 = vmatprep.subr.mxu0 0.0
  %4215 = vmatpush1.msra.mxu0 0.0
  %4216 = vmatprep.subr.mxu0 0.0
  %4217 = vmatpush1.msra.mxu0 0.0
  %4218 = vmatprep.subr.mxu0 0.0
  %4219 = vmatpush1.msra.mxu0 0.0
  %4220 = vmatprep.subr.mxu0 0.0
  %4221 = vmatpush1.msra.mxu0 0.0
  %4222 = vmatprep.subr.mxu0 0.0
  %4223 = vmatpush1.msra.mxu0 0.0
  %4224 = vmatprep.subr.mxu0 0.0
  %4225 = vmatpush1.msra.mxu0 0.0
  %4226 = vmatprep.subr.mxu0 0.0
  %4227 = vmatpush1.msra.mxu0 0.0
  %4228 = vmatprep.subr.mxu0 0.0
  %4229 = vmatpush1.msra.mxu0 0.0
  %4230 = vmatprep.subr.mxu0 0.0
  %4231 = vmatpush1.msra.mxu0 0.0
  %4232 = vmatprep.subr.mxu0 0.0
  %4233 = vmatpush1.msra.mxu0 0.0
  %4234 = vmatprep.subr.mxu0 0.0
  %4235 = vmatpush1.msra.mxu0 0.0
  %4236 = vmatprep.subr.mxu0 0.0
  %4237 = vmatpush1.msra.mxu0 0.0
  %4238 = vmatprep.subr.mxu0 0.0
  %4239 = vmatpush1.msra.mxu0 0.0
  %4240 = vmatprep.subr.mxu0 0.0
  %4241 = vmatpush1.msra.mxu0 0.0
  %4242 = vmatprep.mubr.f32.mxu0 0.0
  %4243 = vmatmul.mubr.f32.gmra.mrb[0].mxu0 %v4176
  %v4244 = vpop.f32.mrb[0].mxu0
  %v4245 = vadd.f32 0.0, %v4244
  %v4246 = vpop.f32.mrb[0].mxu0
  %4247 = vdwg.mxu0
  %4248 = vrot.lane.b32.xlu0 %v3890, 120
  %v4249 = vpop.permute.xlu0 %4248
  %4250 = vrot.lane.b32.xlu0 %v3900, 88
  %v4251 = vpop.permute.xlu0 %4250
  %v4252 = vsel %vm210, %v4249, 0
  %v4254 = vsel %vm210, %v4251, 0
  %4256 = vmatprep.subr.mxu0 0.0
  %4257 = vmatpush1.xpose.msra.mxu0 %v4254
  %4258 = vmatprep.subr.mxu0 0.0
  %4259 = vmatpush1.xpose.msra.mxu0 0.0
  %4260 = vmatprep.subr.mxu0 0.0
  %4261 = vmatpush1.xpose.msra.mxu0 0.0
  %4262 = vmatprep.subr.mxu0 0.0
  %4263 = vmatpush1.xpose.msra.mxu0 0.0
  %4264 = vmatprep.subr.mxu0 0.0
  %4265 = vmatpush1.xpose.msra.mxu0 0.0
  %4266 = vmatprep.subr.mxu0 0.0
  %4267 = vmatpush1.xpose.msra.mxu0 0.0
  %4268 = vmatprep.subr.mxu0 0.0
  %4269 = vmatpush1.xpose.msra.mxu0 0.0
  %4270 = vmatprep.subr.mxu0 0.0
  %4271 = vmatpush1.xpose.msra.mxu0 0.0
  %4272 = vmatprep.subr.mxu0 0.0
  %4273 = vmatpush1.xpose.msra.mxu0 0.0
  %4274 = vmatprep.subr.mxu0 0.0
  %4275 = vmatpush1.xpose.msra.mxu0 0.0
  %4276 = vmatprep.subr.mxu0 0.0
  %4277 = vmatpush1.xpose.msra.mxu0 0.0
  %4278 = vmatprep.subr.mxu0 0.0
  %4279 = vmatpush1.xpose.msra.mxu0 0.0
  %4280 = vmatprep.subr.mxu0 0.0
  %4281 = vmatpush1.xpose.msra.mxu0 0.0
  %4282 = vmatprep.subr.mxu0 0.0
  %4283 = vmatpush1.xpose.msra.mxu0 0.0
  %4284 = vmatprep.subr.mxu0 0.0
  %4285 = vmatpush1.xpose.msra.mxu0 0.0
  %4286 = vmatprep.subr.mxu0 0.0
  %4287 = vmatpush1.xpose.msra.mxu0 0.0
  %4288 = vmatprep.subr.mxu0 0.0
  %4289 = vmatpush1.xpose.msra.mxu0 0.0
  %4290 = vmatprep.subr.mxu0 0.0
  %4291 = vmatpush1.xpose.msra.mxu0 0.0
  %4292 = vmatprep.subr.mxu0 0.0
  %4293 = vmatpush1.xpose.msra.mxu0 0.0
  %4294 = vmatprep.subr.mxu0 0.0
  %4295 = vmatpush1.xpose.msra.mxu0 0.0
  %4296 = vmatprep.subr.mxu0 0.0
  %4297 = vmatpush1.xpose.msra.mxu0 0.0
  %4298 = vmatprep.subr.mxu0 0.0
  %4299 = vmatpush1.xpose.msra.mxu0 0.0
  %4300 = vmatprep.subr.mxu0 0.0
  %4301 = vmatpush1.xpose.msra.mxu0 0.0
  %4302 = vmatprep.subr.mxu0 0.0
  %4303 = vmatpush1.xpose.msra.mxu0 0.0
  %4304 = vmatprep.subr.mxu0 0.0
  %4305 = vmatpush1.xpose.msra.mxu0 0.0
  %4306 = vmatprep.subr.mxu0 0.0
  %4307 = vmatpush1.xpose.msra.mxu0 0.0
  %4308 = vmatprep.subr.mxu0 0.0
  %4309 = vmatpush1.xpose.msra.mxu0 0.0
  %4310 = vmatprep.subr.mxu0 0.0
  %4311 = vmatpush1.xpose.msra.mxu0 0.0
  %4312 = vmatprep.subr.mxu0 0.0
  %4313 = vmatpush1.xpose.msra.mxu0 0.0
  %4314 = vmatprep.subr.mxu0 0.0
  %4315 = vmatpush1.xpose.msra.mxu0 0.0
  %4316 = vmatprep.subr.mxu0 0.0
  %4317 = vmatpush1.xpose.msra.mxu0 0.0
  %4318 = vmatprep.subr.mxu0 0.0
  %4319 = vmatpush1.xpose.msra.mxu0 0.0
  %4320 = vmatprep.mubr.f32.mxu0 0.0
  %4321 = vmatmul.mubr.f32.gmra.mrb[0].mxu0 %v4252
  %v4322 = vpop.f32.mrb[0].mxu0
  %v4323 = vadd.f32 0.0, %v4322
  %v4324 = vpop.f32.mrb[0].mxu0
  %4325 = vdwg.mxu0
  %4326 = vrot.lane.b32.xlu0 %v3891, 120
  %v4327 = vpop.permute.xlu0 %4326
  %4328 = vrot.lane.b32.xlu0 %v3901, 88
  %v4329 = vpop.permute.xlu0 %4328
  %v4330 = vsel %vm210, %v4327, 0
  %v4332 = vsel %vm210, %v4329, 0
  %4334 = vmatprep.subr.mxu0 0.0
  %4335 = vmatpush1.xpose.msra.mxu0 %v4332
  %4336 = vmatprep.subr.mxu0 0.0
  %4337 = vmatpush1.xpose.msra.mxu0 0.0
  %4338 = vmatprep.subr.mxu0 0.0
  %4339 = vmatpush1.xpose.msra.mxu0 0.0
  %4340 = vmatprep.subr.mxu0 0.0
  %4341 = vmatpush1.xpose.msra.mxu0 0.0
  %4342 = vmatprep.subr.mxu0 0.0
  %4343 = vmatpush1.xpose.msra.mxu0 0.0
  %4344 = vmatprep.subr.mxu0 0.0
  %4345 = vmatpush1.xpose.msra.mxu0 0.0
  %4346 = vmatprep.subr.mxu0 0.0
  %4347 = vmatpush1.xpose.msra.mxu0 0.0
  %4348 = vmatprep.subr.mxu0 0.0
  %4349 = vmatpush1.xpose.msra.mxu0 0.0
  %4350 = vmatprep.subr.mxu0 0.0
  %4351 = vmatpush1.xpose.msra.mxu0 0.0
  %4352 = vmatprep.subr.mxu0 0.0
  %4353 = vmatpush1.xpose.msra.mxu0 0.0
  %4354 = vmatprep.subr.mxu0 0.0
  %4355 = vmatpush1.xpose.msra.mxu0 0.0
  %4356 = vmatprep.subr.mxu0 0.0
  %4357 = vmatpush1.xpose.msra.mxu0 0.0
  %4358 = vmatprep.subr.mxu0 0.0
  %4359 = vmatpush1.xpose.msra.mxu0 0.0
  %4360 = vmatprep.subr.mxu0 0.0
  %4361 = vmatpush1.xpose.msra.mxu0 0.0
  %4362 = vmatprep.subr.mxu0 0.0
  %4363 = vmatpush1.xpose.msra.mxu0 0.0
  %4364 = vmatprep.subr.mxu0 0.0
  %4365 = vmatpush1.xpose.msra.mxu0 0.0
  %4366 = vmatprep.subr.mxu0 0.0
  %4367 = vmatpush1.xpose.msra.mxu0 0.0
  %4368 = vmatprep.subr.mxu0 0.0
  %4369 = vmatpush1.xpose.msra.mxu0 0.0
  %4370 = vmatprep.subr.mxu0 0.0
  %4371 = vmatpush1.xpose.msra.mxu0 0.0
  %4372 = vmatprep.subr.mxu0 0.0
  %4373 = vmatpush1.xpose.msra.mxu0 0.0
  %4374 = vmatprep.subr.mxu0 0.0
  %4375 = vmatpush1.xpose.msra.mxu0 0.0
  %4376 = vmatprep.subr.mxu0 0.0
  %4377 = vmatpush1.xpose.msra.mxu0 0.0
  %4378 = vmatprep.subr.mxu0 0.0
  %4379 = vmatpush1.xpose.msra.mxu0 0.0
  %4380 = vmatprep.subr.mxu0 0.0
  %4381 = vmatpush1.xpose.msra.mxu0 0.0
  %4382 = vmatprep.subr.mxu0 0.0
  %4383 = vmatpush1.xpose.msra.mxu0 0.0
  %4384 = vmatprep.subr.mxu0 0.0
  %4385 = vmatpush1.xpose.msra.mxu0 0.0
  %4386 = vmatprep.subr.mxu0 0.0
  %4387 = vmatpush1.xpose.msra.mxu0 0.0
  %4388 = vmatprep.subr.mxu0 0.0
  %4389 = vmatpush1.xpose.msra.mxu0 0.0
  %4390 = vmatprep.subr.mxu0 0.0
  %4391 = vmatpush1.xpose.msra.mxu0 0.0
  %4392 = vmatprep.subr.mxu0 0.0
  %4393 = vmatpush1.xpose.msra.mxu0 0.0
  %4394 = vmatprep.subr.mxu0 0.0
  %4395 = vmatpush1.xpose.msra.mxu0 0.0
  %4396 = vmatprep.subr.mxu0 0.0
  %4397 = vmatpush1.xpose.msra.mxu0 0.0
  %4398 = vmatprep.mubr.f32.mxu0 0.0
  %4399 = vmatmul.mubr.f32.gmra.mrb[0].mxu0 %v4330
  %v4400 = vpop.f32.mrb[0].mxu0
  %v4401 = vadd.f32 0.0, %v4400
  %v4402 = vpop.f32.mrb[0].mxu0
  %4403 = vdwg.mxu0
  %v4404 = vmul.f32 %v4323, 0.35355338
  %v4405 = vmul.f32 %v4401, 0.35355338
  %v4406 = vadd.f32 %v4404, %v28
  %v4407 = vadd.f32 %v4405, %v28
  %v4408 = vsel %vm210, %v4406, -inf
  %4409 = vmax.xlane.f32.xlu0 %v4408
  %v4410 = vpop.xlane.xlu0 %4409
  %v4411 = vsel %vm210, %v4407, -inf
  %4412 = vmax.xlane.f32.xlu0 %v4411
  %v4413 = vpop.xlane.xlu0 %4412
  %v4414 = vsub.f32 %v4406, %v4410
  %v4415 = vsub.f32 %v4407, %v4413
  %v4416 = vmul.f32 %v4414, 1.442695
  %v4417 = vpow.pop %v4416
  %v4418 = vmul.f32 %v4415, 1.442695
  %v4419 = vpow.pop %v4418
  %v4420 = vsel %vm210, %v4417, 0.0
  %4421 = vadd.xlane.f32.xlu0 %v4420
  %v4422 = vpop.xlane.xlu0 %4421
  %v4423 = vsel %vm210, %v4419, 0.0
  %4424 = vadd.xlane.f32.xlu0 %v4423
  %v4425 = vpop.xlane.xlu0 %4424
  %v4426 = vrcp.pop %v4422
  %v4427 = vrcp.pop %v4425
  %v4428 = vmul.f32 %v4417, %v4426
  %v4429 = vmul.f32 %v4419, %v4427
  %4430 = vrot.lane.b32.xlu0 %v3910, 56
  %v4431 = vpop.permute.xlu0 %4430
  %v4434 = vsel %vm210, %v4428, 0
  %4436 = vmatprep.subr.mxu0 0.0
  %4437 = vmatpush1.msra.mxu0 %v4431
  %4438 = vmatprep.subr.mxu0 0.0
  %4439 = vmatpush1.msra.mxu0 0.0
  %4440 = vmatprep.subr.mxu0 0.0
  %4441 = vmatpush1.msra.mxu0 0.0
  %4442 = vmatprep.subr.mxu0 0.0
  %4443 = vmatpush1.msra.mxu0 0.0
  %4444 = vmatprep.subr.mxu0 0.0
  %4445 = vmatpush1.msra.mxu0 0.0
  %4446 = vmatprep.subr.mxu0 0.0
  %4447 = vmatpush1.msra.mxu0 0.0
  %4448 = vmatprep.subr.mxu0 0.0
  %4449 = vmatpush1.msra.mxu0 0.0
  %4450 = vmatprep.subr.mxu0 0.0
  %4451 = vmatpush1.msra.mxu0 0.0
  %4452 = vmatprep.subr.mxu0 0.0
  %4453 = vmatpush1.msra.mxu0 0.0
  %4454 = vmatprep.subr.mxu0 0.0
  %4455 = vmatpush1.msra.mxu0 0.0
  %4456 = vmatprep.subr.mxu0 0.0
  %4457 = vmatpush1.msra.mxu0 0.0
  %4458 = vmatprep.subr.mxu0 0.0
  %4459 = vmatpush1.msra.mxu0 0.0
  %4460 = vmatprep.subr.mxu0 0.0
  %4461 = vmatpush1.msra.mxu0 0.0
  %4462 = vmatprep.subr.mxu0 0.0
  %4463 = vmatpush1.msra.mxu0 0.0
  %4464 = vmatprep.subr.mxu0 0.0
  %4465 = vmatpush1.msra.mxu0 0.0
  %4466 = vmatprep.subr.mxu0 0.0
  %4467 = vmatpush1.msra.mxu0 0.0
  %4468 = vmatprep.subr.mxu0 0.0
  %4469 = vmatpush1.msra.mxu0 0.0
  %4470 = vmatprep.subr.mxu0 0.0
  %4471 = vmatpush1.msra.mxu0 0.0
  %4472 = vmatprep.subr.mxu0 0.0
  %4473 = vmatpush1.msra.mxu0 0.0
  %4474 = vmatprep.subr.mxu0 0.0
  %4475 = vmatpush1.msra.mxu0 0.0
  %4476 = vmatprep.subr.mxu0 0.0
  %4477 = vmatpush1.msra.mxu0 0.0
  %4478 = vmatprep.subr.mxu0 0.0
  %4479 = vmatpush1.msra.mxu0 0.0
  %4480 = vmatprep.subr.mxu0 0.0
  %4481 = vmatpush1.msra.mxu0 0.0
  %4482 = vmatprep.subr.mxu0 0.0
  %4483 = vmatpush1.msra.mxu0 0.0
  %4484 = vmatprep.subr.mxu0 0.0
  %4485 = vmatpush1.msra.mxu0 0.0
  %4486 = vmatprep.subr.mxu0 0.0
  %4487 = vmatpush1.msra.mxu0 0.0
  %4488 = vmatprep.subr.mxu0 0.0
  %4489 = vmatpush1.msra.mxu0 0.0
  %4490 = vmatprep.subr.mxu0 0.0
  %4491 = vmatpush1.msra.mxu0 0.0
  %4492 = vmatprep.subr.mxu0 0.0
  %4493 = vmatpush1.msra.mxu0 0.0
  %4494 = vmatprep.subr.mxu0 0.0
  %4495 = vmatpush1.msra.mxu0 0.0
  %4496 = vmatprep.subr.mxu0 0.0
  %4497 = vmatpush1.msra.mxu0 0.0
  %4498 = vmatprep.subr.mxu0 0.0
  %4499 = vmatpush1.msra.mxu0 0.0
  %4500 = vmatprep.mubr.f32.mxu0 0.0
  %4501 = vmatmul.mubr.f32.gmra.mrb[0].mxu0 %v4434
  %v4502 = vpop.f32.mrb[0].mxu0
  %v4503 = vadd.f32 0.0, %v4502
  %v4504 = vpop.f32.mrb[0].mxu0
  %4505 = vdwg.mxu0
  %4506 = vrot.lane.b32.xlu0 %v3911, 56
  %v4507 = vpop.permute.xlu0 %4506
  %v4510 = vsel %vm210, %v4429, 0
  %4512 = vmatprep.subr.mxu0 0.0
  %4513 = vmatpush1.msra.mxu0 %v4507
  %4514 = vmatprep.subr.mxu0 0.0
  %4515 = vmatpush1.msra.mxu0 0.0
  %4516 = vmatprep.subr.mxu0 0.0
  %4517 = vmatpush1.msra.mxu0 0.0
  %4518 = vmatprep.subr.mxu0 0.0
  %4519 = vmatpush1.msra.mxu0 0.0
  %4520 = vmatprep.subr.mxu0 0.0
  %4521 = vmatpush1.msra.mxu0 0.0
  %4522 = vmatprep.subr.mxu0 0.0
  %4523 = vmatpush1.msra.mxu0 0.0
  %4524 = vmatprep.subr.mxu0 0.0
  %4525 = vmatpush1.msra.mxu0 0.0
  %4526 = vmatprep.subr.mxu0 0.0
  %4527 = vmatpush1.msra.mxu0 0.0
  %4528 = vmatprep.subr.mxu0 0.0
  %4529 = vmatpush1.msra.mxu0 0.0
  %4530 = vmatprep.subr.mxu0 0.0
  %4531 = vmatpush1.msra.mxu0 0.0
  %4532 = vmatprep.subr.mxu0 0.0
  %4533 = vmatpush1.msra.mxu0 0.0
  %4534 = vmatprep.subr.mxu0 0.0
  %4535 = vmatpush1.msra.mxu0 0.0
  %4536 = vmatprep.subr.mxu0 0.0
  %4537 = vmatpush1.msra.mxu0 0.0
  %4538 = vmatprep.subr.mxu0 0.0
  %4539 = vmatpush1.msra.mxu0 0.0
  %4540 = vmatprep.subr.mxu0 0.0
  %4541 = vmatpush1.msra.mxu0 0.0
  %4542 = vmatprep.subr.mxu0 0.0
  %4543 = vmatpush1.msra.mxu0 0.0
  %4544 = vmatprep.subr.mxu0 0.0
  %4545 = vmatpush1.msra.mxu0 0.0
  %4546 = vmatprep.subr.mxu0 0.0
  %4547 = vmatpush1.msra.mxu0 0.0
  %4548 = vmatprep.subr.mxu0 0.0
  %4549 = vmatpush1.msra.mxu0 0.0
  %4550 = vmatprep.subr.mxu0 0.0
  %4551 = vmatpush1.msra.mxu0 0.0
  %4552 = vmatprep.subr.mxu0 0.0
  %4553 = vmatpush1.msra.mxu0 0.0
  %4554 = vmatprep.subr.mxu0 0.0
  %4555 = vmatpush1.msra.mxu0 0.0
  %4556 = vmatprep.subr.mxu0 0.0
  %4557 = vmatpush1.msra.mxu0 0.0
  %4558 = vmatprep.subr.mxu0 0.0
  %4559 = vmatpush1.msra.mxu0 0.0
  %4560 = vmatprep.subr.mxu0 0.0
  %4561 = vmatpush1.msra.mxu0 0.0
  %4562 = vmatprep.subr.mxu0 0.0
  %4563 = vmatpush1.msra.mxu0 0.0
  %4564 = vmatprep.subr.mxu0 0.0
  %4565 = vmatpush1.msra.mxu0 0.0
  %4566 = vmatprep.subr.mxu0 0.0
  %4567 = vmatpush1.msra.mxu0 0.0
  %4568 = vmatprep.subr.mxu0 0.0
  %4569 = vmatpush1.msra.mxu0 0.0
  %4570 = vmatprep.subr.mxu0 0.0
  %4571 = vmatpush1.msra.mxu0 0.0
  %4572 = vmatprep.subr.mxu0 0.0
  %4573 = vmatpush1.msra.mxu0 0.0
  %4574 = vmatprep.subr.mxu0 0.0
  %4575 = vmatpush1.msra.mxu0 0.0
  %4576 = vmatprep.mubr.f32.mxu0 0.0
  %4577 = vmatmul.mubr.f32.gmra.mrb[0].mxu0 %v4510
  %v4578 = vpop.f32.mrb[0].mxu0
  %v4579 = vadd.f32 0.0, %v4578
  %v4580 = vpop.f32.mrb[0].mxu0
  %4581 = vdwg.mxu0
  %4582 = vrot.lane.b32.xlu0 %v3890, 112
  %v4583 = vpop.permute.xlu0 %4582
  %4584 = vrot.lane.b32.xlu0 %v3900, 80
  %v4585 = vpop.permute.xlu0 %4584
  %v4586 = vsel %vm210, %v4583, 0
  %v4588 = vsel %vm210, %v4585, 0
  %4590 = vmatprep.subr.mxu0 0.0
  %4591 = vmatpush1.xpose.msra.mxu0 %v4588
  %4592 = vmatprep.subr.mxu0 0.0
  %4593 = vmatpush1.xpose.msra.mxu0 0.0
  %4594 = vmatprep.subr.mxu0 0.0
  %4595 = vmatpush1.xpose.msra.mxu0 0.0
  %4596 = vmatprep.subr.mxu0 0.0
  %4597 = vmatpush1.xpose.msra.mxu0 0.0
  %4598 = vmatprep.subr.mxu0 0.0
  %4599 = vmatpush1.xpose.msra.mxu0 0.0
  %4600 = vmatprep.subr.mxu0 0.0
  %4601 = vmatpush1.xpose.msra.mxu0 0.0
  %4602 = vmatprep.subr.mxu0 0.0
  %4603 = vmatpush1.xpose.msra.mxu0 0.0
  %4604 = vmatprep.subr.mxu0 0.0
  %4605 = vmatpush1.xpose.msra.mxu0 0.0
  %4606 = vmatprep.subr.mxu0 0.0
  %4607 = vmatpush1.xpose.msra.mxu0 0.0
  %4608 = vmatprep.subr.mxu0 0.0
  %4609 = vmatpush1.xpose.msra.mxu0 0.0
  %4610 = vmatprep.subr.mxu0 0.0
  %4611 = vmatpush1.xpose.msra.mxu0 0.0
  %4612 = vmatprep.subr.mxu0 0.0
  %4613 = vmatpush1.xpose.msra.mxu0 0.0
  %4614 = vmatprep.subr.mxu0 0.0
  %4615 = vmatpush1.xpose.msra.mxu0 0.0
  %4616 = vmatprep.subr.mxu0 0.0
  %4617 = vmatpush1.xpose.msra.mxu0 0.0
  %4618 = vmatprep.subr.mxu0 0.0
  %4619 = vmatpush1.xpose.msra.mxu0 0.0
  %4620 = vmatprep.subr.mxu0 0.0
  %4621 = vmatpush1.xpose.msra.mxu0 0.0
  %4622 = vmatprep.subr.mxu0 0.0
  %4623 = vmatpush1.xpose.msra.mxu0 0.0
  %4624 = vmatprep.subr.mxu0 0.0
  %4625 = vmatpush1.xpose.msra.mxu0 0.0
  %4626 = vmatprep.subr.mxu0 0.0
  %4627 = vmatpush1.xpose.msra.mxu0 0.0
  %4628 = vmatprep.subr.mxu0 0.0
  %4629 = vmatpush1.xpose.msra.mxu0 0.0
  %4630 = vmatprep.subr.mxu0 0.0
  %4631 = vmatpush1.xpose.msra.mxu0 0.0
  %4632 = vmatprep.subr.mxu0 0.0
  %4633 = vmatpush1.xpose.msra.mxu0 0.0
  %4634 = vmatprep.subr.mxu0 0.0
  %4635 = vmatpush1.xpose.msra.mxu0 0.0
  %4636 = vmatprep.subr.mxu0 0.0
  %4637 = vmatpush1.xpose.msra.mxu0 0.0
  %4638 = vmatprep.subr.mxu0 0.0
  %4639 = vmatpush1.xpose.msra.mxu0 0.0
  %4640 = vmatprep.subr.mxu0 0.0
  %4641 = vmatpush1.xpose.msra.mxu0 0.0
  %4642 = vmatprep.subr.mxu0 0.0
  %4643 = vmatpush1.xpose.msra.mxu0 0.0
  %4644 = vmatprep.subr.mxu0 0.0
  %4645 = vmatpush1.xpose.msra.mxu0 0.0
  %4646 = vmatprep.subr.mxu0 0.0
  %4647 = vmatpush1.xpose.msra.mxu0 0.0
  %4648 = vmatprep.subr.mxu0 0.0
  %4649 = vmatpush1.xpose.msra.mxu0 0.0
  %4650 = vmatprep.subr.mxu0 0.0
  %4651 = vmatpush1.xpose.msra.mxu0 0.0
  %4652 = vmatprep.subr.mxu0 0.0
  %4653 = vmatpush1.xpose.msra.mxu0 0.0
  %4654 = vmatprep.mubr.f32.mxu0 0.0
  %4655 = vmatmul.mubr.f32.gmra.mrb[0].mxu0 %v4586
  %v4656 = vpop.f32.mrb[0].mxu0
  %v4657 = vadd.f32 0.0, %v4656
  %v4658 = vpop.f32.mrb[0].mxu0
  %4659 = vdwg.mxu0
  %4660 = vrot.lane.b32.xlu0 %v3891, 112
  %v4661 = vpop.permute.xlu0 %4660
  %4662 = vrot.lane.b32.xlu0 %v3901, 80
  %v4663 = vpop.permute.xlu0 %4662
  %v4664 = vsel %vm210, %v4661, 0
  %v4666 = vsel %vm210, %v4663, 0
  %4668 = vmatprep.subr.mxu0 0.0
  %4669 = vmatpush1.xpose.msra.mxu0 %v4666
  %4670 = vmatprep.subr.mxu0 0.0
  %4671 = vmatpush1.xpose.msra.mxu0 0.0
  %4672 = vmatprep.subr.mxu0 0.0
  %4673 = vmatpush1.xpose.msra.mxu0 0.0
  %4674 = vmatprep.subr.mxu0 0.0
  %4675 = vmatpush1.xpose.msra.mxu0 0.0
  %4676 = vmatprep.subr.mxu0 0.0
  %4677 = vmatpush1.xpose.msra.mxu0 0.0
  %4678 = vmatprep.subr.mxu0 0.0
  %4679 = vmatpush1.xpose.msra.mxu0 0.0
  %4680 = vmatprep.subr.mxu0 0.0
  %4681 = vmatpush1.xpose.msra.mxu0 0.0
  %4682 = vmatprep.subr.mxu0 0.0
  %4683 = vmatpush1.xpose.msra.mxu0 0.0
  %4684 = vmatprep.subr.mxu0 0.0
  %4685 = vmatpush1.xpose.msra.mxu0 0.0
  %4686 = vmatprep.subr.mxu0 0.0
  %4687 = vmatpush1.xpose.msra.mxu0 0.0
  %4688 = vmatprep.subr.mxu0 0.0
  %4689 = vmatpush1.xpose.msra.mxu0 0.0
  %4690 = vmatprep.subr.mxu0 0.0
  %4691 = vmatpush1.xpose.msra.mxu0 0.0
  %4692 = vmatprep.subr.mxu0 0.0
  %4693 = vmatpush1.xpose.msra.mxu0 0.0
  %4694 = vmatprep.subr.mxu0 0.0
  %4695 = vmatpush1.xpose.msra.mxu0 0.0
  %4696 = vmatprep.subr.mxu0 0.0
  %4697 = vmatpush1.xpose.msra.mxu0 0.0
  %4698 = vmatprep.subr.mxu0 0.0
  %4699 = vmatpush1.xpose.msra.mxu0 0.0
  %4700 = vmatprep.subr.mxu0 0.0
  %4701 = vmatpush1.xpose.msra.mxu0 0.0
  %4702 = vmatprep.subr.mxu0 0.0
  %4703 = vmatpush1.xpose.msra.mxu0 0.0
  %4704 = vmatprep.subr.mxu0 0.0
  %4705 = vmatpush1.xpose.msra.mxu0 0.0
  %4706 = vmatprep.subr.mxu0 0.0
  %4707 = vmatpush1.xpose.msra.mxu0 0.0
  %4708 = vmatprep.subr.mxu0 0.0
  %4709 = vmatpush1.xpose.msra.mxu0 0.0
  %4710 = vmatprep.subr.mxu0 0.0
  %4711 = vmatpush1.xpose.msra.mxu0 0.0
  %4712 = vmatprep.subr.mxu0 0.0
  %4713 = vmatpush1.xpose.msra.mxu0 0.0
  %4714 = vmatprep.subr.mxu0 0.0
  %4715 = vmatpush1.xpose.msra.mxu0 0.0
  %4716 = vmatprep.subr.mxu0 0.0
  %4717 = vmatpush1.xpose.msra.mxu0 0.0
  %4718 = vmatprep.subr.mxu0 0.0
  %4719 = vmatpush1.xpose.msra.mxu0 0.0
  %4720 = vmatprep.subr.mxu0 0.0
  %4721 = vmatpush1.xpose.msra.mxu0 0.0
  %4722 = vmatprep.subr.mxu0 0.0
  %4723 = vmatpush1.xpose.msra.mxu0 0.0
  %4724 = vmatprep.subr.mxu0 0.0
  %4725 = vmatpush1.xpose.msra.mxu0 0.0
  %4726 = vmatprep.subr.mxu0 0.0
  %4727 = vmatpush1.xpose.msra.mxu0 0.0
  %4728 = vmatprep.subr.mxu0 0.0
  %4729 = vmatpush1.xpose.msra.mxu0 0.0
  %4730 = vmatprep.subr.mxu0 0.0
  %4731 = vmatpush1.xpose.msra.mxu0 0.0
  %4732 = vmatprep.mubr.f32.mxu0 0.0
  %4733 = vmatmul.mubr.f32.gmra.mrb[0].mxu0 %v4664
  %v4734 = vpop.f32.mrb[0].mxu0
  %v4735 = vadd.f32 0.0, %v4734
  %v4736 = vpop.f32.mrb[0].mxu0
  %4737 = vdwg.mxu0
  %v4738 = vmul.f32 %v4657, 0.35355338
  %v4739 = vmul.f32 %v4735, 0.35355338
  %v4740 = vadd.f32 %v4738, %v28
  %v4741 = vadd.f32 %v4739, %v28
  %v4742 = vsel %vm210, %v4740, -inf
  %4743 = vmax.xlane.f32.xlu0 %v4742
  %v4744 = vpop.xlane.xlu0 %4743
  %v4745 = vsel %vm210, %v4741, -inf
  %4746 = vmax.xlane.f32.xlu0 %v4745
  %v4747 = vpop.xlane.xlu0 %4746
  %v4748 = vsub.f32 %v4740, %v4744
  %v4749 = vsub.f32 %v4741, %v4747
  %v4750 = vmul.f32 %v4748, 1.442695
  %v4751 = vpow.pop %v4750
  %v4752 = vmul.f32 %v4749, 1.442695
  %v4753 = vpow.pop %v4752
  %v4754 = vsel %vm210, %v4751, 0.0
  %4755 = vadd.xlane.f32.xlu0 %v4754
  %v4756 = vpop.xlane.xlu0 %4755
  %v4757 = vsel %vm210, %v4753, 0.0
  %4758 = vadd.xlane.f32.xlu0 %v4757
  %v4759 = vpop.xlane.xlu0 %4758
  %v4760 = vrcp.pop %v4756
  %v4761 = vrcp.pop %v4759
  %v4762 = vmul.f32 %v4751, %v4760
  %v4763 = vmul.f32 %v4753, %v4761
  %4764 = vrot.lane.b32.xlu0 %v3910, 48
  %v4765 = vpop.permute.xlu0 %4764
  %v4768 = vsel %vm210, %v4762, 0
  %4770 = vmatprep.subr.mxu0 0.0
  %4771 = vmatpush1.msra.mxu0 %v4765
  %4772 = vmatprep.subr.mxu0 0.0
  %4773 = vmatpush1.msra.mxu0 0.0
  %4774 = vmatprep.subr.mxu0 0.0
  %4775 = vmatpush1.msra.mxu0 0.0
  %4776 = vmatprep.subr.mxu0 0.0
  %4777 = vmatpush1.msra.mxu0 0.0
  %4778 = vmatprep.subr.mxu0 0.0
  %4779 = vmatpush1.msra.mxu0 0.0
  %4780 = vmatprep.subr.mxu0 0.0
  %4781 = vmatpush1.msra.mxu0 0.0
  %4782 = vmatprep.subr.mxu0 0.0
  %4783 = vmatpush1.msra.mxu0 0.0
  %4784 = vmatprep.subr.mxu0 0.0
  %4785 = vmatpush1.msra.mxu0 0.0
  %4786 = vmatprep.subr.mxu0 0.0
  %4787 = vmatpush1.msra.mxu0 0.0
  %4788 = vmatprep.subr.mxu0 0.0
  %4789 = vmatpush1.msra.mxu0 0.0
  %4790 = vmatprep.subr.mxu0 0.0
  %4791 = vmatpush1.msra.mxu0 0.0
  %4792 = vmatprep.subr.mxu0 0.0
  %4793 = vmatpush1.msra.mxu0 0.0
  %4794 = vmatprep.subr.mxu0 0.0
  %4795 = vmatpush1.msra.mxu0 0.0
  %4796 = vmatprep.subr.mxu0 0.0
  %4797 = vmatpush1.msra.mxu0 0.0
  %4798 = vmatprep.subr.mxu0 0.0
  %4799 = vmatpush1.msra.mxu0 0.0
  %4800 = vmatprep.subr.mxu0 0.0
  %4801 = vmatpush1.msra.mxu0 0.0
  %4802 = vmatprep.subr.mxu0 0.0
  %4803 = vmatpush1.msra.mxu0 0.0
  %4804 = vmatprep.subr.mxu0 0.0
  %4805 = vmatpush1.msra.mxu0 0.0
  %4806 = vmatprep.subr.mxu0 0.0
  %4807 = vmatpush1.msra.mxu0 0.0
  %4808 = vmatprep.subr.mxu0 0.0
  %4809 = vmatpush1.msra.mxu0 0.0
  %4810 = vmatprep.subr.mxu0 0.0
  %4811 = vmatpush1.msra.mxu0 0.0
  %4812 = vmatprep.subr.mxu0 0.0
  %4813 = vmatpush1.msra.mxu0 0.0
  %4814 = vmatprep.subr.mxu0 0.0
  %4815 = vmatpush1.msra.mxu0 0.0
  %4816 = vmatprep.subr.mxu0 0.0
  %4817 = vmatpush1.msra.mxu0 0.0
  %4818 = vmatprep.subr.mxu0 0.0
  %4819 = vmatpush1.msra.mxu0 0.0
  %4820 = vmatprep.subr.mxu0 0.0
  %4821 = vmatpush1.msra.mxu0 0.0
  %4822 = vmatprep.subr.mxu0 0.0
  %4823 = vmatpush1.msra.mxu0 0.0
  %4824 = vmatprep.subr.mxu0 0.0
  %4825 = vmatpush1.msra.mxu0 0.0
  %4826 = vmatprep.subr.mxu0 0.0
  %4827 = vmatpush1.msra.mxu0 0.0
  %4828 = vmatprep.subr.mxu0 0.0
  %4829 = vmatpush1.msra.mxu0 0.0
  %4830 = vmatprep.subr.mxu0 0.0
  %4831 = vmatpush1.msra.mxu0 0.0
  %4832 = vmatprep.subr.mxu0 0.0
  %4833 = vmatpush1.msra.mxu0 0.0
  %4834 = vmatprep.mubr.f32.mxu0 0.0
  %4835 = vmatmul.mubr.f32.gmra.mrb[0].mxu0 %v4768
  %v4836 = vpop.f32.mrb[0].mxu0
  %v4837 = vadd.f32 0.0, %v4836
  %v4838 = vpop.f32.mrb[0].mxu0
  %4839 = vdwg.mxu0
  %4840 = vrot.lane.b32.xlu0 %v3911, 48
  %v4841 = vpop.permute.xlu0 %4840
  %v4844 = vsel %vm210, %v4763, 0
  %4846 = vmatprep.subr.mxu0 0.0
  %4847 = vmatpush1.msra.mxu0 %v4841
  %4848 = vmatprep.subr.mxu0 0.0
  %4849 = vmatpush1.msra.mxu0 0.0
  %4850 = vmatprep.subr.mxu0 0.0
  %4851 = vmatpush1.msra.mxu0 0.0
  %4852 = vmatprep.subr.mxu0 0.0
  %4853 = vmatpush1.msra.mxu0 0.0
  %4854 = vmatprep.subr.mxu0 0.0
  %4855 = vmatpush1.msra.mxu0 0.0
  %4856 = vmatprep.subr.mxu0 0.0
  %4857 = vmatpush1.msra.mxu0 0.0
  %4858 = vmatprep.subr.mxu0 0.0
  %4859 = vmatpush1.msra.mxu0 0.0
  %4860 = vmatprep.subr.mxu0 0.0
  %4861 = vmatpush1.msra.mxu0 0.0
  %4862 = vmatprep.subr.mxu0 0.0
  %4863 = vmatpush1.msra.mxu0 0.0
  %4864 = vmatprep.subr.mxu0 0.0
  %4865 = vmatpush1.msra.mxu0 0.0
  %4866 = vmatprep.subr.mxu0 0.0
  %4867 = vmatpush1.msra.mxu0 0.0
  %4868 = vmatprep.subr.mxu0 0.0
  %4869 = vmatpush1.msra.mxu0 0.0
  %4870 = vmatprep.subr.mxu0 0.0
  %4871 = vmatpush1.msra.mxu0 0.0
  %4872 = vmatprep.subr.mxu0 0.0
  %4873 = vmatpush1.msra.mxu0 0.0
  %4874 = vmatprep.subr.mxu0 0.0
  %4875 = vmatpush1.msra.mxu0 0.0
  %4876 = vmatprep.subr.mxu0 0.0
  %4877 = vmatpush1.msra.mxu0 0.0
  %4878 = vmatprep.subr.mxu0 0.0
  %4879 = vmatpush1.msra.mxu0 0.0
  %4880 = vmatprep.subr.mxu0 0.0
  %4881 = vmatpush1.msra.mxu0 0.0
  %4882 = vmatprep.subr.mxu0 0.0
  %4883 = vmatpush1.msra.mxu0 0.0
  %4884 = vmatprep.subr.mxu0 0.0
  %4885 = vmatpush1.msra.mxu0 0.0
  %4886 = vmatprep.subr.mxu0 0.0
  %4887 = vmatpush1.msra.mxu0 0.0
  %4888 = vmatprep.subr.mxu0 0.0
  %4889 = vmatpush1.msra.mxu0 0.0
  %4890 = vmatprep.subr.mxu0 0.0
  %4891 = vmatpush1.msra.mxu0 0.0
  %4892 = vmatprep.subr.mxu0 0.0
  %4893 = vmatpush1.msra.mxu0 0.0
  %4894 = vmatprep.subr.mxu0 0.0
  %4895 = vmatpush1.msra.mxu0 0.0
  %4896 = vmatprep.subr.mxu0 0.0
  %4897 = vmatpush1.msra.mxu0 0.0
  %4898 = vmatprep.subr.mxu0 0.0
  %4899 = vmatpush1.msra.mxu0 0.0
  %4900 = vmatprep.subr.mxu0 0.0
  %4901 = vmatpush1.msra.mxu0 0.0
  %4902 = vmatprep.subr.mxu0 0.0
  %4903 = vmatpush1.msra.mxu0 0.0
  %4904 = vmatprep.subr.mxu0 0.0
  %4905 = vmatpush1.msra.mxu0 0.0
  %4906 = vmatprep.subr.mxu0 0.0
  %4907 = vmatpush1.msra.mxu0 0.0
  %4908 = vmatprep.subr.mxu0 0.0
  %4909 = vmatpush1.msra.mxu0 0.0
  %4910 = vmatprep.mubr.f32.mxu0 0.0
  %4911 = vmatmul.mubr.f32.gmra.mrb[0].mxu0 %v4844
  %v4912 = vpop.f32.mrb[0].mxu0
  %v4913 = vadd.f32 0.0, %v4912
  %v4914 = vpop.f32.mrb[0].mxu0
  %4915 = vdwg.mxu0
  %4916 = vrot.lane.b32.xlu0 %v3890, 104
  %v4917 = vpop.permute.xlu0 %4916
  %4918 = vrot.lane.b32.xlu0 %v3900, 72
  %v4919 = vpop.permute.xlu0 %4918
  %v4920 = vsel %vm210, %v4917, 0
  %v4922 = vsel %vm210, %v4919, 0
  %4924 = vmatprep.subr.mxu0 0.0
  %4925 = vmatpush1.xpose.msra.mxu0 %v4922
  %4926 = vmatprep.subr.mxu0 0.0
  %4927 = vmatpush1.xpose.msra.mxu0 0.0
  %4928 = vmatprep.subr.mxu0 0.0
  %4929 = vmatpush1.xpose.msra.mxu0 0.0
  %4930 = vmatprep.subr.mxu0 0.0
  %4931 = vmatpush1.xpose.msra.mxu0 0.0
  %4932 = vmatprep.subr.mxu0 0.0
  %4933 = vmatpush1.xpose.msra.mxu0 0.0
  %4934 = vmatprep.subr.mxu0 0.0
  %4935 = vmatpush1.xpose.msra.mxu0 0.0
  %4936 = vmatprep.subr.mxu0 0.0
  %4937 = vmatpush1.xpose.msra.mxu0 0.0
  %4938 = vmatprep.subr.mxu0 0.0
  %4939 = vmatpush1.xpose.msra.mxu0 0.0
  %4940 = vmatprep.subr.mxu0 0.0
  %4941 = vmatpush1.xpose.msra.mxu0 0.0
  %4942 = vmatprep.subr.mxu0 0.0
  %4943 = vmatpush1.xpose.msra.mxu0 0.0
  %4944 = vmatprep.subr.mxu0 0.0
  %4945 = vmatpush1.xpose.msra.mxu0 0.0
  %4946 = vmatprep.subr.mxu0 0.0
  %4947 = vmatpush1.xpose.msra.mxu0 0.0
  %4948 = vmatprep.subr.mxu0 0.0
  %4949 = vmatpush1.xpose.msra.mxu0 0.0
  %4950 = vmatprep.subr.mxu0 0.0
  %4951 = vmatpush1.xpose.msra.mxu0 0.0
  %4952 = vmatprep.subr.mxu0 0.0
  %4953 = vmatpush1.xpose.msra.mxu0 0.0
  %4954 = vmatprep.subr.mxu0 0.0
  %4955 = vmatpush1.xpose.msra.mxu0 0.0
  %4956 = vmatprep.subr.mxu0 0.0
  %4957 = vmatpush1.xpose.msra.mxu0 0.0
  %4958 = vmatprep.subr.mxu0 0.0
  %4959 = vmatpush1.xpose.msra.mxu0 0.0
  %4960 = vmatprep.subr.mxu0 0.0
  %4961 = vmatpush1.xpose.msra.mxu0 0.0
  %4962 = vmatprep.subr.mxu0 0.0
  %4963 = vmatpush1.xpose.msra.mxu0 0.0
  %4964 = vmatprep.subr.mxu0 0.0
  %4965 = vmatpush1.xpose.msra.mxu0 0.0
  %4966 = vmatprep.subr.mxu0 0.0
  %4967 = vmatpush1.xpose.msra.mxu0 0.0
  %4968 = vmatprep.subr.mxu0 0.0
  %4969 = vmatpush1.xpose.msra.mxu0 0.0
  %4970 = vmatprep.subr.mxu0 0.0
  %4971 = vmatpush1.xpose.msra.mxu0 0.0
  %4972 = vmatprep.subr.mxu0 0.0
  %4973 = vmatpush1.xpose.msra.mxu0 0.0
  %4974 = vmatprep.subr.mxu0 0.0
  %4975 = vmatpush1.xpose.msra.mxu0 0.0
  %4976 = vmatprep.subr.mxu0 0.0
  %4977 = vmatpush1.xpose.msra.mxu0 0.0
  %4978 = vmatprep.subr.mxu0 0.0
  %4979 = vmatpush1.xpose.msra.mxu0 0.0
  %4980 = vmatprep.subr.mxu0 0.0
  %4981 = vmatpush1.xpose.msra.mxu0 0.0
  %4982 = vmatprep.subr.mxu0 0.0
  %4983 = vmatpush1.xpose.msra.mxu0 0.0
  %4984 = vmatprep.subr.mxu0 0.0
  %4985 = vmatpush1.xpose.msra.mxu0 0.0
  %4986 = vmatprep.subr.mxu0 0.0
  %4987 = vmatpush1.xpose.msra.mxu0 0.0
  %4988 = vmatprep.mubr.f32.mxu0 0.0
  %4989 = vmatmul.mubr.f32.gmra.mrb[0].mxu0 %v4920
  %v4990 = vpop.f32.mrb[0].mxu0
  %v4991 = vadd.f32 0.0, %v4990
  %v4992 = vpop.f32.mrb[0].mxu0
  %4993 = vdwg.mxu0
  %4994 = vrot.lane.b32.xlu0 %v3891, 104
  %v4995 = vpop.permute.xlu0 %4994
  %4996 = vrot.lane.b32.xlu0 %v3901, 72
  %v4997 = vpop.permute.xlu0 %4996
  %v4998 = vsel %vm210, %v4995, 0
  %v5000 = vsel %vm210, %v4997, 0
  %5002 = vmatprep.subr.mxu0 0.0
  %5003 = vmatpush1.xpose.msra.mxu0 %v5000
  %5004 = vmatprep.subr.mxu0 0.0
  %5005 = vmatpush1.xpose.msra.mxu0 0.0
  %5006 = vmatprep.subr.mxu0 0.0
  %5007 = vmatpush1.xpose.msra.mxu0 0.0
  %5008 = vmatprep.subr.mxu0 0.0
  %5009 = vmatpush1.xpose.msra.mxu0 0.0
  %5010 = vmatprep.subr.mxu0 0.0
  %5011 = vmatpush1.xpose.msra.mxu0 0.0
  %5012 = vmatprep.subr.mxu0 0.0
  %5013 = vmatpush1.xpose.msra.mxu0 0.0
  %5014 = vmatprep.subr.mxu0 0.0
  %5015 = vmatpush1.xpose.msra.mxu0 0.0
  %5016 = vmatprep.subr.mxu0 0.0
  %5017 = vmatpush1.xpose.msra.mxu0 0.0
  %5018 = vmatprep.subr.mxu0 0.0
  %5019 = vmatpush1.xpose.msra.mxu0 0.0
  %5020 = vmatprep.subr.mxu0 0.0
  %5021 = vmatpush1.xpose.msra.mxu0 0.0
  %5022 = vmatprep.subr.mxu0 0.0
  %5023 = vmatpush1.xpose.msra.mxu0 0.0
  %5024 = vmatprep.subr.mxu0 0.0
  %5025 = vmatpush1.xpose.msra.mxu0 0.0
  %5026 = vmatprep.subr.mxu0 0.0
  %5027 = vmatpush1.xpose.msra.mxu0 0.0
  %5028 = vmatprep.subr.mxu0 0.0
  %5029 = vmatpush1.xpose.msra.mxu0 0.0
  %5030 = vmatprep.subr.mxu0 0.0
  %5031 = vmatpush1.xpose.msra.mxu0 0.0
  %5032 = vmatprep.subr.mxu0 0.0
  %5033 = vmatpush1.xpose.msra.mxu0 0.0
  %5034 = vmatprep.subr.mxu0 0.0
  %5035 = vmatpush1.xpose.msra.mxu0 0.0
  %5036 = vmatprep.subr.mxu0 0.0
  %5037 = vmatpush1.xpose.msra.mxu0 0.0
  %5038 = vmatprep.subr.mxu0 0.0
  %5039 = vmatpush1.xpose.msra.mxu0 0.0
  %5040 = vmatprep.subr.mxu0 0.0
  %5041 = vmatpush1.xpose.msra.mxu0 0.0
  %5042 = vmatprep.subr.mxu0 0.0
  %5043 = vmatpush1.xpose.msra.mxu0 0.0
  %5044 = vmatprep.subr.mxu0 0.0
  %5045 = vmatpush1.xpose.msra.mxu0 0.0
  %5046 = vmatprep.subr.mxu0 0.0
  %5047 = vmatpush1.xpose.msra.mxu0 0.0
  %5048 = vmatprep.subr.mxu0 0.0
  %5049 = vmatpush1.xpose.msra.mxu0 0.0
  %5050 = vmatprep.subr.mxu0 0.0
  %5051 = vmatpush1.xpose.msra.mxu0 0.0
  %5052 = vmatprep.subr.mxu0 0.0
  %5053 = vmatpush1.xpose.msra.mxu0 0.0
  %5054 = vmatprep.subr.mxu0 0.0
  %5055 = vmatpush1.xpose.msra.mxu0 0.0
  %5056 = vmatprep.subr.mxu0 0.0
  %5057 = vmatpush1.xpose.msra.mxu0 0.0
  %5058 = vmatprep.subr.mxu0 0.0
  %5059 = vmatpush1.xpose.msra.mxu0 0.0
  %5060 = vmatprep.subr.mxu0 0.0
  %5061 = vmatpush1.xpose.msra.mxu0 0.0
  %5062 = vmatprep.subr.mxu0 0.0
  %5063 = vmatpush1.xpose.msra.mxu0 0.0
  %5064 = vmatprep.subr.mxu0 0.0
  %5065 = vmatpush1.xpose.msra.mxu0 0.0
  %5066 = vmatprep.mubr.f32.mxu0 0.0
  %5067 = vmatmul.mubr.f32.gmra.mrb[0].mxu0 %v4998
  %v5068 = vpop.f32.mrb[0].mxu0
  %v5069 = vadd.f32 0.0, %v5068
  %v5070 = vpop.f32.mrb[0].mxu0
  %5071 = vdwg.mxu0
  %v5072 = vmul.f32 %v4991, 0.35355338
  %v5073 = vmul.f32 %v5069, 0.35355338
  %v5074 = vadd.f32 %v5072, %v28
  %v5075 = vadd.f32 %v5073, %v28
  %v5076 = vsel %vm210, %v5074, -inf
  %5077 = vmax.xlane.f32.xlu0 %v5076
  %v5078 = vpop.xlane.xlu0 %5077
  %v5079 = vsel %vm210, %v5075, -inf
  %5080 = vmax.xlane.f32.xlu0 %v5079
  %v5081 = vpop.xlane.xlu0 %5080
  %v5082 = vsub.f32 %v5074, %v5078
  %v5083 = vsub.f32 %v5075, %v5081
  %v5084 = vmul.f32 %v5082, 1.442695
  %v5085 = vpow.pop %v5084
  %v5086 = vmul.f32 %v5083, 1.442695
  %v5087 = vpow.pop %v5086
  %v5088 = vsel %vm210, %v5085, 0.0
  %5089 = vadd.xlane.f32.xlu0 %v5088
  %v5090 = vpop.xlane.xlu0 %5089
  %v5091 = vsel %vm210, %v5087, 0.0
  %5092 = vadd.xlane.f32.xlu0 %v5091
  %v5093 = vpop.xlane.xlu0 %5092
  %v5094 = vrcp.pop %v5090
  %v5095 = vrcp.pop %v5093
  %v5096 = vmul.f32 %v5085, %v5094
  %v5097 = vmul.f32 %v5087, %v5095
  %5098 = vrot.lane.b32.xlu0 %v3910, 40
  %v5099 = vpop.permute.xlu0 %5098
  %v5102 = vsel %vm210, %v5096, 0
  %5104 = vmatprep.subr.mxu0 0.0
  %5105 = vmatpush1.msra.mxu0 %v5099
  %5106 = vmatprep.subr.mxu0 0.0
  %5107 = vmatpush1.msra.mxu0 0.0
  %5108 = vmatprep.subr.mxu0 0.0
  %5109 = vmatpush1.msra.mxu0 0.0
  %5110 = vmatprep.subr.mxu0 0.0
  %5111 = vmatpush1.msra.mxu0 0.0
  %5112 = vmatprep.subr.mxu0 0.0
  %5113 = vmatpush1.msra.mxu0 0.0
  %5114 = vmatprep.subr.mxu0 0.0
  %5115 = vmatpush1.msra.mxu0 0.0
  %5116 = vmatprep.subr.mxu0 0.0
  %5117 = vmatpush1.msra.mxu0 0.0
  %5118 = vmatprep.subr.mxu0 0.0
  %5119 = vmatpush1.msra.mxu0 0.0
  %5120 = vmatprep.subr.mxu0 0.0
  %5121 = vmatpush1.msra.mxu0 0.0
  %5122 = vmatprep.subr.mxu0 0.0
  %5123 = vmatpush1.msra.mxu0 0.0
  %5124 = vmatprep.subr.mxu0 0.0
  %5125 = vmatpush1.msra.mxu0 0.0
  %5126 = vmatprep.subr.mxu0 0.0
  %5127 = vmatpush1.msra.mxu0 0.0
  %5128 = vmatprep.subr.mxu0 0.0
  %5129 = vmatpush1.msra.mxu0 0.0
  %5130 = vmatprep.subr.mxu0 0.0
  %5131 = vmatpush1.msra.mxu0 0.0
  %5132 = vmatprep.subr.mxu0 0.0
  %5133 = vmatpush1.msra.mxu0 0.0
  %5134 = vmatprep.subr.mxu0 0.0
  %5135 = vmatpush1.msra.mxu0 0.0
  %5136 = vmatprep.subr.mxu0 0.0
  %5137 = vmatpush1.msra.mxu0 0.0
  %5138 = vmatprep.subr.mxu0 0.0
  %5139 = vmatpush1.msra.mxu0 0.0
  %5140 = vmatprep.subr.mxu0 0.0
  %5141 = vmatpush1.msra.mxu0 0.0
  %5142 = vmatprep.subr.mxu0 0.0
  %5143 = vmatpush1.msra.mxu0 0.0
  %5144 = vmatprep.subr.mxu0 0.0
  %5145 = vmatpush1.msra.mxu0 0.0
  %5146 = vmatprep.subr.mxu0 0.0
  %5147 = vmatpush1.msra.mxu0 0.0
  %5148 = vmatprep.subr.mxu0 0.0
  %5149 = vmatpush1.msra.mxu0 0.0
  %5150 = vmatprep.subr.mxu0 0.0
  %5151 = vmatpush1.msra.mxu0 0.0
  %5152 = vmatprep.subr.mxu0 0.0
  %5153 = vmatpush1.msra.mxu0 0.0
  %5154 = vmatprep.subr.mxu0 0.0
  %5155 = vmatpush1.msra.mxu0 0.0
  %5156 = vmatprep.subr.mxu0 0.0
  %5157 = vmatpush1.msra.mxu0 0.0
  %5158 = vmatprep.subr.mxu0 0.0
  %5159 = vmatpush1.msra.mxu0 0.0
  %5160 = vmatprep.subr.mxu0 0.0
  %5161 = vmatpush1.msra.mxu0 0.0
  %5162 = vmatprep.subr.mxu0 0.0
  %5163 = vmatpush1.msra.mxu0 0.0
  %5164 = vmatprep.subr.mxu0 0.0
  %5165 = vmatpush1.msra.mxu0 0.0
  %5166 = vmatprep.subr.mxu0 0.0
  %5167 = vmatpush1.msra.mxu0 0.0
  %5168 = vmatprep.mubr.f32.mxu0 0.0
  %5169 = vmatmul.mubr.f32.gmra.mrb[0].mxu0 %v5102
  %v5170 = vpop.f32.mrb[0].mxu0
  %v5171 = vadd.f32 0.0, %v5170
  %v5172 = vpop.f32.mrb[0].mxu0
  %5173 = vdwg.mxu0
  %5174 = vrot.lane.b32.xlu0 %v3911, 40
  %v5175 = vpop.permute.xlu0 %5174
  %v5178 = vsel %vm210, %v5097, 0
  %5180 = vmatprep.subr.mxu0 0.0
  %5181 = vmatpush1.msra.mxu0 %v5175
  %5182 = vmatprep.subr.mxu0 0.0
  %5183 = vmatpush1.msra.mxu0 0.0
  %5184 = vmatprep.subr.mxu0 0.0
  %5185 = vmatpush1.msra.mxu0 0.0
  %5186 = vmatprep.subr.mxu0 0.0
  %5187 = vmatpush1.msra.mxu0 0.0
  %5188 = vmatprep.subr.mxu0 0.0
  %5189 = vmatpush1.msra.mxu0 0.0
  %5190 = vmatprep.subr.mxu0 0.0
  %5191 = vmatpush1.msra.mxu0 0.0
  %5192 = vmatprep.subr.mxu0 0.0
  %5193 = vmatpush1.msra.mxu0 0.0
  %5194 = vmatprep.subr.mxu0 0.0
  %5195 = vmatpush1.msra.mxu0 0.0
  %5196 = vmatprep.subr.mxu0 0.0
  %5197 = vmatpush1.msra.mxu0 0.0
  %5198 = vmatprep.subr.mxu0 0.0
  %5199 = vmatpush1.msra.mxu0 0.0
  %5200 = vmatprep.subr.mxu0 0.0
  %5201 = vmatpush1.msra.mxu0 0.0
  %5202 = vmatprep.subr.mxu0 0.0
  %5203 = vmatpush1.msra.mxu0 0.0
  %5204 = vmatprep.subr.mxu0 0.0
  %5205 = vmatpush1.msra.mxu0 0.0
  %5206 = vmatprep.subr.mxu0 0.0
  %5207 = vmatpush1.msra.mxu0 0.0
  %5208 = vmatprep.subr.mxu0 0.0
  %5209 = vmatpush1.msra.mxu0 0.0
  %5210 = vmatprep.subr.mxu0 0.0
  %5211 = vmatpush1.msra.mxu0 0.0
  %5212 = vmatprep.subr.mxu0 0.0
  %5213 = vmatpush1.msra.mxu0 0.0
  %5214 = vmatprep.subr.mxu0 0.0
  %5215 = vmatpush1.msra.mxu0 0.0
  %5216 = vmatprep.subr.mxu0 0.0
  %5217 = vmatpush1.msra.mxu0 0.0
  %5218 = vmatprep.subr.mxu0 0.0
  %5219 = vmatpush1.msra.mxu0 0.0
  %5220 = vmatprep.subr.mxu0 0.0
  %5221 = vmatpush1.msra.mxu0 0.0
  %5222 = vmatprep.subr.mxu0 0.0
  %5223 = vmatpush1.msra.mxu0 0.0
  %5224 = vmatprep.subr.mxu0 0.0
  %5225 = vmatpush1.msra.mxu0 0.0
  %5226 = vmatprep.subr.mxu0 0.0
  %5227 = vmatpush1.msra.mxu0 0.0
  %5228 = vmatprep.subr.mxu0 0.0
  %5229 = vmatpush1.msra.mxu0 0.0
  %5230 = vmatprep.subr.mxu0 0.0
  %5231 = vmatpush1.msra.mxu0 0.0
  %5232 = vmatprep.subr.mxu0 0.0
  %5233 = vmatpush1.msra.mxu0 0.0
  %5234 = vmatprep.subr.mxu0 0.0
  %5235 = vmatpush1.msra.mxu0 0.0
  %5236 = vmatprep.subr.mxu0 0.0
  %5237 = vmatpush1.msra.mxu0 0.0
  %5238 = vmatprep.subr.mxu0 0.0
  %5239 = vmatpush1.msra.mxu0 0.0
  %5240 = vmatprep.subr.mxu0 0.0
  %5241 = vmatpush1.msra.mxu0 0.0
  %5242 = vmatprep.subr.mxu0 0.0
  %5243 = vmatpush1.msra.mxu0 0.0
  %5244 = vmatprep.mubr.f32.mxu0 0.0
  %5245 = vmatmul.mubr.f32.gmra.mrb[0].mxu0 %v5178
  %v5246 = vpop.f32.mrb[0].mxu0
  %v5247 = vadd.f32 0.0, %v5246
  %v5248 = vpop.f32.mrb[0].mxu0
  %5249 = vdwg.mxu0
  %5252 = vrot.lane.b32.xlu0 %v4503, 8
  %v5253 = vpop.permute.xlu0 %5252
  %5254 = vrot.lane.b32.xlu0 %v4579, 8
  %v5255 = vpop.permute.xlu0 %5254
  %5260 = vrot.lane.b32.xlu0 %v4837, 16
  %v5261 = vpop.permute.xlu0 %5260
  %5262 = vrot.lane.b32.xlu0 %v4913, 16
  %v5263 = vpop.permute.xlu0 %5262
  %5268 = vrot.lane.b32.xlu0 %v5171, 24
  %v5269 = vpop.permute.xlu0 %5268
  %5270 = vrot.lane.b32.xlu0 %v5247, 24
  %v5271 = vpop.permute.xlu0 %5270
  %v5274 = vsel %vm210, %v4168, %v5253
  %v5275 = vsel %vm210, %v4245, %v5255
  %v5276 = vsel %vm1572, %v5274, %v5261
  %v5277 = vsel %vm1572, %v5275, %v5263
  %v5278 = vsel %vm1575, %v5276, %v5269
  %v5279 = vsel %vm1575, %v5277, %v5271
  %v5280 = vlaneseq
  %v5281 = vshrl.u32 %v5280, 7
  %v5282 = vsub.s32 0, %v5281
  %v5283 = vrot.slane %v3730, %v5282
  %v5285 = vsel %vm60, %v5278, 0
  %v5288 = vsel %vm60, %v5279, 0
  %5290 = vmatprep.subr.mxu0 0.0
  %5291 = vmatpush1.msra.mxu0 %v3741
  %5292 = vmatprep.subr.mxu0 0.0
  %5293 = vmatpush1.msra.mxu0 %v3742
  %5294 = vmatprep.subr.mxu0 0.0
  %5295 = vmatpush1.msra.mxu0 %v3743
  %5296 = vmatprep.subr.mxu0 0.0
  %5297 = vmatpush1.msra.mxu0 %v3744
  %5298 = vmatprep.subr.mxu0 0.0
  %5299 = vmatpush1.msra.mxu0 0.0
  %5300 = vmatprep.subr.mxu0 0.0
  %5301 = vmatpush1.msra.mxu0 0.0
  %5302 = vmatprep.subr.mxu0 0.0
  %5303 = vmatpush1.msra.mxu0 0.0
  %5304 = vmatprep.subr.mxu0 0.0
  %5305 = vmatpush1.msra.mxu0 0.0
  %5306 = vmatprep.subr.mxu0 0.0
  %5307 = vmatpush1.msra.mxu0 0.0
  %5308 = vmatprep.subr.mxu0 0.0
  %5309 = vmatpush1.msra.mxu0 0.0
  %5310 = vmatprep.subr.mxu0 0.0
  %5311 = vmatpush1.msra.mxu0 0.0
  %5312 = vmatprep.subr.mxu0 0.0
  %5313 = vmatpush1.msra.mxu0 0.0
  %5314 = vmatprep.subr.mxu0 0.0
  %5315 = vmatpush1.msra.mxu0 0.0
  %5316 = vmatprep.subr.mxu0 0.0
  %5317 = vmatpush1.msra.mxu0 0.0
  %5318 = vmatprep.subr.mxu0 0.0
  %5319 = vmatpush1.msra.mxu0 0.0
  %5320 = vmatprep.subr.mxu0 0.0
  %5321 = vmatpush1.msra.mxu0 0.0
  %5322 = vmatprep.subr.mxu0 0.0
  %5323 = vmatpush1.msra.mxu0 0.0
  %5324 = vmatprep.subr.mxu0 0.0
  %5325 = vmatpush1.msra.mxu0 0.0
  %5326 = vmatprep.subr.mxu0 0.0
  %5327 = vmatpush1.msra.mxu0 0.0
  %5328 = vmatprep.subr.mxu0 0.0
  %5329 = vmatpush1.msra.mxu0 0.0
  %5330 = vmatprep.subr.mxu0 0.0
  %5331 = vmatpush1.msra.mxu0 0.0
  %5332 = vmatprep.subr.mxu0 0.0
  %5333 = vmatpush1.msra.mxu0 0.0
  %5334 = vmatprep.subr.mxu0 0.0
  %5335 = vmatpush1.msra.mxu0 0.0
  %5336 = vmatprep.subr.mxu0 0.0
  %5337 = vmatpush1.msra.mxu0 0.0
  %5338 = vmatprep.subr.mxu0 0.0
  %5339 = vmatpush1.msra.mxu0 0.0
  %5340 = vmatprep.subr.mxu0 0.0
  %5341 = vmatpush1.msra.mxu0 0.0
  %5342 = vmatprep.subr.mxu0 0.0
  %5343 = vmatpush1.msra.mxu0 0.0
  %5344 = vmatprep.subr.mxu0 0.0
  %5345 = vmatpush1.msra.mxu0 0.0
  %5346 = vmatprep.subr.mxu0 0.0
  %5347 = vmatpush1.msra.mxu0 0.0
  %5348 = vmatprep.subr.mxu0 0.0
  %5349 = vmatpush1.msra.mxu0 0.0
  %5350 = vmatprep.subr.mxu0 0.0
  %5351 = vmatpush1.msra.mxu0 0.0
  %5352 = vmatprep.subr.mxu0 0.0
  %5353 = vmatpush1.msra.mxu0 0.0
  %5354 = vmatprep.mubr.f32.mxu0 0.0
  %5355 = vmatmul.mubr.f32.gmra.mrb[0].mxu0 %v5285
  %v5356 = vpop.f32.mrb[0].mxu0
  %v5357 = vadd.f32 %v5283, %v5356
  %v5358 = vpop.f32.mrb[0].mxu0
  %5359 = vmatprep.mubr.f32.mxu0 0.0
  %5360 = vmatmul.mubr.f32.gmra.mrb[0].mxu0 %v5288
  %v5361 = vpop.f32.mrb[0].mxu0
  %v5362 = vadd.f32 %v5283, %v5361
  %v5363 = vpop.f32.mrb[0].mxu0
  %5364 = vdwg.mxu0
  %v5365 = vadd.f32 %v3803, %v5357
  %v5366 = vadd.f32 %v3804, %v5362
  %v5367 = vsel %vm60, %v3716, 0.0
  %5368 = vadd.xlane.f32.xlu0 %v5367
  %v5369 = vpop.xlane.xlu0 %5368
  %v5370 = vsel %vm60, %v3717, 0.0
  %5371 = vadd.xlane.f32.xlu0 %v5370
  %v5372 = vpop.xlane.xlu0 %5371
  %v5373 = vmul.f32 %v5369, %v67
  %v5374 = vmul.f32 %v5372, %v67
  %v5375 = vsub.f32 %v3716, %v5373
  %v5376 = vsub.f32 %v3717, %v5374
  %v5377 = vmul.f32 %v5375, %v5375
  %v5378 = vmul.f32 %v5376, %v5376
  %v5379 = vsel %vm60, %v5377, 0.0
  %5380 = vadd.xlane.f32.xlu0 %v5379
  %v5381 = vpop.xlane.xlu0 %5380
  %v5382 = vsel %vm60, %v5378, 0.0
  %5383 = vadd.xlane.f32.xlu0 %v5382
  %v5384 = vpop.xlane.xlu0 %5383
  %v5385 = vmul.f32 %v5381, %v67
  %v5386 = vmul.f32 %v5384, %v67
  %v5387 = vadd.f32 %v5385, 1e-05
  %v5388 = vadd.f32 %v5386, 1e-05
  %v5389 = vrsqrt.pop %v5387
  %v5390 = vrsqrt.pop %v5388
  %v5391 = vmul.f32 %v5375, %v5389
  %v5392 = vmul.f32 %v5376, %v5390
  %v5393 = vlaneseq
  %v5394 = vshrl.u32 %v5393, 7
  %v5395 = vsub.s32 0, %v5394
  %v5396 = vrot.slane %v3723, %v5395
  %v5397 = vmul.f32 %v5391, %v5396
  %v5398 = vmul.f32 %v5392, %v5396
  %v5399 = vlaneseq
  %v5400 = vshrl.u32 %v5399, 7
  %v5401 = vsub.s32 0, %v5400
  %v5402 = vrot.slane %v3724, %v5401
  %v5403 = vadd.f32 %v5397, %v5402
  %v5404 = vadd.f32 %v5398, %v5402
  %v5405 = vlaneseq
  %v5406 = vshrl.u32 %v5405, 7
  %v5407 = vsub.s32 0, %v5406
  %v5408 = vrot.slane %v3731, %v5407
  %v5410 = vsel %vm60, %v5365, 0
  %v5413 = vsel %vm60, %v5366, 0
  %5415 = vmatprep.subr.mxu0 0.0
  %5416 = vmatpush1.msra.mxu0 %v3745
  %5417 = vmatprep.subr.mxu0 0.0
  %5418 = vmatpush1.msra.mxu0 %v3746
  %5419 = vmatprep.subr.mxu0 0.0
  %5420 = vmatpush1.msra.mxu0 %v3747
  %5421 = vmatprep.subr.mxu0 0.0
  %5422 = vmatpush1.msra.mxu0 %v3748
  %5423 = vmatprep.subr.mxu0 0.0
  %5424 = vmatpush1.msra.mxu0 0.0
  %5425 = vmatprep.subr.mxu0 0.0
  %5426 = vmatpush1.msra.mxu0 0.0
  %5427 = vmatprep.subr.mxu0 0.0
  %5428 = vmatpush1.msra.mxu0 0.0
  %5429 = vmatprep.subr.mxu0 0.0
  %5430 = vmatpush1.msra.mxu0 0.0
  %5431 = vmatprep.subr.mxu0 0.0
  %5432 = vmatpush1.msra.mxu0 0.0
  %5433 = vmatprep.subr.mxu0 0.0
  %5434 = vmatpush1.msra.mxu0 0.0
  %5435 = vmatprep.subr.mxu0 0.0
  %5436 = vmatpush1.msra.mxu0 0.0
  %5437 = vmatprep.subr.mxu0 0.0
  %5438 = vmatpush1.msra.mxu0 0.0
  %5439 = vmatprep.subr.mxu0 0.0
  %5440 = vmatpush1.msra.mxu0 0.0
  %5441 = vmatprep.subr.mxu0 0.0
  %5442 = vmatpush1.msra.mxu0 0.0
  %5443 = vmatprep.subr.mxu0 0.0
  %5444 = vmatpush1.msra.mxu0 0.0
  %5445 = vmatprep.subr.mxu0 0.0
  %5446 = vmatpush1.msra.mxu0 0.0
  %5447 = vmatprep.subr.mxu0 0.0
  %5448 = vmatpush1.msra.mxu0 0.0
  %5449 = vmatprep.subr.mxu0 0.0
  %5450 = vmatpush1.msra.mxu0 0.0
  %5451 = vmatprep.subr.mxu0 0.0
  %5452 = vmatpush1.msra.mxu0 0.0
  %5453 = vmatprep.subr.mxu0 0.0
  %5454 = vmatpush1.msra.mxu0 0.0
  %5455 = vmatprep.subr.mxu0 0.0
  %5456 = vmatpush1.msra.mxu0 0.0
  %5457 = vmatprep.subr.mxu0 0.0
  %5458 = vmatpush1.msra.mxu0 0.0
  %5459 = vmatprep.subr.mxu0 0.0
  %5460 = vmatpush1.msra.mxu0 0.0
  %5461 = vmatprep.subr.mxu0 0.0
  %5462 = vmatpush1.msra.mxu0 0.0
  %5463 = vmatprep.subr.mxu0 0.0
  %5464 = vmatpush1.msra.mxu0 0.0
  %5465 = vmatprep.subr.mxu0 0.0
  %5466 = vmatpush1.msra.mxu0 0.0
  %5467 = vmatprep.subr.mxu0 0.0
  %5468 = vmatpush1.msra.mxu0 0.0
  %5469 = vmatprep.subr.mxu0 0.0
  %5470 = vmatpush1.msra.mxu0 0.0
  %5471 = vmatprep.subr.mxu0 0.0
  %5472 = vmatpush1.msra.mxu0 0.0
  %5473 = vmatprep.subr.mxu0 0.0
  %5474 = vmatpush1.msra.mxu0 0.0
  %5475 = vmatprep.subr.mxu0 0.0
  %5476 = vmatpush1.msra.mxu0 0.0
  %5477 = vmatprep.subr.mxu0 0.0
  %5478 = vmatpush1.msra.mxu0 0.0
  %5479 = vmatprep.mubr.f32.mxu0 0.0
  %5480 = vmatmul.mubr.f32.gmra.mrb[0].mxu0 %v5410
  %v5481 = vpop.f32.mrb[0].mxu0
  %v5482 = vadd.f32 %v5408, %v5481
  %v5483 = vpop.f32.mrb[0].mxu0
  %5484 = vmatprep.mubr.f32.mxu0 0.0
  %5485 = vmatmul.mubr.f32.gmra.mrb[0].mxu0 %v5413
  %v5486 = vpop.f32.mrb[0].mxu0
  %v5487 = vadd.f32 %v5408, %v5486
  %v5488 = vpop.f32.mrb[0].mxu0
  %5489 = vdwg.mxu0
  %v5491 = vsel %vm60, %v5403, 0
  %v5494 = vsel %vm60, %v5404, 0
  %5496 = vmatprep.subr.mxu0 0.0
  %5497 = vmatpush1.msra.mxu0 %v3749
  %5498 = vmatprep.subr.mxu0 0.0
  %5499 = vmatpush1.msra.mxu0 %v3750
  %5500 = vmatprep.subr.mxu0 0.0
  %5501 = vmatpush1.msra.mxu0 %v3751
  %5502 = vmatprep.subr.mxu0 0.0
  %5503 = vmatpush1.msra.mxu0 %v3752
  %5504 = vmatprep.subr.mxu0 0.0
  %5505 = vmatpush1.msra.mxu0 0.0
  %5506 = vmatprep.subr.mxu0 0.0
  %5507 = vmatpush1.msra.mxu0 0.0
  %5508 = vmatprep.subr.mxu0 0.0
  %5509 = vmatpush1.msra.mxu0 0.0
  %5510 = vmatprep.subr.mxu0 0.0
  %5511 = vmatpush1.msra.mxu0 0.0
  %5512 = vmatprep.subr.mxu0 0.0
  %5513 = vmatpush1.msra.mxu0 0.0
  %5514 = vmatprep.subr.mxu0 0.0
  %5515 = vmatpush1.msra.mxu0 0.0
  %5516 = vmatprep.subr.mxu0 0.0
  %5517 = vmatpush1.msra.mxu0 0.0
  %5518 = vmatprep.subr.mxu0 0.0
  %5519 = vmatpush1.msra.mxu0 0.0
  %5520 = vmatprep.subr.mxu0 0.0
  %5521 = vmatpush1.msra.mxu0 0.0
  %5522 = vmatprep.subr.mxu0 0.0
  %5523 = vmatpush1.msra.mxu0 0.0
  %5524 = vmatprep.subr.mxu0 0.0
  %5525 = vmatpush1.msra.mxu0 0.0
  %5526 = vmatprep.subr.mxu0 0.0
  %5527 = vmatpush1.msra.mxu0 0.0
  %5528 = vmatprep.subr.mxu0 0.0
  %5529 = vmatpush1.msra.mxu0 0.0
  %5530 = vmatprep.subr.mxu0 0.0
  %5531 = vmatpush1.msra.mxu0 0.0
  %5532 = vmatprep.subr.mxu0 0.0
  %5533 = vmatpush1.msra.mxu0 0.0
  %5534 = vmatprep.subr.mxu0 0.0
  %5535 = vmatpush1.msra.mxu0 0.0
  %5536 = vmatprep.subr.mxu0 0.0
  %5537 = vmatpush1.msra.mxu0 0.0
  %5538 = vmatprep.subr.mxu0 0.0
  %5539 = vmatpush1.msra.mxu0 0.0
  %5540 = vmatprep.subr.mxu0 0.0
  %5541 = vmatpush1.msra.mxu0 0.0
  %5542 = vmatprep.subr.mxu0 0.0
  %5543 = vmatpush1.msra.mxu0 0.0
  %5544 = vmatprep.subr.mxu0 0.0
  %5545 = vmatpush1.msra.mxu0 0.0
  %5546 = vmatprep.subr.mxu0 0.0
  %5547 = vmatpush1.msra.mxu0 0.0
  %5548 = vmatprep.subr.mxu0 0.0
  %5549 = vmatpush1.msra.mxu0 0.0
  %5550 = vmatprep.subr.mxu0 0.0
  %5551 = vmatpush1.msra.mxu0 0.0
  %5552 = vmatprep.subr.mxu0 0.0
  %5553 = vmatpush1.msra.mxu0 0.0
  %5554 = vmatprep.subr.mxu0 0.0
  %5555 = vmatpush1.msra.mxu0 0.0
  %5556 = vmatprep.subr.mxu0 0.0
  %5557 = vmatpush1.msra.mxu0 0.0
  %5558 = vmatprep.subr.mxu0 0.0
  %5559 = vmatpush1.msra.mxu0 0.0
  %5560 = vmatprep.mubr.f32.mxu0 0.0
  %5561 = vmatmul.mubr.f32.gmra.mrb[0].mxu0 %v5491
  %v5562 = vpop.f32.mrb[0].mxu0
  %v5563 = vadd.f32 0.0, %v5562
  %v5564 = vpop.f32.mrb[0].mxu0
  %5565 = vmatprep.mubr.f32.mxu0 0.0
  %5566 = vmatmul.mubr.f32.gmra.mrb[0].mxu0 %v5494
  %v5567 = vpop.f32.mrb[0].mxu0
  %v5568 = vadd.f32 0.0, %v5567
  %v5569 = vpop.f32.mrb[0].mxu0
  %5570 = vdwg.mxu0
  %v5571 = vlaneseq
  %v5572 = vshrl.u32 %v5571, 7
  %v5573 = vsub.s32 0, %v5572
  %v5574 = vrot.slane %v3732, %v5573
  %v5575 = vadd.f32 %v5563, %v5574
  %v5576 = vadd.f32 %v5568, %v5574
  %v5577 = vlaneseq
  %v5578 = vshrl.u32 %v5577, 7
  %v5579 = vsub.s32 0, %v5578
  %v5580 = vrot.slane %v3733, %v5579
  %5582 = vrot.lane.b32.xlu0 %v5580, 32
  %v5583 = vpop.permute.xlu0 %5582
  %v5585 = vadd.f32 %v5563, %v5583
  %v5586 = vadd.f32 %v5568, %v5583
  %v5588 = vsel %vm210, %v5482, 0
  %v5591 = vsel %vm210, %v5575, 0
  %5593 = vmatprep.subr.mxu0 0.0
  %5594 = vmatpush1.xpose.msra.mxu0 %v5591
  %5595 = vmatprep.subr.mxu0 0.0
  %5596 = vmatpush1.xpose.msra.mxu0 0.0
  %5597 = vmatprep.subr.mxu0 0.0
  %5598 = vmatpush1.xpose.msra.mxu0 0.0
  %5599 = vmatprep.subr.mxu0 0.0
  %5600 = vmatpush1.xpose.msra.mxu0 0.0
  %5601 = vmatprep.subr.mxu0 0.0
  %5602 = vmatpush1.xpose.msra.mxu0 0.0
  %5603 = vmatprep.subr.mxu0 0.0
  %5604 = vmatpush1.xpose.msra.mxu0 0.0
  %5605 = vmatprep.subr.mxu0 0.0
  %5606 = vmatpush1.xpose.msra.mxu0 0.0
  %5607 = vmatprep.subr.mxu0 0.0
  %5608 = vmatpush1.xpose.msra.mxu0 0.0
  %5609 = vmatprep.subr.mxu0 0.0
  %5610 = vmatpush1.xpose.msra.mxu0 0.0
  %5611 = vmatprep.subr.mxu0 0.0
  %5612 = vmatpush1.xpose.msra.mxu0 0.0
  %5613 = vmatprep.subr.mxu0 0.0
  %5614 = vmatpush1.xpose.msra.mxu0 0.0
  %5615 = vmatprep.subr.mxu0 0.0
  %5616 = vmatpush1.xpose.msra.mxu0 0.0
  %5617 = vmatprep.subr.mxu0 0.0
  %5618 = vmatpush1.xpose.msra.mxu0 0.0
  %5619 = vmatprep.subr.mxu0 0.0
  %5620 = vmatpush1.xpose.msra.mxu0 0.0
  %5621 = vmatprep.subr.mxu0 0.0
  %5622 = vmatpush1.xpose.msra.mxu0 0.0
  %5623 = vmatprep.subr.mxu0 0.0
  %5624 = vmatpush1.xpose.msra.mxu0 0.0
  %5625 = vmatprep.subr.mxu0 0.0
  %5626 = vmatpush1.xpose.msra.mxu0 0.0
  %5627 = vmatprep.subr.mxu0 0.0
  %5628 = vmatpush1.xpose.msra.mxu0 0.0
  %5629 = vmatprep.subr.mxu0 0.0
  %5630 = vmatpush1.xpose.msra.mxu0 0.0
  %5631 = vmatprep.subr.mxu0 0.0
  %5632 = vmatpush1.xpose.msra.mxu0 0.0
  %5633 = vmatprep.subr.mxu0 0.0
  %5634 = vmatpush1.xpose.msra.mxu0 0.0
  %5635 = vmatprep.subr.mxu0 0.0
  %5636 = vmatpush1.xpose.msra.mxu0 0.0
  %5637 = vmatprep.subr.mxu0 0.0
  %5638 = vmatpush1.xpose.msra.mxu0 0.0
  %5639 = vmatprep.subr.mxu0 0.0
  %5640 = vmatpush1.xpose.msra.mxu0 0.0
  %5641 = vmatprep.subr.mxu0 0.0
  %5642 = vmatpush1.xpose.msra.mxu0 0.0
  %5643 = vmatprep.subr.mxu0 0.0
  %5644 = vmatpush1.xpose.msra.mxu0 0.0
  %5645 = vmatprep.subr.mxu0 0.0
  %5646 = vmatpush1.xpose.msra.mxu0 0.0
  %5647 = vmatprep.subr.mxu0 0.0
  %5648 = vmatpush1.xpose.msra.mxu0 0.0
  %5649 = vmatprep.subr.mxu0 0.0
  %5650 = vmatpush1.xpose.msra.mxu0 0.0
  %5651 = vmatprep.subr.mxu0 0.0
  %5652 = vmatpush1.xpose.msra.mxu0 0.0
  %5653 = vmatprep.subr.mxu0 0.0
  %5654 = vmatpush1.xpose.msra.mxu0 0.0
  %5655 = vmatprep.subr.mxu0 0.0
  %5656 = vmatpush1.xpose.msra.mxu0 0.0
  %5657 = vmatprep.mubr.f32.mxu0 0.0
  %5658 = vmatmul.mubr.f32.gmra.mrb[0].mxu0 %v5588
  %v5659 = vpop.f32.mrb[0].mxu0
  %v5660 = vadd.f32 0.0, %v5659
  %v5661 = vpop.f32.mrb[0].mxu0
  %5662 = vdwg.mxu0
  %v5664 = vsel %vm210, %v5487, 0
  %v5667 = vsel %vm210, %v5576, 0
  %5669 = vmatprep.subr.mxu0 0.0
  %5670 = vmatpush1.xpose.msra.mxu0 %v5667
  %5671 = vmatprep.subr.mxu0 0.0
  %5672 = vmatpush1.xpose.msra.mxu0 0.0
  %5673 = vmatprep.subr.mxu0 0.0
  %5674 = vmatpush1.xpose.msra.mxu0 0.0
  %5675 = vmatprep.subr.mxu0 0.0
  %5676 = vmatpush1.xpose.msra.mxu0 0.0
  %5677 = vmatprep.subr.mxu0 0.0
  %5678 = vmatpush1.xpose.msra.mxu0 0.0
  %5679 = vmatprep.subr.mxu0 0.0
  %5680 = vmatpush1.xpose.msra.mxu0 0.0
  %5681 = vmatprep.subr.mxu0 0.0
  %5682 = vmatpush1.xpose.msra.mxu0 0.0
  %5683 = vmatprep.subr.mxu0 0.0
  %5684 = vmatpush1.xpose.msra.mxu0 0.0
  %5685 = vmatprep.subr.mxu0 0.0
  %5686 = vmatpush1.xpose.msra.mxu0 0.0
  %5687 = vmatprep.subr.mxu0 0.0
  %5688 = vmatpush1.xpose.msra.mxu0 0.0
  %5689 = vmatprep.subr.mxu0 0.0
  %5690 = vmatpush1.xpose.msra.mxu0 0.0
  %5691 = vmatprep.subr.mxu0 0.0
  %5692 = vmatpush1.xpose.msra.mxu0 0.0
  %5693 = vmatprep.subr.mxu0 0.0
  %5694 = vmatpush1.xpose.msra.mxu0 0.0
  %5695 = vmatprep.subr.mxu0 0.0
  %5696 = vmatpush1.xpose.msra.mxu0 0.0
  %5697 = vmatprep.subr.mxu0 0.0
  %5698 = vmatpush1.xpose.msra.mxu0 0.0
  %5699 = vmatprep.subr.mxu0 0.0
  %5700 = vmatpush1.xpose.msra.mxu0 0.0
  %5701 = vmatprep.subr.mxu0 0.0
  %5702 = vmatpush1.xpose.msra.mxu0 0.0
  %5703 = vmatprep.subr.mxu0 0.0
  %5704 = vmatpush1.xpose.msra.mxu0 0.0
  %5705 = vmatprep.subr.mxu0 0.0
  %5706 = vmatpush1.xpose.msra.mxu0 0.0
  %5707 = vmatprep.subr.mxu0 0.0
  %5708 = vmatpush1.xpose.msra.mxu0 0.0
  %5709 = vmatprep.subr.mxu0 0.0
  %5710 = vmatpush1.xpose.msra.mxu0 0.0
  %5711 = vmatprep.subr.mxu0 0.0
  %5712 = vmatpush1.xpose.msra.mxu0 0.0
  %5713 = vmatprep.subr.mxu0 0.0
  %5714 = vmatpush1.xpose.msra.mxu0 0.0
  %5715 = vmatprep.subr.mxu0 0.0
  %5716 = vmatpush1.xpose.msra.mxu0 0.0
  %5717 = vmatprep.subr.mxu0 0.0
  %5718 = vmatpush1.xpose.msra.mxu0 0.0
  %5719 = vmatprep.subr.mxu0 0.0
  %5720 = vmatpush1.xpose.msra.mxu0 0.0
  %5721 = vmatprep.subr.mxu0 0.0
  %5722 = vmatpush1.xpose.msra.mxu0 0.0
  %5723 = vmatprep.subr.mxu0 0.0
  %5724 = vmatpush1.xpose.msra.mxu0 0.0
  %5725 = vmatprep.subr.mxu0 0.0
  %5726 = vmatpush1.xpose.msra.mxu0 0.0
  %5727 = vmatprep.subr.mxu0 0.0
  %5728 = vmatpush1.xpose.msra.mxu0 0.0
  %5729 = vmatprep.subr.mxu0 0.0
  %5730 = vmatpush1.xpose.msra.mxu0 0.0
  %5731 = vmatprep.subr.mxu0 0.0
  %5732 = vmatpush1.xpose.msra.mxu0 0.0
  %5733 = vmatprep.mubr.f32.mxu0 0.0
  %5734 = vmatmul.mubr.f32.gmra.mrb[0].mxu0 %v5664
  %v5735 = vpop.f32.mrb[0].mxu0
  %v5736 = vadd.f32 0.0, %v5735
  %v5737 = vpop.f32.mrb[0].mxu0
  %5738 = vdwg.mxu0
  %v5739 = vmul.f32 %v5660, 0.35355338
  %v5740 = vmul.f32 %v5736, 0.35355338
  %v5741 = vadd.f32 %v5739, %v28
  %v5742 = vadd.f32 %v5740, %v28
  %v5743 = vsel %vm210, %v5741, -inf
  %5744 = vmax.xlane.f32.xlu0 %v5743
  %v5745 = vpop.xlane.xlu0 %5744
  %v5746 = vsel %vm210, %v5742, -inf
  %5747 = vmax.xlane.f32.xlu0 %v5746
  %v5748 = vpop.xlane.xlu0 %5747
  %v5749 = vsub.f32 %v5741, %v5745
  %v5750 = vsub.f32 %v5742, %v5748
  %v5751 = vmul.f32 %v5749, 1.442695
  %v5752 = vpow.pop %v5751
  %v5753 = vmul.f32 %v5750, 1.442695
  %v5754 = vpow.pop %v5753
  %v5755 = vsel %vm210, %v5752, 0.0
  %5756 = vadd.xlane.f32.xlu0 %v5755
  %v5757 = vpop.xlane.xlu0 %5756
  %v5758 = vsel %vm210, %v5754, 0.0
  %5759 = vadd.xlane.f32.xlu0 %v5758
  %v5760 = vpop.xlane.xlu0 %5759
  %v5761 = vrcp.pop %v5757
  %v5762 = vrcp.pop %v5760
  %v5763 = vmul.f32 %v5752, %v5761
  %v5764 = vmul.f32 %v5754, %v5762
  %5766 = vrot.lane.b32.xlu0 %v5585, 96
  %v5767 = vpop.permute.xlu0 %5766
  %v5770 = vsel %vm210, %v5763, 0
  %5772 = vmatprep.subr.mxu0 0.0
  %5773 = vmatpush1.msra.mxu0 %v5767
  %5774 = vmatprep.subr.mxu0 0.0
  %5775 = vmatpush1.msra.mxu0 0.0
  %5776 = vmatprep.subr.mxu0 0.0
  %5777 = vmatpush1.msra.mxu0 0.0
  %5778 = vmatprep.subr.mxu0 0.0
  %5779 = vmatpush1.msra.mxu0 0.0
  %5780 = vmatprep.subr.mxu0 0.0
  %5781 = vmatpush1.msra.mxu0 0.0
  %5782 = vmatprep.subr.mxu0 0.0
  %5783 = vmatpush1.msra.mxu0 0.0
  %5784 = vmatprep.subr.mxu0 0.0
  %5785 = vmatpush1.msra.mxu0 0.0
  %5786 = vmatprep.subr.mxu0 0.0
  %5787 = vmatpush1.msra.mxu0 0.0
  %5788 = vmatprep.subr.mxu0 0.0
  %5789 = vmatpush1.msra.mxu0 0.0
  %5790 = vmatprep.subr.mxu0 0.0
  %5791 = vmatpush1.msra.mxu0 0.0
  %5792 = vmatprep.subr.mxu0 0.0
  %5793 = vmatpush1.msra.mxu0 0.0
  %5794 = vmatprep.subr.mxu0 0.0
  %5795 = vmatpush1.msra.mxu0 0.0
  %5796 = vmatprep.subr.mxu0 0.0
  %5797 = vmatpush1.msra.mxu0 0.0
  %5798 = vmatprep.subr.mxu0 0.0
  %5799 = vmatpush1.msra.mxu0 0.0
  %5800 = vmatprep.subr.mxu0 0.0
  %5801 = vmatpush1.msra.mxu0 0.0
  %5802 = vmatprep.subr.mxu0 0.0
  %5803 = vmatpush1.msra.mxu0 0.0
  %5804 = vmatprep.subr.mxu0 0.0
  %5805 = vmatpush1.msra.mxu0 0.0
  %5806 = vmatprep.subr.mxu0 0.0
  %5807 = vmatpush1.msra.mxu0 0.0
  %5808 = vmatprep.subr.mxu0 0.0
  %5809 = vmatpush1.msra.mxu0 0.0
  %5810 = vmatprep.subr.mxu0 0.0
  %5811 = vmatpush1.msra.mxu0 0.0
  %5812 = vmatprep.subr.mxu0 0.0
  %5813 = vmatpush1.msra.mxu0 0.0
  %5814 = vmatprep.subr.mxu0 0.0
  %5815 = vmatpush1.msra.mxu0 0.0
  %5816 = vmatprep.subr.mxu0 0.0
  %5817 = vmatpush1.msra.mxu0 0.0
  %5818 = vmatprep.subr.mxu0 0.0
  %5819 = vmatpush1.msra.mxu0 0.0
  %5820 = vmatprep.subr.mxu0 0.0
  %5821 = vmatpush1.msra.mxu0 0.0
  %5822 = vmatprep.subr.mxu0 0.0
  %5823 = vmatpush1.msra.mxu0 0.0
  %5824 = vmatprep.subr.mxu0 0.0
  %5825 = vmatpush1.msra.mxu0 0.0
  %5826 = vmatprep.subr.mxu0 0.0
  %5827 = vmatpush1.msra.mxu0 0.0
  %5828 = vmatprep.subr.mxu0 0.0
  %5829 = vmatpush1.msra.mxu0 0.0
  %5830 = vmatprep.subr.mxu0 0.0
  %5831 = vmatpush1.msra.mxu0 0.0
  %5832 = vmatprep.subr.mxu0 0.0
  %5833 = vmatpush1.msra.mxu0 0.0
  %5834 = vmatprep.subr.mxu0 0.0
  %5835 = vmatpush1.msra.mxu0 0.0
  %5836 = vmatprep.mubr.f32.mxu0 0.0
  %5837 = vmatmul.mubr.f32.gmra.mrb[0].mxu0 %v5770
  %v5838 = vpop.f32.mrb[0].mxu0
  %v5839 = vadd.f32 0.0, %v5838
  %v5840 = vpop.f32.mrb[0].mxu0
  %5841 = vdwg.mxu0
  %5843 = vrot.lane.b32.xlu0 %v5586, 96
  %v5844 = vpop.permute.xlu0 %5843
  %v5847 = vsel %vm210, %v5764, 0
  %5849 = vmatprep.subr.mxu0 0.0
  %5850 = vmatpush1.msra.mxu0 %v5844
  %5851 = vmatprep.subr.mxu0 0.0
  %5852 = vmatpush1.msra.mxu0 0.0
  %5853 = vmatprep.subr.mxu0 0.0
  %5854 = vmatpush1.msra.mxu0 0.0
  %5855 = vmatprep.subr.mxu0 0.0
  %5856 = vmatpush1.msra.mxu0 0.0
  %5857 = vmatprep.subr.mxu0 0.0
  %5858 = vmatpush1.msra.mxu0 0.0
  %5859 = vmatprep.subr.mxu0 0.0
  %5860 = vmatpush1.msra.mxu0 0.0
  %5861 = vmatprep.subr.mxu0 0.0
  %5862 = vmatpush1.msra.mxu0 0.0
  %5863 = vmatprep.subr.mxu0 0.0
  %5864 = vmatpush1.msra.mxu0 0.0
  %5865 = vmatprep.subr.mxu0 0.0
  %5866 = vmatpush1.msra.mxu0 0.0
  %5867 = vmatprep.subr.mxu0 0.0
  %5868 = vmatpush1.msra.mxu0 0.0
  %5869 = vmatprep.subr.mxu0 0.0
  %5870 = vmatpush1.msra.mxu0 0.0
  %5871 = vmatprep.subr.mxu0 0.0
  %5872 = vmatpush1.msra.mxu0 0.0
  %5873 = vmatprep.subr.mxu0 0.0
  %5874 = vmatpush1.msra.mxu0 0.0
  %5875 = vmatprep.subr.mxu0 0.0
  %5876 = vmatpush1.msra.mxu0 0.0
  %5877 = vmatprep.subr.mxu0 0.0
  %5878 = vmatpush1.msra.mxu0 0.0
  %5879 = vmatprep.subr.mxu0 0.0
  %5880 = vmatpush1.msra.mxu0 0.0
  %5881 = vmatprep.subr.mxu0 0.0
  %5882 = vmatpush1.msra.mxu0 0.0
  %5883 = vmatprep.subr.mxu0 0.0
  %5884 = vmatpush1.msra.mxu0 0.0
  %5885 = vmatprep.subr.mxu0 0.0
  %5886 = vmatpush1.msra.mxu0 0.0
  %5887 = vmatprep.subr.mxu0 0.0
  %5888 = vmatpush1.msra.mxu0 0.0
  %5889 = vmatprep.subr.mxu0 0.0
  %5890 = vmatpush1.msra.mxu0 0.0
  %5891 = vmatprep.subr.mxu0 0.0
  %5892 = vmatpush1.msra.mxu0 0.0
  %5893 = vmatprep.subr.mxu0 0.0
  %5894 = vmatpush1.msra.mxu0 0.0
  %5895 = vmatprep.subr.mxu0 0.0
  %5896 = vmatpush1.msra.mxu0 0.0
  %5897 = vmatprep.subr.mxu0 0.0
  %5898 = vmatpush1.msra.mxu0 0.0
  %5899 = vmatprep.subr.mxu0 0.0
  %5900 = vmatpush1.msra.mxu0 0.0
  %5901 = vmatprep.subr.mxu0 0.0
  %5902 = vmatpush1.msra.mxu0 0.0
  %5903 = vmatprep.subr.mxu0 0.0
  %5904 = vmatpush1.msra.mxu0 0.0
  %5905 = vmatprep.subr.mxu0 0.0
  %5906 = vmatpush1.msra.mxu0 0.0
  %5907 = vmatprep.subr.mxu0 0.0
  %5908 = vmatpush1.msra.mxu0 0.0
  %5909 = vmatprep.subr.mxu0 0.0
  %5910 = vmatpush1.msra.mxu0 0.0
  %5911 = vmatprep.subr.mxu0 0.0
  %5912 = vmatpush1.msra.mxu0 0.0
  %5913 = vmatprep.mubr.f32.mxu0 0.0
  %5914 = vmatmul.mubr.f32.gmra.mrb[0].mxu0 %v5847
  %v5915 = vpop.f32.mrb[0].mxu0
  %v5916 = vadd.f32 0.0, %v5915
  %v5917 = vpop.f32.mrb[0].mxu0
  %5918 = vdwg.mxu0
  %5919 = vrot.lane.b32.xlu0 %v5482, 120
  %v5920 = vpop.permute.xlu0 %5919
  %5921 = vrot.lane.b32.xlu0 %v5575, 120
  %v5922 = vpop.permute.xlu0 %5921
  %v5923 = vsel %vm210, %v5920, 0
  %v5925 = vsel %vm210, %v5922, 0
  %5927 = vmatprep.subr.mxu0 0.0
  %5928 = vmatpush1.xpose.msra.mxu0 %v5925
  %5929 = vmatprep.subr.mxu0 0.0
  %5930 = vmatpush1.xpose.msra.mxu0 0.0
  %5931 = vmatprep.subr.mxu0 0.0
  %5932 = vmatpush1.xpose.msra.mxu0 0.0
  %5933 = vmatprep.subr.mxu0 0.0
  %5934 = vmatpush1.xpose.msra.mxu0 0.0
  %5935 = vmatprep.subr.mxu0 0.0
  %5936 = vmatpush1.xpose.msra.mxu0 0.0
  %5937 = vmatprep.subr.mxu0 0.0
  %5938 = vmatpush1.xpose.msra.mxu0 0.0
  %5939 = vmatprep.subr.mxu0 0.0
  %5940 = vmatpush1.xpose.msra.mxu0 0.0
  %5941 = vmatprep.subr.mxu0 0.0
  %5942 = vmatpush1.xpose.msra.mxu0 0.0
  %5943 = vmatprep.subr.mxu0 0.0
  %5944 = vmatpush1.xpose.msra.mxu0 0.0
  %5945 = vmatprep.subr.mxu0 0.0
  %5946 = vmatpush1.xpose.msra.mxu0 0.0
  %5947 = vmatprep.subr.mxu0 0.0
  %5948 = vmatpush1.xpose.msra.mxu0 0.0
  %5949 = vmatprep.subr.mxu0 0.0
  %5950 = vmatpush1.xpose.msra.mxu0 0.0
  %5951 = vmatprep.subr.mxu0 0.0
  %5952 = vmatpush1.xpose.msra.mxu0 0.0
  %5953 = vmatprep.subr.mxu0 0.0
  %5954 = vmatpush1.xpose.msra.mxu0 0.0
  %5955 = vmatprep.subr.mxu0 0.0
  %5956 = vmatpush1.xpose.msra.mxu0 0.0
  %5957 = vmatprep.subr.mxu0 0.0
  %5958 = vmatpush1.xpose.msra.mxu0 0.0
  %5959 = vmatprep.subr.mxu0 0.0
  %5960 = vmatpush1.xpose.msra.mxu0 0.0
  %5961 = vmatprep.subr.mxu0 0.0
  %5962 = vmatpush1.xpose.msra.mxu0 0.0
  %5963 = vmatprep.subr.mxu0 0.0
  %5964 = vmatpush1.xpose.msra.mxu0 0.0
  %5965 = vmatprep.subr.mxu0 0.0
  %5966 = vmatpush1.xpose.msra.mxu0 0.0
  %5967 = vmatprep.subr.mxu0 0.0
  %5968 = vmatpush1.xpose.msra.mxu0 0.0
  %5969 = vmatprep.subr.mxu0 0.0
  %5970 = vmatpush1.xpose.msra.mxu0 0.0
  %5971 = vmatprep.subr.mxu0 0.0
  %5972 = vmatpush1.xpose.msra.mxu0 0.0
  %5973 = vmatprep.subr.mxu0 0.0
  %5974 = vmatpush1.xpose.msra.mxu0 0.0
  %5975 = vmatprep.subr.mxu0 0.0
  %5976 = vmatpush1.xpose.msra.mxu0 0.0
  %5977 = vmatprep.subr.mxu0 0.0
  %5978 = vmatpush1.xpose.msra.mxu0 0.0
  %5979 = vmatprep.subr.mxu0 0.0
  %5980 = vmatpush1.xpose.msra.mxu0 0.0
  %5981 = vmatprep.subr.mxu0 0.0
  %5982 = vmatpush1.xpose.msra.mxu0 0.0
  %5983 = vmatprep.subr.mxu0 0.0
  %5984 = vmatpush1.xpose.msra.mxu0 0.0
  %5985 = vmatprep.subr.mxu0 0.0
  %5986 = vmatpush1.xpose.msra.mxu0 0.0
  %5987 = vmatprep.subr.mxu0 0.0
  %5988 = vmatpush1.xpose.msra.mxu0 0.0
  %5989 = vmatprep.subr.mxu0 0.0
  %5990 = vmatpush1.xpose.msra.mxu0 0.0
  %5991 = vmatprep.mubr.f32.mxu0 0.0
  %5992 = vmatmul.mubr.f32.gmra.mrb[0].mxu0 %v5923
  %v5993 = vpop.f32.mrb[0].mxu0
  %v5994 = vadd.f32 0.0, %v5993
  %v5995 = vpop.f32.mrb[0].mxu0
  %5996 = vdwg.mxu0
  %5997 = vrot.lane.b32.xlu0 %v5487, 120
  %v5998 = vpop.permute.xlu0 %5997
  %5999 = vrot.lane.b32.xlu0 %v5576, 120
  %v6000 = vpop.permute.xlu0 %5999
  %v6001 = vsel %vm210, %v5998, 0
  %v6003 = vsel %vm210, %v6000, 0
  %6005 = vmatprep.subr.mxu0 0.0
  %6006 = vmatpush1.xpose.msra.mxu0 %v6003
  %6007 = vmatprep.subr.mxu0 0.0
  %6008 = vmatpush1.xpose.msra.mxu0 0.0
  %6009 = vmatprep.subr.mxu0 0.0
  %6010 = vmatpush1.xpose.msra.mxu0 0.0
  %6011 = vmatprep.subr.mxu0 0.0
  %6012 = vmatpush1.xpose.msra.mxu0 0.0
  %6013 = vmatprep.subr.mxu0 0.0
  %6014 = vmatpush1.xpose.msra.mxu0 0.0
  %6015 = vmatprep.subr.mxu0 0.0
  %6016 = vmatpush1.xpose.msra.mxu0 0.0
  %6017 = vmatprep.subr.mxu0 0.0
  %6018 = vmatpush1.xpose.msra.mxu0 0.0
  %6019 = vmatprep.subr.mxu0 0.0
  %6020 = vmatpush1.xpose.msra.mxu0 0.0
  %6021 = vmatprep.subr.mxu0 0.0
  %6022 = vmatpush1.xpose.msra.mxu0 0.0
  %6023 = vmatprep.subr.mxu0 0.0
  %6024 = vmatpush1.xpose.msra.mxu0 0.0
  %6025 = vmatprep.subr.mxu0 0.0
  %6026 = vmatpush1.xpose.msra.mxu0 0.0
  %6027 = vmatprep.subr.mxu0 0.0
  %6028 = vmatpush1.xpose.msra.mxu0 0.0
  %6029 = vmatprep.subr.mxu0 0.0
  %6030 = vmatpush1.xpose.msra.mxu0 0.0
  %6031 = vmatprep.subr.mxu0 0.0
  %6032 = vmatpush1.xpose.msra.mxu0 0.0
  %6033 = vmatprep.subr.mxu0 0.0
  %6034 = vmatpush1.xpose.msra.mxu0 0.0
  %6035 = vmatprep.subr.mxu0 0.0
  %6036 = vmatpush1.xpose.msra.mxu0 0.0
  %6037 = vmatprep.subr.mxu0 0.0
  %6038 = vmatpush1.xpose.msra.mxu0 0.0
  %6039 = vmatprep.subr.mxu0 0.0
  %6040 = vmatpush1.xpose.msra.mxu0 0.0
  %6041 = vmatprep.subr.mxu0 0.0
  %6042 = vmatpush1.xpose.msra.mxu0 0.0
  %6043 = vmatprep.subr.mxu0 0.0
  %6044 = vmatpush1.xpose.msra.mxu0 0.0
  %6045 = vmatprep.subr.mxu0 0.0
  %6046 = vmatpush1.xpose.msra.mxu0 0.0
  %6047 = vmatprep.subr.mxu0 0.0
  %6048 = vmatpush1.xpose.msra.mxu0 0.0
  %6049 = vmatprep.subr.mxu0 0.0
  %6050 = vmatpush1.xpose.msra.mxu0 0.0
  %6051 = vmatprep.subr.mxu0 0.0
  %6052 = vmatpush1.xpose.msra.mxu0 0.0
  %6053 = vmatprep.subr.mxu0 0.0
  %6054 = vmatpush1.xpose.msra.mxu0 0.0
  %6055 = vmatprep.subr.mxu0 0.0
  %6056 = vmatpush1.xpose.msra.mxu0 0.0
  %6057 = vmatprep.subr.mxu0 0.0
  %6058 = vmatpush1.xpose.msra.mxu0 0.0
  %6059 = vmatprep.subr.mxu0 0.0
  %6060 = vmatpush1.xpose.msra.mxu0 0.0
  %6061 = vmatprep.subr.mxu0 0.0
  %6062 = vmatpush1.xpose.msra.mxu0 0.0
  %6063 = vmatprep.subr.mxu0 0.0
  %6064 = vmatpush1.xpose.msra.mxu0 0.0
  %6065 = vmatprep.subr.mxu0 0.0
  %6066 = vmatpush1.xpose.msra.mxu0 0.0
  %6067 = vmatprep.subr.mxu0 0.0
  %6068 = vmatpush1.xpose.msra.mxu0 0.0
  %6069 = vmatprep.mubr.f32.mxu0 0.0
  %6070 = vmatmul.mubr.f32.gmra.mrb[0].mxu0 %v6001
  %v6071 = vpop.f32.mrb[0].mxu0
  %v6072 = vadd.f32 0.0, %v6071
  %v6073 = vpop.f32.mrb[0].mxu0
  %6074 = vdwg.mxu0
  %v6075 = vmul.f32 %v5994, 0.35355338
  %v6076 = vmul.f32 %v6072, 0.35355338
  %v6077 = vadd.f32 %v6075, %v28
  %v6078 = vadd.f32 %v6076, %v28
  %v6079 = vsel %vm210, %v6077, -inf
  %6080 = vmax.xlane.f32.xlu0 %v6079
  %v6081 = vpop.xlane.xlu0 %6080
  %v6082 = vsel %vm210, %v6078, -inf
  %6083 = vmax.xlane.f32.xlu0 %v6082
  %v6084 = vpop.xlane.xlu0 %6083
  %v6085 = vsub.f32 %v6077, %v6081
  %v6086 = vsub.f32 %v6078, %v6084
  %v6087 = vmul.f32 %v6085, 1.442695
  %v6088 = vpow.pop %v6087
  %v6089 = vmul.f32 %v6086, 1.442695
  %v6090 = vpow.pop %v6089
  %v6091 = vsel %vm210, %v6088, 0.0
  %6092 = vadd.xlane.f32.xlu0 %v6091
  %v6093 = vpop.xlane.xlu0 %6092
  %v6094 = vsel %vm210, %v6090, 0.0
  %6095 = vadd.xlane.f32.xlu0 %v6094
  %v6096 = vpop.xlane.xlu0 %6095
  %v6097 = vrcp.pop %v6093
  %v6098 = vrcp.pop %v6096
  %v6099 = vmul.f32 %v6088, %v6097
  %v6100 = vmul.f32 %v6090, %v6098
  %6101 = vrot.lane.b32.xlu0 %v5585, 88
  %v6102 = vpop.permute.xlu0 %6101
  %v6105 = vsel %vm210, %v6099, 0
  %6107 = vmatprep.subr.mxu0 0.0
  %6108 = vmatpush1.msra.mxu0 %v6102
  %6109 = vmatprep.subr.mxu0 0.0
  %6110 = vmatpush1.msra.mxu0 0.0
  %6111 = vmatprep.subr.mxu0 0.0
  %6112 = vmatpush1.msra.mxu0 0.0
  %6113 = vmatprep.subr.mxu0 0.0
  %6114 = vmatpush1.msra.mxu0 0.0
  %6115 = vmatprep.subr.mxu0 0.0
  %6116 = vmatpush1.msra.mxu0 0.0
  %6117 = vmatprep.subr.mxu0 0.0
  %6118 = vmatpush1.msra.mxu0 0.0
  %6119 = vmatprep.subr.mxu0 0.0
  %6120 = vmatpush1.msra.mxu0 0.0
  %6121 = vmatprep.subr.mxu0 0.0
  %6122 = vmatpush1.msra.mxu0 0.0
  %6123 = vmatprep.subr.mxu0 0.0
  %6124 = vmatpush1.msra.mxu0 0.0
  %6125 = vmatprep.subr.mxu0 0.0
  %6126 = vmatpush1.msra.mxu0 0.0
  %6127 = vmatprep.subr.mxu0 0.0
  %6128 = vmatpush1.msra.mxu0 0.0
  %6129 = vmatprep.subr.mxu0 0.0
  %6130 = vmatpush1.msra.mxu0 0.0
  %6131 = vmatprep.subr.mxu0 0.0
  %6132 = vmatpush1.msra.mxu0 0.0
  %6133 = vmatprep.subr.mxu0 0.0
  %6134 = vmatpush1.msra.mxu0 0.0
  %6135 = vmatprep.subr.mxu0 0.0
  %6136 = vmatpush1.msra.mxu0 0.0
  %6137 = vmatprep.subr.mxu0 0.0
  %6138 = vmatpush1.msra.mxu0 0.0
  %6139 = vmatprep.subr.mxu0 0.0
  %6140 = vmatpush1.msra.mxu0 0.0
  %6141 = vmatprep.subr.mxu0 0.0
  %6142 = vmatpush1.msra.mxu0 0.0
  %6143 = vmatprep.subr.mxu0 0.0
  %6144 = vmatpush1.msra.mxu0 0.0
  %6145 = vmatprep.subr.mxu0 0.0
  %6146 = vmatpush1.msra.mxu0 0.0
  %6147 = vmatprep.subr.mxu0 0.0
  %6148 = vmatpush1.msra.mxu0 0.0
  %6149 = vmatprep.subr.mxu0 0.0
  %6150 = vmatpush1.msra.mxu0 0.0
  %6151 = vmatprep.subr.mxu0 0.0
  %6152 = vmatpush1.msra.mxu0 0.0
  %6153 = vmatprep.subr.mxu0 0.0
  %6154 = vmatpush1.msra.mxu0 0.0
  %6155 = vmatprep.subr.mxu0 0.0
  %6156 = vmatpush1.msra.mxu0 0.0
  %6157 = vmatprep.subr.mxu0 0.0
  %6158 = vmatpush1.msra.mxu0 0.0
  %6159 = vmatprep.subr.mxu0 0.0
  %6160 = vmatpush1.msra.mxu0 0.0
  %6161 = vmatprep.subr.mxu0 0.0
  %6162 = vmatpush1.msra.mxu0 0.0
  %6163 = vmatprep.subr.mxu0 0.0
  %6164 = vmatpush1.msra.mxu0 0.0
  %6165 = vmatprep.subr.mxu0 0.0
  %6166 = vmatpush1.msra.mxu0 0.0
  %6167 = vmatprep.subr.mxu0 0.0
  %6168 = vmatpush1.msra.mxu0 0.0
  %6169 = vmatprep.subr.mxu0 0.0
  %6170 = vmatpush1.msra.mxu0 0.0
  %6171 = vmatprep.mubr.f32.mxu0 0.0
  %6172 = vmatmul.mubr.f32.gmra.mrb[0].mxu0 %v6105
  %v6173 = vpop.f32.mrb[0].mxu0
  %v6174 = vadd.f32 0.0, %v6173
  %v6175 = vpop.f32.mrb[0].mxu0
  %6176 = vdwg.mxu0
  %6177 = vrot.lane.b32.xlu0 %v5586, 88
  %v6178 = vpop.permute.xlu0 %6177
  %v6181 = vsel %vm210, %v6100, 0
  %6183 = vmatprep.subr.mxu0 0.0
  %6184 = vmatpush1.msra.mxu0 %v6178
  %6185 = vmatprep.subr.mxu0 0.0
  %6186 = vmatpush1.msra.mxu0 0.0
  %6187 = vmatprep.subr.mxu0 0.0
  %6188 = vmatpush1.msra.mxu0 0.0
  %6189 = vmatprep.subr.mxu0 0.0
  %6190 = vmatpush1.msra.mxu0 0.0
  %6191 = vmatprep.subr.mxu0 0.0
  %6192 = vmatpush1.msra.mxu0 0.0
  %6193 = vmatprep.subr.mxu0 0.0
  %6194 = vmatpush1.msra.mxu0 0.0
  %6195 = vmatprep.subr.mxu0 0.0
  %6196 = vmatpush1.msra.mxu0 0.0
  %6197 = vmatprep.subr.mxu0 0.0
  %6198 = vmatpush1.msra.mxu0 0.0
  %6199 = vmatprep.subr.mxu0 0.0
  %6200 = vmatpush1.msra.mxu0 0.0
  %6201 = vmatprep.subr.mxu0 0.0
  %6202 = vmatpush1.msra.mxu0 0.0
  %6203 = vmatprep.subr.mxu0 0.0
  %6204 = vmatpush1.msra.mxu0 0.0
  %6205 = vmatprep.subr.mxu0 0.0
  %6206 = vmatpush1.msra.mxu0 0.0
  %6207 = vmatprep.subr.mxu0 0.0
  %6208 = vmatpush1.msra.mxu0 0.0
  %6209 = vmatprep.subr.mxu0 0.0
  %6210 = vmatpush1.msra.mxu0 0.0
  %6211 = vmatprep.subr.mxu0 0.0
  %6212 = vmatpush1.msra.mxu0 0.0
  %6213 = vmatprep.subr.mxu0 0.0
  %6214 = vmatpush1.msra.mxu0 0.0
  %6215 = vmatprep.subr.mxu0 0.0
  %6216 = vmatpush1.msra.mxu0 0.0
  %6217 = vmatprep.subr.mxu0 0.0
  %6218 = vmatpush1.msra.mxu0 0.0
  %6219 = vmatprep.subr.mxu0 0.0
  %6220 = vmatpush1.msra.mxu0 0.0
  %6221 = vmatprep.subr.mxu0 0.0
  %6222 = vmatpush1.msra.mxu0 0.0
  %6223 = vmatprep.subr.mxu0 0.0
  %6224 = vmatpush1.msra.mxu0 0.0
  %6225 = vmatprep.subr.mxu0 0.0
  %6226 = vmatpush1.msra.mxu0 0.0
  %6227 = vmatprep.subr.mxu0 0.0
  %6228 = vmatpush1.msra.mxu0 0.0
  %6229 = vmatprep.subr.mxu0 0.0
  %6230 = vmatpush1.msra.mxu0 0.0
  %6231 = vmatprep.subr.mxu0 0.0
  %6232 = vmatpush1.msra.mxu0 0.0
  %6233 = vmatprep.subr.mxu0 0.0
  %6234 = vmatpush1.msra.mxu0 0.0
  %6235 = vmatprep.subr.mxu0 0.0
  %6236 = vmatpush1.msra.mxu0 0.0
  %6237 = vmatprep.subr.mxu0 0.0
  %6238 = vmatpush1.msra.mxu0 0.0
  %6239 = vmatprep.subr.mxu0 0.0
  %6240 = vmatpush1.msra.mxu0 0.0
  %6241 = vmatprep.subr.mxu0 0.0
  %6242 = vmatpush1.msra.mxu0 0.0
  %6243 = vmatprep.subr.mxu0 0.0
  %6244 = vmatpush1.msra.mxu0 0.0
  %6245 = vmatprep.subr.mxu0 0.0
  %6246 = vmatpush1.msra.mxu0 0.0
  %6247 = vmatprep.mubr.f32.mxu0 0.0
  %6248 = vmatmul.mubr.f32.gmra.mrb[0].mxu0 %v6181
  %v6249 = vpop.f32.mrb[0].mxu0
  %v6250 = vadd.f32 0.0, %v6249
  %v6251 = vpop.f32.mrb[0].mxu0
  %6252 = vdwg.mxu0
  %6253 = vrot.lane.b32.xlu0 %v5482, 112
  %v6254 = vpop.permute.xlu0 %6253
  %6255 = vrot.lane.b32.xlu0 %v5575, 112
  %v6256 = vpop.permute.xlu0 %6255
  %v6257 = vsel %vm210, %v6254, 0
  %v6259 = vsel %vm210, %v6256, 0
  %6261 = vmatprep.subr.mxu0 0.0
  %6262 = vmatpush1.xpose.msra.mxu0 %v6259
  %6263 = vmatprep.subr.mxu0 0.0
  %6264 = vmatpush1.xpose.msra.mxu0 0.0
  %6265 = vmatprep.subr.mxu0 0.0
  %6266 = vmatpush1.xpose.msra.mxu0 0.0
  %6267 = vmatprep.subr.mxu0 0.0
  %6268 = vmatpush1.xpose.msra.mxu0 0.0
  %6269 = vmatprep.subr.mxu0 0.0
  %6270 = vmatpush1.xpose.msra.mxu0 0.0
  %6271 = vmatprep.subr.mxu0 0.0
  %6272 = vmatpush1.xpose.msra.mxu0 0.0
  %6273 = vmatprep.subr.mxu0 0.0
  %6274 = vmatpush1.xpose.msra.mxu0 0.0
  %6275 = vmatprep.subr.mxu0 0.0
  %6276 = vmatpush1.xpose.msra.mxu0 0.0
  %6277 = vmatprep.subr.mxu0 0.0
  %6278 = vmatpush1.xpose.msra.mxu0 0.0
  %6279 = vmatprep.subr.mxu0 0.0
  %6280 = vmatpush1.xpose.msra.mxu0 0.0
  %6281 = vmatprep.subr.mxu0 0.0
  %6282 = vmatpush1.xpose.msra.mxu0 0.0
  %6283 = vmatprep.subr.mxu0 0.0
  %6284 = vmatpush1.xpose.msra.mxu0 0.0
  %6285 = vmatprep.subr.mxu0 0.0
  %6286 = vmatpush1.xpose.msra.mxu0 0.0
  %6287 = vmatprep.subr.mxu0 0.0
  %6288 = vmatpush1.xpose.msra.mxu0 0.0
  %6289 = vmatprep.subr.mxu0 0.0
  %6290 = vmatpush1.xpose.msra.mxu0 0.0
  %6291 = vmatprep.subr.mxu0 0.0
  %6292 = vmatpush1.xpose.msra.mxu0 0.0
  %6293 = vmatprep.subr.mxu0 0.0
  %6294 = vmatpush1.xpose.msra.mxu0 0.0
  %6295 = vmatprep.subr.mxu0 0.0
  %6296 = vmatpush1.xpose.msra.mxu0 0.0
  %6297 = vmatprep.subr.mxu0 0.0
  %6298 = vmatpush1.xpose.msra.mxu0 0.0
  %6299 = vmatprep.subr.mxu0 0.0
  %6300 = vmatpush1.xpose.msra.mxu0 0.0
  %6301 = vmatprep.subr.mxu0 0.0
  %6302 = vmatpush1.xpose.msra.mxu0 0.0
  %6303 = vmatprep.subr.mxu0 0.0
  %6304 = vmatpush1.xpose.msra.mxu0 0.0
  %6305 = vmatprep.subr.mxu0 0.0
  %6306 = vmatpush1.xpose.msra.mxu0 0.0
  %6307 = vmatprep.subr.mxu0 0.0
  %6308 = vmatpush1.xpose.msra.mxu0 0.0
  %6309 = vmatprep.subr.mxu0 0.0
  %6310 = vmatpush1.xpose.msra.mxu0 0.0
  %6311 = vmatprep.subr.mxu0 0.0
  %6312 = vmatpush1.xpose.msra.mxu0 0.0
  %6313 = vmatprep.subr.mxu0 0.0
  %6314 = vmatpush1.xpose.msra.mxu0 0.0
  %6315 = vmatprep.subr.mxu0 0.0
  %6316 = vmatpush1.xpose.msra.mxu0 0.0
  %6317 = vmatprep.subr.mxu0 0.0
  %6318 = vmatpush1.xpose.msra.mxu0 0.0
  %6319 = vmatprep.subr.mxu0 0.0
  %6320 = vmatpush1.xpose.msra.mxu0 0.0
  %6321 = vmatprep.subr.mxu0 0.0
  %6322 = vmatpush1.xpose.msra.mxu0 0.0
  %6323 = vmatprep.subr.mxu0 0.0
  %6324 = vmatpush1.xpose.msra.mxu0 0.0
  %6325 = vmatprep.mubr.f32.mxu0 0.0
  %6326 = vmatmul.mubr.f32.gmra.mrb[0].mxu0 %v6257
  %v6327 = vpop.f32.mrb[0].mxu0
  %v6328 = vadd.f32 0.0, %v6327
  %v6329 = vpop.f32.mrb[0].mxu0
  %6330 = vdwg.mxu0
  %6331 = vrot.lane.b32.xlu0 %v5487, 112
  %v6332 = vpop.permute.xlu0 %6331
  %6333 = vrot.lane.b32.xlu0 %v5576, 112
  %v6334 = vpop.permute.xlu0 %6333
  %v6335 = vsel %vm210, %v6332, 0
  %v6337 = vsel %vm210, %v6334, 0
  %6339 = vmatprep.subr.mxu0 0.0
  %6340 = vmatpush1.xpose.msra.mxu0 %v6337
  %6341 = vmatprep.subr.mxu0 0.0
  %6342 = vmatpush1.xpose.msra.mxu0 0.0
  %6343 = vmatprep.subr.mxu0 0.0
  %6344 = vmatpush1.xpose.msra.mxu0 0.0
  %6345 = vmatprep.subr.mxu0 0.0
  %6346 = vmatpush1.xpose.msra.mxu0 0.0
  %6347 = vmatprep.subr.mxu0 0.0
  %6348 = vmatpush1.xpose.msra.mxu0 0.0
  %6349 = vmatprep.subr.mxu0 0.0
  %6350 = vmatpush1.xpose.msra.mxu0 0.0
  %6351 = vmatprep.subr.mxu0 0.0
  %6352 = vmatpush1.xpose.msra.mxu0 0.0
  %6353 = vmatprep.subr.mxu0 0.0
  %6354 = vmatpush1.xpose.msra.mxu0 0.0
  %6355 = vmatprep.subr.mxu0 0.0
  %6356 = vmatpush1.xpose.msra.mxu0 0.0
  %6357 = vmatprep.subr.mxu0 0.0
  %6358 = vmatpush1.xpose.msra.mxu0 0.0
  %6359 = vmatprep.subr.mxu0 0.0
  %6360 = vmatpush1.xpose.msra.mxu0 0.0
  %6361 = vmatprep.subr.mxu0 0.0
  %6362 = vmatpush1.xpose.msra.mxu0 0.0
  %6363 = vmatprep.subr.mxu0 0.0
  %6364 = vmatpush1.xpose.msra.mxu0 0.0
  %6365 = vmatprep.subr.mxu0 0.0
  %6366 = vmatpush1.xpose.msra.mxu0 0.0
  %6367 = vmatprep.subr.mxu0 0.0
  %6368 = vmatpush1.xpose.msra.mxu0 0.0
  %6369 = vmatprep.subr.mxu0 0.0
  %6370 = vmatpush1.xpose.msra.mxu0 0.0
  %6371 = vmatprep.subr.mxu0 0.0
  %6372 = vmatpush1.xpose.msra.mxu0 0.0
  %6373 = vmatprep.subr.mxu0 0.0
  %6374 = vmatpush1.xpose.msra.mxu0 0.0
  %6375 = vmatprep.subr.mxu0 0.0
  %6376 = vmatpush1.xpose.msra.mxu0 0.0
  %6377 = vmatprep.subr.mxu0 0.0
  %6378 = vmatpush1.xpose.msra.mxu0 0.0
  %6379 = vmatprep.subr.mxu0 0.0
  %6380 = vmatpush1.xpose.msra.mxu0 0.0
  %6381 = vmatprep.subr.mxu0 0.0
  %6382 = vmatpush1.xpose.msra.mxu0 0.0
  %6383 = vmatprep.subr.mxu0 0.0
  %6384 = vmatpush1.xpose.msra.mxu0 0.0
  %6385 = vmatprep.subr.mxu0 0.0
  %6386 = vmatpush1.xpose.msra.mxu0 0.0
  %6387 = vmatprep.subr.mxu0 0.0
  %6388 = vmatpush1.xpose.msra.mxu0 0.0
  %6389 = vmatprep.subr.mxu0 0.0
  %6390 = vmatpush1.xpose.msra.mxu0 0.0
  %6391 = vmatprep.subr.mxu0 0.0
  %6392 = vmatpush1.xpose.msra.mxu0 0.0
  %6393 = vmatprep.subr.mxu0 0.0
  %6394 = vmatpush1.xpose.msra.mxu0 0.0
  %6395 = vmatprep.subr.mxu0 0.0
  %6396 = vmatpush1.xpose.msra.mxu0 0.0
  %6397 = vmatprep.subr.mxu0 0.0
  %6398 = vmatpush1.xpose.msra.mxu0 0.0
  %6399 = vmatprep.subr.mxu0 0.0
  %6400 = vmatpush1.xpose.msra.mxu0 0.0
  %6401 = vmatprep.subr.mxu0 0.0
  %6402 = vmatpush1.xpose.msra.mxu0 0.0
  %6403 = vmatprep.mubr.f32.mxu0 0.0
  %6404 = vmatmul.mubr.f32.gmra.mrb[0].mxu0 %v6335
  %v6405 = vpop.f32.mrb[0].mxu0
  %v6406 = vadd.f32 0.0, %v6405
  %v6407 = vpop.f32.mrb[0].mxu0
  %6408 = vdwg.mxu0
  %v6409 = vmul.f32 %v6328, 0.35355338
  %v6410 = vmul.f32 %v6406, 0.35355338
  %v6411 = vadd.f32 %v6409, %v28
  %v6412 = vadd.f32 %v6410, %v28
  %v6413 = vsel %vm210, %v6411, -inf
  %6414 = vmax.xlane.f32.xlu0 %v6413
  %v6415 = vpop.xlane.xlu0 %6414
  %v6416 = vsel %vm210, %v6412, -inf
  %6417 = vmax.xlane.f32.xlu0 %v6416
  %v6418 = vpop.xlane.xlu0 %6417
  %v6419 = vsub.f32 %v6411, %v6415
  %v6420 = vsub.f32 %v6412, %v6418
  %v6421 = vmul.f32 %v6419, 1.442695
  %v6422 = vpow.pop %v6421
  %v6423 = vmul.f32 %v6420, 1.442695
  %v6424 = vpow.pop %v6423
  %v6425 = vsel %vm210, %v6422, 0.0
  %6426 = vadd.xlane.f32.xlu0 %v6425
  %v6427 = vpop.xlane.xlu0 %6426
  %v6428 = vsel %vm210, %v6424, 0.0
  %6429 = vadd.xlane.f32.xlu0 %v6428
  %v6430 = vpop.xlane.xlu0 %6429
  %v6431 = vrcp.pop %v6427
  %v6432 = vrcp.pop %v6430
  %v6433 = vmul.f32 %v6422, %v6431
  %v6434 = vmul.f32 %v6424, %v6432
  %6435 = vrot.lane.b32.xlu0 %v5585, 80
  %v6436 = vpop.permute.xlu0 %6435
  %v6439 = vsel %vm210, %v6433, 0
  %6441 = vmatprep.subr.mxu0 0.0
  %6442 = vmatpush1.msra.mxu0 %v6436
  %6443 = vmatprep.subr.mxu0 0.0
  %6444 = vmatpush1.msra.mxu0 0.0
  %6445 = vmatprep.subr.mxu0 0.0
  %6446 = vmatpush1.msra.mxu0 0.0
  %6447 = vmatprep.subr.mxu0 0.0
  %6448 = vmatpush1.msra.mxu0 0.0
  %6449 = vmatprep.subr.mxu0 0.0
  %6450 = vmatpush1.msra.mxu0 0.0
  %6451 = vmatprep.subr.mxu0 0.0
  %6452 = vmatpush1.msra.mxu0 0.0
  %6453 = vmatprep.subr.mxu0 0.0
  %6454 = vmatpush1.msra.mxu0 0.0
  %6455 = vmatprep.subr.mxu0 0.0
  %6456 = vmatpush1.msra.mxu0 0.0
  %6457 = vmatprep.subr.mxu0 0.0
  %6458 = vmatpush1.msra.mxu0 0.0
  %6459 = vmatprep.subr.mxu0 0.0
  %6460 = vmatpush1.msra.mxu0 0.0
  %6461 = vmatprep.subr.mxu0 0.0
  %6462 = vmatpush1.msra.mxu0 0.0
  %6463 = vmatprep.subr.mxu0 0.0
  %6464 = vmatpush1.msra.mxu0 0.0
  %6465 = vmatprep.subr.mxu0 0.0
  %6466 = vmatpush1.msra.mxu0 0.0
  %6467 = vmatprep.subr.mxu0 0.0
  %6468 = vmatpush1.msra.mxu0 0.0
  %6469 = vmatprep.subr.mxu0 0.0
  %6470 = vmatpush1.msra.mxu0 0.0
  %6471 = vmatprep.subr.mxu0 0.0
  %6472 = vmatpush1.msra.mxu0 0.0
  %6473 = vmatprep.subr.mxu0 0.0
  %6474 = vmatpush1.msra.mxu0 0.0
  %6475 = vmatprep.subr.mxu0 0.0
  %6476 = vmatpush1.msra.mxu0 0.0
  %6477 = vmatprep.subr.mxu0 0.0
  %6478 = vmatpush1.msra.mxu0 0.0
  %6479 = vmatprep.subr.mxu0 0.0
  %6480 = vmatpush1.msra.mxu0 0.0
  %6481 = vmatprep.subr.mxu0 0.0
  %6482 = vmatpush1.msra.mxu0 0.0
  %6483 = vmatprep.subr.mxu0 0.0
  %6484 = vmatpush1.msra.mxu0 0.0
  %6485 = vmatprep.subr.mxu0 0.0
  %6486 = vmatpush1.msra.mxu0 0.0
  %6487 = vmatprep.subr.mxu0 0.0
  %6488 = vmatpush1.msra.mxu0 0.0
  %6489 = vmatprep.subr.mxu0 0.0
  %6490 = vmatpush1.msra.mxu0 0.0
  %6491 = vmatprep.subr.mxu0 0.0
  %6492 = vmatpush1.msra.mxu0 0.0
  %6493 = vmatprep.subr.mxu0 0.0
  %6494 = vmatpush1.msra.mxu0 0.0
  %6495 = vmatprep.subr.mxu0 0.0
  %6496 = vmatpush1.msra.mxu0 0.0
  %6497 = vmatprep.subr.mxu0 0.0
  %6498 = vmatpush1.msra.mxu0 0.0
  %6499 = vmatprep.subr.mxu0 0.0
  %6500 = vmatpush1.msra.mxu0 0.0
  %6501 = vmatprep.subr.mxu0 0.0
  %6502 = vmatpush1.msra.mxu0 0.0
  %6503 = vmatprep.subr.mxu0 0.0
  %6504 = vmatpush1.msra.mxu0 0.0
  %6505 = vmatprep.mubr.f32.mxu0 0.0
  %6506 = vmatmul.mubr.f32.gmra.mrb[0].mxu0 %v6439
  %v6507 = vpop.f32.mrb[0].mxu0
  %v6508 = vadd.f32 0.0, %v6507
  %v6509 = vpop.f32.mrb[0].mxu0
  %6510 = vdwg.mxu0
  %6511 = vrot.lane.b32.xlu0 %v5586, 80
  %v6512 = vpop.permute.xlu0 %6511
  %v6515 = vsel %vm210, %v6434, 0
  %6517 = vmatprep.subr.mxu0 0.0
  %6518 = vmatpush1.msra.mxu0 %v6512
  %6519 = vmatprep.subr.mxu0 0.0
  %6520 = vmatpush1.msra.mxu0 0.0
  %6521 = vmatprep.subr.mxu0 0.0
  %6522 = vmatpush1.msra.mxu0 0.0
  %6523 = vmatprep.subr.mxu0 0.0
  %6524 = vmatpush1.msra.mxu0 0.0
  %6525 = vmatprep.subr.mxu0 0.0
  %6526 = vmatpush1.msra.mxu0 0.0
  %6527 = vmatprep.subr.mxu0 0.0
  %6528 = vmatpush1.msra.mxu0 0.0
  %6529 = vmatprep.subr.mxu0 0.0
  %6530 = vmatpush1.msra.mxu0 0.0
  %6531 = vmatprep.subr.mxu0 0.0
  %6532 = vmatpush1.msra.mxu0 0.0
  %6533 = vmatprep.subr.mxu0 0.0
  %6534 = vmatpush1.msra.mxu0 0.0
  %6535 = vmatprep.subr.mxu0 0.0
  %6536 = vmatpush1.msra.mxu0 0.0
  %6537 = vmatprep.subr.mxu0 0.0
  %6538 = vmatpush1.msra.mxu0 0.0
  %6539 = vmatprep.subr.mxu0 0.0
  %6540 = vmatpush1.msra.mxu0 0.0
  %6541 = vmatprep.subr.mxu0 0.0
  %6542 = vmatpush1.msra.mxu0 0.0
  %6543 = vmatprep.subr.mxu0 0.0
  %6544 = vmatpush1.msra.mxu0 0.0
  %6545 = vmatprep.subr.mxu0 0.0
  %6546 = vmatpush1.msra.mxu0 0.0
  %6547 = vmatprep.subr.mxu0 0.0
  %6548 = vmatpush1.msra.mxu0 0.0
  %6549 = vmatprep.subr.mxu0 0.0
  %6550 = vmatpush1.msra.mxu0 0.0
  %6551 = vmatprep.subr.mxu0 0.0
  %6552 = vmatpush1.msra.mxu0 0.0
  %6553 = vmatprep.subr.mxu0 0.0
  %6554 = vmatpush1.msra.mxu0 0.0
  %6555 = vmatprep.subr.mxu0 0.0
  %6556 = vmatpush1.msra.mxu0 0.0
  %6557 = vmatprep.subr.mxu0 0.0
  %6558 = vmatpush1.msra.mxu0 0.0
  %6559 = vmatprep.subr.mxu0 0.0
  %6560 = vmatpush1.msra.mxu0 0.0
  %6561 = vmatprep.subr.mxu0 0.0
  %6562 = vmatpush1.msra.mxu0 0.0
  %6563 = vmatprep.subr.mxu0 0.0
  %6564 = vmatpush1.msra.mxu0 0.0
  %6565 = vmatprep.subr.mxu0 0.0
  %6566 = vmatpush1.msra.mxu0 0.0
  %6567 = vmatprep.subr.mxu0 0.0
  %6568 = vmatpush1.msra.mxu0 0.0
  %6569 = vmatprep.subr.mxu0 0.0
  %6570 = vmatpush1.msra.mxu0 0.0
  %6571 = vmatprep.subr.mxu0 0.0
  %6572 = vmatpush1.msra.mxu0 0.0
  %6573 = vmatprep.subr.mxu0 0.0
  %6574 = vmatpush1.msra.mxu0 0.0
  %6575 = vmatprep.subr.mxu0 0.0
  %6576 = vmatpush1.msra.mxu0 0.0
  %6577 = vmatprep.subr.mxu0 0.0
  %6578 = vmatpush1.msra.mxu0 0.0
  %6579 = vmatprep.subr.mxu0 0.0
  %6580 = vmatpush1.msra.mxu0 0.0
  %6581 = vmatprep.mubr.f32.mxu0 0.0
  %6582 = vmatmul.mubr.f32.gmra.mrb[0].mxu0 %v6515
  %v6583 = vpop.f32.mrb[0].mxu0
  %v6584 = vadd.f32 0.0, %v6583
  %v6585 = vpop.f32.mrb[0].mxu0
  %6586 = vdwg.mxu0
  %6587 = vrot.lane.b32.xlu0 %v5482, 104
  %v6588 = vpop.permute.xlu0 %6587
  %6589 = vrot.lane.b32.xlu0 %v5575, 104
  %v6590 = vpop.permute.xlu0 %6589
  %v6591 = vsel %vm210, %v6588, 0
  %v6593 = vsel %vm210, %v6590, 0
  %6595 = vmatprep.subr.mxu0 0.0
  %6596 = vmatpush1.xpose.msra.mxu0 %v6593
  %6597 = vmatprep.subr.mxu0 0.0
  %6598 = vmatpush1.xpose.msra.mxu0 0.0
  %6599 = vmatprep.subr.mxu0 0.0
  %6600 = vmatpush1.xpose.msra.mxu0 0.0
  %6601 = vmatprep.subr.mxu0 0.0
  %6602 = vmatpush1.xpose.msra.mxu0 0.0
  %6603 = vmatprep.subr.mxu0 0.0
  %6604 = vmatpush1.xpose.msra.mxu0 0.0
  %6605 = vmatprep.subr.mxu0 0.0
  %6606 = vmatpush1.xpose.msra.mxu0 0.0
  %6607 = vmatprep.subr.mxu0 0.0
  %6608 = vmatpush1.xpose.msra.mxu0 0.0
  %6609 = vmatprep.subr.mxu0 0.0
  %6610 = vmatpush1.xpose.msra.mxu0 0.0
  %6611 = vmatprep.subr.mxu0 0.0
  %6612 = vmatpush1.xpose.msra.mxu0 0.0
  %6613 = vmatprep.subr.mxu0 0.0
  %6614 = vmatpush1.xpose.msra.mxu0 0.0
  %6615 = vmatprep.subr.mxu0 0.0
  %6616 = vmatpush1.xpose.msra.mxu0 0.0
  %6617 = vmatprep.subr.mxu0 0.0
  %6618 = vmatpush1.xpose.msra.mxu0 0.0
  %6619 = vmatprep.subr.mxu0 0.0
  %6620 = vmatpush1.xpose.msra.mxu0 0.0
  %6621 = vmatprep.subr.mxu0 0.0
  %6622 = vmatpush1.xpose.msra.mxu0 0.0
  %6623 = vmatprep.subr.mxu0 0.0
  %6624 = vmatpush1.xpose.msra.mxu0 0.0
  %6625 = vmatprep.subr.mxu0 0.0
  %6626 = vmatpush1.xpose.msra.mxu0 0.0
  %6627 = vmatprep.subr.mxu0 0.0
  %6628 = vmatpush1.xpose.msra.mxu0 0.0
  %6629 = vmatprep.subr.mxu0 0.0
  %6630 = vmatpush1.xpose.msra.mxu0 0.0
  %6631 = vmatprep.subr.mxu0 0.0
  %6632 = vmatpush1.xpose.msra.mxu0 0.0
  %6633 = vmatprep.subr.mxu0 0.0
  %6634 = vmatpush1.xpose.msra.mxu0 0.0
  %6635 = vmatprep.subr.mxu0 0.0
  %6636 = vmatpush1.xpose.msra.mxu0 0.0
  %6637 = vmatprep.subr.mxu0 0.0
  %6638 = vmatpush1.xpose.msra.mxu0 0.0
  %6639 = vmatprep.subr.mxu0 0.0
  %6640 = vmatpush1.xpose.msra.mxu0 0.0
  %6641 = vmatprep.subr.mxu0 0.0
  %6642 = vmatpush1.xpose.msra.mxu0 0.0
  %6643 = vmatprep.subr.mxu0 0.0
  %6644 = vmatpush1.xpose.msra.mxu0 0.0
  %6645 = vmatprep.subr.mxu0 0.0
  %6646 = vmatpush1.xpose.msra.mxu0 0.0
  %6647 = vmatprep.subr.mxu0 0.0
  %6648 = vmatpush1.xpose.msra.mxu0 0.0
  %6649 = vmatprep.subr.mxu0 0.0
  %6650 = vmatpush1.xpose.msra.mxu0 0.0
  %6651 = vmatprep.subr.mxu0 0.0
  %6652 = vmatpush1.xpose.msra.mxu0 0.0
  %6653 = vmatprep.subr.mxu0 0.0
  %6654 = vmatpush1.xpose.msra.mxu0 0.0
  %6655 = vmatprep.subr.mxu0 0.0
  %6656 = vmatpush1.xpose.msra.mxu0 0.0
  %6657 = vmatprep.subr.mxu0 0.0
  %6658 = vmatpush1.xpose.msra.mxu0 0.0
  %6659 = vmatprep.mubr.f32.mxu0 0.0
  %6660 = vmatmul.mubr.f32.gmra.mrb[0].mxu0 %v6591
  %v6661 = vpop.f32.mrb[0].mxu0
  %v6662 = vadd.f32 0.0, %v6661
  %v6663 = vpop.f32.mrb[0].mxu0
  %6664 = vdwg.mxu0
  %6665 = vrot.lane.b32.xlu0 %v5487, 104
  %v6666 = vpop.permute.xlu0 %6665
  %6667 = vrot.lane.b32.xlu0 %v5576, 104
  %v6668 = vpop.permute.xlu0 %6667
  %v6669 = vsel %vm210, %v6666, 0
  %v6671 = vsel %vm210, %v6668, 0
  %6673 = vmatprep.subr.mxu0 0.0
  %6674 = vmatpush1.xpose.msra.mxu0 %v6671
  %6675 = vmatprep.subr.mxu0 0.0
  %6676 = vmatpush1.xpose.msra.mxu0 0.0
  %6677 = vmatprep.subr.mxu0 0.0
  %6678 = vmatpush1.xpose.msra.mxu0 0.0
  %6679 = vmatprep.subr.mxu0 0.0
  %6680 = vmatpush1.xpose.msra.mxu0 0.0
  %6681 = vmatprep.subr.mxu0 0.0
  %6682 = vmatpush1.xpose.msra.mxu0 0.0
  %6683 = vmatprep.subr.mxu0 0.0
  %6684 = vmatpush1.xpose.msra.mxu0 0.0
  %6685 = vmatprep.subr.mxu0 0.0
  %6686 = vmatpush1.xpose.msra.mxu0 0.0
  %6687 = vmatprep.subr.mxu0 0.0
  %6688 = vmatpush1.xpose.msra.mxu0 0.0
  %6689 = vmatprep.subr.mxu0 0.0
  %6690 = vmatpush1.xpose.msra.mxu0 0.0
  %6691 = vmatprep.subr.mxu0 0.0
  %6692 = vmatpush1.xpose.msra.mxu0 0.0
  %6693 = vmatprep.subr.mxu0 0.0
  %6694 = vmatpush1.xpose.msra.mxu0 0.0
  %6695 = vmatprep.subr.mxu0 0.0
  %6696 = vmatpush1.xpose.msra.mxu0 0.0
  %6697 = vmatprep.subr.mxu0 0.0
  %6698 = vmatpush1.xpose.msra.mxu0 0.0
  %6699 = vmatprep.subr.mxu0 0.0
  %6700 = vmatpush1.xpose.msra.mxu0 0.0
  %6701 = vmatprep.subr.mxu0 0.0
  %6702 = vmatpush1.xpose.msra.mxu0 0.0
  %6703 = vmatprep.subr.mxu0 0.0
  %6704 = vmatpush1.xpose.msra.mxu0 0.0
  %6705 = vmatprep.subr.mxu0 0.0
  %6706 = vmatpush1.xpose.msra.mxu0 0.0
  %6707 = vmatprep.subr.mxu0 0.0
  %6708 = vmatpush1.xpose.msra.mxu0 0.0
  %6709 = vmatprep.subr.mxu0 0.0
  %6710 = vmatpush1.xpose.msra.mxu0 0.0
  %6711 = vmatprep.subr.mxu0 0.0
  %6712 = vmatpush1.xpose.msra.mxu0 0.0
  %6713 = vmatprep.subr.mxu0 0.0
  %6714 = vmatpush1.xpose.msra.mxu0 0.0
  %6715 = vmatprep.subr.mxu0 0.0
  %6716 = vmatpush1.xpose.msra.mxu0 0.0
  %6717 = vmatprep.subr.mxu0 0.0
  %6718 = vmatpush1.xpose.msra.mxu0 0.0
  %6719 = vmatprep.subr.mxu0 0.0
  %6720 = vmatpush1.xpose.msra.mxu0 0.0
  %6721 = vmatprep.subr.mxu0 0.0
  %6722 = vmatpush1.xpose.msra.mxu0 0.0
  %6723 = vmatprep.subr.mxu0 0.0
  %6724 = vmatpush1.xpose.msra.mxu0 0.0
  %6725 = vmatprep.subr.mxu0 0.0
  %6726 = vmatpush1.xpose.msra.mxu0 0.0
  %6727 = vmatprep.subr.mxu0 0.0
  %6728 = vmatpush1.xpose.msra.mxu0 0.0
  %6729 = vmatprep.subr.mxu0 0.0
  %6730 = vmatpush1.xpose.msra.mxu0 0.0
  %6731 = vmatprep.subr.mxu0 0.0
  %6732 = vmatpush1.xpose.msra.mxu0 0.0
  %6733 = vmatprep.subr.mxu0 0.0
  %6734 = vmatpush1.xpose.msra.mxu0 0.0
  %6735 = vmatprep.subr.mxu0 0.0
  %6736 = vmatpush1.xpose.msra.mxu0 0.0
  %6737 = vmatprep.mubr.f32.mxu0 0.0
  %6738 = vmatmul.mubr.f32.gmra.mrb[0].mxu0 %v6669
  %v6739 = vpop.f32.mrb[0].mxu0
  %v6740 = vadd.f32 0.0, %v6739
  %v6741 = vpop.f32.mrb[0].mxu0
  %6742 = vdwg.mxu0
  %v6743 = vmul.f32 %v6662, 0.35355338
  %v6744 = vmul.f32 %v6740, 0.35355338
  %v6745 = vadd.f32 %v6743, %v28
  %v6746 = vadd.f32 %v6744, %v28
  %v6747 = vsel %vm210, %v6745, -inf
  %6748 = vmax.xlane.f32.xlu0 %v6747
  %v6749 = vpop.xlane.xlu0 %6748
  %v6750 = vsel %vm210, %v6746, -inf
  %6751 = vmax.xlane.f32.xlu0 %v6750
  %v6752 = vpop.xlane.xlu0 %6751
  %v6753 = vsub.f32 %v6745, %v6749
  %v6754 = vsub.f32 %v6746, %v6752
  %v6755 = vmul.f32 %v6753, 1.442695
  %v6756 = vpow.pop %v6755
  %v6757 = vmul.f32 %v6754, 1.442695
  %v6758 = vpow.pop %v6757
  %v6759 = vsel %vm210, %v6756, 0.0
  %6760 = vadd.xlane.f32.xlu0 %v6759
  %v6761 = vpop.xlane.xlu0 %6760
  %v6762 = vsel %vm210, %v6758, 0.0
  %6763 = vadd.xlane.f32.xlu0 %v6762
  %v6764 = vpop.xlane.xlu0 %6763
  %v6765 = vrcp.pop %v6761
  %v6766 = vrcp.pop %v6764
  %v6767 = vmul.f32 %v6756, %v6765
  %v6768 = vmul.f32 %v6758, %v6766
  %6769 = vrot.lane.b32.xlu0 %v5585, 72
  %v6770 = vpop.permute.xlu0 %6769
  %v6773 = vsel %vm210, %v6767, 0
  %6775 = vmatprep.subr.mxu0 0.0
  %6776 = vmatpush1.msra.mxu0 %v6770
  %6777 = vmatprep.subr.mxu0 0.0
  %6778 = vmatpush1.msra.mxu0 0.0
  %6779 = vmatprep.subr.mxu0 0.0
  %6780 = vmatpush1.msra.mxu0 0.0
  %6781 = vmatprep.subr.mxu0 0.0
  %6782 = vmatpush1.msra.mxu0 0.0
  %6783 = vmatprep.subr.mxu0 0.0
  %6784 = vmatpush1.msra.mxu0 0.0
  %6785 = vmatprep.subr.mxu0 0.0
  %6786 = vmatpush1.msra.mxu0 0.0
  %6787 = vmatprep.subr.mxu0 0.0
  %6788 = vmatpush1.msra.mxu0 0.0
  %6789 = vmatprep.subr.mxu0 0.0
  %6790 = vmatpush1.msra.mxu0 0.0
  %6791 = vmatprep.subr.mxu0 0.0
  %6792 = vmatpush1.msra.mxu0 0.0
  %6793 = vmatprep.subr.mxu0 0.0
  %6794 = vmatpush1.msra.mxu0 0.0
  %6795 = vmatprep.subr.mxu0 0.0
  %6796 = vmatpush1.msra.mxu0 0.0
  %6797 = vmatprep.subr.mxu0 0.0
  %6798 = vmatpush1.msra.mxu0 0.0
  %6799 = vmatprep.subr.mxu0 0.0
  %6800 = vmatpush1.msra.mxu0 0.0
  %6801 = vmatprep.subr.mxu0 0.0
  %6802 = vmatpush1.msra.mxu0 0.0
  %6803 = vmatprep.subr.mxu0 0.0
  %6804 = vmatpush1.msra.mxu0 0.0
  %6805 = vmatprep.subr.mxu0 0.0
  %6806 = vmatpush1.msra.mxu0 0.0
  %6807 = vmatprep.subr.mxu0 0.0
  %6808 = vmatpush1.msra.mxu0 0.0
  %6809 = vmatprep.subr.mxu0 0.0
  %6810 = vmatpush1.msra.mxu0 0.0
  %6811 = vmatprep.subr.mxu0 0.0
  %6812 = vmatpush1.msra.mxu0 0.0
  %6813 = vmatprep.subr.mxu0 0.0
  %6814 = vmatpush1.msra.mxu0 0.0
  %6815 = vmatprep.subr.mxu0 0.0
  %6816 = vmatpush1.msra.mxu0 0.0
  %6817 = vmatprep.subr.mxu0 0.0
  %6818 = vmatpush1.msra.mxu0 0.0
  %6819 = vmatprep.subr.mxu0 0.0
  %6820 = vmatpush1.msra.mxu0 0.0
  %6821 = vmatprep.subr.mxu0 0.0
  %6822 = vmatpush1.msra.mxu0 0.0
  %6823 = vmatprep.subr.mxu0 0.0
  %6824 = vmatpush1.msra.mxu0 0.0
  %6825 = vmatprep.subr.mxu0 0.0
  %6826 = vmatpush1.msra.mxu0 0.0
  %6827 = vmatprep.subr.mxu0 0.0
  %6828 = vmatpush1.msra.mxu0 0.0
  %6829 = vmatprep.subr.mxu0 0.0
  %6830 = vmatpush1.msra.mxu0 0.0
  %6831 = vmatprep.subr.mxu0 0.0
  %6832 = vmatpush1.msra.mxu0 0.0
  %6833 = vmatprep.subr.mxu0 0.0
  %6834 = vmatpush1.msra.mxu0 0.0
  %6835 = vmatprep.subr.mxu0 0.0
  %6836 = vmatpush1.msra.mxu0 0.0
  %6837 = vmatprep.subr.mxu0 0.0
  %6838 = vmatpush1.msra.mxu0 0.0
  %6839 = vmatprep.mubr.f32.mxu0 0.0
  %6840 = vmatmul.mubr.f32.gmra.mrb[0].mxu0 %v6773
  %v6841 = vpop.f32.mrb[0].mxu0
  %v6842 = vadd.f32 0.0, %v6841
  %v6843 = vpop.f32.mrb[0].mxu0
  %6844 = vdwg.mxu0
  %6845 = vrot.lane.b32.xlu0 %v5586, 72
  %v6846 = vpop.permute.xlu0 %6845
  %v6849 = vsel %vm210, %v6768, 0
  %6851 = vmatprep.subr.mxu0 0.0
  %6852 = vmatpush1.msra.mxu0 %v6846
  %6853 = vmatprep.subr.mxu0 0.0
  %6854 = vmatpush1.msra.mxu0 0.0
  %6855 = vmatprep.subr.mxu0 0.0
  %6856 = vmatpush1.msra.mxu0 0.0
  %6857 = vmatprep.subr.mxu0 0.0
  %6858 = vmatpush1.msra.mxu0 0.0
  %6859 = vmatprep.subr.mxu0 0.0
  %6860 = vmatpush1.msra.mxu0 0.0
  %6861 = vmatprep.subr.mxu0 0.0
  %6862 = vmatpush1.msra.mxu0 0.0
  %6863 = vmatprep.subr.mxu0 0.0
  %6864 = vmatpush1.msra.mxu0 0.0
  %6865 = vmatprep.subr.mxu0 0.0
  %6866 = vmatpush1.msra.mxu0 0.0
  %6867 = vmatprep.subr.mxu0 0.0
  %6868 = vmatpush1.msra.mxu0 0.0
  %6869 = vmatprep.subr.mxu0 0.0
  %6870 = vmatpush1.msra.mxu0 0.0
  %6871 = vmatprep.subr.mxu0 0.0
  %6872 = vmatpush1.msra.mxu0 0.0
  %6873 = vmatprep.subr.mxu0 0.0
  %6874 = vmatpush1.msra.mxu0 0.0
  %6875 = vmatprep.subr.mxu0 0.0
  %6876 = vmatpush1.msra.mxu0 0.0
  %6877 = vmatprep.subr.mxu0 0.0
  %6878 = vmatpush1.msra.mxu0 0.0
  %6879 = vmatprep.subr.mxu0 0.0
  %6880 = vmatpush1.msra.mxu0 0.0
  %6881 = vmatprep.subr.mxu0 0.0
  %6882 = vmatpush1.msra.mxu0 0.0
  %6883 = vmatprep.subr.mxu0 0.0
  %6884 = vmatpush1.msra.mxu0 0.0
  %6885 = vmatprep.subr.mxu0 0.0
  %6886 = vmatpush1.msra.mxu0 0.0
  %6887 = vmatprep.subr.mxu0 0.0
  %6888 = vmatpush1.msra.mxu0 0.0
  %6889 = vmatprep.subr.mxu0 0.0
  %6890 = vmatpush1.msra.mxu0 0.0
  %6891 = vmatprep.subr.mxu0 0.0
  %6892 = vmatpush1.msra.mxu0 0.0
  %6893 = vmatprep.subr.mxu0 0.0
  %6894 = vmatpush1.msra.mxu0 0.0
  %6895 = vmatprep.subr.mxu0 0.0
  %6896 = vmatpush1.msra.mxu0 0.0
  %6897 = vmatprep.subr.mxu0 0.0
  %6898 = vmatpush1.msra.mxu0 0.0
  %6899 = vmatprep.subr.mxu0 0.0
  %6900 = vmatpush1.msra.mxu0 0.0
  %6901 = vmatprep.subr.mxu0 0.0
  %6902 = vmatpush1.msra.mxu0 0.0
  %6903 = vmatprep.subr.mxu0 0.0
  %6904 = vmatpush1.msra.mxu0 0.0
  %6905 = vmatprep.subr.mxu0 0.0
  %6906 = vmatpush1.msra.mxu0 0.0
  %6907 = vmatprep.subr.mxu0 0.0
  %6908 = vmatpush1.msra.mxu0 0.0
  %6909 = vmatprep.subr.mxu0 0.0
  %6910 = vmatpush1.msra.mxu0 0.0
  %6911 = vmatprep.subr.mxu0 0.0
  %6912 = vmatpush1.msra.mxu0 0.0
  %6913 = vmatprep.subr.mxu0 0.0
  %6914 = vmatpush1.msra.mxu0 0.0
  %6915 = vmatprep.mubr.f32.mxu0 0.0
  %6916 = vmatmul.mubr.f32.gmra.mrb[0].mxu0 %v6849
  %v6917 = vpop.f32.mrb[0].mxu0
  %v6918 = vadd.f32 0.0, %v6917
  %v6919 = vpop.f32.mrb[0].mxu0
  %6920 = vdwg.mxu0
  %6923 = vrot.lane.b32.xlu0 %v6174, 8
  %v6924 = vpop.permute.xlu0 %6923
  %6925 = vrot.lane.b32.xlu0 %v6250, 8
  %v6926 = vpop.permute.xlu0 %6925
  %6931 = vrot.lane.b32.xlu0 %v6508, 16
  %v6932 = vpop.permute.xlu0 %6931
  %6933 = vrot.lane.b32.xlu0 %v6584, 16
  %v6934 = vpop.permute.xlu0 %6933
  %6939 = vrot.lane.b32.xlu0 %v6842, 24
  %v6940 = vpop.permute.xlu0 %6939
  %6941 = vrot.lane.b32.xlu0 %v6918, 24
  %v6942 = vpop.permute.xlu0 %6941
  %v6945 = vsel %vm210, %v5839, %v6924
  %v6946 = vsel %vm210, %v5916, %v6926
  %v6947 = vsel %vm1572, %v6945, %v6932
  %v6948 = vsel %vm1572, %v6946, %v6934
  %v6949 = vsel %vm1575, %v6947, %v6940
  %v6950 = vsel %vm1575, %v6948, %v6942
  %v6951 = vlaneseq
  %v6952 = vshrl.u32 %v6951, 7
  %v6953 = vsub.s32 0, %v6952
  %v6954 = vrot.slane %v3734, %v6953
  %v6956 = vsel %vm60, %v6949, 0
  %v6959 = vsel %vm60, %v6950, 0
  %6961 = vmatprep.subr.mxu0 0.0
  %6962 = vmatpush1.msra.mxu0 %v3753
  %6963 = vmatprep.subr.mxu0 0.0
  %6964 = vmatpush1.msra.mxu0 %v3754
  %6965 = vmatprep.subr.mxu0 0.0
  %6966 = vmatpush1.msra.mxu0 %v3755
  %6967 = vmatprep.subr.mxu0 0.0
  %6968 = vmatpush1.msra.mxu0 %v3756
  %6969 = vmatprep.subr.mxu0 0.0
  %6970 = vmatpush1.msra.mxu0 0.0
  %6971 = vmatprep.subr.mxu0 0.0
  %6972 = vmatpush1.msra.mxu0 0.0
  %6973 = vmatprep.subr.mxu0 0.0
  %6974 = vmatpush1.msra.mxu0 0.0
  %6975 = vmatprep.subr.mxu0 0.0
  %6976 = vmatpush1.msra.mxu0 0.0
  %6977 = vmatprep.subr.mxu0 0.0
  %6978 = vmatpush1.msra.mxu0 0.0
  %6979 = vmatprep.subr.mxu0 0.0
  %6980 = vmatpush1.msra.mxu0 0.0
  %6981 = vmatprep.subr.mxu0 0.0
  %6982 = vmatpush1.msra.mxu0 0.0
  %6983 = vmatprep.subr.mxu0 0.0
  %6984 = vmatpush1.msra.mxu0 0.0
  %6985 = vmatprep.subr.mxu0 0.0
  %6986 = vmatpush1.msra.mxu0 0.0
  %6987 = vmatprep.subr.mxu0 0.0
  %6988 = vmatpush1.msra.mxu0 0.0
  %6989 = vmatprep.subr.mxu0 0.0
  %6990 = vmatpush1.msra.mxu0 0.0
  %6991 = vmatprep.subr.mxu0 0.0
  %6992 = vmatpush1.msra.mxu0 0.0
  %6993 = vmatprep.subr.mxu0 0.0
  %6994 = vmatpush1.msra.mxu0 0.0
  %6995 = vmatprep.subr.mxu0 0.0
  %6996 = vmatpush1.msra.mxu0 0.0
  %6997 = vmatprep.subr.mxu0 0.0
  %6998 = vmatpush1.msra.mxu0 0.0
  %6999 = vmatprep.subr.mxu0 0.0
  %7000 = vmatpush1.msra.mxu0 0.0
  %7001 = vmatprep.subr.mxu0 0.0
  %7002 = vmatpush1.msra.mxu0 0.0
  %7003 = vmatprep.subr.mxu0 0.0
  %7004 = vmatpush1.msra.mxu0 0.0
  %7005 = vmatprep.subr.mxu0 0.0
  %7006 = vmatpush1.msra.mxu0 0.0
  %7007 = vmatprep.subr.mxu0 0.0
  %7008 = vmatpush1.msra.mxu0 0.0
  %7009 = vmatprep.subr.mxu0 0.0
  %7010 = vmatpush1.msra.mxu0 0.0
  %7011 = vmatprep.subr.mxu0 0.0
  %7012 = vmatpush1.msra.mxu0 0.0
  %7013 = vmatprep.subr.mxu0 0.0
  %7014 = vmatpush1.msra.mxu0 0.0
  %7015 = vmatprep.subr.mxu0 0.0
  %7016 = vmatpush1.msra.mxu0 0.0
  %7017 = vmatprep.subr.mxu0 0.0
  %7018 = vmatpush1.msra.mxu0 0.0
  %7019 = vmatprep.subr.mxu0 0.0
  %7020 = vmatpush1.msra.mxu0 0.0
  %7021 = vmatprep.subr.mxu0 0.0
  %7022 = vmatpush1.msra.mxu0 0.0
  %7023 = vmatprep.subr.mxu0 0.0
  %7024 = vmatpush1.msra.mxu0 0.0
  %7025 = vmatprep.mubr.f32.mxu0 0.0
  %7026 = vmatmul.mubr.f32.gmra.mrb[0].mxu0 %v6956
  %v7027 = vpop.f32.mrb[0].mxu0
  %v7028 = vadd.f32 %v6954, %v7027
  %v7029 = vpop.f32.mrb[0].mxu0
  %7030 = vmatprep.mubr.f32.mxu0 0.0
  %7031 = vmatmul.mubr.f32.gmra.mrb[0].mxu0 %v6959
  %v7032 = vpop.f32.mrb[0].mxu0
  %v7033 = vadd.f32 %v6954, %v7032
  %v7034 = vpop.f32.mrb[0].mxu0
  %7035 = vdwg.mxu0
  %v7036 = vadd.f32 %v5365, %v7028
  %v7037 = vadd.f32 %v5366, %v7033
  %v7038 = vsel %vm60, %v7036, 0.0
  %7039 = vadd.xlane.f32.xlu0 %v7038
  %v7040 = vpop.xlane.xlu0 %7039
  %v7041 = vsel %vm60, %v7037, 0.0
  %7042 = vadd.xlane.f32.xlu0 %v7041
  %v7043 = vpop.xlane.xlu0 %7042
  %v7044 = vmul.f32 %v7040, %v67
  %v7045 = vmul.f32 %v7043, %v67
  %v7046 = vsub.f32 %v7036, %v7044
  %v7047 = vsub.f32 %v7037, %v7045
  %v7048 = vmul.f32 %v7046, %v7046
  %v7049 = vmul.f32 %v7047, %v7047
  %v7050 = vsel %vm60, %v7048, 0.0
  %7051 = vadd.xlane.f32.xlu0 %v7050
  %v7052 = vpop.xlane.xlu0 %7051
  %v7053 = vsel %vm60, %v7049, 0.0
  %7054 = vadd.xlane.f32.xlu0 %v7053
  %v7055 = vpop.xlane.xlu0 %7054
  %v7056 = vmul.f32 %v7052, %v67
  %v7057 = vmul.f32 %v7055, %v67
  %v7058 = vadd.f32 %v7056, 1e-05
  %v7059 = vadd.f32 %v7057, 1e-05
  %v7060 = vrsqrt.pop %v7058
  %v7061 = vrsqrt.pop %v7059
  %v7062 = vmul.f32 %v7046, %v7060
  %v7063 = vmul.f32 %v7047, %v7061
  %v7064 = vlaneseq
  %v7065 = vshrl.u32 %v7064, 7
  %v7066 = vsub.s32 0, %v7065
  %v7067 = vrot.slane %v3725, %v7066
  %v7068 = vmul.f32 %v7062, %v7067
  %v7069 = vmul.f32 %v7063, %v7067
  %v7070 = vlaneseq
  %v7071 = vshrl.u32 %v7070, 7
  %v7072 = vsub.s32 0, %v7071
  %v7073 = vrot.slane %v3726, %v7072
  %v7074 = vadd.f32 %v7068, %v7073
  %v7075 = vadd.f32 %v7069, %v7073
  %v7076 = vlaneseq
  %v7077 = vshrl.u32 %v7076, 7
  %v7078 = vsub.s32 0, %v7077
  %v7079 = vrot.slane %v3735, %v7078
  %v7081 = vsel %vm60, %v7074, 0
  %v7084 = vsel %vm60, %v7075, 0
  %7086 = vmatprep.subr.mxu0 0.0
  %7087 = vmatpush1.msra.mxu0 %v3757
  %7088 = vmatprep.subr.mxu0 0.0
  %7089 = vmatpush1.msra.mxu0 %v3758
  %7090 = vmatprep.subr.mxu0 0.0
  %7091 = vmatpush1.msra.mxu0 %v3759
  %7092 = vmatprep.subr.mxu0 0.0
  %7093 = vmatpush1.msra.mxu0 %v3760
  %7094 = vmatprep.subr.mxu0 0.0
  %7095 = vmatpush1.msra.mxu0 0.0
  %7096 = vmatprep.subr.mxu0 0.0
  %7097 = vmatpush1.msra.mxu0 0.0
  %7098 = vmatprep.subr.mxu0 0.0
  %7099 = vmatpush1.msra.mxu0 0.0
  %7100 = vmatprep.subr.mxu0 0.0
  %7101 = vmatpush1.msra.mxu0 0.0
  %7102 = vmatprep.subr.mxu0 0.0
  %7103 = vmatpush1.msra.mxu0 0.0
  %7104 = vmatprep.subr.mxu0 0.0
  %7105 = vmatpush1.msra.mxu0 0.0
  %7106 = vmatprep.subr.mxu0 0.0
  %7107 = vmatpush1.msra.mxu0 0.0
  %7108 = vmatprep.subr.mxu0 0.0
  %7109 = vmatpush1.msra.mxu0 0.0
  %7110 = vmatprep.subr.mxu0 0.0
  %7111 = vmatpush1.msra.mxu0 0.0
  %7112 = vmatprep.subr.mxu0 0.0
  %7113 = vmatpush1.msra.mxu0 0.0
  %7114 = vmatprep.subr.mxu0 0.0
  %7115 = vmatpush1.msra.mxu0 0.0
  %7116 = vmatprep.subr.mxu0 0.0
  %7117 = vmatpush1.msra.mxu0 0.0
  %7118 = vmatprep.subr.mxu0 0.0
  %7119 = vmatpush1.msra.mxu0 0.0
  %7120 = vmatprep.subr.mxu0 0.0
  %7121 = vmatpush1.msra.mxu0 0.0
  %7122 = vmatprep.subr.mxu0 0.0
  %7123 = vmatpush1.msra.mxu0 0.0
  %7124 = vmatprep.subr.mxu0 0.0
  %7125 = vmatpush1.msra.mxu0 0.0
  %7126 = vmatprep.subr.mxu0 0.0
  %7127 = vmatpush1.msra.mxu0 0.0
  %7128 = vmatprep.subr.mxu0 0.0
  %7129 = vmatpush1.msra.mxu0 0.0
  %7130 = vmatprep.subr.mxu0 0.0
  %7131 = vmatpush1.msra.mxu0 0.0
  %7132 = vmatprep.subr.mxu0 0.0
  %7133 = vmatpush1.msra.mxu0 0.0
  %7134 = vmatprep.subr.mxu0 0.0
  %7135 = vmatpush1.msra.mxu0 0.0
  %7136 = vmatprep.subr.mxu0 0.0
  %7137 = vmatpush1.msra.mxu0 0.0
  %7138 = vmatprep.subr.mxu0 0.0
  %7139 = vmatpush1.msra.mxu0 0.0
  %7140 = vmatprep.subr.mxu0 0.0
  %7141 = vmatpush1.msra.mxu0 0.0
  %7142 = vmatprep.subr.mxu0 0.0
  %7143 = vmatpush1.msra.mxu0 0.0
  %7144 = vmatprep.subr.mxu0 0.0
  %7145 = vmatpush1.msra.mxu0 0.0
  %7146 = vmatprep.subr.mxu0 0.0
  %7147 = vmatpush1.msra.mxu0 0.0
  %7148 = vmatprep.subr.mxu0 0.0
  %7149 = vmatpush1.msra.mxu0 0.0
  %7150 = vmatprep.mubr.f32.mxu0 0.0
  %7151 = vmatmul.mubr.f32.gmra.mrb[0].mxu0 %v7081
  %v7152 = vpop.f32.mrb[0].mxu0
  %v7153 = vadd.f32 %v7079, %v7152
  %v7154 = vpop.f32.mrb[0].mxu0
  %7155 = vmatprep.mubr.f32.mxu0 0.0
  %7156 = vmatmul.mubr.f32.gmra.mrb[0].mxu0 %v7084
  %v7157 = vpop.f32.mrb[0].mxu0
  %v7158 = vadd.f32 %v7079, %v7157
  %v7159 = vpop.f32.mrb[0].mxu0
  %7160 = vdwg.mxu0
  %v7161 = vmax.f32 %v7153, 0.0
  %v7162 = vmax.f32 %v7158, 0.0
  %v7163 = vlaneseq
  %v7164 = vshrl.u32 %v7163, 7
  %v7165 = vsub.s32 0, %v7164
  %v7166 = vrot.slane %v3736, %v7165
  %v7168 = vsel %vm60, %v7161, 0
  %v7171 = vsel %vm60, %v7162, 0
  %7173 = vmatprep.subr.mxu0 0.0
  %7174 = vmatpush1.msra.mxu0 %v3761
  %7175 = vmatprep.subr.mxu0 0.0
  %7176 = vmatpush1.msra.mxu0 %v3762
  %7177 = vmatprep.subr.mxu0 0.0
  %7178 = vmatpush1.msra.mxu0 %v3763
  %7179 = vmatprep.subr.mxu0 0.0
  %7180 = vmatpush1.msra.mxu0 %v3764
  %7181 = vmatprep.subr.mxu0 0.0
  %7182 = vmatpush1.msra.mxu0 0.0
  %7183 = vmatprep.subr.mxu0 0.0
  %7184 = vmatpush1.msra.mxu0 0.0
  %7185 = vmatprep.subr.mxu0 0.0
  %7186 = vmatpush1.msra.mxu0 0.0
  %7187 = vmatprep.subr.mxu0 0.0
  %7188 = vmatpush1.msra.mxu0 0.0
  %7189 = vmatprep.subr.mxu0 0.0
  %7190 = vmatpush1.msra.mxu0 0.0
  %7191 = vmatprep.subr.mxu0 0.0
  %7192 = vmatpush1.msra.mxu0 0.0
  %7193 = vmatprep.subr.mxu0 0.0
  %7194 = vmatpush1.msra.mxu0 0.0
  %7195 = vmatprep.subr.mxu0 0.0
  %7196 = vmatpush1.msra.mxu0 0.0
  %7197 = vmatprep.subr.mxu0 0.0
  %7198 = vmatpush1.msra.mxu0 0.0
  %7199 = vmatprep.subr.mxu0 0.0
  %7200 = vmatpush1.msra.mxu0 0.0
  %7201 = vmatprep.subr.mxu0 0.0
  %7202 = vmatpush1.msra.mxu0 0.0
  %7203 = vmatprep.subr.mxu0 0.0
  %7204 = vmatpush1.msra.mxu0 0.0
  %7205 = vmatprep.subr.mxu0 0.0
  %7206 = vmatpush1.msra.mxu0 0.0
  %7207 = vmatprep.subr.mxu0 0.0
  %7208 = vmatpush1.msra.mxu0 0.0
  %7209 = vmatprep.subr.mxu0 0.0
  %7210 = vmatpush1.msra.mxu0 0.0
  %7211 = vmatprep.subr.mxu0 0.0
  %7212 = vmatpush1.msra.mxu0 0.0
  %7213 = vmatprep.subr.mxu0 0.0
  %7214 = vmatpush1.msra.mxu0 0.0
  %7215 = vmatprep.subr.mxu0 0.0
  %7216 = vmatpush1.msra.mxu0 0.0
  %7217 = vmatprep.subr.mxu0 0.0
  %7218 = vmatpush1.msra.mxu0 0.0
  %7219 = vmatprep.subr.mxu0 0.0
  %7220 = vmatpush1.msra.mxu0 0.0
  %7221 = vmatprep.subr.mxu0 0.0
  %7222 = vmatpush1.msra.mxu0 0.0
  %7223 = vmatprep.subr.mxu0 0.0
  %7224 = vmatpush1.msra.mxu0 0.0
  %7225 = vmatprep.subr.mxu0 0.0
  %7226 = vmatpush1.msra.mxu0 0.0
  %7227 = vmatprep.subr.mxu0 0.0
  %7228 = vmatpush1.msra.mxu0 0.0
  %7229 = vmatprep.subr.mxu0 0.0
  %7230 = vmatpush1.msra.mxu0 0.0
  %7231 = vmatprep.subr.mxu0 0.0
  %7232 = vmatpush1.msra.mxu0 0.0
  %7233 = vmatprep.subr.mxu0 0.0
  %7234 = vmatpush1.msra.mxu0 0.0
  %7235 = vmatprep.subr.mxu0 0.0
  %7236 = vmatpush1.msra.mxu0 0.0
  %7237 = vmatprep.mubr.f32.mxu0 0.0
  %7238 = vmatmul.mubr.f32.gmra.mrb[0].mxu0 %v7168
  %v7239 = vpop.f32.mrb[0].mxu0
  %v7240 = vadd.f32 %v7166, %v7239
  %v7241 = vpop.f32.mrb[0].mxu0
  %7242 = vmatprep.mubr.f32.mxu0 0.0
  %7243 = vmatmul.mubr.f32.gmra.mrb[0].mxu0 %v7171
  %v7244 = vpop.f32.mrb[0].mxu0
  %v7245 = vadd.f32 %v7166, %v7244
  %v7246 = vpop.f32.mrb[0].mxu0
  %7247 = vdwg.mxu0
  %v7248 = vadd.f32 %v7074, %v7240
  %v7249 = vadd.f32 %v7075, %v7245
  %v7250 = vld [vmem:[%s5 + $0x18] sm:$0xff]
  %v7251 = vld [vmem:[%s5 + $0x20] sm:$0x1]
  %v7252 = vld [vmem:[%s5 + $0x21] sm:$0x1]
  %v7253 = vld [vmem:[%s5 + $0x22] sm:$0x1]
  %v7254 = vld [vmem:[%s5 + $0x23] sm:$0x1]
  %v7255 = vld [vmem:[%s5 + $0x24] sm:$0x1]
  %v7256 = vld [vmem:[%s5 + $0x25] sm:$0x1]
  %v7257 = vld [vmem:[%s5 + $0x26] sm:$0x1]
  %v7258 = vld [vmem:[%s5 + $0x27] sm:$0x1]
  %v7259 = vld [vmem:[%s5 + $0x28] sm:$0x1]
  %v7260 = vld [vmem:[%s5 + $0x29] sm:$0x1]
  %v7261 = vld [vmem:[%s5 + $0x2a] sm:$0x1]
  %v7262 = vld [vmem:[%s5 + $0x2b] sm:$0x1]
  %v7263 = vld [vmem:[%s5 + $0x2c] sm:$0x1]
  %v7264 = vld [vmem:[%s5 + $0x2d] sm:$0x1]
  %v7265 = vld [vmem:[%s5 + $0x2e] sm:$0x1]
  %v7266 = vld [vmem:[%s5 + $0x2f] sm:$0x1]
  %v7267 = vld [vmem:[%s4 + $0xe0] sm:$0xff]
  %v7268 = vld [vmem:[%s4 + $0xe8] sm:$0xff]
  %v7269 = vld [vmem:[%s4 + $0xf0] sm:$0xff]
  %v7270 = vld [vmem:[%s4 + $0xf8] sm:$0xff]
  %v7271 = vld [vmem:[%s4 + $0x100] sm:$0xff]
  %v7272 = vld [vmem:[%s4 + $0x108] sm:$0xff]
  %v7273 = vld [vmem:[%s4 + $0x110] sm:$0xff]
  %v7274 = vld [vmem:[%s4 + $0x118] sm:$0xff]
  %v7275 = vld [vmem:[%s4 + $0x120] sm:$0xff]
  %v7276 = vld [vmem:[%s4 + $0x128] sm:$0xff]
  %v7277 = vld [vmem:[%s4 + $0x130] sm:$0xff]
  %v7278 = vld [vmem:[%s4 + $0x138] sm:$0xff]
  %v7279 = vld [vmem:[%s4 + $0x140] sm:$0xff]
  %v7280 = vld [vmem:[%s4 + $0x148] sm:$0xff]
  %v7281 = vld [vmem:[%s4 + $0x150] sm:$0xff]
  %v7282 = vld [vmem:[%s4 + $0x158] sm:$0xff]
  %v7283 = vld [vmem:[%s4 + $0x160] sm:$0xff]
  %v7284 = vld [vmem:[%s4 + $0x168] sm:$0xff]
  %v7285 = vld [vmem:[%s4 + $0x170] sm:$0xff]
  %v7286 = vld [vmem:[%s4 + $0x178] sm:$0xff]
  %v7287 = vld [vmem:[%s4 + $0x180] sm:$0xff]
  %v7288 = vld [vmem:[%s4 + $0x188] sm:$0xff]
  %v7289 = vld [vmem:[%s4 + $0x190] sm:$0xff]
  %v7290 = vld [vmem:[%s4 + $0x198] sm:$0xff]
  %v7291 = vld [vmem:[%s4 + $0x1a0] sm:$0xff]
  %v7292 = vld [vmem:[%s4 + $0x1a8] sm:$0xff]
  %v7293 = vld [vmem:[%s4 + $0x1b0] sm:$0xff]
  %v7294 = vld [vmem:[%s4 + $0x1b8] sm:$0xff]
  %v7295 = vadd.f32 %v7248, %v7250
  %v7296 = vadd.f32 %v7249, %v7250
  %v7297 = vsel %vm60, %v7295, 0.0
  %7298 = vadd.xlane.f32.xlu0 %v7297
  %v7299 = vpop.xlane.xlu0 %7298
  %v7300 = vsel %vm60, %v7296, 0.0
  %7301 = vadd.xlane.f32.xlu0 %v7300
  %v7302 = vpop.xlane.xlu0 %7301
  %v7303 = vmul.f32 %v7299, %v67
  %v7304 = vmul.f32 %v7302, %v67
  %v7305 = vsub.f32 %v7295, %v7303
  %v7306 = vsub.f32 %v7296, %v7304
  %v7307 = vmul.f32 %v7305, %v7305
  %v7308 = vmul.f32 %v7306, %v7306
  %v7309 = vsel %vm60, %v7307, 0.0
  %7310 = vadd.xlane.f32.xlu0 %v7309
  %v7311 = vpop.xlane.xlu0 %7310
  %v7312 = vsel %vm60, %v7308, 0.0
  %7313 = vadd.xlane.f32.xlu0 %v7312
  %v7314 = vpop.xlane.xlu0 %7313
  %v7315 = vmul.f32 %v7311, %v67
  %v7316 = vmul.f32 %v7314, %v67
  %v7317 = vadd.f32 %v7315, 1e-05
  %v7318 = vadd.f32 %v7316, 1e-05
  %v7319 = vrsqrt.pop %v7317
  %v7320 = vrsqrt.pop %v7318
  %v7321 = vmul.f32 %v7305, %v7319
  %v7322 = vmul.f32 %v7306, %v7320
  %v7323 = vlaneseq
  %v7324 = vshrl.u32 %v7323, 7
  %v7325 = vsub.s32 0, %v7324
  %v7326 = vrot.slane %v7251, %v7325
  %v7327 = vmul.f32 %v7321, %v7326
  %v7328 = vmul.f32 %v7322, %v7326
  %v7329 = vlaneseq
  %v7330 = vshrl.u32 %v7329, 7
  %v7331 = vsub.s32 0, %v7330
  %v7332 = vrot.slane %v7252, %v7331
  %v7333 = vadd.f32 %v7327, %v7332
  %v7334 = vadd.f32 %v7328, %v7332
  %v7336 = vsel %vm60, %v7333, 0
  %v7339 = vsel %vm60, %v7334, 0
  %7341 = vmatprep.subr.mxu0 0.0
  %7342 = vmatpush1.msra.mxu0 %v7267
  %7343 = vmatprep.subr.mxu0 0.0
  %7344 = vmatpush1.msra.mxu0 %v7268
  %7345 = vmatprep.subr.mxu0 0.0
  %7346 = vmatpush1.msra.mxu0 %v7269
  %7347 = vmatprep.subr.mxu0 0.0
  %7348 = vmatpush1.msra.mxu0 %v7270
  %7349 = vmatprep.subr.mxu0 0.0
  %7350 = vmatpush1.msra.mxu0 0.0
  %7351 = vmatprep.subr.mxu0 0.0
  %7352 = vmatpush1.msra.mxu0 0.0
  %7353 = vmatprep.subr.mxu0 0.0
  %7354 = vmatpush1.msra.mxu0 0.0
  %7355 = vmatprep.subr.mxu0 0.0
  %7356 = vmatpush1.msra.mxu0 0.0
  %7357 = vmatprep.subr.mxu0 0.0
  %7358 = vmatpush1.msra.mxu0 0.0
  %7359 = vmatprep.subr.mxu0 0.0
  %7360 = vmatpush1.msra.mxu0 0.0
  %7361 = vmatprep.subr.mxu0 0.0
  %7362 = vmatpush1.msra.mxu0 0.0
  %7363 = vmatprep.subr.mxu0 0.0
  %7364 = vmatpush1.msra.mxu0 0.0
  %7365 = vmatprep.subr.mxu0 0.0
  %7366 = vmatpush1.msra.mxu0 0.0
  %7367 = vmatprep.subr.mxu0 0.0
  %7368 = vmatpush1.msra.mxu0 0.0
  %7369 = vmatprep.subr.mxu0 0.0
  %7370 = vmatpush1.msra.mxu0 0.0
  %7371 = vmatprep.subr.mxu0 0.0
  %7372 = vmatpush1.msra.mxu0 0.0
  %7373 = vmatprep.subr.mxu0 0.0
  %7374 = vmatpush1.msra.mxu0 0.0
  %7375 = vmatprep.subr.mxu0 0.0
  %7376 = vmatpush1.msra.mxu0 0.0
  %7377 = vmatprep.subr.mxu0 0.0
  %7378 = vmatpush1.msra.mxu0 0.0
  %7379 = vmatprep.subr.mxu0 0.0
  %7380 = vmatpush1.msra.mxu0 0.0
  %7381 = vmatprep.subr.mxu0 0.0
  %7382 = vmatpush1.msra.mxu0 0.0
  %7383 = vmatprep.subr.mxu0 0.0
  %7384 = vmatpush1.msra.mxu0 0.0
  %7385 = vmatprep.subr.mxu0 0.0
  %7386 = vmatpush1.msra.mxu0 0.0
  %7387 = vmatprep.subr.mxu0 0.0
  %7388 = vmatpush1.msra.mxu0 0.0
  %7389 = vmatprep.subr.mxu0 0.0
  %7390 = vmatpush1.msra.mxu0 0.0
  %7391 = vmatprep.subr.mxu0 0.0
  %7392 = vmatpush1.msra.mxu0 0.0
  %7393 = vmatprep.subr.mxu0 0.0
  %7394 = vmatpush1.msra.mxu0 0.0
  %7395 = vmatprep.subr.mxu0 0.0
  %7396 = vmatpush1.msra.mxu0 0.0
  %7397 = vmatprep.subr.mxu0 0.0
  %7398 = vmatpush1.msra.mxu0 0.0
  %7399 = vmatprep.subr.mxu0 0.0
  %7400 = vmatpush1.msra.mxu0 0.0
  %7401 = vmatprep.subr.mxu0 0.0
  %7402 = vmatpush1.msra.mxu0 0.0
  %7403 = vmatprep.subr.mxu0 0.0
  %7404 = vmatpush1.msra.mxu0 0.0
  %7405 = vmatprep.mubr.f32.mxu0 0.0
  %7406 = vmatmul.mubr.f32.gmra.mrb[0].mxu0 %v7336
  %v7407 = vpop.f32.mrb[0].mxu0
  %v7408 = vadd.f32 0.0, %v7407
  %v7409 = vpop.f32.mrb[0].mxu0
  %7410 = vmatprep.mubr.f32.mxu0 0.0
  %7411 = vmatmul.mubr.f32.gmra.mrb[0].mxu0 %v7339
  %v7412 = vpop.f32.mrb[0].mxu0
  %v7413 = vadd.f32 0.0, %v7412
  %v7414 = vpop.f32.mrb[0].mxu0
  %7415 = vdwg.mxu0
  %v7416 = vlaneseq
  %v7417 = vshrl.u32 %v7416, 7
  %v7418 = vsub.s32 0, %v7417
  %v7419 = vrot.slane %v7257, %v7418
  %v7420 = vadd.f32 %v7408, %v7419
  %v7421 = vadd.f32 %v7413, %v7419
  %v7422 = vlaneseq
  %v7423 = vshrl.u32 %v7422, 7
  %v7424 = vsub.s32 0, %v7423
  %v7425 = vrot.slane %v7258, %v7424
  %7427 = vrot.lane.b32.xlu0 %v7425, 32
  %v7428 = vpop.permute.xlu0 %7427
  %v7430 = vadd.f32 %v7408, %v7428
  %v7431 = vadd.f32 %v7413, %v7428
  %v7432 = vlaneseq
  %v7433 = vshrl.u32 %v7432, 7
  %v7434 = vsub.s32 0, %v7433
  %v7435 = vrot.slane %v7259, %v7434
  %7437 = vrot.lane.b32.xlu0 %v7435, 64
  %v7438 = vpop.permute.xlu0 %7437
  %v7440 = vadd.f32 %v7408, %v7438
  %v7441 = vadd.f32 %v7413, %v7438
  %7443 = vrot.lane.b32.xlu0 %v7430, 96
  %v7444 = vpop.permute.xlu0 %7443
  %v7446 = vsel %vm210, %v7420, 0
  %v7448 = vsel %vm210, %v7444, 0
  %7450 = vmatprep.subr.mxu0 0.0
  %7451 = vmatpush1.xpose.msra.mxu0 %v7448
  %7452 = vmatprep.subr.mxu0 0.0
  %7453 = vmatpush1.xpose.msra.mxu0 0.0
  %7454 = vmatprep.subr.mxu0 0.0
  %7455 = vmatpush1.xpose.msra.mxu0 0.0
  %7456 = vmatprep.subr.mxu0 0.0
  %7457 = vmatpush1.xpose.msra.mxu0 0.0
  %7458 = vmatprep.subr.mxu0 0.0
  %7459 = vmatpush1.xpose.msra.mxu0 0.0
  %7460 = vmatprep.subr.mxu0 0.0
  %7461 = vmatpush1.xpose.msra.mxu0 0.0
  %7462 = vmatprep.subr.mxu0 0.0
  %7463 = vmatpush1.xpose.msra.mxu0 0.0
  %7464 = vmatprep.subr.mxu0 0.0
  %7465 = vmatpush1.xpose.msra.mxu0 0.0
  %7466 = vmatprep.subr.mxu0 0.0
  %7467 = vmatpush1.xpose.msra.mxu0 0.0
  %7468 = vmatprep.subr.mxu0 0.0
  %7469 = vmatpush1.xpose.msra.mxu0 0.0
  %7470 = vmatprep.subr.mxu0 0.0
  %7471 = vmatpush1.xpose.msra.mxu0 0.0
  %7472 = vmatprep.subr.mxu0 0.0
  %7473 = vmatpush1.xpose.msra.mxu0 0.0
  %7474 = vmatprep.subr.mxu0 0.0
  %7475 = vmatpush1.xpose.msra.mxu0 0.0
  %7476 = vmatprep.subr.mxu0 0.0
  %7477 = vmatpush1.xpose.msra.mxu0 0.0
  %7478 = vmatprep.subr.mxu0 0.0
  %7479 = vmatpush1.xpose.msra.mxu0 0.0
  %7480 = vmatprep.subr.mxu0 0.0
  %7481 = vmatpush1.xpose.msra.mxu0 0.0
  %7482 = vmatprep.subr.mxu0 0.0
  %7483 = vmatpush1.xpose.msra.mxu0 0.0
  %7484 = vmatprep.subr.mxu0 0.0
  %7485 = vmatpush1.xpose.msra.mxu0 0.0
  %7486 = vmatprep.subr.mxu0 0.0
  %7487 = vmatpush1.xpose.msra.mxu0 0.0
  %7488 = vmatprep.subr.mxu0 0.0
  %7489 = vmatpush1.xpose.msra.mxu0 0.0
  %7490 = vmatprep.subr.mxu0 0.0
  %7491 = vmatpush1.xpose.msra.mxu0 0.0
  %7492 = vmatprep.subr.mxu0 0.0
  %7493 = vmatpush1.xpose.msra.mxu0 0.0
  %7494 = vmatprep.subr.mxu0 0.0
  %7495 = vmatpush1.xpose.msra.mxu0 0.0
  %7496 = vmatprep.subr.mxu0 0.0
  %7497 = vmatpush1.xpose.msra.mxu0 0.0
  %7498 = vmatprep.subr.mxu0 0.0
  %7499 = vmatpush1.xpose.msra.mxu0 0.0
  %7500 = vmatprep.subr.mxu0 0.0
  %7501 = vmatpush1.xpose.msra.mxu0 0.0
  %7502 = vmatprep.subr.mxu0 0.0
  %7503 = vmatpush1.xpose.msra.mxu0 0.0
  %7504 = vmatprep.subr.mxu0 0.0
  %7505 = vmatpush1.xpose.msra.mxu0 0.0
  %7506 = vmatprep.subr.mxu0 0.0
  %7507 = vmatpush1.xpose.msra.mxu0 0.0
  %7508 = vmatprep.subr.mxu0 0.0
  %7509 = vmatpush1.xpose.msra.mxu0 0.0
  %7510 = vmatprep.subr.mxu0 0.0
  %7511 = vmatpush1.xpose.msra.mxu0 0.0
  %7512 = vmatprep.subr.mxu0 0.0
  %7513 = vmatpush1.xpose.msra.mxu0 0.0
  %7514 = vmatprep.mubr.f32.mxu0 0.0
  %7515 = vmatmul.mubr.f32.gmra.mrb[0].mxu0 %v7446
  %v7516 = vpop.f32.mrb[0].mxu0
  %v7517 = vadd.f32 0.0, %v7516
  %v7518 = vpop.f32.mrb[0].mxu0
  %7519 = vdwg.mxu0
  %7521 = vrot.lane.b32.xlu0 %v7431, 96
  %v7522 = vpop.permute.xlu0 %7521
  %v7524 = vsel %vm210, %v7421, 0
  %v7526 = vsel %vm210, %v7522, 0
  %7528 = vmatprep.subr.mxu0 0.0
  %7529 = vmatpush1.xpose.msra.mxu0 %v7526
  %7530 = vmatprep.subr.mxu0 0.0
  %7531 = vmatpush1.xpose.msra.mxu0 0.0
  %7532 = vmatprep.subr.mxu0 0.0
  %7533 = vmatpush1.xpose.msra.mxu0 0.0
  %7534 = vmatprep.subr.mxu0 0.0
  %7535 = vmatpush1.xpose.msra.mxu0 0.0
  %7536 = vmatprep.subr.mxu0 0.0
  %7537 = vmatpush1.xpose.msra.mxu0 0.0
  %7538 = vmatprep.subr.mxu0 0.0
  %7539 = vmatpush1.xpose.msra.mxu0 0.0
  %7540 = vmatprep.subr.mxu0 0.0
  %7541 = vmatpush1.xpose.msra.mxu0 0.0
  %7542 = vmatprep.subr.mxu0 0.0
  %7543 = vmatpush1.xpose.msra.mxu0 0.0
  %7544 = vmatprep.subr.mxu0 0.0
  %7545 = vmatpush1.xpose.msra.mxu0 0.0
  %7546 = vmatprep.subr.mxu0 0.0
  %7547 = vmatpush1.xpose.msra.mxu0 0.0
  %7548 = vmatprep.subr.mxu0 0.0
  %7549 = vmatpush1.xpose.msra.mxu0 0.0
  %7550 = vmatprep.subr.mxu0 0.0
  %7551 = vmatpush1.xpose.msra.mxu0 0.0
  %7552 = vmatprep.subr.mxu0 0.0
  %7553 = vmatpush1.xpose.msra.mxu0 0.0
  %7554 = vmatprep.subr.mxu0 0.0
  %7555 = vmatpush1.xpose.msra.mxu0 0.0
  %7556 = vmatprep.subr.mxu0 0.0
  %7557 = vmatpush1.xpose.msra.mxu0 0.0
  %7558 = vmatprep.subr.mxu0 0.0
  %7559 = vmatpush1.xpose.msra.mxu0 0.0
  %7560 = vmatprep.subr.mxu0 0.0
  %7561 = vmatpush1.xpose.msra.mxu0 0.0
  %7562 = vmatprep.subr.mxu0 0.0
  %7563 = vmatpush1.xpose.msra.mxu0 0.0
  %7564 = vmatprep.subr.mxu0 0.0
  %7565 = vmatpush1.xpose.msra.mxu0 0.0
  %7566 = vmatprep.subr.mxu0 0.0
  %7567 = vmatpush1.xpose.msra.mxu0 0.0
  %7568 = vmatprep.subr.mxu0 0.0
  %7569 = vmatpush1.xpose.msra.mxu0 0.0
  %7570 = vmatprep.subr.mxu0 0.0
  %7571 = vmatpush1.xpose.msra.mxu0 0.0
  %7572 = vmatprep.subr.mxu0 0.0
  %7573 = vmatpush1.xpose.msra.mxu0 0.0
  %7574 = vmatprep.subr.mxu0 0.0
  %7575 = vmatpush1.xpose.msra.mxu0 0.0
  %7576 = vmatprep.subr.mxu0 0.0
  %7577 = vmatpush1.xpose.msra.mxu0 0.0
  %7578 = vmatprep.subr.mxu0 0.0
  %7579 = vmatpush1.xpose.msra.mxu0 0.0
  %7580 = vmatprep.subr.mxu0 0.0
  %7581 = vmatpush1.xpose.msra.mxu0 0.0
  %7582 = vmatprep.subr.mxu0 0.0
  %7583 = vmatpush1.xpose.msra.mxu0 0.0
  %7584 = vmatprep.subr.mxu0 0.0
  %7585 = vmatpush1.xpose.msra.mxu0 0.0
  %7586 = vmatprep.subr.mxu0 0.0
  %7587 = vmatpush1.xpose.msra.mxu0 0.0
  %7588 = vmatprep.subr.mxu0 0.0
  %7589 = vmatpush1.xpose.msra.mxu0 0.0
  %7590 = vmatprep.subr.mxu0 0.0
  %7591 = vmatpush1.xpose.msra.mxu0 0.0
  %7592 = vmatprep.mubr.f32.mxu0 0.0
  %7593 = vmatmul.mubr.f32.gmra.mrb[0].mxu0 %v7524
  %v7594 = vpop.f32.mrb[0].mxu0
  %v7595 = vadd.f32 0.0, %v7594
  %v7596 = vpop.f32.mrb[0].mxu0
  %7597 = vdwg.mxu0
  %v7598 = vmul.f32 %v7517, 0.35355338
  %v7599 = vmul.f32 %v7595, 0.35355338
  %v7600 = vadd.f32 %v7598, %v28
  %v7601 = vadd.f32 %v7599, %v28
  %v7602 = vsel %vm210, %v7600, -inf
  %7603 = vmax.xlane.f32.xlu0 %v7602
  %v7604 = vpop.xlane.xlu0 %7603
  %v7605 = vsel %vm210, %v7601, -inf
  %7606 = vmax.xlane.f32.xlu0 %v7605
  %v7607 = vpop.xlane.xlu0 %7606
  %v7608 = vsub.f32 %v7600, %v7604
  %v7609 = vsub.f32 %v7601, %v7607
  %v7610 = vmul.f32 %v7608, 1.442695
  %v7611 = vpow.pop %v7610
  %v7612 = vmul.f32 %v7609, 1.442695
  %v7613 = vpow.pop %v7612
  %v7614 = vsel %vm210, %v7611, 0.0
  %7615 = vadd.xlane.f32.xlu0 %v7614
  %v7616 = vpop.xlane.xlu0 %7615
  %v7617 = vsel %vm210, %v7613, 0.0
  %7618 = vadd.xlane.f32.xlu0 %v7617
  %v7619 = vpop.xlane.xlu0 %7618
  %v7620 = vrcp.pop %v7616
  %v7621 = vrcp.pop %v7619
  %v7622 = vmul.f32 %v7611, %v7620
  %v7623 = vmul.f32 %v7613, %v7621
  %7625 = vrot.lane.b32.xlu0 %v7440, 64
  %v7626 = vpop.permute.xlu0 %7625
  %v7629 = vsel %vm210, %v7622, 0
  %7631 = vmatprep.subr.mxu0 0.0
  %7632 = vmatpush1.msra.mxu0 %v7626
  %7633 = vmatprep.subr.mxu0 0.0
  %7634 = vmatpush1.msra.mxu0 0.0
  %7635 = vmatprep.subr.mxu0 0.0
  %7636 = vmatpush1.msra.mxu0 0.0
  %7637 = vmatprep.subr.mxu0 0.0
  %7638 = vmatpush1.msra.mxu0 0.0
  %7639 = vmatprep.subr.mxu0 0.0
  %7640 = vmatpush1.msra.mxu0 0.0
  %7641 = vmatprep.subr.mxu0 0.0
  %7642 = vmatpush1.msra.mxu0 0.0
  %7643 = vmatprep.subr.mxu0 0.0
  %7644 = vmatpush1.msra.mxu0 0.0
  %7645 = vmatprep.subr.mxu0 0.0
  %7646 = vmatpush1.msra.mxu0 0.0
  %7647 = vmatprep.subr.mxu0 0.0
  %7648 = vmatpush1.msra.mxu0 0.0
  %7649 = vmatprep.subr.mxu0 0.0
  %7650 = vmatpush1.msra.mxu0 0.0
  %7651 = vmatprep.subr.mxu0 0.0
  %7652 = vmatpush1.msra.mxu0 0.0
  %7653 = vmatprep.subr.mxu0 0.0
  %7654 = vmatpush1.msra.mxu0 0.0
  %7655 = vmatprep.subr.mxu0 0.0
  %7656 = vmatpush1.msra.mxu0 0.0
  %7657 = vmatprep.subr.mxu0 0.0
  %7658 = vmatpush1.msra.mxu0 0.0
  %7659 = vmatprep.subr.mxu0 0.0
  %7660 = vmatpush1.msra.mxu0 0.0
  %7661 = vmatprep.subr.mxu0 0.0
  %7662 = vmatpush1.msra.mxu0 0.0
  %7663 = vmatprep.subr.mxu0 0.0
  %7664 = vmatpush1.msra.mxu0 0.0
  %7665 = vmatprep.subr.mxu0 0.0
  %7666 = vmatpush1.msra.mxu0 0.0
  %7667 = vmatprep.subr.mxu0 0.0
  %7668 = vmatpush1.msra.mxu0 0.0
  %7669 = vmatprep.subr.mxu0 0.0
  %7670 = vmatpush1.msra.mxu0 0.0
  %7671 = vmatprep.subr.mxu0 0.0
  %7672 = vmatpush1.msra.mxu0 0.0
  %7673 = vmatprep.subr.mxu0 0.0
  %7674 = vmatpush1.msra.mxu0 0.0
  %7675 = vmatprep.subr.mxu0 0.0
  %7676 = vmatpush1.msra.mxu0 0.0
  %7677 = vmatprep.subr.mxu0 0.0
  %7678 = vmatpush1.msra.mxu0 0.0
  %7679 = vmatprep.subr.mxu0 0.0
  %7680 = vmatpush1.msra.mxu0 0.0
  %7681 = vmatprep.subr.mxu0 0.0
  %7682 = vmatpush1.msra.mxu0 0.0
  %7683 = vmatprep.subr.mxu0 0.0
  %7684 = vmatpush1.msra.mxu0 0.0
  %7685 = vmatprep.subr.mxu0 0.0
  %7686 = vmatpush1.msra.mxu0 0.0
  %7687 = vmatprep.subr.mxu0 0.0
  %7688 = vmatpush1.msra.mxu0 0.0
  %7689 = vmatprep.subr.mxu0 0.0
  %7690 = vmatpush1.msra.mxu0 0.0
  %7691 = vmatprep.subr.mxu0 0.0
  %7692 = vmatpush1.msra.mxu0 0.0
  %7693 = vmatprep.subr.mxu0 0.0
  %7694 = vmatpush1.msra.mxu0 0.0
  %7695 = vmatprep.mubr.f32.mxu0 0.0
  %7696 = vmatmul.mubr.f32.gmra.mrb[0].mxu0 %v7629
  %v7697 = vpop.f32.mrb[0].mxu0
  %v7698 = vadd.f32 0.0, %v7697
  %v7699 = vpop.f32.mrb[0].mxu0
  %7700 = vdwg.mxu0
  %7702 = vrot.lane.b32.xlu0 %v7441, 64
  %v7703 = vpop.permute.xlu0 %7702
  %v7706 = vsel %vm210, %v7623, 0
  %7708 = vmatprep.subr.mxu0 0.0
  %7709 = vmatpush1.msra.mxu0 %v7703
  %7710 = vmatprep.subr.mxu0 0.0
  %7711 = vmatpush1.msra.mxu0 0.0
  %7712 = vmatprep.subr.mxu0 0.0
  %7713 = vmatpush1.msra.mxu0 0.0
  %7714 = vmatprep.subr.mxu0 0.0
  %7715 = vmatpush1.msra.mxu0 0.0
  %7716 = vmatprep.subr.mxu0 0.0
  %7717 = vmatpush1.msra.mxu0 0.0
  %7718 = vmatprep.subr.mxu0 0.0
  %7719 = vmatpush1.msra.mxu0 0.0
  %7720 = vmatprep.subr.mxu0 0.0
  %7721 = vmatpush1.msra.mxu0 0.0
  %7722 = vmatprep.subr.mxu0 0.0
  %7723 = vmatpush1.msra.mxu0 0.0
  %7724 = vmatprep.subr.mxu0 0.0
  %7725 = vmatpush1.msra.mxu0 0.0
  %7726 = vmatprep.subr.mxu0 0.0
  %7727 = vmatpush1.msra.mxu0 0.0
  %7728 = vmatprep.subr.mxu0 0.0
  %7729 = vmatpush1.msra.mxu0 0.0
  %7730 = vmatprep.subr.mxu0 0.0
  %7731 = vmatpush1.msra.mxu0 0.0
  %7732 = vmatprep.subr.mxu0 0.0
  %7733 = vmatpush1.msra.mxu0 0.0
  %7734 = vmatprep.subr.mxu0 0.0
  %7735 = vmatpush1.msra.mxu0 0.0
  %7736 = vmatprep.subr.mxu0 0.0
  %7737 = vmatpush1.msra.mxu0 0.0
  %7738 = vmatprep.subr.mxu0 0.0
  %7739 = vmatpush1.msra.mxu0 0.0
  %7740 = vmatprep.subr.mxu0 0.0
  %7741 = vmatpush1.msra.mxu0 0.0
  %7742 = vmatprep.subr.mxu0 0.0
  %7743 = vmatpush1.msra.mxu0 0.0
  %7744 = vmatprep.subr.mxu0 0.0
  %7745 = vmatpush1.msra.mxu0 0.0
  %7746 = vmatprep.subr.mxu0 0.0
  %7747 = vmatpush1.msra.mxu0 0.0
  %7748 = vmatprep.subr.mxu0 0.0
  %7749 = vmatpush1.msra.mxu0 0.0
  %7750 = vmatprep.subr.mxu0 0.0
  %7751 = vmatpush1.msra.mxu0 0.0
  %7752 = vmatprep.subr.mxu0 0.0
  %7753 = vmatpush1.msra.mxu0 0.0
  %7754 = vmatprep.subr.mxu0 0.0
  %7755 = vmatpush1.msra.mxu0 0.0
  %7756 = vmatprep.subr.mxu0 0.0
  %7757 = vmatpush1.msra.mxu0 0.0
  %7758 = vmatprep.subr.mxu0 0.0
  %7759 = vmatpush1.msra.mxu0 0.0
  %7760 = vmatprep.subr.mxu0 0.0
  %7761 = vmatpush1.msra.mxu0 0.0
  %7762 = vmatprep.subr.mxu0 0.0
  %7763 = vmatpush1.msra.mxu0 0.0
  %7764 = vmatprep.subr.mxu0 0.0
  %7765 = vmatpush1.msra.mxu0 0.0
  %7766 = vmatprep.subr.mxu0 0.0
  %7767 = vmatpush1.msra.mxu0 0.0
  %7768 = vmatprep.subr.mxu0 0.0
  %7769 = vmatpush1.msra.mxu0 0.0
  %7770 = vmatprep.subr.mxu0 0.0
  %7771 = vmatpush1.msra.mxu0 0.0
  %7772 = vmatprep.mubr.f32.mxu0 0.0
  %7773 = vmatmul.mubr.f32.gmra.mrb[0].mxu0 %v7706
  %v7774 = vpop.f32.mrb[0].mxu0
  %v7775 = vadd.f32 0.0, %v7774
  %v7776 = vpop.f32.mrb[0].mxu0
  %7777 = vdwg.mxu0
  %7778 = vrot.lane.b32.xlu0 %v7420, 120
  %v7779 = vpop.permute.xlu0 %7778
  %7780 = vrot.lane.b32.xlu0 %v7430, 88
  %v7781 = vpop.permute.xlu0 %7780
  %v7782 = vsel %vm210, %v7779, 0
  %v7784 = vsel %vm210, %v7781, 0
  %7786 = vmatprep.subr.mxu0 0.0
  %7787 = vmatpush1.xpose.msra.mxu0 %v7784
  %7788 = vmatprep.subr.mxu0 0.0
  %7789 = vmatpush1.xpose.msra.mxu0 0.0
  %7790 = vmatprep.subr.mxu0 0.0
  %7791 = vmatpush1.xpose.msra.mxu0 0.0
  %7792 = vmatprep.subr.mxu0 0.0
  %7793 = vmatpush1.xpose.msra.mxu0 0.0
  %7794 = vmatprep.subr.mxu0 0.0
  %7795 = vmatpush1.xpose.msra.mxu0 0.0
  %7796 = vmatprep.subr.mxu0 0.0
  %7797 = vmatpush1.xpose.msra.mxu0 0.0
  %7798 = vmatprep.subr.mxu0 0.0
  %7799 = vmatpush1.xpose.msra.mxu0 0.0
  %7800 = vmatprep.subr.mxu0 0.0
  %7801 = vmatpush1.xpose.msra.mxu0 0.0
  %7802 = vmatprep.subr.mxu0 0.0
  %7803 = vmatpush1.xpose.msra.mxu0 0.0
  %7804 = vmatprep.subr.mxu0 0.0
  %7805 = vmatpush1.xpose.msra.mxu0 0.0
  %7806 = vmatprep.subr.mxu0 0.0
  %7807 = vmatpush1.xpose.msra.mxu0 0.0
  %7808 = vmatprep.subr.mxu0 0.0
  %7809 = vmatpush1.xpose.msra.mxu0 0.0
  %7810 = vmatprep.subr.mxu0 0.0
  %7811 = vmatpush1.xpose.msra.mxu0 0.0
  %7812 = vmatprep.subr.mxu0 0.0
  %7813 = vmatpush1.xpose.msra.mxu0 0.0
  %7814 = vmatprep.subr.mxu0 0.0
  %7815 = vmatpush1.xpose.msra.mxu0 0.0
  %7816 = vmatprep.subr.mxu0 0.0
  %7817 = vmatpush1.xpose.msra.mxu0 0.0
  %7818 = vmatprep.subr.mxu0 0.0
  %7819 = vmatpush1.xpose.msra.mxu0 0.0
  %7820 = vmatprep.subr.mxu0 0.0
  %7821 = vmatpush1.xpose.msra.mxu0 0.0
  %7822 = vmatprep.subr.mxu0 0.0
  %7823 = vmatpush1.xpose.msra.mxu0 0.0
  %7824 = vmatprep.subr.mxu0 0.0
  %7825 = vmatpush1.xpose.msra.mxu0 0.0
  %7826 = vmatprep.subr.mxu0 0.0
  %7827 = vmatpush1.xpose.msra.mxu0 0.0
  %7828 = vmatprep.subr.mxu0 0.0
  %7829 = vmatpush1.xpose.msra.mxu0 0.0
  %7830 = vmatprep.subr.mxu0 0.0
  %7831 = vmatpush1.xpose.msra.mxu0 0.0
  %7832 = vmatprep.subr.mxu0 0.0
  %7833 = vmatpush1.xpose.msra.mxu0 0.0
  %7834 = vmatprep.subr.mxu0 0.0
  %7835 = vmatpush1.xpose.msra.mxu0 0.0
  %7836 = vmatprep.subr.mxu0 0.0
  %7837 = vmatpush1.xpose.msra.mxu0 0.0
  %7838 = vmatprep.subr.mxu0 0.0
  %7839 = vmatpush1.xpose.msra.mxu0 0.0
  %7840 = vmatprep.subr.mxu0 0.0
  %7841 = vmatpush1.xpose.msra.mxu0 0.0
  %7842 = vmatprep.subr.mxu0 0.0
  %7843 = vmatpush1.xpose.msra.mxu0 0.0
  %7844 = vmatprep.subr.mxu0 0.0
  %7845 = vmatpush1.xpose.msra.mxu0 0.0
  %7846 = vmatprep.subr.mxu0 0.0
  %7847 = vmatpush1.xpose.msra.mxu0 0.0
  %7848 = vmatprep.subr.mxu0 0.0
  %7849 = vmatpush1.xpose.msra.mxu0 0.0
  %7850 = vmatprep.mubr.f32.mxu0 0.0
  %7851 = vmatmul.mubr.f32.gmra.mrb[0].mxu0 %v7782
  %v7852 = vpop.f32.mrb[0].mxu0
  %v7853 = vadd.f32 0.0, %v7852
  %v7854 = vpop.f32.mrb[0].mxu0
  %7855 = vdwg.mxu0
  %7856 = vrot.lane.b32.xlu0 %v7421, 120
  %v7857 = vpop.permute.xlu0 %7856
  %7858 = vrot.lane.b32.xlu0 %v7431, 88
  %v7859 = vpop.permute.xlu0 %7858
  %v7860 = vsel %vm210, %v7857, 0
  %v7862 = vsel %vm210, %v7859, 0
  %7864 = vmatprep.subr.mxu0 0.0
  %7865 = vmatpush1.xpose.msra.mxu0 %v7862
  %7866 = vmatprep.subr.mxu0 0.0
  %7867 = vmatpush1.xpose.msra.mxu0 0.0
  %7868 = vmatprep.subr.mxu0 0.0
  %7869 = vmatpush1.xpose.msra.mxu0 0.0
  %7870 = vmatprep.subr.mxu0 0.0
  %7871 = vmatpush1.xpose.msra.mxu0 0.0
  %7872 = vmatprep.subr.mxu0 0.0
  %7873 = vmatpush1.xpose.msra.mxu0 0.0
  %7874 = vmatprep.subr.mxu0 0.0
  %7875 = vmatpush1.xpose.msra.mxu0 0.0
  %7876 = vmatprep.subr.mxu0 0.0
  %7877 = vmatpush1.xpose.msra.mxu0 0.0
  %7878 = vmatprep.subr.mxu0 0.0
  %7879 = vmatpush1.xpose.msra.mxu0 0.0
  %7880 = vmatprep.subr.mxu0 0.0
  %7881 = vmatpush1.xpose.msra.mxu0 0.0
  %7882 = vmatprep.subr.mxu0 0.0
  %7883 = vmatpush1.xpose.msra.mxu0 0.0
  %7884 = vmatprep.subr.mxu0 0.0
  %7885 = vmatpush1.xpose.msra.mxu0 0.0
  %7886 = vmatprep.subr.mxu0 0.0
  %7887 = vmatpush1.xpose.msra.mxu0 0.0
  %7888 = vmatprep.subr.mxu0 0.0
  %7889 = vmatpush1.xpose.msra.mxu0 0.0
  %7890 = vmatprep.subr.mxu0 0.0
  %7891 = vmatpush1.xpose.msra.mxu0 0.0
  %7892 = vmatprep.subr.mxu0 0.0
  %7893 = vmatpush1.xpose.msra.mxu0 0.0
  %7894 = vmatprep.subr.mxu0 0.0
  %7895 = vmatpush1.xpose.msra.mxu0 0.0
  %7896 = vmatprep.subr.mxu0 0.0
  %7897 = vmatpush1.xpose.msra.mxu0 0.0
  %7898 = vmatprep.subr.mxu0 0.0
  %7899 = vmatpush1.xpose.msra.mxu0 0.0
  %7900 = vmatprep.subr.mxu0 0.0
  %7901 = vmatpush1.xpose.msra.mxu0 0.0
  %7902 = vmatprep.subr.mxu0 0.0
  %7903 = vmatpush1.xpose.msra.mxu0 0.0
  %7904 = vmatprep.subr.mxu0 0.0
  %7905 = vmatpush1.xpose.msra.mxu0 0.0
  %7906 = vmatprep.subr.mxu0 0.0
  %7907 = vmatpush1.xpose.msra.mxu0 0.0
  %7908 = vmatprep.subr.mxu0 0.0
  %7909 = vmatpush1.xpose.msra.mxu0 0.0
  %7910 = vmatprep.subr.mxu0 0.0
  %7911 = vmatpush1.xpose.msra.mxu0 0.0
  %7912 = vmatprep.subr.mxu0 0.0
  %7913 = vmatpush1.xpose.msra.mxu0 0.0
  %7914 = vmatprep.subr.mxu0 0.0
  %7915 = vmatpush1.xpose.msra.mxu0 0.0
  %7916 = vmatprep.subr.mxu0 0.0
  %7917 = vmatpush1.xpose.msra.mxu0 0.0
  %7918 = vmatprep.subr.mxu0 0.0
  %7919 = vmatpush1.xpose.msra.mxu0 0.0
  %7920 = vmatprep.subr.mxu0 0.0
  %7921 = vmatpush1.xpose.msra.mxu0 0.0
  %7922 = vmatprep.subr.mxu0 0.0
  %7923 = vmatpush1.xpose.msra.mxu0 0.0
  %7924 = vmatprep.subr.mxu0 0.0
  %7925 = vmatpush1.xpose.msra.mxu0 0.0
  %7926 = vmatprep.subr.mxu0 0.0
  %7927 = vmatpush1.xpose.msra.mxu0 0.0
  %7928 = vmatprep.mubr.f32.mxu0 0.0
  %7929 = vmatmul.mubr.f32.gmra.mrb[0].mxu0 %v7860
  %v7930 = vpop.f32.mrb[0].mxu0
  %v7931 = vadd.f32 0.0, %v7930
  %v7932 = vpop.f32.mrb[0].mxu0
  %7933 = vdwg.mxu0
  %v7934 = vmul.f32 %v7853, 0.35355338
  %v7935 = vmul.f32 %v7931, 0.35355338
  %v7936 = vadd.f32 %v7934, %v28
  %v7937 = vadd.f32 %v7935, %v28
  %v7938 = vsel %vm210, %v7936, -inf
  %7939 = vmax.xlane.f32.xlu0 %v7938
  %v7940 = vpop.xlane.xlu0 %7939
  %v7941 = vsel %vm210, %v7937, -inf
  %7942 = vmax.xlane.f32.xlu0 %v7941
  %v7943 = vpop.xlane.xlu0 %7942
  %v7944 = vsub.f32 %v7936, %v7940
  %v7945 = vsub.f32 %v7937, %v7943
  %v7946 = vmul.f32 %v7944, 1.442695
  %v7947 = vpow.pop %v7946
  %v7948 = vmul.f32 %v7945, 1.442695
  %v7949 = vpow.pop %v7948
  %v7950 = vsel %vm210, %v7947, 0.0
  %7951 = vadd.xlane.f32.xlu0 %v7950
  %v7952 = vpop.xlane.xlu0 %7951
  %v7953 = vsel %vm210, %v7949, 0.0
  %7954 = vadd.xlane.f32.xlu0 %v7953
  %v7955 = vpop.xlane.xlu0 %7954
  %v7956 = vrcp.pop %v7952
  %v7957 = vrcp.pop %v7955
  %v7958 = vmul.f32 %v7947, %v7956
  %v7959 = vmul.f32 %v7949, %v7957
  %7960 = vrot.lane.b32.xlu0 %v7440, 56
  %v7961 = vpop.permute.xlu0 %7960
  %v7964 = vsel %vm210, %v7958, 0
  %7966 = vmatprep.subr.mxu0 0.0
  %7967 = vmatpush1.msra.mxu0 %v7961
  %7968 = vmatprep.subr.mxu0 0.0
  %7969 = vmatpush1.msra.mxu0 0.0
  %7970 = vmatprep.subr.mxu0 0.0
  %7971 = vmatpush1.msra.mxu0 0.0
  %7972 = vmatprep.subr.mxu0 0.0
  %7973 = vmatpush1.msra.mxu0 0.0
  %7974 = vmatprep.subr.mxu0 0.0
  %7975 = vmatpush1.msra.mxu0 0.0
  %7976 = vmatprep.subr.mxu0 0.0
  %7977 = vmatpush1.msra.mxu0 0.0
  %7978 = vmatprep.subr.mxu0 0.0
  %7979 = vmatpush1.msra.mxu0 0.0
  %7980 = vmatprep.subr.mxu0 0.0
  %7981 = vmatpush1.msra.mxu0 0.0
  %7982 = vmatprep.subr.mxu0 0.0
  %7983 = vmatpush1.msra.mxu0 0.0
  %7984 = vmatprep.subr.mxu0 0.0
  %7985 = vmatpush1.msra.mxu0 0.0
  %7986 = vmatprep.subr.mxu0 0.0
  %7987 = vmatpush1.msra.mxu0 0.0
  %7988 = vmatprep.subr.mxu0 0.0
  %7989 = vmatpush1.msra.mxu0 0.0
  %7990 = vmatprep.subr.mxu0 0.0
  %7991 = vmatpush1.msra.mxu0 0.0
  %7992 = vmatprep.subr.mxu0 0.0
  %7993 = vmatpush1.msra.mxu0 0.0
  %7994 = vmatprep.subr.mxu0 0.0
  %7995 = vmatpush1.msra.mxu0 0.0
  %7996 = vmatprep.subr.mxu0 0.0
  %7997 = vmatpush1.msra.mxu0 0.0
  %7998 = vmatprep.subr.mxu0 0.0
  %7999 = vmatpush1.msra.mxu0 0.0
  %8000 = vmatprep.subr.mxu0 0.0
  %8001 = vmatpush1.msra.mxu0 0.0
  %8002 = vmatprep.subr.mxu0 0.0
  %8003 = vmatpush1.msra.mxu0 0.0
  %8004 = vmatprep.subr.mxu0 0.0
  %8005 = vmatpush1.msra.mxu0 0.0
  %8006 = vmatprep.subr.mxu0 0.0
  %8007 = vmatpush1.msra.mxu0 0.0
  %8008 = vmatprep.subr.mxu0 0.0
  %8009 = vmatpush1.msra.mxu0 0.0
  %8010 = vmatprep.subr.mxu0 0.0
  %8011 = vmatpush1.msra.mxu0 0.0
  %8012 = vmatprep.subr.mxu0 0.0
  %8013 = vmatpush1.msra.mxu0 0.0
  %8014 = vmatprep.subr.mxu0 0.0
  %8015 = vmatpush1.msra.mxu0 0.0
  %8016 = vmatprep.subr.mxu0 0.0
  %8017 = vmatpush1.msra.mxu0 0.0
  %8018 = vmatprep.subr.mxu0 0.0
  %8019 = vmatpush1.msra.mxu0 0.0
  %8020 = vmatprep.subr.mxu0 0.0
  %8021 = vmatpush1.msra.mxu0 0.0
  %8022 = vmatprep.subr.mxu0 0.0
  %8023 = vmatpush1.msra.mxu0 0.0
  %8024 = vmatprep.subr.mxu0 0.0
  %8025 = vmatpush1.msra.mxu0 0.0
  %8026 = vmatprep.subr.mxu0 0.0
  %8027 = vmatpush1.msra.mxu0 0.0
  %8028 = vmatprep.subr.mxu0 0.0
  %8029 = vmatpush1.msra.mxu0 0.0
  %8030 = vmatprep.mubr.f32.mxu0 0.0
  %8031 = vmatmul.mubr.f32.gmra.mrb[0].mxu0 %v7964
  %v8032 = vpop.f32.mrb[0].mxu0
  %v8033 = vadd.f32 0.0, %v8032
  %v8034 = vpop.f32.mrb[0].mxu0
  %8035 = vdwg.mxu0
  %8036 = vrot.lane.b32.xlu0 %v7441, 56
  %v8037 = vpop.permute.xlu0 %8036
  %v8040 = vsel %vm210, %v7959, 0
  %8042 = vmatprep.subr.mxu0 0.0
  %8043 = vmatpush1.msra.mxu0 %v8037
  %8044 = vmatprep.subr.mxu0 0.0
  %8045 = vmatpush1.msra.mxu0 0.0
  %8046 = vmatprep.subr.mxu0 0.0
  %8047 = vmatpush1.msra.mxu0 0.0
  %8048 = vmatprep.subr.mxu0 0.0
  %8049 = vmatpush1.msra.mxu0 0.0
  %8050 = vmatprep.subr.mxu0 0.0
  %8051 = vmatpush1.msra.mxu0 0.0
  %8052 = vmatprep.subr.mxu0 0.0
  %8053 = vmatpush1.msra.mxu0 0.0
  %8054 = vmatprep.subr.mxu0 0.0
  %8055 = vmatpush1.msra.mxu0 0.0
  %8056 = vmatprep.subr.mxu0 0.0
  %8057 = vmatpush1.msra.mxu0 0.0
  %8058 = vmatprep.subr.mxu0 0.0
  %8059 = vmatpush1.msra.mxu0 0.0
  %8060 = vmatprep.subr.mxu0 0.0
  %8061 = vmatpush1.msra.mxu0 0.0
  %8062 = vmatprep.subr.mxu0 0.0
  %8063 = vmatpush1.msra.mxu0 0.0
  %8064 = vmatprep.subr.mxu0 0.0
  %8065 = vmatpush1.msra.mxu0 0.0
  %8066 = vmatprep.subr.mxu0 0.0
  %8067 = vmatpush1.msra.mxu0 0.0
  %8068 = vmatprep.subr.mxu0 0.0
  %8069 = vmatpush1.msra.mxu0 0.0
  %8070 = vmatprep.subr.mxu0 0.0
  %8071 = vmatpush1.msra.mxu0 0.0
  %8072 = vmatprep.subr.mxu0 0.0
  %8073 = vmatpush1.msra.mxu0 0.0
  %8074 = vmatprep.subr.mxu0 0.0
  %8075 = vmatpush1.msra.mxu0 0.0
  %8076 = vmatprep.subr.mxu0 0.0
  %8077 = vmatpush1.msra.mxu0 0.0
  %8078 = vmatprep.subr.mxu0 0.0
  %8079 = vmatpush1.msra.mxu0 0.0
  %8080 = vmatprep.subr.mxu0 0.0
  %8081 = vmatpush1.msra.mxu0 0.0
  %8082 = vmatprep.subr.mxu0 0.0
  %8083 = vmatpush1.msra.mxu0 0.0
  %8084 = vmatprep.subr.mxu0 0.0
  %8085 = vmatpush1.msra.mxu0 0.0
  %8086 = vmatprep.subr.mxu0 0.0
  %8087 = vmatpush1.msra.mxu0 0.0
  %8088 = vmatprep.subr.mxu0 0.0
  %8089 = vmatpush1.msra.mxu0 0.0
  %8090 = vmatprep.subr.mxu0 0.0
  %8091 = vmatpush1.msra.mxu0 0.0
  %8092 = vmatprep.subr.mxu0 0.0
  %8093 = vmatpush1.msra.mxu0 0.0
  %8094 = vmatprep.subr.mxu0 0.0
  %8095 = vmatpush1.msra.mxu0 0.0
  %8096 = vmatprep.subr.mxu0 0.0
  %8097 = vmatpush1.msra.mxu0 0.0
  %8098 = vmatprep.subr.mxu0 0.0
  %8099 = vmatpush1.msra.mxu0 0.0
  %8100 = vmatprep.subr.mxu0 0.0
  %8101 = vmatpush1.msra.mxu0 0.0
  %8102 = vmatprep.subr.mxu0 0.0
  %8103 = vmatpush1.msra.mxu0 0.0
  %8104 = vmatprep.subr.mxu0 0.0
  %8105 = vmatpush1.msra.mxu0 0.0
  %8106 = vmatprep.mubr.f32.mxu0 0.0
  %8107 = vmatmul.mubr.f32.gmra.mrb[0].mxu0 %v8040
  %v8108 = vpop.f32.mrb[0].mxu0
  %v8109 = vadd.f32 0.0, %v8108
  %v8110 = vpop.f32.mrb[0].mxu0
  %8111 = vdwg.mxu0
  %8112 = vrot.lane.b32.xlu0 %v7420, 112
  %v8113 = vpop.permute.xlu0 %8112
  %8114 = vrot.lane.b32.xlu0 %v7430, 80
  %v8115 = vpop.permute.xlu0 %8114
  %v8116 = vsel %vm210, %v8113, 0
  %v8118 = vsel %vm210, %v8115, 0
  %8120 = vmatprep.subr.mxu0 0.0
  %8121 = vmatpush1.xpose.msra.mxu0 %v8118
  %8122 = vmatprep.subr.mxu0 0.0
  %8123 = vmatpush1.xpose.msra.mxu0 0.0
  %8124 = vmatprep.subr.mxu0 0.0
  %8125 = vmatpush1.xpose.msra.mxu0 0.0
  %8126 = vmatprep.subr.mxu0 0.0
  %8127 = vmatpush1.xpose.msra.mxu0 0.0
  %8128 = vmatprep.subr.mxu0 0.0
  %8129 = vmatpush1.xpose.msra.mxu0 0.0
  %8130 = vmatprep.subr.mxu0 0.0
  %8131 = vmatpush1.xpose.msra.mxu0 0.0
  %8132 = vmatprep.subr.mxu0 0.0
  %8133 = vmatpush1.xpose.msra.mxu0 0.0
  %8134 = vmatprep.subr.mxu0 0.0
  %8135 = vmatpush1.xpose.msra.mxu0 0.0
  %8136 = vmatprep.subr.mxu0 0.0
  %8137 = vmatpush1.xpose.msra.mxu0 0.0
  %8138 = vmatprep.subr.mxu0 0.0
  %8139 = vmatpush1.xpose.msra.mxu0 0.0
  %8140 = vmatprep.subr.mxu0 0.0
  %8141 = vmatpush1.xpose.msra.mxu0 0.0
  %8142 = vmatprep.subr.mxu0 0.0
  %8143 = vmatpush1.xpose.msra.mxu0 0.0
  %8144 = vmatprep.subr.mxu0 0.0
  %8145 = vmatpush1.xpose.msra.mxu0 0.0
  %8146 = vmatprep.subr.mxu0 0.0
  %8147 = vmatpush1.xpose.msra.mxu0 0.0
  %8148 = vmatprep.subr.mxu0 0.0
  %8149 = vmatpush1.xpose.msra.mxu0 0.0
  %8150 = vmatprep.subr.mxu0 0.0
  %8151 = vmatpush1.xpose.msra.mxu0 0.0
  %8152 = vmatprep.subr.mxu0 0.0
  %8153 = vmatpush1.xpose.msra.mxu0 0.0
  %8154 = vmatprep.subr.mxu0 0.0
  %8155 = vmatpush1.xpose.msra.mxu0 0.0
  %8156 = vmatprep.subr.mxu0 0.0
  %8157 = vmatpush1.xpose.msra.mxu0 0.0
  %8158 = vmatprep.subr.mxu0 0.0
  %8159 = vmatpush1.xpose.msra.mxu0 0.0
  %8160 = vmatprep.subr.mxu0 0.0
  %8161 = vmatpush1.xpose.msra.mxu0 0.0
  %8162 = vmatprep.subr.mxu0 0.0
  %8163 = vmatpush1.xpose.msra.mxu0 0.0
  %8164 = vmatprep.subr.mxu0 0.0
  %8165 = vmatpush1.xpose.msra.mxu0 0.0
  %8166 = vmatprep.subr.mxu0 0.0
  %8167 = vmatpush1.xpose.msra.mxu0 0.0
  %8168 = vmatprep.subr.mxu0 0.0
  %8169 = vmatpush1.xpose.msra.mxu0 0.0
  %8170 = vmatprep.subr.mxu0 0.0
  %8171 = vmatpush1.xpose.msra.mxu0 0.0
  %8172 = vmatprep.subr.mxu0 0.0
  %8173 = vmatpush1.xpose.msra.mxu0 0.0
  %8174 = vmatprep.subr.mxu0 0.0
  %8175 = vmatpush1.xpose.msra.mxu0 0.0
  %8176 = vmatprep.subr.mxu0 0.0
  %8177 = vmatpush1.xpose.msra.mxu0 0.0
  %8178 = vmatprep.subr.mxu0 0.0
  %8179 = vmatpush1.xpose.msra.mxu0 0.0
  %8180 = vmatprep.subr.mxu0 0.0
  %8181 = vmatpush1.xpose.msra.mxu0 0.0
  %8182 = vmatprep.subr.mxu0 0.0
  %8183 = vmatpush1.xpose.msra.mxu0 0.0
  %8184 = vmatprep.mubr.f32.mxu0 0.0
  %8185 = vmatmul.mubr.f32.gmra.mrb[0].mxu0 %v8116
  %v8186 = vpop.f32.mrb[0].mxu0
  %v8187 = vadd.f32 0.0, %v8186
  %v8188 = vpop.f32.mrb[0].mxu0
  %8189 = vdwg.mxu0
  %8190 = vrot.lane.b32.xlu0 %v7421, 112
  %v8191 = vpop.permute.xlu0 %8190
  %8192 = vrot.lane.b32.xlu0 %v7431, 80
  %v8193 = vpop.permute.xlu0 %8192
  %v8194 = vsel %vm210, %v8191, 0
  %v8196 = vsel %vm210, %v8193, 0
  %8198 = vmatprep.subr.mxu0 0.0
  %8199 = vmatpush1.xpose.msra.mxu0 %v8196
  %8200 = vmatprep.subr.mxu0 0.0
  %8201 = vmatpush1.xpose.msra.mxu0 0.0
  %8202 = vmatprep.subr.mxu0 0.0
  %8203 = vmatpush1.xpose.msra.mxu0 0.0
  %8204 = vmatprep.subr.mxu0 0.0
  %8205 = vmatpush1.xpose.msra.mxu0 0.0
  %8206 = vmatprep.subr.mxu0 0.0
  %8207 = vmatpush1.xpose.msra.mxu0 0.0
  %8208 = vmatprep.subr.mxu0 0.0
  %8209 = vmatpush1.xpose.msra.mxu0 0.0
  %8210 = vmatprep.subr.mxu0 0.0
  %8211 = vmatpush1.xpose.msra.mxu0 0.0
  %8212 = vmatprep.subr.mxu0 0.0
  %8213 = vmatpush1.xpose.msra.mxu0 0.0
  %8214 = vmatprep.subr.mxu0 0.0
  %8215 = vmatpush1.xpose.msra.mxu0 0.0
  %8216 = vmatprep.subr.mxu0 0.0
  %8217 = vmatpush1.xpose.msra.mxu0 0.0
  %8218 = vmatprep.subr.mxu0 0.0
  %8219 = vmatpush1.xpose.msra.mxu0 0.0
  %8220 = vmatprep.subr.mxu0 0.0
  %8221 = vmatpush1.xpose.msra.mxu0 0.0
  %8222 = vmatprep.subr.mxu0 0.0
  %8223 = vmatpush1.xpose.msra.mxu0 0.0
  %8224 = vmatprep.subr.mxu0 0.0
  %8225 = vmatpush1.xpose.msra.mxu0 0.0
  %8226 = vmatprep.subr.mxu0 0.0
  %8227 = vmatpush1.xpose.msra.mxu0 0.0
  %8228 = vmatprep.subr.mxu0 0.0
  %8229 = vmatpush1.xpose.msra.mxu0 0.0
  %8230 = vmatprep.subr.mxu0 0.0
  %8231 = vmatpush1.xpose.msra.mxu0 0.0
  %8232 = vmatprep.subr.mxu0 0.0
  %8233 = vmatpush1.xpose.msra.mxu0 0.0
  %8234 = vmatprep.subr.mxu0 0.0
  %8235 = vmatpush1.xpose.msra.mxu0 0.0
  %8236 = vmatprep.subr.mxu0 0.0
  %8237 = vmatpush1.xpose.msra.mxu0 0.0
  %8238 = vmatprep.subr.mxu0 0.0
  %8239 = vmatpush1.xpose.msra.mxu0 0.0
  %8240 = vmatprep.subr.mxu0 0.0
  %8241 = vmatpush1.xpose.msra.mxu0 0.0
  %8242 = vmatprep.subr.mxu0 0.0
  %8243 = vmatpush1.xpose.msra.mxu0 0.0
  %8244 = vmatprep.subr.mxu0 0.0
  %8245 = vmatpush1.xpose.msra.mxu0 0.0
  %8246 = vmatprep.subr.mxu0 0.0
  %8247 = vmatpush1.xpose.msra.mxu0 0.0
  %8248 = vmatprep.subr.mxu0 0.0
  %8249 = vmatpush1.xpose.msra.mxu0 0.0
  %8250 = vmatprep.subr.mxu0 0.0
  %8251 = vmatpush1.xpose.msra.mxu0 0.0
  %8252 = vmatprep.subr.mxu0 0.0
  %8253 = vmatpush1.xpose.msra.mxu0 0.0
  %8254 = vmatprep.subr.mxu0 0.0
  %8255 = vmatpush1.xpose.msra.mxu0 0.0
  %8256 = vmatprep.subr.mxu0 0.0
  %8257 = vmatpush1.xpose.msra.mxu0 0.0
  %8258 = vmatprep.subr.mxu0 0.0
  %8259 = vmatpush1.xpose.msra.mxu0 0.0
  %8260 = vmatprep.subr.mxu0 0.0
  %8261 = vmatpush1.xpose.msra.mxu0 0.0
  %8262 = vmatprep.mubr.f32.mxu0 0.0
  %8263 = vmatmul.mubr.f32.gmra.mrb[0].mxu0 %v8194
  %v8264 = vpop.f32.mrb[0].mxu0
  %v8265 = vadd.f32 0.0, %v8264
  %v8266 = vpop.f32.mrb[0].mxu0
  %8267 = vdwg.mxu0
  %v8268 = vmul.f32 %v8187, 0.35355338
  %v8269 = vmul.f32 %v8265, 0.35355338
  %v8270 = vadd.f32 %v8268, %v28
  %v8271 = vadd.f32 %v8269, %v28
  %v8272 = vsel %vm210, %v8270, -inf
  %8273 = vmax.xlane.f32.xlu0 %v8272
  %v8274 = vpop.xlane.xlu0 %8273
  %v8275 = vsel %vm210, %v8271, -inf
  %8276 = vmax.xlane.f32.xlu0 %v8275
  %v8277 = vpop.xlane.xlu0 %8276
  %v8278 = vsub.f32 %v8270, %v8274
  %v8279 = vsub.f32 %v8271, %v8277
  %v8280 = vmul.f32 %v8278, 1.442695
  %v8281 = vpow.pop %v8280
  %v8282 = vmul.f32 %v8279, 1.442695
  %v8283 = vpow.pop %v8282
  %v8284 = vsel %vm210, %v8281, 0.0
  %8285 = vadd.xlane.f32.xlu0 %v8284
  %v8286 = vpop.xlane.xlu0 %8285
  %v8287 = vsel %vm210, %v8283, 0.0
  %8288 = vadd.xlane.f32.xlu0 %v8287
  %v8289 = vpop.xlane.xlu0 %8288
  %v8290 = vrcp.pop %v8286
  %v8291 = vrcp.pop %v8289
  %v8292 = vmul.f32 %v8281, %v8290
  %v8293 = vmul.f32 %v8283, %v8291
  %8294 = vrot.lane.b32.xlu0 %v7440, 48
  %v8295 = vpop.permute.xlu0 %8294
  %v8298 = vsel %vm210, %v8292, 0
  %8300 = vmatprep.subr.mxu0 0.0
  %8301 = vmatpush1.msra.mxu0 %v8295
  %8302 = vmatprep.subr.mxu0 0.0
  %8303 = vmatpush1.msra.mxu0 0.0
  %8304 = vmatprep.subr.mxu0 0.0
  %8305 = vmatpush1.msra.mxu0 0.0
  %8306 = vmatprep.subr.mxu0 0.0
  %8307 = vmatpush1.msra.mxu0 0.0
  %8308 = vmatprep.subr.mxu0 0.0
  %8309 = vmatpush1.msra.mxu0 0.0
  %8310 = vmatprep.subr.mxu0 0.0
  %8311 = vmatpush1.msra.mxu0 0.0
  %8312 = vmatprep.subr.mxu0 0.0
  %8313 = vmatpush1.msra.mxu0 0.0
  %8314 = vmatprep.subr.mxu0 0.0
  %8315 = vmatpush1.msra.mxu0 0.0
  %8316 = vmatprep.subr.mxu0 0.0
  %8317 = vmatpush1.msra.mxu0 0.0
  %8318 = vmatprep.subr.mxu0 0.0
  %8319 = vmatpush1.msra.mxu0 0.0
  %8320 = vmatprep.subr.mxu0 0.0
  %8321 = vmatpush1.msra.mxu0 0.0
  %8322 = vmatprep.subr.mxu0 0.0
  %8323 = vmatpush1.msra.mxu0 0.0
  %8324 = vmatprep.subr.mxu0 0.0
  %8325 = vmatpush1.msra.mxu0 0.0
  %8326 = vmatprep.subr.mxu0 0.0
  %8327 = vmatpush1.msra.mxu0 0.0
  %8328 = vmatprep.subr.mxu0 0.0
  %8329 = vmatpush1.msra.mxu0 0.0
  %8330 = vmatprep.subr.mxu0 0.0
  %8331 = vmatpush1.msra.mxu0 0.0
  %8332 = vmatprep.subr.mxu0 0.0
  %8333 = vmatpush1.msra.mxu0 0.0
  %8334 = vmatprep.subr.mxu0 0.0
  %8335 = vmatpush1.msra.mxu0 0.0
  %8336 = vmatprep.subr.mxu0 0.0
  %8337 = vmatpush1.msra.mxu0 0.0
  %8338 = vmatprep.subr.mxu0 0.0
  %8339 = vmatpush1.msra.mxu0 0.0
  %8340 = vmatprep.subr.mxu0 0.0
  %8341 = vmatpush1.msra.mxu0 0.0
  %8342 = vmatprep.subr.mxu0 0.0
  %8343 = vmatpush1.msra.mxu0 0.0
  %8344 = vmatprep.subr.mxu0 0.0
  %8345 = vmatpush1.msra.mxu0 0.0
  %8346 = vmatprep.subr.mxu0 0.0
  %8347 = vmatpush1.msra.mxu0 0.0
  %8348 = vmatprep.subr.mxu0 0.0
  %8349 = vmatpush1.msra.mxu0 0.0
  %8350 = vmatprep.subr.mxu0 0.0
  %8351 = vmatpush1.msra.mxu0 0.0
  %8352 = vmatprep.subr.mxu0 0.0
  %8353 = vmatpush1.msra.mxu0 0.0
  %8354 = vmatprep.subr.mxu0 0.0
  %8355 = vmatpush1.msra.mxu0 0.0
  %8356 = vmatprep.subr.mxu0 0.0
  %8357 = vmatpush1.msra.mxu0 0.0
  %8358 = vmatprep.subr.mxu0 0.0
  %8359 = vmatpush1.msra.mxu0 0.0
  %8360 = vmatprep.subr.mxu0 0.0
  %8361 = vmatpush1.msra.mxu0 0.0
  %8362 = vmatprep.subr.mxu0 0.0
  %8363 = vmatpush1.msra.mxu0 0.0
  %8364 = vmatprep.mubr.f32.mxu0 0.0
  %8365 = vmatmul.mubr.f32.gmra.mrb[0].mxu0 %v8298
  %v8366 = vpop.f32.mrb[0].mxu0
  %v8367 = vadd.f32 0.0, %v8366
  %v8368 = vpop.f32.mrb[0].mxu0
  %8369 = vdwg.mxu0
  %8370 = vrot.lane.b32.xlu0 %v7441, 48
  %v8371 = vpop.permute.xlu0 %8370
  %v8374 = vsel %vm210, %v8293, 0
  %8376 = vmatprep.subr.mxu0 0.0
  %8377 = vmatpush1.msra.mxu0 %v8371
  %8378 = vmatprep.subr.mxu0 0.0
  %8379 = vmatpush1.msra.mxu0 0.0
  %8380 = vmatprep.subr.mxu0 0.0
  %8381 = vmatpush1.msra.mxu0 0.0
  %8382 = vmatprep.subr.mxu0 0.0
  %8383 = vmatpush1.msra.mxu0 0.0
  %8384 = vmatprep.subr.mxu0 0.0
  %8385 = vmatpush1.msra.mxu0 0.0
  %8386 = vmatprep.subr.mxu0 0.0
  %8387 = vmatpush1.msra.mxu0 0.0
  %8388 = vmatprep.subr.mxu0 0.0
  %8389 = vmatpush1.msra.mxu0 0.0
  %8390 = vmatprep.subr.mxu0 0.0
  %8391 = vmatpush1.msra.mxu0 0.0
  %8392 = vmatprep.subr.mxu0 0.0
  %8393 = vmatpush1.msra.mxu0 0.0
  %8394 = vmatprep.subr.mxu0 0.0
  %8395 = vmatpush1.msra.mxu0 0.0
  %8396 = vmatprep.subr.mxu0 0.0
  %8397 = vmatpush1.msra.mxu0 0.0
  %8398 = vmatprep.subr.mxu0 0.0
  %8399 = vmatpush1.msra.mxu0 0.0
  %8400 = vmatprep.subr.mxu0 0.0
  %8401 = vmatpush1.msra.mxu0 0.0
  %8402 = vmatprep.subr.mxu0 0.0
  %8403 = vmatpush1.msra.mxu0 0.0
  %8404 = vmatprep.subr.mxu0 0.0
  %8405 = vmatpush1.msra.mxu0 0.0
  %8406 = vmatprep.subr.mxu0 0.0
  %8407 = vmatpush1.msra.mxu0 0.0
  %8408 = vmatprep.subr.mxu0 0.0
  %8409 = vmatpush1.msra.mxu0 0.0
  %8410 = vmatprep.subr.mxu0 0.0
  %8411 = vmatpush1.msra.mxu0 0.0
  %8412 = vmatprep.subr.mxu0 0.0
  %8413 = vmatpush1.msra.mxu0 0.0
  %8414 = vmatprep.subr.mxu0 0.0
  %8415 = vmatpush1.msra.mxu0 0.0
  %8416 = vmatprep.subr.mxu0 0.0
  %8417 = vmatpush1.msra.mxu0 0.0
  %8418 = vmatprep.subr.mxu0 0.0
  %8419 = vmatpush1.msra.mxu0 0.0
  %8420 = vmatprep.subr.mxu0 0.0
  %8421 = vmatpush1.msra.mxu0 0.0
  %8422 = vmatprep.subr.mxu0 0.0
  %8423 = vmatpush1.msra.mxu0 0.0
  %8424 = vmatprep.subr.mxu0 0.0
  %8425 = vmatpush1.msra.mxu0 0.0
  %8426 = vmatprep.subr.mxu0 0.0
  %8427 = vmatpush1.msra.mxu0 0.0
  %8428 = vmatprep.subr.mxu0 0.0
  %8429 = vmatpush1.msra.mxu0 0.0
  %8430 = vmatprep.subr.mxu0 0.0
  %8431 = vmatpush1.msra.mxu0 0.0
  %8432 = vmatprep.subr.mxu0 0.0
  %8433 = vmatpush1.msra.mxu0 0.0
  %8434 = vmatprep.subr.mxu0 0.0
  %8435 = vmatpush1.msra.mxu0 0.0
  %8436 = vmatprep.subr.mxu0 0.0
  %8437 = vmatpush1.msra.mxu0 0.0
  %8438 = vmatprep.subr.mxu0 0.0
  %8439 = vmatpush1.msra.mxu0 0.0
  %8440 = vmatprep.mubr.f32.mxu0 0.0
  %8441 = vmatmul.mubr.f32.gmra.mrb[0].mxu0 %v8374
  %v8442 = vpop.f32.mrb[0].mxu0
  %v8443 = vadd.f32 0.0, %v8442
  %v8444 = vpop.f32.mrb[0].mxu0
  %8445 = vdwg.mxu0
  %8446 = vrot.lane.b32.xlu0 %v7420, 104
  %v8447 = vpop.permute.xlu0 %8446
  %8448 = vrot.lane.b32.xlu0 %v7430, 72
  %v8449 = vpop.permute.xlu0 %8448
  %v8450 = vsel %vm210, %v8447, 0
  %v8452 = vsel %vm210, %v8449, 0
  %8454 = vmatprep.subr.mxu0 0.0
  %8455 = vmatpush1.xpose.msra.mxu0 %v8452
  %8456 = vmatprep.subr.mxu0 0.0
  %8457 = vmatpush1.xpose.msra.mxu0 0.0
  %8458 = vmatprep.subr.mxu0 0.0
  %8459 = vmatpush1.xpose.msra.mxu0 0.0
  %8460 = vmatprep.subr.mxu0 0.0
  %8461 = vmatpush1.xpose.msra.mxu0 0.0
  %8462 = vmatprep.subr.mxu0 0.0
  %8463 = vmatpush1.xpose.msra.mxu0 0.0
  %8464 = vmatprep.subr.mxu0 0.0
  %8465 = vmatpush1.xpose.msra.mxu0 0.0
  %8466 = vmatprep.subr.mxu0 0.0
  %8467 = vmatpush1.xpose.msra.mxu0 0.0
  %8468 = vmatprep.subr.mxu0 0.0
  %8469 = vmatpush1.xpose.msra.mxu0 0.0
  %8470 = vmatprep.subr.mxu0 0.0
  %8471 = vmatpush1.xpose.msra.mxu0 0.0
  %8472 = vmatprep.subr.mxu0 0.0
  %8473 = vmatpush1.xpose.msra.mxu0 0.0
  %8474 = vmatprep.subr.mxu0 0.0
  %8475 = vmatpush1.xpose.msra.mxu0 0.0
  %8476 = vmatprep.subr.mxu0 0.0
  %8477 = vmatpush1.xpose.msra.mxu0 0.0
  %8478 = vmatprep.subr.mxu0 0.0
  %8479 = vmatpush1.xpose.msra.mxu0 0.0
  %8480 = vmatprep.subr.mxu0 0.0
  %8481 = vmatpush1.xpose.msra.mxu0 0.0
  %8482 = vmatprep.subr.mxu0 0.0
  %8483 = vmatpush1.xpose.msra.mxu0 0.0
  %8484 = vmatprep.subr.mxu0 0.0
  %8485 = vmatpush1.xpose.msra.mxu0 0.0
  %8486 = vmatprep.subr.mxu0 0.0
  %8487 = vmatpush1.xpose.msra.mxu0 0.0
  %8488 = vmatprep.subr.mxu0 0.0
  %8489 = vmatpush1.xpose.msra.mxu0 0.0
  %8490 = vmatprep.subr.mxu0 0.0
  %8491 = vmatpush1.xpose.msra.mxu0 0.0
  %8492 = vmatprep.subr.mxu0 0.0
  %8493 = vmatpush1.xpose.msra.mxu0 0.0
  %8494 = vmatprep.subr.mxu0 0.0
  %8495 = vmatpush1.xpose.msra.mxu0 0.0
  %8496 = vmatprep.subr.mxu0 0.0
  %8497 = vmatpush1.xpose.msra.mxu0 0.0
  %8498 = vmatprep.subr.mxu0 0.0
  %8499 = vmatpush1.xpose.msra.mxu0 0.0
  %8500 = vmatprep.subr.mxu0 0.0
  %8501 = vmatpush1.xpose.msra.mxu0 0.0
  %8502 = vmatprep.subr.mxu0 0.0
  %8503 = vmatpush1.xpose.msra.mxu0 0.0
  %8504 = vmatprep.subr.mxu0 0.0
  %8505 = vmatpush1.xpose.msra.mxu0 0.0
  %8506 = vmatprep.subr.mxu0 0.0
  %8507 = vmatpush1.xpose.msra.mxu0 0.0
  %8508 = vmatprep.subr.mxu0 0.0
  %8509 = vmatpush1.xpose.msra.mxu0 0.0
  %8510 = vmatprep.subr.mxu0 0.0
  %8511 = vmatpush1.xpose.msra.mxu0 0.0
  %8512 = vmatprep.subr.mxu0 0.0
  %8513 = vmatpush1.xpose.msra.mxu0 0.0
  %8514 = vmatprep.subr.mxu0 0.0
  %8515 = vmatpush1.xpose.msra.mxu0 0.0
  %8516 = vmatprep.subr.mxu0 0.0
  %8517 = vmatpush1.xpose.msra.mxu0 0.0
  %8518 = vmatprep.mubr.f32.mxu0 0.0
  %8519 = vmatmul.mubr.f32.gmra.mrb[0].mxu0 %v8450
  %v8520 = vpop.f32.mrb[0].mxu0
  %v8521 = vadd.f32 0.0, %v8520
  %v8522 = vpop.f32.mrb[0].mxu0
  %8523 = vdwg.mxu0
  %8524 = vrot.lane.b32.xlu0 %v7421, 104
  %v8525 = vpop.permute.xlu0 %8524
  %8526 = vrot.lane.b32.xlu0 %v7431, 72
  %v8527 = vpop.permute.xlu0 %8526
  %v8528 = vsel %vm210, %v8525, 0
  %v8530 = vsel %vm210, %v8527, 0
  %8532 = vmatprep.subr.mxu0 0.0
  %8533 = vmatpush1.xpose.msra.mxu0 %v8530
  %8534 = vmatprep.subr.mxu0 0.0
  %8535 = vmatpush1.xpose.msra.mxu0 0.0
  %8536 = vmatprep.subr.mxu0 0.0
  %8537 = vmatpush1.xpose.msra.mxu0 0.0
  %8538 = vmatprep.subr.mxu0 0.0
  %8539 = vmatpush1.xpose.msra.mxu0 0.0
  %8540 = vmatprep.subr.mxu0 0.0
  %8541 = vmatpush1.xpose.msra.mxu0 0.0
  %8542 = vmatprep.subr.mxu0 0.0
  %8543 = vmatpush1.xpose.msra.mxu0 0.0
  %8544 = vmatprep.subr.mxu0 0.0
  %8545 = vmatpush1.xpose.msra.mxu0 0.0
  %8546 = vmatprep.subr.mxu0 0.0
  %8547 = vmatpush1.xpose.msra.mxu0 0.0
  %8548 = vmatprep.subr.mxu0 0.0
  %8549 = vmatpush1.xpose.msra.mxu0 0.0
  %8550 = vmatprep.subr.mxu0 0.0
  %8551 = vmatpush1.xpose.msra.mxu0 0.0
  %8552 = vmatprep.subr.mxu0 0.0
  %8553 = vmatpush1.xpose.msra.mxu0 0.0
  %8554 = vmatprep.subr.mxu0 0.0
  %8555 = vmatpush1.xpose.msra.mxu0 0.0
  %8556 = vmatprep.subr.mxu0 0.0
  %8557 = vmatpush1.xpose.msra.mxu0 0.0
  %8558 = vmatprep.subr.mxu0 0.0
  %8559 = vmatpush1.xpose.msra.mxu0 0.0
  %8560 = vmatprep.subr.mxu0 0.0
  %8561 = vmatpush1.xpose.msra.mxu0 0.0
  %8562 = vmatprep.subr.mxu0 0.0
  %8563 = vmatpush1.xpose.msra.mxu0 0.0
  %8564 = vmatprep.subr.mxu0 0.0
  %8565 = vmatpush1.xpose.msra.mxu0 0.0
  %8566 = vmatprep.subr.mxu0 0.0
  %8567 = vmatpush1.xpose.msra.mxu0 0.0
  %8568 = vmatprep.subr.mxu0 0.0
  %8569 = vmatpush1.xpose.msra.mxu0 0.0
  %8570 = vmatprep.subr.mxu0 0.0
  %8571 = vmatpush1.xpose.msra.mxu0 0.0
  %8572 = vmatprep.subr.mxu0 0.0
  %8573 = vmatpush1.xpose.msra.mxu0 0.0
  %8574 = vmatprep.subr.mxu0 0.0
  %8575 = vmatpush1.xpose.msra.mxu0 0.0
  %8576 = vmatprep.subr.mxu0 0.0
  %8577 = vmatpush1.xpose.msra.mxu0 0.0
  %8578 = vmatprep.subr.mxu0 0.0
  %8579 = vmatpush1.xpose.msra.mxu0 0.0
  %8580 = vmatprep.subr.mxu0 0.0
  %8581 = vmatpush1.xpose.msra.mxu0 0.0
  %8582 = vmatprep.subr.mxu0 0.0
  %8583 = vmatpush1.xpose.msra.mxu0 0.0
  %8584 = vmatprep.subr.mxu0 0.0
  %8585 = vmatpush1.xpose.msra.mxu0 0.0
  %8586 = vmatprep.subr.mxu0 0.0
  %8587 = vmatpush1.xpose.msra.mxu0 0.0
  %8588 = vmatprep.subr.mxu0 0.0
  %8589 = vmatpush1.xpose.msra.mxu0 0.0
  %8590 = vmatprep.subr.mxu0 0.0
  %8591 = vmatpush1.xpose.msra.mxu0 0.0
  %8592 = vmatprep.subr.mxu0 0.0
  %8593 = vmatpush1.xpose.msra.mxu0 0.0
  %8594 = vmatprep.subr.mxu0 0.0
  %8595 = vmatpush1.xpose.msra.mxu0 0.0
  %8596 = vmatprep.mubr.f32.mxu0 0.0
  %8597 = vmatmul.mubr.f32.gmra.mrb[0].mxu0 %v8528
  %v8598 = vpop.f32.mrb[0].mxu0
  %v8599 = vadd.f32 0.0, %v8598
  %v8600 = vpop.f32.mrb[0].mxu0
  %8601 = vdwg.mxu0
  %v8602 = vmul.f32 %v8521, 0.35355338
  %v8603 = vmul.f32 %v8599, 0.35355338
  %v8604 = vadd.f32 %v8602, %v28
  %v8605 = vadd.f32 %v8603, %v28
  %v8606 = vsel %vm210, %v8604, -inf
  %8607 = vmax.xlane.f32.xlu0 %v8606
  %v8608 = vpop.xlane.xlu0 %8607
  %v8609 = vsel %vm210, %v8605, -inf
  %8610 = vmax.xlane.f32.xlu0 %v8609
  %v8611 = vpop.xlane.xlu0 %8610
  %v8612 = vsub.f32 %v8604, %v8608
  %v8613 = vsub.f32 %v8605, %v8611
  %v8614 = vmul.f32 %v8612, 1.442695
  %v8615 = vpow.pop %v8614
  %v8616 = vmul.f32 %v8613, 1.442695
  %v8617 = vpow.pop %v8616
  %v8618 = vsel %vm210, %v8615, 0.0
  %8619 = vadd.xlane.f32.xlu0 %v8618
  %v8620 = vpop.xlane.xlu0 %8619
  %v8621 = vsel %vm210, %v8617, 0.0
  %8622 = vadd.xlane.f32.xlu0 %v8621
  %v8623 = vpop.xlane.xlu0 %8622
  %v8624 = vrcp.pop %v8620
  %v8625 = vrcp.pop %v8623
  %v8626 = vmul.f32 %v8615, %v8624
  %v8627 = vmul.f32 %v8617, %v8625
  %8628 = vrot.lane.b32.xlu0 %v7440, 40
  %v8629 = vpop.permute.xlu0 %8628
  %v8632 = vsel %vm210, %v8626, 0
  %8634 = vmatprep.subr.mxu0 0.0
  %8635 = vmatpush1.msra.mxu0 %v8629
  %8636 = vmatprep.subr.mxu0 0.0
  %8637 = vmatpush1.msra.mxu0 0.0
  %8638 = vmatprep.subr.mxu0 0.0
  %8639 = vmatpush1.msra.mxu0 0.0
  %8640 = vmatprep.subr.mxu0 0.0
  %8641 = vmatpush1.msra.mxu0 0.0
  %8642 = vmatprep.subr.mxu0 0.0
  %8643 = vmatpush1.msra.mxu0 0.0
  %8644 = vmatprep.subr.mxu0 0.0
  %8645 = vmatpush1.msra.mxu0 0.0
  %8646 = vmatprep.subr.mxu0 0.0
  %8647 = vmatpush1.msra.mxu0 0.0
  %8648 = vmatprep.subr.mxu0 0.0
  %8649 = vmatpush1.msra.mxu0 0.0
  %8650 = vmatprep.subr.mxu0 0.0
  %8651 = vmatpush1.msra.mxu0 0.0
  %8652 = vmatprep.subr.mxu0 0.0
  %8653 = vmatpush1.msra.mxu0 0.0
  %8654 = vmatprep.subr.mxu0 0.0
  %8655 = vmatpush1.msra.mxu0 0.0
  %8656 = vmatprep.subr.mxu0 0.0
  %8657 = vmatpush1.msra.mxu0 0.0
  %8658 = vmatprep.subr.mxu0 0.0
  %8659 = vmatpush1.msra.mxu0 0.0
  %8660 = vmatprep.subr.mxu0 0.0
  %8661 = vmatpush1.msra.mxu0 0.0
  %8662 = vmatprep.subr.mxu0 0.0
  %8663 = vmatpush1.msra.mxu0 0.0
  %8664 = vmatprep.subr.mxu0 0.0
  %8665 = vmatpush1.msra.mxu0 0.0
  %8666 = vmatprep.subr.mxu0 0.0
  %8667 = vmatpush1.msra.mxu0 0.0
  %8668 = vmatprep.subr.mxu0 0.0
  %8669 = vmatpush1.msra.mxu0 0.0
  %8670 = vmatprep.subr.mxu0 0.0
  %8671 = vmatpush1.msra.mxu0 0.0
  %8672 = vmatprep.subr.mxu0 0.0
  %8673 = vmatpush1.msra.mxu0 0.0
  %8674 = vmatprep.subr.mxu0 0.0
  %8675 = vmatpush1.msra.mxu0 0.0
  %8676 = vmatprep.subr.mxu0 0.0
  %8677 = vmatpush1.msra.mxu0 0.0
  %8678 = vmatprep.subr.mxu0 0.0
  %8679 = vmatpush1.msra.mxu0 0.0
  %8680 = vmatprep.subr.mxu0 0.0
  %8681 = vmatpush1.msra.mxu0 0.0
  %8682 = vmatprep.subr.mxu0 0.0
  %8683 = vmatpush1.msra.mxu0 0.0
  %8684 = vmatprep.subr.mxu0 0.0
  %8685 = vmatpush1.msra.mxu0 0.0
  %8686 = vmatprep.subr.mxu0 0.0
  %8687 = vmatpush1.msra.mxu0 0.0
  %8688 = vmatprep.subr.mxu0 0.0
  %8689 = vmatpush1.msra.mxu0 0.0
  %8690 = vmatprep.subr.mxu0 0.0
  %8691 = vmatpush1.msra.mxu0 0.0
  %8692 = vmatprep.subr.mxu0 0.0
  %8693 = vmatpush1.msra.mxu0 0.0
  %8694 = vmatprep.subr.mxu0 0.0
  %8695 = vmatpush1.msra.mxu0 0.0
  %8696 = vmatprep.subr.mxu0 0.0
  %8697 = vmatpush1.msra.mxu0 0.0
  %8698 = vmatprep.mubr.f32.mxu0 0.0
  %8699 = vmatmul.mubr.f32.gmra.mrb[0].mxu0 %v8632
  %v8700 = vpop.f32.mrb[0].mxu0
  %v8701 = vadd.f32 0.0, %v8700
  %v8702 = vpop.f32.mrb[0].mxu0
  %8703 = vdwg.mxu0
  %8704 = vrot.lane.b32.xlu0 %v7441, 40
  %v8705 = vpop.permute.xlu0 %8704
  %v8708 = vsel %vm210, %v8627, 0
  %8710 = vmatprep.subr.mxu0 0.0
  %8711 = vmatpush1.msra.mxu0 %v8705
  %8712 = vmatprep.subr.mxu0 0.0
  %8713 = vmatpush1.msra.mxu0 0.0
  %8714 = vmatprep.subr.mxu0 0.0
  %8715 = vmatpush1.msra.mxu0 0.0
  %8716 = vmatprep.subr.mxu0 0.0
  %8717 = vmatpush1.msra.mxu0 0.0
  %8718 = vmatprep.subr.mxu0 0.0
  %8719 = vmatpush1.msra.mxu0 0.0
  %8720 = vmatprep.subr.mxu0 0.0
  %8721 = vmatpush1.msra.mxu0 0.0
  %8722 = vmatprep.subr.mxu0 0.0
  %8723 = vmatpush1.msra.mxu0 0.0
  %8724 = vmatprep.subr.mxu0 0.0
  %8725 = vmatpush1.msra.mxu0 0.0
  %8726 = vmatprep.subr.mxu0 0.0
  %8727 = vmatpush1.msra.mxu0 0.0
  %8728 = vmatprep.subr.mxu0 0.0
  %8729 = vmatpush1.msra.mxu0 0.0
  %8730 = vmatprep.subr.mxu0 0.0
  %8731 = vmatpush1.msra.mxu0 0.0
  %8732 = vmatprep.subr.mxu0 0.0
  %8733 = vmatpush1.msra.mxu0 0.0
  %8734 = vmatprep.subr.mxu0 0.0
  %8735 = vmatpush1.msra.mxu0 0.0
  %8736 = vmatprep.subr.mxu0 0.0
  %8737 = vmatpush1.msra.mxu0 0.0
  %8738 = vmatprep.subr.mxu0 0.0
  %8739 = vmatpush1.msra.mxu0 0.0
  %8740 = vmatprep.subr.mxu0 0.0
  %8741 = vmatpush1.msra.mxu0 0.0
  %8742 = vmatprep.subr.mxu0 0.0
  %8743 = vmatpush1.msra.mxu0 0.0
  %8744 = vmatprep.subr.mxu0 0.0
  %8745 = vmatpush1.msra.mxu0 0.0
  %8746 = vmatprep.subr.mxu0 0.0
  %8747 = vmatpush1.msra.mxu0 0.0
  %8748 = vmatprep.subr.mxu0 0.0
  %8749 = vmatpush1.msra.mxu0 0.0
  %8750 = vmatprep.subr.mxu0 0.0
  %8751 = vmatpush1.msra.mxu0 0.0
  %8752 = vmatprep.subr.mxu0 0.0
  %8753 = vmatpush1.msra.mxu0 0.0
  %8754 = vmatprep.subr.mxu0 0.0
  %8755 = vmatpush1.msra.mxu0 0.0
  %8756 = vmatprep.subr.mxu0 0.0
  %8757 = vmatpush1.msra.mxu0 0.0
  %8758 = vmatprep.subr.mxu0 0.0
  %8759 = vmatpush1.msra.mxu0 0.0
  %8760 = vmatprep.subr.mxu0 0.0
  %8761 = vmatpush1.msra.mxu0 0.0
  %8762 = vmatprep.subr.mxu0 0.0
  %8763 = vmatpush1.msra.mxu0 0.0
  %8764 = vmatprep.subr.mxu0 0.0
  %8765 = vmatpush1.msra.mxu0 0.0
  %8766 = vmatprep.subr.mxu0 0.0
  %8767 = vmatpush1.msra.mxu0 0.0
  %8768 = vmatprep.subr.mxu0 0.0
  %8769 = vmatpush1.msra.mxu0 0.0
  %8770 = vmatprep.subr.mxu0 0.0
  %8771 = vmatpush1.msra.mxu0 0.0
  %8772 = vmatprep.subr.mxu0 0.0
  %8773 = vmatpush1.msra.mxu0 0.0
  %8774 = vmatprep.mubr.f32.mxu0 0.0
  %8775 = vmatmul.mubr.f32.gmra.mrb[0].mxu0 %v8708
  %v8776 = vpop.f32.mrb[0].mxu0
  %v8777 = vadd.f32 0.0, %v8776
  %v8778 = vpop.f32.mrb[0].mxu0
  %8779 = vdwg.mxu0
  %8782 = vrot.lane.b32.xlu0 %v8033, 8
  %v8783 = vpop.permute.xlu0 %8782
  %8784 = vrot.lane.b32.xlu0 %v8109, 8
  %v8785 = vpop.permute.xlu0 %8784
  %8790 = vrot.lane.b32.xlu0 %v8367, 16
  %v8791 = vpop.permute.xlu0 %8790
  %8792 = vrot.lane.b32.xlu0 %v8443, 16
  %v8793 = vpop.permute.xlu0 %8792
  %8798 = vrot.lane.b32.xlu0 %v8701, 24
  %v8799 = vpop.permute.xlu0 %8798
  %8800 = vrot.lane.b32.xlu0 %v8777, 24
  %v8801 = vpop.permute.xlu0 %8800
  %v8804 = vsel %vm210, %v7698, %v8783
  %v8805 = vsel %vm210, %v7775, %v8785
  %v8806 = vsel %vm1572, %v8804, %v8791
  %v8807 = vsel %vm1572, %v8805, %v8793
  %v8808 = vsel %vm1575, %v8806, %v8799
  %v8809 = vsel %vm1575, %v8807, %v8801
  %v8810 = vlaneseq
  %v8811 = vshrl.u32 %v8810, 7
  %v8812 = vsub.s32 0, %v8811
  %v8813 = vrot.slane %v7260, %v8812
  %v8815 = vsel %vm60, %v8808, 0
  %v8818 = vsel %vm60, %v8809, 0
  %8820 = vmatprep.subr.mxu0 0.0
  %8821 = vmatpush1.msra.mxu0 %v7271
  %8822 = vmatprep.subr.mxu0 0.0
  %8823 = vmatpush1.msra.mxu0 %v7272
  %8824 = vmatprep.subr.mxu0 0.0
  %8825 = vmatpush1.msra.mxu0 %v7273
  %8826 = vmatprep.subr.mxu0 0.0
  %8827 = vmatpush1.msra.mxu0 %v7274
  %8828 = vmatprep.subr.mxu0 0.0
  %8829 = vmatpush1.msra.mxu0 0.0
  %8830 = vmatprep.subr.mxu0 0.0
  %8831 = vmatpush1.msra.mxu0 0.0
  %8832 = vmatprep.subr.mxu0 0.0
  %8833 = vmatpush1.msra.mxu0 0.0
  %8834 = vmatprep.subr.mxu0 0.0
  %8835 = vmatpush1.msra.mxu0 0.0
  %8836 = vmatprep.subr.mxu0 0.0
  %8837 = vmatpush1.msra.mxu0 0.0
  %8838 = vmatprep.subr.mxu0 0.0
  %8839 = vmatpush1.msra.mxu0 0.0
  %8840 = vmatprep.subr.mxu0 0.0
  %8841 = vmatpush1.msra.mxu0 0.0
  %8842 = vmatprep.subr.mxu0 0.0
  %8843 = vmatpush1.msra.mxu0 0.0
  %8844 = vmatprep.subr.mxu0 0.0
  %8845 = vmatpush1.msra.mxu0 0.0
  %8846 = vmatprep.subr.mxu0 0.0
  %8847 = vmatpush1.msra.mxu0 0.0
  %8848 = vmatprep.subr.mxu0 0.0
  %8849 = vmatpush1.msra.mxu0 0.0
  %8850 = vmatprep.subr.mxu0 0.0
  %8851 = vmatpush1.msra.mxu0 0.0
  %8852 = vmatprep.subr.mxu0 0.0
  %8853 = vmatpush1.msra.mxu0 0.0
  %8854 = vmatprep.subr.mxu0 0.0
  %8855 = vmatpush1.msra.mxu0 0.0
  %8856 = vmatprep.subr.mxu0 0.0
  %8857 = vmatpush1.msra.mxu0 0.0
  %8858 = vmatprep.subr.mxu0 0.0
  %8859 = vmatpush1.msra.mxu0 0.0
  %8860 = vmatprep.subr.mxu0 0.0
  %8861 = vmatpush1.msra.mxu0 0.0
  %8862 = vmatprep.subr.mxu0 0.0
  %8863 = vmatpush1.msra.mxu0 0.0
  %8864 = vmatprep.subr.mxu0 0.0
  %8865 = vmatpush1.msra.mxu0 0.0
  %8866 = vmatprep.subr.mxu0 0.0
  %8867 = vmatpush1.msra.mxu0 0.0
  %8868 = vmatprep.subr.mxu0 0.0
  %8869 = vmatpush1.msra.mxu0 0.0
  %8870 = vmatprep.subr.mxu0 0.0
  %8871 = vmatpush1.msra.mxu0 0.0
  %8872 = vmatprep.subr.mxu0 0.0
  %8873 = vmatpush1.msra.mxu0 0.0
  %8874 = vmatprep.subr.mxu0 0.0
  %8875 = vmatpush1.msra.mxu0 0.0
  %8876 = vmatprep.subr.mxu0 0.0
  %8877 = vmatpush1.msra.mxu0 0.0
  %8878 = vmatprep.subr.mxu0 0.0
  %8879 = vmatpush1.msra.mxu0 0.0
  %8880 = vmatprep.subr.mxu0 0.0
  %8881 = vmatpush1.msra.mxu0 0.0
  %8882 = vmatprep.subr.mxu0 0.0
  %8883 = vmatpush1.msra.mxu0 0.0
  %8884 = vmatprep.mubr.f32.mxu0 0.0
  %8885 = vmatmul.mubr.f32.gmra.mrb[0].mxu0 %v8815
  %v8886 = vpop.f32.mrb[0].mxu0
  %v8887 = vadd.f32 %v8813, %v8886
  %v8888 = vpop.f32.mrb[0].mxu0
  %8889 = vmatprep.mubr.f32.mxu0 0.0
  %8890 = vmatmul.mubr.f32.gmra.mrb[0].mxu0 %v8818
  %v8891 = vpop.f32.mrb[0].mxu0
  %v8892 = vadd.f32 %v8813, %v8891
  %v8893 = vpop.f32.mrb[0].mxu0
  %8894 = vdwg.mxu0
  %v8895 = vadd.f32 %v7333, %v8887
  %v8896 = vadd.f32 %v7334, %v8892
  %v8897 = vlaneseq
  %v8898 = vshrl.u32 %v8897, 7
  %v8899 = vsub.s32 0, %v8898
  %v8900 = vrot.slane %v7253, %v8899
  %v8901 = vmul.f32 %v5391, %v8900
  %v8902 = vmul.f32 %v5392, %v8900
  %v8903 = vlaneseq
  %v8904 = vshrl.u32 %v8903, 7
  %v8905 = vsub.s32 0, %v8904
  %v8906 = vrot.slane %v7254, %v8905
  %v8907 = vadd.f32 %v8901, %v8906
  %v8908 = vadd.f32 %v8902, %v8906
  %v8909 = vlaneseq
  %v8910 = vshrl.u32 %v8909, 7
  %v8911 = vsub.s32 0, %v8910
  %v8912 = vrot.slane %v7261, %v8911
  %v8914 = vsel %vm60, %v8895, 0
  %v8917 = vsel %vm60, %v8896, 0
  %8919 = vmatprep.subr.mxu0 0.0
  %8920 = vmatpush1.msra.mxu0 %v7275
  %8921 = vmatprep.subr.mxu0 0.0
  %8922 = vmatpush1.msra.mxu0 %v7276
  %8923 = vmatprep.subr.mxu0 0.0
  %8924 = vmatpush1.msra.mxu0 %v7277
  %8925 = vmatprep.subr.mxu0 0.0
  %8926 = vmatpush1.msra.mxu0 %v7278
  %8927 = vmatprep.subr.mxu0 0.0
  %8928 = vmatpush1.msra.mxu0 0.0
  %8929 = vmatprep.subr.mxu0 0.0
  %8930 = vmatpush1.msra.mxu0 0.0
  %8931 = vmatprep.subr.mxu0 0.0
  %8932 = vmatpush1.msra.mxu0 0.0
  %8933 = vmatprep.subr.mxu0 0.0
  %8934 = vmatpush1.msra.mxu0 0.0
  %8935 = vmatprep.subr.mxu0 0.0
  %8936 = vmatpush1.msra.mxu0 0.0
  %8937 = vmatprep.subr.mxu0 0.0
  %8938 = vmatpush1.msra.mxu0 0.0
  %8939 = vmatprep.subr.mxu0 0.0
  %8940 = vmatpush1.msra.mxu0 0.0
  %8941 = vmatprep.subr.mxu0 0.0
  %8942 = vmatpush1.msra.mxu0 0.0
  %8943 = vmatprep.subr.mxu0 0.0
  %8944 = vmatpush1.msra.mxu0 0.0
  %8945 = vmatprep.subr.mxu0 0.0
  %8946 = vmatpush1.msra.mxu0 0.0
  %8947 = vmatprep.subr.mxu0 0.0
  %8948 = vmatpush1.msra.mxu0 0.0
  %8949 = vmatprep.subr.mxu0 0.0
  %8950 = vmatpush1.msra.mxu0 0.0
  %8951 = vmatprep.subr.mxu0 0.0
  %8952 = vmatpush1.msra.mxu0 0.0
  %8953 = vmatprep.subr.mxu0 0.0
  %8954 = vmatpush1.msra.mxu0 0.0
  %8955 = vmatprep.subr.mxu0 0.0
  %8956 = vmatpush1.msra.mxu0 0.0
  %8957 = vmatprep.subr.mxu0 0.0
  %8958 = vmatpush1.msra.mxu0 0.0
  %8959 = vmatprep.subr.mxu0 0.0
  %8960 = vmatpush1.msra.mxu0 0.0
  %8961 = vmatprep.subr.mxu0 0.0
  %8962 = vmatpush1.msra.mxu0 0.0
  %8963 = vmatprep.subr.mxu0 0.0
  %8964 = vmatpush1.msra.mxu0 0.0
  %8965 = vmatprep.subr.mxu0 0.0
  %8966 = vmatpush1.msra.mxu0 0.0
  %8967 = vmatprep.subr.mxu0 0.0
  %8968 = vmatpush1.msra.mxu0 0.0
  %8969 = vmatprep.subr.mxu0 0.0
  %8970 = vmatpush1.msra.mxu0 0.0
  %8971 = vmatprep.subr.mxu0 0.0
  %8972 = vmatpush1.msra.mxu0 0.0
  %8973 = vmatprep.subr.mxu0 0.0
  %8974 = vmatpush1.msra.mxu0 0.0
  %8975 = vmatprep.subr.mxu0 0.0
  %8976 = vmatpush1.msra.mxu0 0.0
  %8977 = vmatprep.subr.mxu0 0.0
  %8978 = vmatpush1.msra.mxu0 0.0
  %8979 = vmatprep.subr.mxu0 0.0
  %8980 = vmatpush1.msra.mxu0 0.0
  %8981 = vmatprep.subr.mxu0 0.0
  %8982 = vmatpush1.msra.mxu0 0.0
  %8983 = vmatprep.mubr.f32.mxu0 0.0
  %8984 = vmatmul.mubr.f32.gmra.mrb[0].mxu0 %v8914
  %v8985 = vpop.f32.mrb[0].mxu0
  %v8986 = vadd.f32 %v8912, %v8985
  %v8987 = vpop.f32.mrb[0].mxu0
  %8988 = vmatprep.mubr.f32.mxu0 0.0
  %8989 = vmatmul.mubr.f32.gmra.mrb[0].mxu0 %v8917
  %v8990 = vpop.f32.mrb[0].mxu0
  %v8991 = vadd.f32 %v8912, %v8990
  %v8992 = vpop.f32.mrb[0].mxu0
  %8993 = vdwg.mxu0
  %v8995 = vsel %vm60, %v8907, 0
  %v8998 = vsel %vm60, %v8908, 0
  %9000 = vmatprep.subr.mxu0 0.0
  %9001 = vmatpush1.msra.mxu0 %v7279
  %9002 = vmatprep.subr.mxu0 0.0
  %9003 = vmatpush1.msra.mxu0 %v7280
  %9004 = vmatprep.subr.mxu0 0.0
  %9005 = vmatpush1.msra.mxu0 %v7281
  %9006 = vmatprep.subr.mxu0 0.0
  %9007 = vmatpush1.msra.mxu0 %v7282
  %9008 = vmatprep.subr.mxu0 0.0
  %9009 = vmatpush1.msra.mxu0 0.0
  %9010 = vmatprep.subr.mxu0 0.0
  %9011 = vmatpush1.msra.mxu0 0.0
  %9012 = vmatprep.subr.mxu0 0.0
  %9013 = vmatpush1.msra.mxu0 0.0
  %9014 = vmatprep.subr.mxu0 0.0
  %9015 = vmatpush1.msra.mxu0 0.0
  %9016 = vmatprep.subr.mxu0 0.0
  %9017 = vmatpush1.msra.mxu0 0.0
  %9018 = vmatprep.subr.mxu0 0.0
  %9019 = vmatpush1.msra.mxu0 0.0
  %9020 = vmatprep.subr.mxu0 0.0
  %9021 = vmatpush1.msra.mxu0 0.0
  %9022 = vmatprep.subr.mxu0 0.0
  %9023 = vmatpush1.msra.mxu0 0.0
  %9024 = vmatprep.subr.mxu0 0.0
  %9025 = vmatpush1.msra.mxu0 0.0
  %9026 = vmatprep.subr.mxu0 0.0
  %9027 = vmatpush1.msra.mxu0 0.0
  %9028 = vmatprep.subr.mxu0 0.0
  %9029 = vmatpush1.msra.mxu0 0.0
  %9030 = vmatprep.subr.mxu0 0.0
  %9031 = vmatpush1.msra.mxu0 0.0
  %9032 = vmatprep.subr.mxu0 0.0
  %9033 = vmatpush1.msra.mxu0 0.0
  %9034 = vmatprep.subr.mxu0 0.0
  %9035 = vmatpush1.msra.mxu0 0.0
  %9036 = vmatprep.subr.mxu0 0.0
  %9037 = vmatpush1.msra.mxu0 0.0
  %9038 = vmatprep.subr.mxu0 0.0
  %9039 = vmatpush1.msra.mxu0 0.0
  %9040 = vmatprep.subr.mxu0 0.0
  %9041 = vmatpush1.msra.mxu0 0.0
  %9042 = vmatprep.subr.mxu0 0.0
  %9043 = vmatpush1.msra.mxu0 0.0
  %9044 = vmatprep.subr.mxu0 0.0
  %9045 = vmatpush1.msra.mxu0 0.0
  %9046 = vmatprep.subr.mxu0 0.0
  %9047 = vmatpush1.msra.mxu0 0.0
  %9048 = vmatprep.subr.mxu0 0.0
  %9049 = vmatpush1.msra.mxu0 0.0
  %9050 = vmatprep.subr.mxu0 0.0
  %9051 = vmatpush1.msra.mxu0 0.0
  %9052 = vmatprep.subr.mxu0 0.0
  %9053 = vmatpush1.msra.mxu0 0.0
  %9054 = vmatprep.subr.mxu0 0.0
  %9055 = vmatpush1.msra.mxu0 0.0
  %9056 = vmatprep.subr.mxu0 0.0
  %9057 = vmatpush1.msra.mxu0 0.0
  %9058 = vmatprep.subr.mxu0 0.0
  %9059 = vmatpush1.msra.mxu0 0.0
  %9060 = vmatprep.subr.mxu0 0.0
  %9061 = vmatpush1.msra.mxu0 0.0
  %9062 = vmatprep.subr.mxu0 0.0
  %9063 = vmatpush1.msra.mxu0 0.0
  %9064 = vmatprep.mubr.f32.mxu0 0.0
  %9065 = vmatmul.mubr.f32.gmra.mrb[0].mxu0 %v8995
  %v9066 = vpop.f32.mrb[0].mxu0
  %v9067 = vadd.f32 0.0, %v9066
  %v9068 = vpop.f32.mrb[0].mxu0
  %9069 = vmatprep.mubr.f32.mxu0 0.0
  %9070 = vmatmul.mubr.f32.gmra.mrb[0].mxu0 %v8998
  %v9071 = vpop.f32.mrb[0].mxu0
  %v9072 = vadd.f32 0.0, %v9071
  %v9073 = vpop.f32.mrb[0].mxu0
  %9074 = vdwg.mxu0
  %v9075 = vlaneseq
  %v9076 = vshrl.u32 %v9075, 7
  %v9077 = vsub.s32 0, %v9076
  %v9078 = vrot.slane %v7262, %v9077
  %v9079 = vadd.f32 %v9067, %v9078
  %v9080 = vadd.f32 %v9072, %v9078
  %v9081 = vlaneseq
  %v9082 = vshrl.u32 %v9081, 7
  %v9083 = vsub.s32 0, %v9082
  %v9084 = vrot.slane %v7263, %v9083
  %9086 = vrot.lane.b32.xlu0 %v9084, 32
  %v9087 = vpop.permute.xlu0 %9086
  %v9089 = vadd.f32 %v9067, %v9087
  %v9090 = vadd.f32 %v9072, %v9087
  %v9092 = vsel %vm210, %v8986, 0
  %v9095 = vsel %vm210, %v9079, 0
  %9097 = vmatprep.subr.mxu0 0.0
  %9098 = vmatpush1.xpose.msra.mxu0 %v9095
  %9099 = vmatprep.subr.mxu0 0.0
  %9100 = vmatpush1.xpose.msra.mxu0 0.0
  %9101 = vmatprep.subr.mxu0 0.0
  %9102 = vmatpush1.xpose.msra.mxu0 0.0
  %9103 = vmatprep.subr.mxu0 0.0
  %9104 = vmatpush1.xpose.msra.mxu0 0.0
  %9105 = vmatprep.subr.mxu0 0.0
  %9106 = vmatpush1.xpose.msra.mxu0 0.0
  %9107 = vmatprep.subr.mxu0 0.0
  %9108 = vmatpush1.xpose.msra.mxu0 0.0
  %9109 = vmatprep.subr.mxu0 0.0
  %9110 = vmatpush1.xpose.msra.mxu0 0.0
  %9111 = vmatprep.subr.mxu0 0.0
  %9112 = vmatpush1.xpose.msra.mxu0 0.0
  %9113 = vmatprep.subr.mxu0 0.0
  %9114 = vmatpush1.xpose.msra.mxu0 0.0
  %9115 = vmatprep.subr.mxu0 0.0
  %9116 = vmatpush1.xpose.msra.mxu0 0.0
  %9117 = vmatprep.subr.mxu0 0.0
  %9118 = vmatpush1.xpose.msra.mxu0 0.0
  %9119 = vmatprep.subr.mxu0 0.0
  %9120 = vmatpush1.xpose.msra.mxu0 0.0
  %9121 = vmatprep.subr.mxu0 0.0
  %9122 = vmatpush1.xpose.msra.mxu0 0.0
  %9123 = vmatprep.subr.mxu0 0.0
  %9124 = vmatpush1.xpose.msra.mxu0 0.0
  %9125 = vmatprep.subr.mxu0 0.0
  %9126 = vmatpush1.xpose.msra.mxu0 0.0
  %9127 = vmatprep.subr.mxu0 0.0
  %9128 = vmatpush1.xpose.msra.mxu0 0.0
  %9129 = vmatprep.subr.mxu0 0.0
  %9130 = vmatpush1.xpose.msra.mxu0 0.0
  %9131 = vmatprep.subr.mxu0 0.0
  %9132 = vmatpush1.xpose.msra.mxu0 0.0
  %9133 = vmatprep.subr.mxu0 0.0
  %9134 = vmatpush1.xpose.msra.mxu0 0.0
  %9135 = vmatprep.subr.mxu0 0.0
  %9136 = vmatpush1.xpose.msra.mxu0 0.0
  %9137 = vmatprep.subr.mxu0 0.0
  %9138 = vmatpush1.xpose.msra.mxu0 0.0
  %9139 = vmatprep.subr.mxu0 0.0
  %9140 = vmatpush1.xpose.msra.mxu0 0.0
  %9141 = vmatprep.subr.mxu0 0.0
  %9142 = vmatpush1.xpose.msra.mxu0 0.0
  %9143 = vmatprep.subr.mxu0 0.0
  %9144 = vmatpush1.xpose.msra.mxu0 0.0
  %9145 = vmatprep.subr.mxu0 0.0
  %9146 = vmatpush1.xpose.msra.mxu0 0.0
  %9147 = vmatprep.subr.mxu0 0.0
  %9148 = vmatpush1.xpose.msra.mxu0 0.0
  %9149 = vmatprep.subr.mxu0 0.0
  %9150 = vmatpush1.xpose.msra.mxu0 0.0
  %9151 = vmatprep.subr.mxu0 0.0
  %9152 = vmatpush1.xpose.msra.mxu0 0.0
  %9153 = vmatprep.subr.mxu0 0.0
  %9154 = vmatpush1.xpose.msra.mxu0 0.0
  %9155 = vmatprep.subr.mxu0 0.0
  %9156 = vmatpush1.xpose.msra.mxu0 0.0
  %9157 = vmatprep.subr.mxu0 0.0
  %9158 = vmatpush1.xpose.msra.mxu0 0.0
  %9159 = vmatprep.subr.mxu0 0.0
  %9160 = vmatpush1.xpose.msra.mxu0 0.0
  %9161 = vmatprep.mubr.f32.mxu0 0.0
  %9162 = vmatmul.mubr.f32.gmra.mrb[0].mxu0 %v9092
  %v9163 = vpop.f32.mrb[0].mxu0
  %v9164 = vadd.f32 0.0, %v9163
  %v9165 = vpop.f32.mrb[0].mxu0
  %9166 = vdwg.mxu0
  %v9168 = vsel %vm210, %v8991, 0
  %v9171 = vsel %vm210, %v9080, 0
  %9173 = vmatprep.subr.mxu0 0.0
  %9174 = vmatpush1.xpose.msra.mxu0 %v9171
  %9175 = vmatprep.subr.mxu0 0.0
  %9176 = vmatpush1.xpose.msra.mxu0 0.0
  %9177 = vmatprep.subr.mxu0 0.0
  %9178 = vmatpush1.xpose.msra.mxu0 0.0
  %9179 = vmatprep.subr.mxu0 0.0
  %9180 = vmatpush1.xpose.msra.mxu0 0.0
  %9181 = vmatprep.subr.mxu0 0.0
  %9182 = vmatpush1.xpose.msra.mxu0 0.0
  %9183 = vmatprep.subr.mxu0 0.0
  %9184 = vmatpush1.xpose.msra.mxu0 0.0
  %9185 = vmatprep.subr.mxu0 0.0
  %9186 = vmatpush1.xpose.msra.mxu0 0.0
  %9187 = vmatprep.subr.mxu0 0.0
  %9188 = vmatpush1.xpose.msra.mxu0 0.0
  %9189 = vmatprep.subr.mxu0 0.0
  %9190 = vmatpush1.xpose.msra.mxu0 0.0
  %9191 = vmatprep.subr.mxu0 0.0
  %9192 = vmatpush1.xpose.msra.mxu0 0.0
  %9193 = vmatprep.subr.mxu0 0.0
  %9194 = vmatpush1.xpose.msra.mxu0 0.0
  %9195 = vmatprep.subr.mxu0 0.0
  %9196 = vmatpush1.xpose.msra.mxu0 0.0
  %9197 = vmatprep.subr.mxu0 0.0
  %9198 = vmatpush1.xpose.msra.mxu0 0.0
  %9199 = vmatprep.subr.mxu0 0.0
  %9200 = vmatpush1.xpose.msra.mxu0 0.0
  %9201 = vmatprep.subr.mxu0 0.0
  %9202 = vmatpush1.xpose.msra.mxu0 0.0
  %9203 = vmatprep.subr.mxu0 0.0
  %9204 = vmatpush1.xpose.msra.mxu0 0.0
  %9205 = vmatprep.subr.mxu0 0.0
  %9206 = vmatpush1.xpose.msra.mxu0 0.0
  %9207 = vmatprep.subr.mxu0 0.0
  %9208 = vmatpush1.xpose.msra.mxu0 0.0
  %9209 = vmatprep.subr.mxu0 0.0
  %9210 = vmatpush1.xpose.msra.mxu0 0.0
  %9211 = vmatprep.subr.mxu0 0.0
  %9212 = vmatpush1.xpose.msra.mxu0 0.0
  %9213 = vmatprep.subr.mxu0 0.0
  %9214 = vmatpush1.xpose.msra.mxu0 0.0
  %9215 = vmatprep.subr.mxu0 0.0
  %9216 = vmatpush1.xpose.msra.mxu0 0.0
  %9217 = vmatprep.subr.mxu0 0.0
  %9218 = vmatpush1.xpose.msra.mxu0 0.0
  %9219 = vmatprep.subr.mxu0 0.0
  %9220 = vmatpush1.xpose.msra.mxu0 0.0
  %9221 = vmatprep.subr.mxu0 0.0
  %9222 = vmatpush1.xpose.msra.mxu0 0.0
  %9223 = vmatprep.subr.mxu0 0.0
  %9224 = vmatpush1.xpose.msra.mxu0 0.0
  %9225 = vmatprep.subr.mxu0 0.0
  %9226 = vmatpush1.xpose.msra.mxu0 0.0
  %9227 = vmatprep.subr.mxu0 0.0
  %9228 = vmatpush1.xpose.msra.mxu0 0.0
  %9229 = vmatprep.subr.mxu0 0.0
  %9230 = vmatpush1.xpose.msra.mxu0 0.0
  %9231 = vmatprep.subr.mxu0 0.0
  %9232 = vmatpush1.xpose.msra.mxu0 0.0
  %9233 = vmatprep.subr.mxu0 0.0
  %9234 = vmatpush1.xpose.msra.mxu0 0.0
  %9235 = vmatprep.subr.mxu0 0.0
  %9236 = vmatpush1.xpose.msra.mxu0 0.0
  %9237 = vmatprep.mubr.f32.mxu0 0.0
  %9238 = vmatmul.mubr.f32.gmra.mrb[0].mxu0 %v9168
  %v9239 = vpop.f32.mrb[0].mxu0
  %v9240 = vadd.f32 0.0, %v9239
  %v9241 = vpop.f32.mrb[0].mxu0
  %9242 = vdwg.mxu0
  %v9243 = vmul.f32 %v9164, 0.35355338
  %v9244 = vmul.f32 %v9240, 0.35355338
  %v9245 = vadd.f32 %v9243, %v28
  %v9246 = vadd.f32 %v9244, %v28
  %v9247 = vsel %vm210, %v9245, -inf
  %9248 = vmax.xlane.f32.xlu0 %v9247
  %v9249 = vpop.xlane.xlu0 %9248
  %v9250 = vsel %vm210, %v9246, -inf
  %9251 = vmax.xlane.f32.xlu0 %v9250
  %v9252 = vpop.xlane.xlu0 %9251
  %v9253 = vsub.f32 %v9245, %v9249
  %v9254 = vsub.f32 %v9246, %v9252
  %v9255 = vmul.f32 %v9253, 1.442695
  %v9256 = vpow.pop %v9255
  %v9257 = vmul.f32 %v9254, 1.442695
  %v9258 = vpow.pop %v9257
  %v9259 = vsel %vm210, %v9256, 0.0
  %9260 = vadd.xlane.f32.xlu0 %v9259
  %v9261 = vpop.xlane.xlu0 %9260
  %v9262 = vsel %vm210, %v9258, 0.0
  %9263 = vadd.xlane.f32.xlu0 %v9262
  %v9264 = vpop.xlane.xlu0 %9263
  %v9265 = vrcp.pop %v9261
  %v9266 = vrcp.pop %v9264
  %v9267 = vmul.f32 %v9256, %v9265
  %v9268 = vmul.f32 %v9258, %v9266
  %9270 = vrot.lane.b32.xlu0 %v9089, 96
  %v9271 = vpop.permute.xlu0 %9270
  %v9274 = vsel %vm210, %v9267, 0
  %9276 = vmatprep.subr.mxu0 0.0
  %9277 = vmatpush1.msra.mxu0 %v9271
  %9278 = vmatprep.subr.mxu0 0.0
  %9279 = vmatpush1.msra.mxu0 0.0
  %9280 = vmatprep.subr.mxu0 0.0
  %9281 = vmatpush1.msra.mxu0 0.0
  %9282 = vmatprep.subr.mxu0 0.0
  %9283 = vmatpush1.msra.mxu0 0.0
  %9284 = vmatprep.subr.mxu0 0.0
  %9285 = vmatpush1.msra.mxu0 0.0
  %9286 = vmatprep.subr.mxu0 0.0
  %9287 = vmatpush1.msra.mxu0 0.0
  %9288 = vmatprep.subr.mxu0 0.0
  %9289 = vmatpush1.msra.mxu0 0.0
  %9290 = vmatprep.subr.mxu0 0.0
  %9291 = vmatpush1.msra.mxu0 0.0
  %9292 = vmatprep.subr.mxu0 0.0
  %9293 = vmatpush1.msra.mxu0 0.0
  %9294 = vmatprep.subr.mxu0 0.0
  %9295 = vmatpush1.msra.mxu0 0.0
  %9296 = vmatprep.subr.mxu0 0.0
  %9297 = vmatpush1.msra.mxu0 0.0
  %9298 = vmatprep.subr.mxu0 0.0
  %9299 = vmatpush1.msra.mxu0 0.0
  %9300 = vmatprep.subr.mxu0 0.0
  %9301 = vmatpush1.msra.mxu0 0.0
  %9302 = vmatprep.subr.mxu0 0.0
  %9303 = vmatpush1.msra.mxu0 0.0
  %9304 = vmatprep.subr.mxu0 0.0
  %9305 = vmatpush1.msra.mxu0 0.0
  %9306 = vmatprep.subr.mxu0 0.0
  %9307 = vmatpush1.msra.mxu0 0.0
  %9308 = vmatprep.subr.mxu0 0.0
  %9309 = vmatpush1.msra.mxu0 0.0
  %9310 = vmatprep.subr.mxu0 0.0
  %9311 = vmatpush1.msra.mxu0 0.0
  %9312 = vmatprep.subr.mxu0 0.0
  %9313 = vmatpush1.msra.mxu0 0.0
  %9314 = vmatprep.subr.mxu0 0.0
  %9315 = vmatpush1.msra.mxu0 0.0
  %9316 = vmatprep.subr.mxu0 0.0
  %9317 = vmatpush1.msra.mxu0 0.0
  %9318 = vmatprep.subr.mxu0 0.0
  %9319 = vmatpush1.msra.mxu0 0.0
  %9320 = vmatprep.subr.mxu0 0.0
  %9321 = vmatpush1.msra.mxu0 0.0
  %9322 = vmatprep.subr.mxu0 0.0
  %9323 = vmatpush1.msra.mxu0 0.0
  %9324 = vmatprep.subr.mxu0 0.0
  %9325 = vmatpush1.msra.mxu0 0.0
  %9326 = vmatprep.subr.mxu0 0.0
  %9327 = vmatpush1.msra.mxu0 0.0
  %9328 = vmatprep.subr.mxu0 0.0
  %9329 = vmatpush1.msra.mxu0 0.0
  %9330 = vmatprep.subr.mxu0 0.0
  %9331 = vmatpush1.msra.mxu0 0.0
  %9332 = vmatprep.subr.mxu0 0.0
  %9333 = vmatpush1.msra.mxu0 0.0
  %9334 = vmatprep.subr.mxu0 0.0
  %9335 = vmatpush1.msra.mxu0 0.0
  %9336 = vmatprep.subr.mxu0 0.0
  %9337 = vmatpush1.msra.mxu0 0.0
  %9338 = vmatprep.subr.mxu0 0.0
  %9339 = vmatpush1.msra.mxu0 0.0
  %9340 = vmatprep.mubr.f32.mxu0 0.0
  %9341 = vmatmul.mubr.f32.gmra.mrb[0].mxu0 %v9274
  %v9342 = vpop.f32.mrb[0].mxu0
  %v9343 = vadd.f32 0.0, %v9342
  %v9344 = vpop.f32.mrb[0].mxu0
  %9345 = vdwg.mxu0
  %9347 = vrot.lane.b32.xlu0 %v9090, 96
  %v9348 = vpop.permute.xlu0 %9347
  %v9351 = vsel %vm210, %v9268, 0
  %9353 = vmatprep.subr.mxu0 0.0
  %9354 = vmatpush1.msra.mxu0 %v9348
  %9355 = vmatprep.subr.mxu0 0.0
  %9356 = vmatpush1.msra.mxu0 0.0
  %9357 = vmatprep.subr.mxu0 0.0
  %9358 = vmatpush1.msra.mxu0 0.0
  %9359 = vmatprep.subr.mxu0 0.0
  %9360 = vmatpush1.msra.mxu0 0.0
  %9361 = vmatprep.subr.mxu0 0.0
  %9362 = vmatpush1.msra.mxu0 0.0
  %9363 = vmatprep.subr.mxu0 0.0
  %9364 = vmatpush1.msra.mxu0 0.0
  %9365 = vmatprep.subr.mxu0 0.0
  %9366 = vmatpush1.msra.mxu0 0.0
  %9367 = vmatprep.subr.mxu0 0.0
  %9368 = vmatpush1.msra.mxu0 0.0
  %9369 = vmatprep.subr.mxu0 0.0
  %9370 = vmatpush1.msra.mxu0 0.0
  %9371 = vmatprep.subr.mxu0 0.0
  %9372 = vmatpush1.msra.mxu0 0.0
  %9373 = vmatprep.subr.mxu0 0.0
  %9374 = vmatpush1.msra.mxu0 0.0
  %9375 = vmatprep.subr.mxu0 0.0
  %9376 = vmatpush1.msra.mxu0 0.0
  %9377 = vmatprep.subr.mxu0 0.0
  %9378 = vmatpush1.msra.mxu0 0.0
  %9379 = vmatprep.subr.mxu0 0.0
  %9380 = vmatpush1.msra.mxu0 0.0
  %9381 = vmatprep.subr.mxu0 0.0
  %9382 = vmatpush1.msra.mxu0 0.0
  %9383 = vmatprep.subr.mxu0 0.0
  %9384 = vmatpush1.msra.mxu0 0.0
  %9385 = vmatprep.subr.mxu0 0.0
  %9386 = vmatpush1.msra.mxu0 0.0
  %9387 = vmatprep.subr.mxu0 0.0
  %9388 = vmatpush1.msra.mxu0 0.0
  %9389 = vmatprep.subr.mxu0 0.0
  %9390 = vmatpush1.msra.mxu0 0.0
  %9391 = vmatprep.subr.mxu0 0.0
  %9392 = vmatpush1.msra.mxu0 0.0
  %9393 = vmatprep.subr.mxu0 0.0
  %9394 = vmatpush1.msra.mxu0 0.0
  %9395 = vmatprep.subr.mxu0 0.0
  %9396 = vmatpush1.msra.mxu0 0.0
  %9397 = vmatprep.subr.mxu0 0.0
  %9398 = vmatpush1.msra.mxu0 0.0
  %9399 = vmatprep.subr.mxu0 0.0
  %9400 = vmatpush1.msra.mxu0 0.0
  %9401 = vmatprep.subr.mxu0 0.0
  %9402 = vmatpush1.msra.mxu0 0.0
  %9403 = vmatprep.subr.mxu0 0.0
  %9404 = vmatpush1.msra.mxu0 0.0
  %9405 = vmatprep.subr.mxu0 0.0
  %9406 = vmatpush1.msra.mxu0 0.0
  %9407 = vmatprep.subr.mxu0 0.0
  %9408 = vmatpush1.msra.mxu0 0.0
  %9409 = vmatprep.subr.mxu0 0.0
  %9410 = vmatpush1.msra.mxu0 0.0
  %9411 = vmatprep.subr.mxu0 0.0
  %9412 = vmatpush1.msra.mxu0 0.0
  %9413 = vmatprep.subr.mxu0 0.0
  %9414 = vmatpush1.msra.mxu0 0.0
  %9415 = vmatprep.subr.mxu0 0.0
  %9416 = vmatpush1.msra.mxu0 0.0
  %9417 = vmatprep.mubr.f32.mxu0 0.0
  %9418 = vmatmul.mubr.f32.gmra.mrb[0].mxu0 %v9351
  %v9419 = vpop.f32.mrb[0].mxu0
  %v9420 = vadd.f32 0.0, %v9419
  %v9421 = vpop.f32.mrb[0].mxu0
  %9422 = vdwg.mxu0
  %9423 = vrot.lane.b32.xlu0 %v8986, 120
  %v9424 = vpop.permute.xlu0 %9423
  %9425 = vrot.lane.b32.xlu0 %v9079, 120
  %v9426 = vpop.permute.xlu0 %9425
  %v9427 = vsel %vm210, %v9424, 0
  %v9429 = vsel %vm210, %v9426, 0
  %9431 = vmatprep.subr.mxu0 0.0
  %9432 = vmatpush1.xpose.msra.mxu0 %v9429
  %9433 = vmatprep.subr.mxu0 0.0
  %9434 = vmatpush1.xpose.msra.mxu0 0.0
  %9435 = vmatprep.subr.mxu0 0.0
  %9436 = vmatpush1.xpose.msra.mxu0 0.0
  %9437 = vmatprep.subr.mxu0 0.0
  %9438 = vmatpush1.xpose.msra.mxu0 0.0
  %9439 = vmatprep.subr.mxu0 0.0
  %9440 = vmatpush1.xpose.msra.mxu0 0.0
  %9441 = vmatprep.subr.mxu0 0.0
  %9442 = vmatpush1.xpose.msra.mxu0 0.0
  %9443 = vmatprep.subr.mxu0 0.0
  %9444 = vmatpush1.xpose.msra.mxu0 0.0
  %9445 = vmatprep.subr.mxu0 0.0
  %9446 = vmatpush1.xpose.msra.mxu0 0.0
  %9447 = vmatprep.subr.mxu0 0.0
  %9448 = vmatpush1.xpose.msra.mxu0 0.0
  %9449 = vmatprep.subr.mxu0 0.0
  %9450 = vmatpush1.xpose.msra.mxu0 0.0
  %9451 = vmatprep.subr.mxu0 0.0
  %9452 = vmatpush1.xpose.msra.mxu0 0.0
  %9453 = vmatprep.subr.mxu0 0.0
  %9454 = vmatpush1.xpose.msra.mxu0 0.0
  %9455 = vmatprep.subr.mxu0 0.0
  %9456 = vmatpush1.xpose.msra.mxu0 0.0
  %9457 = vmatprep.subr.mxu0 0.0
  %9458 = vmatpush1.xpose.msra.mxu0 0.0
  %9459 = vmatprep.subr.mxu0 0.0
  %9460 = vmatpush1.xpose.msra.mxu0 0.0
  %9461 = vmatprep.subr.mxu0 0.0
  %9462 = vmatpush1.xpose.msra.mxu0 0.0
  %9463 = vmatprep.subr.mxu0 0.0
  %9464 = vmatpush1.xpose.msra.mxu0 0.0
  %9465 = vmatprep.subr.mxu0 0.0
  %9466 = vmatpush1.xpose.msra.mxu0 0.0
  %9467 = vmatprep.subr.mxu0 0.0
  %9468 = vmatpush1.xpose.msra.mxu0 0.0
  %9469 = vmatprep.subr.mxu0 0.0
  %9470 = vmatpush1.xpose.msra.mxu0 0.0
  %9471 = vmatprep.subr.mxu0 0.0
  %9472 = vmatpush1.xpose.msra.mxu0 0.0
  %9473 = vmatprep.subr.mxu0 0.0
  %9474 = vmatpush1.xpose.msra.mxu0 0.0
  %9475 = vmatprep.subr.mxu0 0.0
  %9476 = vmatpush1.xpose.msra.mxu0 0.0
  %9477 = vmatprep.subr.mxu0 0.0
  %9478 = vmatpush1.xpose.msra.mxu0 0.0
  %9479 = vmatprep.subr.mxu0 0.0
  %9480 = vmatpush1.xpose.msra.mxu0 0.0
  %9481 = vmatprep.subr.mxu0 0.0
  %9482 = vmatpush1.xpose.msra.mxu0 0.0
  %9483 = vmatprep.subr.mxu0 0.0
  %9484 = vmatpush1.xpose.msra.mxu0 0.0
  %9485 = vmatprep.subr.mxu0 0.0
  %9486 = vmatpush1.xpose.msra.mxu0 0.0
  %9487 = vmatprep.subr.mxu0 0.0
  %9488 = vmatpush1.xpose.msra.mxu0 0.0
  %9489 = vmatprep.subr.mxu0 0.0
  %9490 = vmatpush1.xpose.msra.mxu0 0.0
  %9491 = vmatprep.subr.mxu0 0.0
  %9492 = vmatpush1.xpose.msra.mxu0 0.0
  %9493 = vmatprep.subr.mxu0 0.0
  %9494 = vmatpush1.xpose.msra.mxu0 0.0
  %9495 = vmatprep.mubr.f32.mxu0 0.0
  %9496 = vmatmul.mubr.f32.gmra.mrb[0].mxu0 %v9427
  %v9497 = vpop.f32.mrb[0].mxu0
  %v9498 = vadd.f32 0.0, %v9497
  %v9499 = vpop.f32.mrb[0].mxu0
  %9500 = vdwg.mxu0
  %9501 = vrot.lane.b32.xlu0 %v8991, 120
  %v9502 = vpop.permute.xlu0 %9501
  %9503 = vrot.lane.b32.xlu0 %v9080, 120
  %v9504 = vpop.permute.xlu0 %9503
  %v9505 = vsel %vm210, %v9502, 0
  %v9507 = vsel %vm210, %v9504, 0
  %9509 = vmatprep.subr.mxu0 0.0
  %9510 = vmatpush1.xpose.msra.mxu0 %v9507
  %9511 = vmatprep.subr.mxu0 0.0
  %9512 = vmatpush1.xpose.msra.mxu0 0.0
  %9513 = vmatprep.subr.mxu0 0.0
  %9514 = vmatpush1.xpose.msra.mxu0 0.0
  %9515 = vmatprep.subr.mxu0 0.0
  %9516 = vmatpush1.xpose.msra.mxu0 0.0
  %9517 = vmatprep.subr.mxu0 0.0
  %9518 = vmatpush1.xpose.msra.mxu0 0.0
  %9519 = vmatprep.subr.mxu0 0.0
  %9520 = vmatpush1.xpose.msra.mxu0 0.0
  %9521 = vmatprep.subr.mxu0 0.0
  %9522 = vmatpush1.xpose.msra.mxu0 0.0
  %9523 = vmatprep.subr.mxu0 0.0
  %9524 = vmatpush1.xpose.msra.mxu0 0.0
  %9525 = vmatprep.subr.mxu0 0.0
  %9526 = vmatpush1.xpose.msra.mxu0 0.0
  %9527 = vmatprep.subr.mxu0 0.0
  %9528 = vmatpush1.xpose.msra.mxu0 0.0
  %9529 = vmatprep.subr.mxu0 0.0
  %9530 = vmatpush1.xpose.msra.mxu0 0.0
  %9531 = vmatprep.subr.mxu0 0.0
  %9532 = vmatpush1.xpose.msra.mxu0 0.0
  %9533 = vmatprep.subr.mxu0 0.0
  %9534 = vmatpush1.xpose.msra.mxu0 0.0
  %9535 = vmatprep.subr.mxu0 0.0
  %9536 = vmatpush1.xpose.msra.mxu0 0.0
  %9537 = vmatprep.subr.mxu0 0.0
  %9538 = vmatpush1.xpose.msra.mxu0 0.0
  %9539 = vmatprep.subr.mxu0 0.0
  %9540 = vmatpush1.xpose.msra.mxu0 0.0
  %9541 = vmatprep.subr.mxu0 0.0
  %9542 = vmatpush1.xpose.msra.mxu0 0.0
  %9543 = vmatprep.subr.mxu0 0.0
  %9544 = vmatpush1.xpose.msra.mxu0 0.0
  %9545 = vmatprep.subr.mxu0 0.0
  %9546 = vmatpush1.xpose.msra.mxu0 0.0
  %9547 = vmatprep.subr.mxu0 0.0
  %9548 = vmatpush1.xpose.msra.mxu0 0.0
  %9549 = vmatprep.subr.mxu0 0.0
  %9550 = vmatpush1.xpose.msra.mxu0 0.0
  %9551 = vmatprep.subr.mxu0 0.0
  %9552 = vmatpush1.xpose.msra.mxu0 0.0
  %9553 = vmatprep.subr.mxu0 0.0
  %9554 = vmatpush1.xpose.msra.mxu0 0.0
  %9555 = vmatprep.subr.mxu0 0.0
  %9556 = vmatpush1.xpose.msra.mxu0 0.0
  %9557 = vmatprep.subr.mxu0 0.0
  %9558 = vmatpush1.xpose.msra.mxu0 0.0
  %9559 = vmatprep.subr.mxu0 0.0
  %9560 = vmatpush1.xpose.msra.mxu0 0.0
  %9561 = vmatprep.subr.mxu0 0.0
  %9562 = vmatpush1.xpose.msra.mxu0 0.0
  %9563 = vmatprep.subr.mxu0 0.0
  %9564 = vmatpush1.xpose.msra.mxu0 0.0
  %9565 = vmatprep.subr.mxu0 0.0
  %9566 = vmatpush1.xpose.msra.mxu0 0.0
  %9567 = vmatprep.subr.mxu0 0.0
  %9568 = vmatpush1.xpose.msra.mxu0 0.0
  %9569 = vmatprep.subr.mxu0 0.0
  %9570 = vmatpush1.xpose.msra.mxu0 0.0
  %9571 = vmatprep.subr.mxu0 0.0
  %9572 = vmatpush1.xpose.msra.mxu0 0.0
  %9573 = vmatprep.mubr.f32.mxu0 0.0
  %9574 = vmatmul.mubr.f32.gmra.mrb[0].mxu0 %v9505
  %v9575 = vpop.f32.mrb[0].mxu0
  %v9576 = vadd.f32 0.0, %v9575
  %v9577 = vpop.f32.mrb[0].mxu0
  %9578 = vdwg.mxu0
  %v9579 = vmul.f32 %v9498, 0.35355338
  %v9580 = vmul.f32 %v9576, 0.35355338
  %v9581 = vadd.f32 %v9579, %v28
  %v9582 = vadd.f32 %v9580, %v28
  %v9583 = vsel %vm210, %v9581, -inf
  %9584 = vmax.xlane.f32.xlu0 %v9583
  %v9585 = vpop.xlane.xlu0 %9584
  %v9586 = vsel %vm210, %v9582, -inf
  %9587 = vmax.xlane.f32.xlu0 %v9586
  %v9588 = vpop.xlane.xlu0 %9587
  %v9589 = vsub.f32 %v9581, %v9585
  %v9590 = vsub.f32 %v9582, %v9588
  %v9591 = vmul.f32 %v9589, 1.442695
  %v9592 = vpow.pop %v9591
  %v9593 = vmul.f32 %v9590, 1.442695
  %v9594 = vpow.pop %v9593
  %v9595 = vsel %vm210, %v9592, 0.0
  %9596 = vadd.xlane.f32.xlu0 %v9595
  %v9597 = vpop.xlane.xlu0 %9596
  %v9598 = vsel %vm210, %v9594, 0.0
  %9599 = vadd.xlane.f32.xlu0 %v9598
  %v9600 = vpop.xlane.xlu0 %9599
  %v9601 = vrcp.pop %v9597
  %v9602 = vrcp.pop %v9600
  %v9603 = vmul.f32 %v9592, %v9601
  %v9604 = vmul.f32 %v9594, %v9602
  %9605 = vrot.lane.b32.xlu0 %v9089, 88
  %v9606 = vpop.permute.xlu0 %9605
  %v9609 = vsel %vm210, %v9603, 0
  %9611 = vmatprep.subr.mxu0 0.0
  %9612 = vmatpush1.msra.mxu0 %v9606
  %9613 = vmatprep.subr.mxu0 0.0
  %9614 = vmatpush1.msra.mxu0 0.0
  %9615 = vmatprep.subr.mxu0 0.0
  %9616 = vmatpush1.msra.mxu0 0.0
  %9617 = vmatprep.subr.mxu0 0.0
  %9618 = vmatpush1.msra.mxu0 0.0
  %9619 = vmatprep.subr.mxu0 0.0
  %9620 = vmatpush1.msra.mxu0 0.0
  %9621 = vmatprep.subr.mxu0 0.0
  %9622 = vmatpush1.msra.mxu0 0.0
  %9623 = vmatprep.subr.mxu0 0.0
  %9624 = vmatpush1.msra.mxu0 0.0
  %9625 = vmatprep.subr.mxu0 0.0
  %9626 = vmatpush1.msra.mxu0 0.0
  %9627 = vmatprep.subr.mxu0 0.0
  %9628 = vmatpush1.msra.mxu0 0.0
  %9629 = vmatprep.subr.mxu0 0.0
  %9630 = vmatpush1.msra.mxu0 0.0
  %9631 = vmatprep.subr.mxu0 0.0
  %9632 = vmatpush1.msra.mxu0 0.0
  %9633 = vmatprep.subr.mxu0 0.0
  %9634 = vmatpush1.msra.mxu0 0.0
  %9635 = vmatprep.subr.mxu0 0.0
  %9636 = vmatpush1.msra.mxu0 0.0
  %9637 = vmatprep.subr.mxu0 0.0
  %9638 = vmatpush1.msra.mxu0 0.0
  %9639 = vmatprep.subr.mxu0 0.0
  %9640 = vmatpush1.msra.mxu0 0.0
  %9641 = vmatprep.subr.mxu0 0.0
  %9642 = vmatpush1.msra.mxu0 0.0
  %9643 = vmatprep.subr.mxu0 0.0
  %9644 = vmatpush1.msra.mxu0 0.0
  %9645 = vmatprep.subr.mxu0 0.0
  %9646 = vmatpush1.msra.mxu0 0.0
  %9647 = vmatprep.subr.mxu0 0.0
  %9648 = vmatpush1.msra.mxu0 0.0
  %9649 = vmatprep.subr.mxu0 0.0
  %9650 = vmatpush1.msra.mxu0 0.0
  %9651 = vmatprep.subr.mxu0 0.0
  %9652 = vmatpush1.msra.mxu0 0.0
  %9653 = vmatprep.subr.mxu0 0.0
  %9654 = vmatpush1.msra.mxu0 0.0
  %9655 = vmatprep.subr.mxu0 0.0
  %9656 = vmatpush1.msra.mxu0 0.0
  %9657 = vmatprep.subr.mxu0 0.0
  %9658 = vmatpush1.msra.mxu0 0.0
  %9659 = vmatprep.subr.mxu0 0.0
  %9660 = vmatpush1.msra.mxu0 0.0
  %9661 = vmatprep.subr.mxu0 0.0
  %9662 = vmatpush1.msra.mxu0 0.0
  %9663 = vmatprep.subr.mxu0 0.0
  %9664 = vmatpush1.msra.mxu0 0.0
  %9665 = vmatprep.subr.mxu0 0.0
  %9666 = vmatpush1.msra.mxu0 0.0
  %9667 = vmatprep.subr.mxu0 0.0
  %9668 = vmatpush1.msra.mxu0 0.0
  %9669 = vmatprep.subr.mxu0 0.0
  %9670 = vmatpush1.msra.mxu0 0.0
  %9671 = vmatprep.subr.mxu0 0.0
  %9672 = vmatpush1.msra.mxu0 0.0
  %9673 = vmatprep.subr.mxu0 0.0
  %9674 = vmatpush1.msra.mxu0 0.0
  %9675 = vmatprep.mubr.f32.mxu0 0.0
  %9676 = vmatmul.mubr.f32.gmra.mrb[0].mxu0 %v9609
  %v9677 = vpop.f32.mrb[0].mxu0
  %v9678 = vadd.f32 0.0, %v9677
  %v9679 = vpop.f32.mrb[0].mxu0
  %9680 = vdwg.mxu0
  %9681 = vrot.lane.b32.xlu0 %v9090, 88
  %v9682 = vpop.permute.xlu0 %9681
  %v9685 = vsel %vm210, %v9604, 0
  %9687 = vmatprep.subr.mxu0 0.0
  %9688 = vmatpush1.msra.mxu0 %v9682
  %9689 = vmatprep.subr.mxu0 0.0
  %9690 = vmatpush1.msra.mxu0 0.0
  %9691 = vmatprep.subr.mxu0 0.0
  %9692 = vmatpush1.msra.mxu0 0.0
  %9693 = vmatprep.subr.mxu0 0.0
  %9694 = vmatpush1.msra.mxu0 0.0
  %9695 = vmatprep.subr.mxu0 0.0
  %9696 = vmatpush1.msra.mxu0 0.0
  %9697 = vmatprep.subr.mxu0 0.0
  %9698 = vmatpush1.msra.mxu0 0.0
  %9699 = vmatprep.subr.mxu0 0.0
  %9700 = vmatpush1.msra.mxu0 0.0
  %9701 = vmatprep.subr.mxu0 0.0
  %9702 = vmatpush1.msra.mxu0 0.0
  %9703 = vmatprep.subr.mxu0 0.0
  %9704 = vmatpush1.msra.mxu0 0.0
  %9705 = vmatprep.subr.mxu0 0.0
  %9706 = vmatpush1.msra.mxu0 0.0
  %9707 = vmatprep.subr.mxu0 0.0
  %9708 = vmatpush1.msra.mxu0 0.0
  %9709 = vmatprep.subr.mxu0 0.0
  %9710 = vmatpush1.msra.mxu0 0.0
  %9711 = vmatprep.subr.mxu0 0.0
  %9712 = vmatpush1.msra.mxu0 0.0
  %9713 = vmatprep.subr.mxu0 0.0
  %9714 = vmatpush1.msra.mxu0 0.0
  %9715 = vmatprep.subr.mxu0 0.0
  %9716 = vmatpush1.msra.mxu0 0.0
  %9717 = vmatprep.subr.mxu0 0.0
  %9718 = vmatpush1.msra.mxu0 0.0
  %9719 = vmatprep.subr.mxu0 0.0
  %9720 = vmatpush1.msra.mxu0 0.0
  %9721 = vmatprep.subr.mxu0 0.0
  %9722 = vmatpush1.msra.mxu0 0.0
  %9723 = vmatprep.subr.mxu0 0.0
  %9724 = vmatpush1.msra.mxu0 0.0
  %9725 = vmatprep.subr.mxu0 0.0
  %9726 = vmatpush1.msra.mxu0 0.0
  %9727 = vmatprep.subr.mxu0 0.0
  %9728 = vmatpush1.msra.mxu0 0.0
  %9729 = vmatprep.subr.mxu0 0.0
  %9730 = vmatpush1.msra.mxu0 0.0
  %9731 = vmatprep.subr.mxu0 0.0
  %9732 = vmatpush1.msra.mxu0 0.0
  %9733 = vmatprep.subr.mxu0 0.0
  %9734 = vmatpush1.msra.mxu0 0.0
  %9735 = vmatprep.subr.mxu0 0.0
  %9736 = vmatpush1.msra.mxu0 0.0
  %9737 = vmatprep.subr.mxu0 0.0
  %9738 = vmatpush1.msra.mxu0 0.0
  %9739 = vmatprep.subr.mxu0 0.0
  %9740 = vmatpush1.msra.mxu0 0.0
  %9741 = vmatprep.subr.mxu0 0.0
  %9742 = vmatpush1.msra.mxu0 0.0
  %9743 = vmatprep.subr.mxu0 0.0
  %9744 = vmatpush1.msra.mxu0 0.0
  %9745 = vmatprep.subr.mxu0 0.0
  %9746 = vmatpush1.msra.mxu0 0.0
  %9747 = vmatprep.subr.mxu0 0.0
  %9748 = vmatpush1.msra.mxu0 0.0
  %9749 = vmatprep.subr.mxu0 0.0
  %9750 = vmatpush1.msra.mxu0 0.0
  %9751 = vmatprep.mubr.f32.mxu0 0.0
  %9752 = vmatmul.mubr.f32.gmra.mrb[0].mxu0 %v9685
  %v9753 = vpop.f32.mrb[0].mxu0
  %v9754 = vadd.f32 0.0, %v9753
  %v9755 = vpop.f32.mrb[0].mxu0
  %9756 = vdwg.mxu0
  %9757 = vrot.lane.b32.xlu0 %v8986, 112
  %v9758 = vpop.permute.xlu0 %9757
  %9759 = vrot.lane.b32.xlu0 %v9079, 112
  %v9760 = vpop.permute.xlu0 %9759
  %v9761 = vsel %vm210, %v9758, 0
  %v9763 = vsel %vm210, %v9760, 0
  %9765 = vmatprep.subr.mxu0 0.0
  %9766 = vmatpush1.xpose.msra.mxu0 %v9763
  %9767 = vmatprep.subr.mxu0 0.0
  %9768 = vmatpush1.xpose.msra.mxu0 0.0
  %9769 = vmatprep.subr.mxu0 0.0
  %9770 = vmatpush1.xpose.msra.mxu0 0.0
  %9771 = vmatprep.subr.mxu0 0.0
  %9772 = vmatpush1.xpose.msra.mxu0 0.0
  %9773 = vmatprep.subr.mxu0 0.0
  %9774 = vmatpush1.xpose.msra.mxu0 0.0
  %9775 = vmatprep.subr.mxu0 0.0
  %9776 = vmatpush1.xpose.msra.mxu0 0.0
  %9777 = vmatprep.subr.mxu0 0.0
  %9778 = vmatpush1.xpose.msra.mxu0 0.0
  %9779 = vmatprep.subr.mxu0 0.0
  %9780 = vmatpush1.xpose.msra.mxu0 0.0
  %9781 = vmatprep.subr.mxu0 0.0
  %9782 = vmatpush1.xpose.msra.mxu0 0.0
  %9783 = vmatprep.subr.mxu0 0.0
  %9784 = vmatpush1.xpose.msra.mxu0 0.0
  %9785 = vmatprep.subr.mxu0 0.0
  %9786 = vmatpush1.xpose.msra.mxu0 0.0
  %9787 = vmatprep.subr.mxu0 0.0
  %9788 = vmatpush1.xpose.msra.mxu0 0.0
  %9789 = vmatprep.subr.mxu0 0.0
  %9790 = vmatpush1.xpose.msra.mxu0 0.0
  %9791 = vmatprep.subr.mxu0 0.0
  %9792 = vmatpush1.xpose.msra.mxu0 0.0
  %9793 = vmatprep.subr.mxu0 0.0
  %9794 = vmatpush1.xpose.msra.mxu0 0.0
  %9795 = vmatprep.subr.mxu0 0.0
  %9796 = vmatpush1.xpose.msra.mxu0 0.0
  %9797 = vmatprep.subr.mxu0 0.0
  %9798 = vmatpush1.xpose.msra.mxu0 0.0
  %9799 = vmatprep.subr.mxu0 0.0
  %9800 = vmatpush1.xpose.msra.mxu0 0.0
  %9801 = vmatprep.subr.mxu0 0.0
  %9802 = vmatpush1.xpose.msra.mxu0 0.0
  %9803 = vmatprep.subr.mxu0 0.0
  %9804 = vmatpush1.xpose.msra.mxu0 0.0
  %9805 = vmatprep.subr.mxu0 0.0
  %9806 = vmatpush1.xpose.msra.mxu0 0.0
  %9807 = vmatprep.subr.mxu0 0.0
  %9808 = vmatpush1.xpose.msra.mxu0 0.0
  %9809 = vmatprep.subr.mxu0 0.0
  %9810 = vmatpush1.xpose.msra.mxu0 0.0
  %9811 = vmatprep.subr.mxu0 0.0
  %9812 = vmatpush1.xpose.msra.mxu0 0.0
  %9813 = vmatprep.subr.mxu0 0.0
  %9814 = vmatpush1.xpose.msra.mxu0 0.0
  %9815 = vmatprep.subr.mxu0 0.0
  %9816 = vmatpush1.xpose.msra.mxu0 0.0
  %9817 = vmatprep.subr.mxu0 0.0
  %9818 = vmatpush1.xpose.msra.mxu0 0.0
  %9819 = vmatprep.subr.mxu0 0.0
  %9820 = vmatpush1.xpose.msra.mxu0 0.0
  %9821 = vmatprep.subr.mxu0 0.0
  %9822 = vmatpush1.xpose.msra.mxu0 0.0
  %9823 = vmatprep.subr.mxu0 0.0
  %9824 = vmatpush1.xpose.msra.mxu0 0.0
  %9825 = vmatprep.subr.mxu0 0.0
  %9826 = vmatpush1.xpose.msra.mxu0 0.0
  %9827 = vmatprep.subr.mxu0 0.0
  %9828 = vmatpush1.xpose.msra.mxu0 0.0
  %9829 = vmatprep.mubr.f32.mxu0 0.0
  %9830 = vmatmul.mubr.f32.gmra.mrb[0].mxu0 %v9761
  %v9831 = vpop.f32.mrb[0].mxu0
  %v9832 = vadd.f32 0.0, %v9831
  %v9833 = vpop.f32.mrb[0].mxu0
  %9834 = vdwg.mxu0
  %9835 = vrot.lane.b32.xlu0 %v8991, 112
  %v9836 = vpop.permute.xlu0 %9835
  %9837 = vrot.lane.b32.xlu0 %v9080, 112
  %v9838 = vpop.permute.xlu0 %9837
  %v9839 = vsel %vm210, %v9836, 0
  %v9841 = vsel %vm210, %v9838, 0
  %9843 = vmatprep.subr.mxu0 0.0
  %9844 = vmatpush1.xpose.msra.mxu0 %v9841
  %9845 = vmatprep.subr.mxu0 0.0
  %9846 = vmatpush1.xpose.msra.mxu0 0.0
  %9847 = vmatprep.subr.mxu0 0.0
  %9848 = vmatpush1.xpose.msra.mxu0 0.0
  %9849 = vmatprep.subr.mxu0 0.0
  %9850 = vmatpush1.xpose.msra.mxu0 0.0
  %9851 = vmatprep.subr.mxu0 0.0
  %9852 = vmatpush1.xpose.msra.mxu0 0.0
  %9853 = vmatprep.subr.mxu0 0.0
  %9854 = vmatpush1.xpose.msra.mxu0 0.0
  %9855 = vmatprep.subr.mxu0 0.0
  %9856 = vmatpush1.xpose.msra.mxu0 0.0
  %9857 = vmatprep.subr.mxu0 0.0
  %9858 = vmatpush1.xpose.msra.mxu0 0.0
  %9859 = vmatprep.subr.mxu0 0.0
  %9860 = vmatpush1.xpose.msra.mxu0 0.0
  %9861 = vmatprep.subr.mxu0 0.0
  %9862 = vmatpush1.xpose.msra.mxu0 0.0
  %9863 = vmatprep.subr.mxu0 0.0
  %9864 = vmatpush1.xpose.msra.mxu0 0.0
  %9865 = vmatprep.subr.mxu0 0.0
  %9866 = vmatpush1.xpose.msra.mxu0 0.0
  %9867 = vmatprep.subr.mxu0 0.0
  %9868 = vmatpush1.xpose.msra.mxu0 0.0
  %9869 = vmatprep.subr.mxu0 0.0
  %9870 = vmatpush1.xpose.msra.mxu0 0.0
  %9871 = vmatprep.subr.mxu0 0.0
  %9872 = vmatpush1.xpose.msra.mxu0 0.0
  %9873 = vmatprep.subr.mxu0 0.0
  %9874 = vmatpush1.xpose.msra.mxu0 0.0
  %9875 = vmatprep.subr.mxu0 0.0
  %9876 = vmatpush1.xpose.msra.mxu0 0.0
  %9877 = vmatprep.subr.mxu0 0.0
  %9878 = vmatpush1.xpose.msra.mxu0 0.0
  %9879 = vmatprep.subr.mxu0 0.0
  %9880 = vmatpush1.xpose.msra.mxu0 0.0
  %9881 = vmatprep.subr.mxu0 0.0
  %9882 = vmatpush1.xpose.msra.mxu0 0.0
  %9883 = vmatprep.subr.mxu0 0.0
  %9884 = vmatpush1.xpose.msra.mxu0 0.0
  %9885 = vmatprep.subr.mxu0 0.0
  %9886 = vmatpush1.xpose.msra.mxu0 0.0
  %9887 = vmatprep.subr.mxu0 0.0
  %9888 = vmatpush1.xpose.msra.mxu0 0.0
  %9889 = vmatprep.subr.mxu0 0.0
  %9890 = vmatpush1.xpose.msra.mxu0 0.0
  %9891 = vmatprep.subr.mxu0 0.0
  %9892 = vmatpush1.xpose.msra.mxu0 0.0
  %9893 = vmatprep.subr.mxu0 0.0
  %9894 = vmatpush1.xpose.msra.mxu0 0.0
  %9895 = vmatprep.subr.mxu0 0.0
  %9896 = vmatpush1.xpose.msra.mxu0 0.0
  %9897 = vmatprep.subr.mxu0 0.0
  %9898 = vmatpush1.xpose.msra.mxu0 0.0
  %9899 = vmatprep.subr.mxu0 0.0
  %9900 = vmatpush1.xpose.msra.mxu0 0.0
  %9901 = vmatprep.subr.mxu0 0.0
  %9902 = vmatpush1.xpose.msra.mxu0 0.0
  %9903 = vmatprep.subr.mxu0 0.0
  %9904 = vmatpush1.xpose.msra.mxu0 0.0
  %9905 = vmatprep.subr.mxu0 0.0
  %9906 = vmatpush1.xpose.msra.mxu0 0.0
  %9907 = vmatprep.mubr.f32.mxu0 0.0
  %9908 = vmatmul.mubr.f32.gmra.mrb[0].mxu0 %v9839
  %v9909 = vpop.f32.mrb[0].mxu0
  %v9910 = vadd.f32 0.0, %v9909
  %v9911 = vpop.f32.mrb[0].mxu0
  %9912 = vdwg.mxu0
  %v9913 = vmul.f32 %v9832, 0.35355338
  %v9914 = vmul.f32 %v9910, 0.35355338
  %v9915 = vadd.f32 %v9913, %v28
  %v9916 = vadd.f32 %v9914, %v28
  %v9917 = vsel %vm210, %v9915, -inf
  %9918 = vmax.xlane.f32.xlu0 %v9917
  %v9919 = vpop.xlane.xlu0 %9918
  %v9920 = vsel %vm210, %v9916, -inf
  %9921 = vmax.xlane.f32.xlu0 %v9920
  %v9922 = vpop.xlane.xlu0 %9921
  %v9923 = vsub.f32 %v9915, %v9919
  %v9924 = vsub.f32 %v9916, %v9922
  %v9925 = vmul.f32 %v9923, 1.442695
  %v9926 = vpow.pop %v9925
  %v9927 = vmul.f32 %v9924, 1.442695
  %v9928 = vpow.pop %v9927
  %v9929 = vsel %vm210, %v9926, 0.0
  %9930 = vadd.xlane.f32.xlu0 %v9929
  %v9931 = vpop.xlane.xlu0 %9930
  %v9932 = vsel %vm210, %v9928, 0.0
  %9933 = vadd.xlane.f32.xlu0 %v9932
  %v9934 = vpop.xlane.xlu0 %9933
  %v9935 = vrcp.pop %v9931
  %v9936 = vrcp.pop %v9934
  %v9937 = vmul.f32 %v9926, %v9935
  %v9938 = vmul.f32 %v9928, %v9936
  %9939 = vrot.lane.b32.xlu0 %v9089, 80
  %v9940 = vpop.permute.xlu0 %9939
  %v9943 = vsel %vm210, %v9937, 0
  %9945 = vmatprep.subr.mxu0 0.0
  %9946 = vmatpush1.msra.mxu0 %v9940
  %9947 = vmatprep.subr.mxu0 0.0
  %9948 = vmatpush1.msra.mxu0 0.0
  %9949 = vmatprep.subr.mxu0 0.0
  %9950 = vmatpush1.msra.mxu0 0.0
  %9951 = vmatprep.subr.mxu0 0.0
  %9952 = vmatpush1.msra.mxu0 0.0
  %9953 = vmatprep.subr.mxu0 0.0
  %9954 = vmatpush1.msra.mxu0 0.0
  %9955 = vmatprep.subr.mxu0 0.0
  %9956 = vmatpush1.msra.mxu0 0.0
  %9957 = vmatprep.subr.mxu0 0.0
  %9958 = vmatpush1.msra.mxu0 0.0
  %9959 = vmatprep.subr.mxu0 0.0
  %9960 = vmatpush1.msra.mxu0 0.0
  %9961 = vmatprep.subr.mxu0 0.0
  %9962 = vmatpush1.msra.mxu0 0.0
  %9963 = vmatprep.subr.mxu0 0.0
  %9964 = vmatpush1.msra.mxu0 0.0
  %9965 = vmatprep.subr.mxu0 0.0
  %9966 = vmatpush1.msra.mxu0 0.0
  %9967 = vmatprep.subr.mxu0 0.0
  %9968 = vmatpush1.msra.mxu0 0.0
  %9969 = vmatprep.subr.mxu0 0.0
  %9970 = vmatpush1.msra.mxu0 0.0
  %9971 = vmatprep.subr.mxu0 0.0
  %9972 = vmatpush1.msra.mxu0 0.0
  %9973 = vmatprep.subr.mxu0 0.0
  %9974 = vmatpush1.msra.mxu0 0.0
  %9975 = vmatprep.subr.mxu0 0.0
  %9976 = vmatpush1.msra.mxu0 0.0
  %9977 = vmatprep.subr.mxu0 0.0
  %9978 = vmatpush1.msra.mxu0 0.0
  %9979 = vmatprep.subr.mxu0 0.0
  %9980 = vmatpush1.msra.mxu0 0.0
  %9981 = vmatprep.subr.mxu0 0.0
  %9982 = vmatpush1.msra.mxu0 0.0
  %9983 = vmatprep.subr.mxu0 0.0
  %9984 = vmatpush1.msra.mxu0 0.0
  %9985 = vmatprep.subr.mxu0 0.0
  %9986 = vmatpush1.msra.mxu0 0.0
  %9987 = vmatprep.subr.mxu0 0.0
  %9988 = vmatpush1.msra.mxu0 0.0
  %9989 = vmatprep.subr.mxu0 0.0
  %9990 = vmatpush1.msra.mxu0 0.0
  %9991 = vmatprep.subr.mxu0 0.0
  %9992 = vmatpush1.msra.mxu0 0.0
  %9993 = vmatprep.subr.mxu0 0.0
  %9994 = vmatpush1.msra.mxu0 0.0
  %9995 = vmatprep.subr.mxu0 0.0
  %9996 = vmatpush1.msra.mxu0 0.0
  %9997 = vmatprep.subr.mxu0 0.0
  %9998 = vmatpush1.msra.mxu0 0.0
  %9999 = vmatprep.subr.mxu0 0.0
  %10000 = vmatpush1.msra.mxu0 0.0
  %10001 = vmatprep.subr.mxu0 0.0
  %10002 = vmatpush1.msra.mxu0 0.0
  %10003 = vmatprep.subr.mxu0 0.0
  %10004 = vmatpush1.msra.mxu0 0.0
  %10005 = vmatprep.subr.mxu0 0.0
  %10006 = vmatpush1.msra.mxu0 0.0
  %10007 = vmatprep.subr.mxu0 0.0
  %10008 = vmatpush1.msra.mxu0 0.0
  %10009 = vmatprep.mubr.f32.mxu0 0.0
  %10010 = vmatmul.mubr.f32.gmra.mrb[0].mxu0 %v9943
  %v10011 = vpop.f32.mrb[0].mxu0
  %v10012 = vadd.f32 0.0, %v10011
  %v10013 = vpop.f32.mrb[0].mxu0
  %10014 = vdwg.mxu0
  %10015 = vrot.lane.b32.xlu0 %v9090, 80
  %v10016 = vpop.permute.xlu0 %10015
  %v10019 = vsel %vm210, %v9938, 0
  %10021 = vmatprep.subr.mxu0 0.0
  %10022 = vmatpush1.msra.mxu0 %v10016
  %10023 = vmatprep.subr.mxu0 0.0
  %10024 = vmatpush1.msra.mxu0 0.0
  %10025 = vmatprep.subr.mxu0 0.0
  %10026 = vmatpush1.msra.mxu0 0.0
  %10027 = vmatprep.subr.mxu0 0.0
  %10028 = vmatpush1.msra.mxu0 0.0
  %10029 = vmatprep.subr.mxu0 0.0
  %10030 = vmatpush1.msra.mxu0 0.0
  %10031 = vmatprep.subr.mxu0 0.0
  %10032 = vmatpush1.msra.mxu0 0.0
  %10033 = vmatprep.subr.mxu0 0.0
  %10034 = vmatpush1.msra.mxu0 0.0
  %10035 = vmatprep.subr.mxu0 0.0
  %10036 = vmatpush1.msra.mxu0 0.0
  %10037 = vmatprep.subr.mxu0 0.0
  %10038 = vmatpush1.msra.mxu0 0.0
  %10039 = vmatprep.subr.mxu0 0.0
  %10040 = vmatpush1.msra.mxu0 0.0
  %10041 = vmatprep.subr.mxu0 0.0
  %10042 = vmatpush1.msra.mxu0 0.0
  %10043 = vmatprep.subr.mxu0 0.0
  %10044 = vmatpush1.msra.mxu0 0.0
  %10045 = vmatprep.subr.mxu0 0.0
  %10046 = vmatpush1.msra.mxu0 0.0
  %10047 = vmatprep.subr.mxu0 0.0
  %10048 = vmatpush1.msra.mxu0 0.0
  %10049 = vmatprep.subr.mxu0 0.0
  %10050 = vmatpush1.msra.mxu0 0.0
  %10051 = vmatprep.subr.mxu0 0.0
  %10052 = vmatpush1.msra.mxu0 0.0
  %10053 = vmatprep.subr.mxu0 0.0
  %10054 = vmatpush1.msra.mxu0 0.0
  %10055 = vmatprep.subr.mxu0 0.0
  %10056 = vmatpush1.msra.mxu0 0.0
  %10057 = vmatprep.subr.mxu0 0.0
  %10058 = vmatpush1.msra.mxu0 0.0
  %10059 = vmatprep.subr.mxu0 0.0
  %10060 = vmatpush1.msra.mxu0 0.0
  %10061 = vmatprep.subr.mxu0 0.0
  %10062 = vmatpush1.msra.mxu0 0.0
  %10063 = vmatprep.subr.mxu0 0.0
  %10064 = vmatpush1.msra.mxu0 0.0
  %10065 = vmatprep.subr.mxu0 0.0
  %10066 = vmatpush1.msra.mxu0 0.0
  %10067 = vmatprep.subr.mxu0 0.0
  %10068 = vmatpush1.msra.mxu0 0.0
  %10069 = vmatprep.subr.mxu0 0.0
  %10070 = vmatpush1.msra.mxu0 0.0
  %10071 = vmatprep.subr.mxu0 0.0
  %10072 = vmatpush1.msra.mxu0 0.0
  %10073 = vmatprep.subr.mxu0 0.0
  %10074 = vmatpush1.msra.mxu0 0.0
  %10075 = vmatprep.subr.mxu0 0.0
  %10076 = vmatpush1.msra.mxu0 0.0
  %10077 = vmatprep.subr.mxu0 0.0
  %10078 = vmatpush1.msra.mxu0 0.0
  %10079 = vmatprep.subr.mxu0 0.0
  %10080 = vmatpush1.msra.mxu0 0.0
  %10081 = vmatprep.subr.mxu0 0.0
  %10082 = vmatpush1.msra.mxu0 0.0
  %10083 = vmatprep.subr.mxu0 0.0
  %10084 = vmatpush1.msra.mxu0 0.0
  %10085 = vmatprep.mubr.f32.mxu0 0.0
  %10086 = vmatmul.mubr.f32.gmra.mrb[0].mxu0 %v10019
  %v10087 = vpop.f32.mrb[0].mxu0
  %v10088 = vadd.f32 0.0, %v10087
  %v10089 = vpop.f32.mrb[0].mxu0
  %10090 = vdwg.mxu0
  %10091 = vrot.lane.b32.xlu0 %v8986, 104
  %v10092 = vpop.permute.xlu0 %10091
  %10093 = vrot.lane.b32.xlu0 %v9079, 104
  %v10094 = vpop.permute.xlu0 %10093
  %v10095 = vsel %vm210, %v10092, 0
  %v10097 = vsel %vm210, %v10094, 0
  %10099 = vmatprep.subr.mxu0 0.0
  %10100 = vmatpush1.xpose.msra.mxu0 %v10097
  %10101 = vmatprep.subr.mxu0 0.0
  %10102 = vmatpush1.xpose.msra.mxu0 0.0
  %10103 = vmatprep.subr.mxu0 0.0
  %10104 = vmatpush1.xpose.msra.mxu0 0.0
  %10105 = vmatprep.subr.mxu0 0.0
  %10106 = vmatpush1.xpose.msra.mxu0 0.0
  %10107 = vmatprep.subr.mxu0 0.0
  %10108 = vmatpush1.xpose.msra.mxu0 0.0
  %10109 = vmatprep.subr.mxu0 0.0
  %10110 = vmatpush1.xpose.msra.mxu0 0.0
  %10111 = vmatprep.subr.mxu0 0.0
  %10112 = vmatpush1.xpose.msra.mxu0 0.0
  %10113 = vmatprep.subr.mxu0 0.0
  %10114 = vmatpush1.xpose.msra.mxu0 0.0
  %10115 = vmatprep.subr.mxu0 0.0
  %10116 = vmatpush1.xpose.msra.mxu0 0.0
  %10117 = vmatprep.subr.mxu0 0.0
  %10118 = vmatpush1.xpose.msra.mxu0 0.0
  %10119 = vmatprep.subr.mxu0 0.0
  %10120 = vmatpush1.xpose.msra.mxu0 0.0
  %10121 = vmatprep.subr.mxu0 0.0
  %10122 = vmatpush1.xpose.msra.mxu0 0.0
  %10123 = vmatprep.subr.mxu0 0.0
  %10124 = vmatpush1.xpose.msra.mxu0 0.0
  %10125 = vmatprep.subr.mxu0 0.0
  %10126 = vmatpush1.xpose.msra.mxu0 0.0
  %10127 = vmatprep.subr.mxu0 0.0
  %10128 = vmatpush1.xpose.msra.mxu0 0.0
  %10129 = vmatprep.subr.mxu0 0.0
  %10130 = vmatpush1.xpose.msra.mxu0 0.0
  %10131 = vmatprep.subr.mxu0 0.0
  %10132 = vmatpush1.xpose.msra.mxu0 0.0
  %10133 = vmatprep.subr.mxu0 0.0
  %10134 = vmatpush1.xpose.msra.mxu0 0.0
  %10135 = vmatprep.subr.mxu0 0.0
  %10136 = vmatpush1.xpose.msra.mxu0 0.0
  %10137 = vmatprep.subr.mxu0 0.0
  %10138 = vmatpush1.xpose.msra.mxu0 0.0
  %10139 = vmatprep.subr.mxu0 0.0
  %10140 = vmatpush1.xpose.msra.mxu0 0.0
  %10141 = vmatprep.subr.mxu0 0.0
  %10142 = vmatpush1.xpose.msra.mxu0 0.0
  %10143 = vmatprep.subr.mxu0 0.0
  %10144 = vmatpush1.xpose.msra.mxu0 0.0
  %10145 = vmatprep.subr.mxu0 0.0
  %10146 = vmatpush1.xpose.msra.mxu0 0.0
  %10147 = vmatprep.subr.mxu0 0.0
  %10148 = vmatpush1.xpose.msra.mxu0 0.0
  %10149 = vmatprep.subr.mxu0 0.0
  %10150 = vmatpush1.xpose.msra.mxu0 0.0
  %10151 = vmatprep.subr.mxu0 0.0
  %10152 = vmatpush1.xpose.msra.mxu0 0.0
  %10153 = vmatprep.subr.mxu0 0.0
  %10154 = vmatpush1.xpose.msra.mxu0 0.0
  %10155 = vmatprep.subr.mxu0 0.0
  %10156 = vmatpush1.xpose.msra.mxu0 0.0
  %10157 = vmatprep.subr.mxu0 0.0
  %10158 = vmatpush1.xpose.msra.mxu0 0.0
  %10159 = vmatprep.subr.mxu0 0.0
  %10160 = vmatpush1.xpose.msra.mxu0 0.0
  %10161 = vmatprep.subr.mxu0 0.0
  %10162 = vmatpush1.xpose.msra.mxu0 0.0
  %10163 = vmatprep.mubr.f32.mxu0 0.0
  %10164 = vmatmul.mubr.f32.gmra.mrb[0].mxu0 %v10095
  %v10165 = vpop.f32.mrb[0].mxu0
  %v10166 = vadd.f32 0.0, %v10165
  %v10167 = vpop.f32.mrb[0].mxu0
  %10168 = vdwg.mxu0
  %10169 = vrot.lane.b32.xlu0 %v8991, 104
  %v10170 = vpop.permute.xlu0 %10169
  %10171 = vrot.lane.b32.xlu0 %v9080, 104
  %v10172 = vpop.permute.xlu0 %10171
  %v10173 = vsel %vm210, %v10170, 0
  %v10175 = vsel %vm210, %v10172, 0
  %10177 = vmatprep.subr.mxu0 0.0
  %10178 = vmatpush1.xpose.msra.mxu0 %v10175
  %10179 = vmatprep.subr.mxu0 0.0
  %10180 = vmatpush1.xpose.msra.mxu0 0.0
  %10181 = vmatprep.subr.mxu0 0.0
  %10182 = vmatpush1.xpose.msra.mxu0 0.0
  %10183 = vmatprep.subr.mxu0 0.0
  %10184 = vmatpush1.xpose.msra.mxu0 0.0
  %10185 = vmatprep.subr.mxu0 0.0
  %10186 = vmatpush1.xpose.msra.mxu0 0.0
  %10187 = vmatprep.subr.mxu0 0.0
  %10188 = vmatpush1.xpose.msra.mxu0 0.0
  %10189 = vmatprep.subr.mxu0 0.0
  %10190 = vmatpush1.xpose.msra.mxu0 0.0
  %10191 = vmatprep.subr.mxu0 0.0
  %10192 = vmatpush1.xpose.msra.mxu0 0.0
  %10193 = vmatprep.subr.mxu0 0.0
  %10194 = vmatpush1.xpose.msra.mxu0 0.0
  %10195 = vmatprep.subr.mxu0 0.0
  %10196 = vmatpush1.xpose.msra.mxu0 0.0
  %10197 = vmatprep.subr.mxu0 0.0
  %10198 = vmatpush1.xpose.msra.mxu0 0.0
  %10199 = vmatprep.subr.mxu0 0.0
  %10200 = vmatpush1.xpose.msra.mxu0 0.0
  %10201 = vmatprep.subr.mxu0 0.0
  %10202 = vmatpush1.xpose.msra.mxu0 0.0
  %10203 = vmatprep.subr.mxu0 0.0
  %10204 = vmatpush1.xpose.msra.mxu0 0.0
  %10205 = vmatprep.subr.mxu0 0.0
  %10206 = vmatpush1.xpose.msra.mxu0 0.0
  %10207 = vmatprep.subr.mxu0 0.0
  %10208 = vmatpush1.xpose.msra.mxu0 0.0
  %10209 = vmatprep.subr.mxu0 0.0
  %10210 = vmatpush1.xpose.msra.mxu0 0.0
  %10211 = vmatprep.subr.mxu0 0.0
  %10212 = vmatpush1.xpose.msra.mxu0 0.0
  %10213 = vmatprep.subr.mxu0 0.0
  %10214 = vmatpush1.xpose.msra.mxu0 0.0
  %10215 = vmatprep.subr.mxu0 0.0
  %10216 = vmatpush1.xpose.msra.mxu0 0.0
  %10217 = vmatprep.subr.mxu0 0.0
  %10218 = vmatpush1.xpose.msra.mxu0 0.0
  %10219 = vmatprep.subr.mxu0 0.0
  %10220 = vmatpush1.xpose.msra.mxu0 0.0
  %10221 = vmatprep.subr.mxu0 0.0
  %10222 = vmatpush1.xpose.msra.mxu0 0.0
  %10223 = vmatprep.subr.mxu0 0.0
  %10224 = vmatpush1.xpose.msra.mxu0 0.0
  %10225 = vmatprep.subr.mxu0 0.0
  %10226 = vmatpush1.xpose.msra.mxu0 0.0
  %10227 = vmatprep.subr.mxu0 0.0
  %10228 = vmatpush1.xpose.msra.mxu0 0.0
  %10229 = vmatprep.subr.mxu0 0.0
  %10230 = vmatpush1.xpose.msra.mxu0 0.0
  %10231 = vmatprep.subr.mxu0 0.0
  %10232 = vmatpush1.xpose.msra.mxu0 0.0
  %10233 = vmatprep.subr.mxu0 0.0
  %10234 = vmatpush1.xpose.msra.mxu0 0.0
  %10235 = vmatprep.subr.mxu0 0.0
  %10236 = vmatpush1.xpose.msra.mxu0 0.0
  %10237 = vmatprep.subr.mxu0 0.0
  %10238 = vmatpush1.xpose.msra.mxu0 0.0
  %10239 = vmatprep.subr.mxu0 0.0
  %10240 = vmatpush1.xpose.msra.mxu0 0.0
  %10241 = vmatprep.mubr.f32.mxu0 0.0
  %10242 = vmatmul.mubr.f32.gmra.mrb[0].mxu0 %v10173
  %v10243 = vpop.f32.mrb[0].mxu0
  %v10244 = vadd.f32 0.0, %v10243
  %v10245 = vpop.f32.mrb[0].mxu0
  %10246 = vdwg.mxu0
  %v10247 = vmul.f32 %v10166, 0.35355338
  %v10248 = vmul.f32 %v10244, 0.35355338
  %v10249 = vadd.f32 %v10247, %v28
  %v10250 = vadd.f32 %v10248, %v28
  %v10251 = vsel %vm210, %v10249, -inf
  %10252 = vmax.xlane.f32.xlu0 %v10251
  %v10253 = vpop.xlane.xlu0 %10252
  %v10254 = vsel %vm210, %v10250, -inf
  %10255 = vmax.xlane.f32.xlu0 %v10254
  %v10256 = vpop.xlane.xlu0 %10255
  %v10257 = vsub.f32 %v10249, %v10253
  %v10258 = vsub.f32 %v10250, %v10256
  %v10259 = vmul.f32 %v10257, 1.442695
  %v10260 = vpow.pop %v10259
  %v10261 = vmul.f32 %v10258, 1.442695
  %v10262 = vpow.pop %v10261
  %v10263 = vsel %vm210, %v10260, 0.0
  %10264 = vadd.xlane.f32.xlu0 %v10263
  %v10265 = vpop.xlane.xlu0 %10264
  %v10266 = vsel %vm210, %v10262, 0.0
  %10267 = vadd.xlane.f32.xlu0 %v10266
  %v10268 = vpop.xlane.xlu0 %10267
  %v10269 = vrcp.pop %v10265
  %v10270 = vrcp.pop %v10268
  %v10271 = vmul.f32 %v10260, %v10269
  %v10272 = vmul.f32 %v10262, %v10270
  %10273 = vrot.lane.b32.xlu0 %v9089, 72
  %v10274 = vpop.permute.xlu0 %10273
  %v10277 = vsel %vm210, %v10271, 0
  %10279 = vmatprep.subr.mxu0 0.0
  %10280 = vmatpush1.msra.mxu0 %v10274
  %10281 = vmatprep.subr.mxu0 0.0
  %10282 = vmatpush1.msra.mxu0 0.0
  %10283 = vmatprep.subr.mxu0 0.0
  %10284 = vmatpush1.msra.mxu0 0.0
  %10285 = vmatprep.subr.mxu0 0.0
  %10286 = vmatpush1.msra.mxu0 0.0
  %10287 = vmatprep.subr.mxu0 0.0
  %10288 = vmatpush1.msra.mxu0 0.0
  %10289 = vmatprep.subr.mxu0 0.0
  %10290 = vmatpush1.msra.mxu0 0.0
  %10291 = vmatprep.subr.mxu0 0.0
  %10292 = vmatpush1.msra.mxu0 0.0
  %10293 = vmatprep.subr.mxu0 0.0
  %10294 = vmatpush1.msra.mxu0 0.0
  %10295 = vmatprep.subr.mxu0 0.0
  %10296 = vmatpush1.msra.mxu0 0.0
  %10297 = vmatprep.subr.mxu0 0.0
  %10298 = vmatpush1.msra.mxu0 0.0
  %10299 = vmatprep.subr.mxu0 0.0
  %10300 = vmatpush1.msra.mxu0 0.0
  %10301 = vmatprep.subr.mxu0 0.0
  %10302 = vmatpush1.msra.mxu0 0.0
  %10303 = vmatprep.subr.mxu0 0.0
  %10304 = vmatpush1.msra.mxu0 0.0
  %10305 = vmatprep.subr.mxu0 0.0
  %10306 = vmatpush1.msra.mxu0 0.0
  %10307 = vmatprep.subr.mxu0 0.0
  %10308 = vmatpush1.msra.mxu0 0.0
  %10309 = vmatprep.subr.mxu0 0.0
  %10310 = vmatpush1.msra.mxu0 0.0
  %10311 = vmatprep.subr.mxu0 0.0
  %10312 = vmatpush1.msra.mxu0 0.0
  %10313 = vmatprep.subr.mxu0 0.0
  %10314 = vmatpush1.msra.mxu0 0.0
  %10315 = vmatprep.subr.mxu0 0.0
  %10316 = vmatpush1.msra.mxu0 0.0
  %10317 = vmatprep.subr.mxu0 0.0
  %10318 = vmatpush1.msra.mxu0 0.0
  %10319 = vmatprep.subr.mxu0 0.0
  %10320 = vmatpush1.msra.mxu0 0.0
  %10321 = vmatprep.subr.mxu0 0.0
  %10322 = vmatpush1.msra.mxu0 0.0
  %10323 = vmatprep.subr.mxu0 0.0
  %10324 = vmatpush1.msra.mxu0 0.0
  %10325 = vmatprep.subr.mxu0 0.0
  %10326 = vmatpush1.msra.mxu0 0.0
  %10327 = vmatprep.subr.mxu0 0.0
  %10328 = vmatpush1.msra.mxu0 0.0
  %10329 = vmatprep.subr.mxu0 0.0
  %10330 = vmatpush1.msra.mxu0 0.0
  %10331 = vmatprep.subr.mxu0 0.0
  %10332 = vmatpush1.msra.mxu0 0.0
  %10333 = vmatprep.subr.mxu0 0.0
  %10334 = vmatpush1.msra.mxu0 0.0
  %10335 = vmatprep.subr.mxu0 0.0
  %10336 = vmatpush1.msra.mxu0 0.0
  %10337 = vmatprep.subr.mxu0 0.0
  %10338 = vmatpush1.msra.mxu0 0.0
  %10339 = vmatprep.subr.mxu0 0.0
  %10340 = vmatpush1.msra.mxu0 0.0
  %10341 = vmatprep.subr.mxu0 0.0
  %10342 = vmatpush1.msra.mxu0 0.0
  %10343 = vmatprep.mubr.f32.mxu0 0.0
  %10344 = vmatmul.mubr.f32.gmra.mrb[0].mxu0 %v10277
  %v10345 = vpop.f32.mrb[0].mxu0
  %v10346 = vadd.f32 0.0, %v10345
  %v10347 = vpop.f32.mrb[0].mxu0
  %10348 = vdwg.mxu0
  %10349 = vrot.lane.b32.xlu0 %v9090, 72
  %v10350 = vpop.permute.xlu0 %10349
  %v10353 = vsel %vm210, %v10272, 0
  %10355 = vmatprep.subr.mxu0 0.0
  %10356 = vmatpush1.msra.mxu0 %v10350
  %10357 = vmatprep.subr.mxu0 0.0
  %10358 = vmatpush1.msra.mxu0 0.0
  %10359 = vmatprep.subr.mxu0 0.0
  %10360 = vmatpush1.msra.mxu0 0.0
  %10361 = vmatprep.subr.mxu0 0.0
  %10362 = vmatpush1.msra.mxu0 0.0
  %10363 = vmatprep.subr.mxu0 0.0
  %10364 = vmatpush1.msra.mxu0 0.0
  %10365 = vmatprep.subr.mxu0 0.0
  %10366 = vmatpush1.msra.mxu0 0.0
  %10367 = vmatprep.subr.mxu0 0.0
  %10368 = vmatpush1.msra.mxu0 0.0
  %10369 = vmatprep.subr.mxu0 0.0
  %10370 = vmatpush1.msra.mxu0 0.0
  %10371 = vmatprep.subr.mxu0 0.0
  %10372 = vmatpush1.msra.mxu0 0.0
  %10373 = vmatprep.subr.mxu0 0.0
  %10374 = vmatpush1.msra.mxu0 0.0
  %10375 = vmatprep.subr.mxu0 0.0
  %10376 = vmatpush1.msra.mxu0 0.0
  %10377 = vmatprep.subr.mxu0 0.0
  %10378 = vmatpush1.msra.mxu0 0.0
  %10379 = vmatprep.subr.mxu0 0.0
  %10380 = vmatpush1.msra.mxu0 0.0
  %10381 = vmatprep.subr.mxu0 0.0
  %10382 = vmatpush1.msra.mxu0 0.0
  %10383 = vmatprep.subr.mxu0 0.0
  %10384 = vmatpush1.msra.mxu0 0.0
  %10385 = vmatprep.subr.mxu0 0.0
  %10386 = vmatpush1.msra.mxu0 0.0
  %10387 = vmatprep.subr.mxu0 0.0
  %10388 = vmatpush1.msra.mxu0 0.0
  %10389 = vmatprep.subr.mxu0 0.0
  %10390 = vmatpush1.msra.mxu0 0.0
  %10391 = vmatprep.subr.mxu0 0.0
  %10392 = vmatpush1.msra.mxu0 0.0
  %10393 = vmatprep.subr.mxu0 0.0
  %10394 = vmatpush1.msra.mxu0 0.0
  %10395 = vmatprep.subr.mxu0 0.0
  %10396 = vmatpush1.msra.mxu0 0.0
  %10397 = vmatprep.subr.mxu0 0.0
  %10398 = vmatpush1.msra.mxu0 0.0
  %10399 = vmatprep.subr.mxu0 0.0
  %10400 = vmatpush1.msra.mxu0 0.0
  %10401 = vmatprep.subr.mxu0 0.0
  %10402 = vmatpush1.msra.mxu0 0.0
  %10403 = vmatprep.subr.mxu0 0.0
  %10404 = vmatpush1.msra.mxu0 0.0
  %10405 = vmatprep.subr.mxu0 0.0
  %10406 = vmatpush1.msra.mxu0 0.0
  %10407 = vmatprep.subr.mxu0 0.0
  %10408 = vmatpush1.msra.mxu0 0.0
  %10409 = vmatprep.subr.mxu0 0.0
  %10410 = vmatpush1.msra.mxu0 0.0
  %10411 = vmatprep.subr.mxu0 0.0
  %10412 = vmatpush1.msra.mxu0 0.0
  %10413 = vmatprep.subr.mxu0 0.0
  %10414 = vmatpush1.msra.mxu0 0.0
  %10415 = vmatprep.subr.mxu0 0.0
  %10416 = vmatpush1.msra.mxu0 0.0
  %10417 = vmatprep.subr.mxu0 0.0
  %10418 = vmatpush1.msra.mxu0 0.0
  %10419 = vmatprep.mubr.f32.mxu0 0.0
  %10420 = vmatmul.mubr.f32.gmra.mrb[0].mxu0 %v10353
  %v10421 = vpop.f32.mrb[0].mxu0
  %v10422 = vadd.f32 0.0, %v10421
  %v10423 = vpop.f32.mrb[0].mxu0
  %10424 = vdwg.mxu0
  %10427 = vrot.lane.b32.xlu0 %v9678, 8
  %v10428 = vpop.permute.xlu0 %10427
  %10429 = vrot.lane.b32.xlu0 %v9754, 8
  %v10430 = vpop.permute.xlu0 %10429
  %10435 = vrot.lane.b32.xlu0 %v10012, 16
  %v10436 = vpop.permute.xlu0 %10435
  %10437 = vrot.lane.b32.xlu0 %v10088, 16
  %v10438 = vpop.permute.xlu0 %10437
  %10443 = vrot.lane.b32.xlu0 %v10346, 24
  %v10444 = vpop.permute.xlu0 %10443
  %10445 = vrot.lane.b32.xlu0 %v10422, 24
  %v10446 = vpop.permute.xlu0 %10445
  %v10449 = vsel %vm210, %v9343, %v10428
  %v10450 = vsel %vm210, %v9420, %v10430
  %v10451 = vsel %vm1572, %v10449, %v10436
  %v10452 = vsel %vm1572, %v10450, %v10438
  %v10453 = vsel %vm1575, %v10451, %v10444
  %v10454 = vsel %vm1575, %v10452, %v10446
  %v10455 = vlaneseq
  %v10456 = vshrl.u32 %v10455, 7
  %v10457 = vsub.s32 0, %v10456
  %v10458 = vrot.slane %v7264, %v10457
  %v10460 = vsel %vm60, %v10453, 0
  %v10463 = vsel %vm60, %v10454, 0
  %10465 = vmatprep.subr.mxu0 0.0
  %10466 = vmatpush1.msra.mxu0 %v7283
  %10467 = vmatprep.subr.mxu0 0.0
  %10468 = vmatpush1.msra.mxu0 %v7284
  %10469 = vmatprep.subr.mxu0 0.0
  %10470 = vmatpush1.msra.mxu0 %v7285
  %10471 = vmatprep.subr.mxu0 0.0
  %10472 = vmatpush1.msra.mxu0 %v7286
  %10473 = vmatprep.subr.mxu0 0.0
  %10474 = vmatpush1.msra.mxu0 0.0
  %10475 = vmatprep.subr.mxu0 0.0
  %10476 = vmatpush1.msra.mxu0 0.0
  %10477 = vmatprep.subr.mxu0 0.0
  %10478 = vmatpush1.msra.mxu0 0.0
  %10479 = vmatprep.subr.mxu0 0.0
  %10480 = vmatpush1.msra.mxu0 0.0
  %10481 = vmatprep.subr.mxu0 0.0
  %10482 = vmatpush1.msra.mxu0 0.0
  %10483 = vmatprep.subr.mxu0 0.0
  %10484 = vmatpush1.msra.mxu0 0.0
  %10485 = vmatprep.subr.mxu0 0.0
  %10486 = vmatpush1.msra.mxu0 0.0
  %10487 = vmatprep.subr.mxu0 0.0
  %10488 = vmatpush1.msra.mxu0 0.0
  %10489 = vmatprep.subr.mxu0 0.0
  %10490 = vmatpush1.msra.mxu0 0.0
  %10491 = vmatprep.subr.mxu0 0.0
  %10492 = vmatpush1.msra.mxu0 0.0
  %10493 = vmatprep.subr.mxu0 0.0
  %10494 = vmatpush1.msra.mxu0 0.0
  %10495 = vmatprep.subr.mxu0 0.0
  %10496 = vmatpush1.msra.mxu0 0.0
  %10497 = vmatprep.subr.mxu0 0.0
  %10498 = vmatpush1.msra.mxu0 0.0
  %10499 = vmatprep.subr.mxu0 0.0
  %10500 = vmatpush1.msra.mxu0 0.0
  %10501 = vmatprep.subr.mxu0 0.0
  %10502 = vmatpush1.msra.mxu0 0.0
  %10503 = vmatprep.subr.mxu0 0.0
  %10504 = vmatpush1.msra.mxu0 0.0
  %10505 = vmatprep.subr.mxu0 0.0
  %10506 = vmatpush1.msra.mxu0 0.0
  %10507 = vmatprep.subr.mxu0 0.0
  %10508 = vmatpush1.msra.mxu0 0.0
  %10509 = vmatprep.subr.mxu0 0.0
  %10510 = vmatpush1.msra.mxu0 0.0
  %10511 = vmatprep.subr.mxu0 0.0
  %10512 = vmatpush1.msra.mxu0 0.0
  %10513 = vmatprep.subr.mxu0 0.0
  %10514 = vmatpush1.msra.mxu0 0.0
  %10515 = vmatprep.subr.mxu0 0.0
  %10516 = vmatpush1.msra.mxu0 0.0
  %10517 = vmatprep.subr.mxu0 0.0
  %10518 = vmatpush1.msra.mxu0 0.0
  %10519 = vmatprep.subr.mxu0 0.0
  %10520 = vmatpush1.msra.mxu0 0.0
  %10521 = vmatprep.subr.mxu0 0.0
  %10522 = vmatpush1.msra.mxu0 0.0
  %10523 = vmatprep.subr.mxu0 0.0
  %10524 = vmatpush1.msra.mxu0 0.0
  %10525 = vmatprep.subr.mxu0 0.0
  %10526 = vmatpush1.msra.mxu0 0.0
  %10527 = vmatprep.subr.mxu0 0.0
  %10528 = vmatpush1.msra.mxu0 0.0
  %10529 = vmatprep.mubr.f32.mxu0 0.0
  %10530 = vmatmul.mubr.f32.gmra.mrb[0].mxu0 %v10460
  %v10531 = vpop.f32.mrb[0].mxu0
  %v10532 = vadd.f32 %v10458, %v10531
  %v10533 = vpop.f32.mrb[0].mxu0
  %10534 = vmatprep.mubr.f32.mxu0 0.0
  %10535 = vmatmul.mubr.f32.gmra.mrb[0].mxu0 %v10463
  %v10536 = vpop.f32.mrb[0].mxu0
  %v10537 = vadd.f32 %v10458, %v10536
  %v10538 = vpop.f32.mrb[0].mxu0
  %10539 = vdwg.mxu0
  %v10540 = vadd.f32 %v8895, %v10532
  %v10541 = vadd.f32 %v8896, %v10537
  %v10542 = vsel %vm60, %v10540, 0.0
  %10543 = vadd.xlane.f32.xlu0 %v10542
  %v10544 = vpop.xlane.xlu0 %10543
  %v10545 = vsel %vm60, %v10541, 0.0
  %10546 = vadd.xlane.f32.xlu0 %v10545
  %v10547 = vpop.xlane.xlu0 %10546
  %v10548 = vmul.f32 %v10544, %v67
  %v10549 = vmul.f32 %v10547, %v67
  %v10550 = vsub.f32 %v10540, %v10548
  %v10551 = vsub.f32 %v10541, %v10549
  %v10552 = vmul.f32 %v10550, %v10550
  %v10553 = vmul.f32 %v10551, %v10551
  %v10554 = vsel %vm60, %v10552, 0.0
  %10555 = vadd.xlane.f32.xlu0 %v10554
  %v10556 = vpop.xlane.xlu0 %10555
  %v10557 = vsel %vm60, %v10553, 0.0
  %10558 = vadd.xlane.f32.xlu0 %v10557
  %v10559 = vpop.xlane.xlu0 %10558
  %v10560 = vmul.f32 %v10556, %v67
  %v10561 = vmul.f32 %v10559, %v67
  %v10562 = vadd.f32 %v10560, 1e-05
  %v10563 = vadd.f32 %v10561, 1e-05
  %v10564 = vrsqrt.pop %v10562
  %v10565 = vrsqrt.pop %v10563
  %v10566 = vmul.f32 %v10550, %v10564
  %v10567 = vmul.f32 %v10551, %v10565
  %v10568 = vlaneseq
  %v10569 = vshrl.u32 %v10568, 7
  %v10570 = vsub.s32 0, %v10569
  %v10571 = vrot.slane %v7255, %v10570
  %v10572 = vmul.f32 %v10566, %v10571
  %v10573 = vmul.f32 %v10567, %v10571
  %v10574 = vlaneseq
  %v10575 = vshrl.u32 %v10574, 7
  %v10576 = vsub.s32 0, %v10575
  %v10577 = vrot.slane %v7256, %v10576
  %v10578 = vadd.f32 %v10572, %v10577
  %v10579 = vadd.f32 %v10573, %v10577
  %v10580 = vlaneseq
  %v10581 = vshrl.u32 %v10580, 7
  %v10582 = vsub.s32 0, %v10581
  %v10583 = vrot.slane %v7265, %v10582
  %v10585 = vsel %vm60, %v10578, 0
  %v10588 = vsel %vm60, %v10579, 0
  %10590 = vmatprep.subr.mxu0 0.0
  %10591 = vmatpush1.msra.mxu0 %v7287
  %10592 = vmatprep.subr.mxu0 0.0
  %10593 = vmatpush1.msra.mxu0 %v7288
  %10594 = vmatprep.subr.mxu0 0.0
  %10595 = vmatpush1.msra.mxu0 %v7289
  %10596 = vmatprep.subr.mxu0 0.0
  %10597 = vmatpush1.msra.mxu0 %v7290
  %10598 = vmatprep.subr.mxu0 0.0
  %10599 = vmatpush1.msra.mxu0 0.0
  %10600 = vmatprep.subr.mxu0 0.0
  %10601 = vmatpush1.msra.mxu0 0.0
  %10602 = vmatprep.subr.mxu0 0.0
  %10603 = vmatpush1.msra.mxu0 0.0
  %10604 = vmatprep.subr.mxu0 0.0
  %10605 = vmatpush1.msra.mxu0 0.0
  %10606 = vmatprep.subr.mxu0 0.0
  %10607 = vmatpush1.msra.mxu0 0.0
  %10608 = vmatprep.subr.mxu0 0.0
  %10609 = vmatpush1.msra.mxu0 0.0
  %10610 = vmatprep.subr.mxu0 0.0
  %10611 = vmatpush1.msra.mxu0 0.0
  %10612 = vmatprep.subr.mxu0 0.0
  %10613 = vmatpush1.msra.mxu0 0.0
  %10614 = vmatprep.subr.mxu0 0.0
  %10615 = vmatpush1.msra.mxu0 0.0
  %10616 = vmatprep.subr.mxu0 0.0
  %10617 = vmatpush1.msra.mxu0 0.0
  %10618 = vmatprep.subr.mxu0 0.0
  %10619 = vmatpush1.msra.mxu0 0.0
  %10620 = vmatprep.subr.mxu0 0.0
  %10621 = vmatpush1.msra.mxu0 0.0
  %10622 = vmatprep.subr.mxu0 0.0
  %10623 = vmatpush1.msra.mxu0 0.0
  %10624 = vmatprep.subr.mxu0 0.0
  %10625 = vmatpush1.msra.mxu0 0.0
  %10626 = vmatprep.subr.mxu0 0.0
  %10627 = vmatpush1.msra.mxu0 0.0
  %10628 = vmatprep.subr.mxu0 0.0
  %10629 = vmatpush1.msra.mxu0 0.0
  %10630 = vmatprep.subr.mxu0 0.0
  %10631 = vmatpush1.msra.mxu0 0.0
  %10632 = vmatprep.subr.mxu0 0.0
  %10633 = vmatpush1.msra.mxu0 0.0
  %10634 = vmatprep.subr.mxu0 0.0
  %10635 = vmatpush1.msra.mxu0 0.0
  %10636 = vmatprep.subr.mxu0 0.0
  %10637 = vmatpush1.msra.mxu0 0.0
  %10638 = vmatprep.subr.mxu0 0.0
  %10639 = vmatpush1.msra.mxu0 0.0
  %10640 = vmatprep.subr.mxu0 0.0
  %10641 = vmatpush1.msra.mxu0 0.0
  %10642 = vmatprep.subr.mxu0 0.0
  %10643 = vmatpush1.msra.mxu0 0.0
  %10644 = vmatprep.subr.mxu0 0.0
  %10645 = vmatpush1.msra.mxu0 0.0
  %10646 = vmatprep.subr.mxu0 0.0
  %10647 = vmatpush1.msra.mxu0 0.0
  %10648 = vmatprep.subr.mxu0 0.0
  %10649 = vmatpush1.msra.mxu0 0.0
  %10650 = vmatprep.subr.mxu0 0.0
  %10651 = vmatpush1.msra.mxu0 0.0
  %10652 = vmatprep.subr.mxu0 0.0
  %10653 = vmatpush1.msra.mxu0 0.0
  %10654 = vmatprep.mubr.f32.mxu0 0.0
  %10655 = vmatmul.mubr.f32.gmra.mrb[0].mxu0 %v10585
  %v10656 = vpop.f32.mrb[0].mxu0
  %v10657 = vadd.f32 %v10583, %v10656
  %v10658 = vpop.f32.mrb[0].mxu0
  %10659 = vmatprep.mubr.f32.mxu0 0.0
  %10660 = vmatmul.mubr.f32.gmra.mrb[0].mxu0 %v10588
  %v10661 = vpop.f32.mrb[0].mxu0
  %v10662 = vadd.f32 %v10583, %v10661
  %v10663 = vpop.f32.mrb[0].mxu0
  %10664 = vdwg.mxu0
  %v10665 = vmax.f32 %v10657, 0.0
  %v10666 = vmax.f32 %v10662, 0.0
  %v10667 = vlaneseq
  %v10668 = vshrl.u32 %v10667, 7
  %v10669 = vsub.s32 0, %v10668
  %v10670 = vrot.slane %v7266, %v10669
  %v10672 = vsel %vm60, %v10665, 0
  %v10675 = vsel %vm60, %v10666, 0
  %10677 = vmatprep.subr.mxu0 0.0
  %10678 = vmatpush1.msra.mxu0 %v7291
  %10679 = vmatprep.subr.mxu0 0.0
  %10680 = vmatpush1.msra.mxu0 %v7292
  %10681 = vmatprep.subr.mxu0 0.0
  %10682 = vmatpush1.msra.mxu0 %v7293
  %10683 = vmatprep.subr.mxu0 0.0
  %10684 = vmatpush1.msra.mxu0 %v7294
  %10685 = vmatprep.subr.mxu0 0.0
  %10686 = vmatpush1.msra.mxu0 0.0
  %10687 = vmatprep.subr.mxu0 0.0
  %10688 = vmatpush1.msra.mxu0 0.0
  %10689 = vmatprep.subr.mxu0 0.0
  %10690 = vmatpush1.msra.mxu0 0.0
  %10691 = vmatprep.subr.mxu0 0.0
  %10692 = vmatpush1.msra.mxu0 0.0
  %10693 = vmatprep.subr.mxu0 0.0
  %10694 = vmatpush1.msra.mxu0 0.0
  %10695 = vmatprep.subr.mxu0 0.0
  %10696 = vmatpush1.msra.mxu0 0.0
  %10697 = vmatprep.subr.mxu0 0.0
  %10698 = vmatpush1.msra.mxu0 0.0
  %10699 = vmatprep.subr.mxu0 0.0
  %10700 = vmatpush1.msra.mxu0 0.0
  %10701 = vmatprep.subr.mxu0 0.0
  %10702 = vmatpush1.msra.mxu0 0.0
  %10703 = vmatprep.subr.mxu0 0.0
  %10704 = vmatpush1.msra.mxu0 0.0
  %10705 = vmatprep.subr.mxu0 0.0
  %10706 = vmatpush1.msra.mxu0 0.0
  %10707 = vmatprep.subr.mxu0 0.0
  %10708 = vmatpush1.msra.mxu0 0.0
  %10709 = vmatprep.subr.mxu0 0.0
  %10710 = vmatpush1.msra.mxu0 0.0
  %10711 = vmatprep.subr.mxu0 0.0
  %10712 = vmatpush1.msra.mxu0 0.0
  %10713 = vmatprep.subr.mxu0 0.0
  %10714 = vmatpush1.msra.mxu0 0.0
  %10715 = vmatprep.subr.mxu0 0.0
  %10716 = vmatpush1.msra.mxu0 0.0
  %10717 = vmatprep.subr.mxu0 0.0
  %10718 = vmatpush1.msra.mxu0 0.0
  %10719 = vmatprep.subr.mxu0 0.0
  %10720 = vmatpush1.msra.mxu0 0.0
  %10721 = vmatprep.subr.mxu0 0.0
  %10722 = vmatpush1.msra.mxu0 0.0
  %10723 = vmatprep.subr.mxu0 0.0
  %10724 = vmatpush1.msra.mxu0 0.0
  %10725 = vmatprep.subr.mxu0 0.0
  %10726 = vmatpush1.msra.mxu0 0.0
  %10727 = vmatprep.subr.mxu0 0.0
  %10728 = vmatpush1.msra.mxu0 0.0
  %10729 = vmatprep.subr.mxu0 0.0
  %10730 = vmatpush1.msra.mxu0 0.0
  %10731 = vmatprep.subr.mxu0 0.0
  %10732 = vmatpush1.msra.mxu0 0.0
  %10733 = vmatprep.subr.mxu0 0.0
  %10734 = vmatpush1.msra.mxu0 0.0
  %10735 = vmatprep.subr.mxu0 0.0
  %10736 = vmatpush1.msra.mxu0 0.0
  %10737 = vmatprep.subr.mxu0 0.0
  %10738 = vmatpush1.msra.mxu0 0.0
  %10739 = vmatprep.subr.mxu0 0.0
  %10740 = vmatpush1.msra.mxu0 0.0
  %10741 = vmatprep.mubr.f32.mxu0 0.0
  %10742 = vmatmul.mubr.f32.gmra.mrb[0].mxu0 %v10672
  %v10743 = vpop.f32.mrb[0].mxu0
  %v10744 = vadd.f32 %v10670, %v10743
  %v10745 = vpop.f32.mrb[0].mxu0
  %10746 = vmatprep.mubr.f32.mxu0 0.0
  %10747 = vmatmul.mubr.f32.gmra.mrb[0].mxu0 %v10675
  %v10748 = vpop.f32.mrb[0].mxu0
  %v10749 = vadd.f32 %v10670, %v10748
  %v10750 = vpop.f32.mrb[0].mxu0
  %10751 = vdwg.mxu0
  %v10752 = vadd.f32 %v10578, %v10744
  %v10753 = vadd.f32 %v10579, %v10749
  %v10754 = vld [vmem:[%s5 + $0x30] sm:$0x1]
  %v10755 = vld [vmem:[%s5 + $0x31] sm:$0x1]
  %v10756 = vlaneseq
  %v10757 = vshrl.u32 %v10756, 7
  %v10758 = vsub.s32 0, %v10757
  %v10759 = vrot.slane %v10754, %v10758
  %v10760 = vmul.f32 %v10752, %v10759
  %v10761 = vmul.f32 %v10753, %v10759
  %v10762 = vsel %vm60, %v10760, 0.0
  %10763 = vadd.xlane.f32.xlu0 %v10762
  %v10764 = vpop.xlane.xlu0 %10763
  %v10765 = vsel %vm60, %v10761, 0.0
  %10766 = vadd.xlane.f32.xlu0 %v10765
  %v10767 = vpop.xlane.xlu0 %10766
  %v10768 = vlaneseq
  %v10769 = vshrl.u32 %v10768, 7
  %v10770 = vsub.s32 0, %v10769
  %v10771 = vrot.slane %v10755, %v10770
  %v10772 = vadd.f32 %v10764, %v10771
  %v10773 = vadd.f32 %v10767, %v10771
  %vm10774 = vcmask 7168
  %10775 = vst.msk [vmem:[%s6] sm:$0xff] %vm10774, %v10772
  %10776 = vst.msk [vmem:[%s6 + $0x8] sm:$0xff] %vm10774, %v10773
  // Predicated region
  $region26: #{saint_forward.1} parent=0 // pred_check
    _
  $region27: #{saint_forward.1} parent=0 // pred_check_branch
    %10778 = sbr.rel (0) target = $region29
  $region28: #{saint_forward.1} parent=0 // pred_region
    _
  $region29: #{saint_forward.1} parent=0 // pred_fallthru
    _
  // Predicated region
  $region30: #{saint_forward.1} parent=0 // pred_check
    _
  $region31: #{saint_forward.1} parent=0 // pred_check_branch
    %10780 = sbr.rel (0) target = $region33
  $region32: #{saint_forward.1} parent=0 // pred_region
    _
  $region33: #{saint_forward.1} parent=0 // pred_fallthru
    _

</llo_original>
